<compile_context>
chip_gen: v7x
topology: tpu7x:2x2x1
jax: 0.10.0
libtpu: 0.0.40
codegen_flags: <defaults>
</compile_context>

<pallas_src>
import functools

import jax
import jax.numpy as jnp
from jax.experimental import pallas as pl
from jax.experimental.pallas import tpu as pltpu

# ----------------------------- config (small) -------------------------------
N_MELS = 8
T_MEL = 8
BATCH = 2

UP_INIT_CH = 16
UP_RATES = [2, 2]
UP_KERNELS = [4, 4]
RES_KERNELS = [3]
RES_DILATIONS = [[1, 3]]
LRELU_SLOPE = 0.1

PERIODS = [2, 3]
MPD_CONVS = [  # (out_ch, kernel_h, stride_h, pad_h)
    (4, 5, 3, 2),
    (8, 5, 3, 2),
    (8, 5, 1, 2),
]

MSD_SCALES = 3
MSD_CONVS = [  # (out_ch, kernel, stride, pad)
    (4, 15, 1, 7),
    (8, 9, 2, 4),
    (8, 5, 1, 2),
]

TL_MAX = 512                 # time (lane) tile once L_out exceeds it (mult of 128)
ACT_DTYPE = jnp.bfloat16     # activation / weight dtype fed to the MXU
VMEM_LIMIT = 32 * 1024 * 1024


# ----------------------------- Pallas kernels --------------------------------
def _conv_kernel(x_ref, w_ref, b_ref, o_ref, *, K, dilation, TL, n_l_tiles,
                 pre_act, act):
    """Fused stride-1 dilated conv + bias + (pre/post) activation.

    x_ref : (Cin, n_l_tiles*TL + dilation*(K-1))  bf16   (padded input, resident)
    w_ref : (Cout, K*Cin)                         bf16   (taps folded into contraction)
    b_ref : (Cout, 1)                             f32
    o_ref : (Cout, TL)
    """
    rf = dilation * (K - 1)
    if n_l_tiles == 1:
        window = x_ref[...]                                  # (Cin, TL + rf)
    else:
        t0 = pl.multiple_of(pl.program_id(1) * TL, 128)      # TL % 128 == 0 asserted
        window = x_ref[:, pl.ds(t0, TL + rf)]

    if pre_act == "leaky":
        window = jnp.maximum(window, LRELU_SLOPE * window)

    # Stack the K shifted tap slices on sublanes -> one MXU contraction.
    if K == 1:
        stacked = window[:, :TL]
    else:
        stacked = jnp.concatenate(
            [window[:, k * dilation: k * dilation + TL] for k in range(K)], axis=0)

    y = jnp.dot(w_ref[...], stacked, preferred_element_type=jnp.float32)
    y = y + b_ref[...]                                       # f32 epilogue
    if act == "leaky":
        y = jnp.maximum(y, LRELU_SLOPE * y)
    elif act == "tanh":
        y = jnp.tanh(y)
    o_ref[...] = y.astype(o_ref.dtype)


def _resblock_kernel(x_ref, w_ref, b_ref, o_ref, *, K, dils, pads, L):
    """Whole ResBlock chain fused:  for each conv_i:  x <- conv_i(leaky(x)) + x.

    x_ref : (C, L + 2*sum(pads))  bf16   (zero-padded input, resident)
    w_ref : (n_convs, C, K*C)     bf16
    b_ref : (n_convs, C, 1)       f32
    o_ref : (C, L)
    Residuals come from the un-activated resident buffer; halo positions of the
    intermediate are masked to zero so the next conv sees proper zero padding.
    """
    c = o_ref.shape[0]
    buf = x_ref[...].astype(jnp.float32)          # (C, L + 2*halo)
    halo = sum(pads)
    for i, (d, p) in enumerate(zip(dils, pads)):
        new_halo = halo - p
        out_len = L + 2 * new_halo
        lx = jnp.maximum(buf, LRELU_SLOPE * buf).astype(ACT_DTYPE)
        if K == 1:
            stacked = lx[:, :out_len]
        else:
            stacked = jnp.concatenate(
                [lx[:, k * d: k * d + out_len] for k in range(K)], axis=0)
        y = jnp.dot(w_ref[i], stacked, preferred_element_type=jnp.float32)
        y = y + b_ref[i] + buf[:, p: p + out_len]            # residual = un-activated x
        if new_halo > 0:                                     # zero the halo (= zero pad)
            idx = jax.lax.broadcasted_iota(jnp.int32, (c, out_len), 1)
            y = jnp.where((idx >= new_halo) & (idx < new_halo + L), y, 0.0)
        buf = y
        halo = new_halo
    o_ref[...] = buf.astype(o_ref.dtype)


# --------------------------- conv layer wrappers -----------------------------
def _conv1d_s1(x, w, b, *, dilation=1, padding=0, pre_act="none", act="none",
               out_dtype=ACT_DTYPE):
    """Stride-1 dilated Conv1d. x:(N,Cin,L) w:(Cout,Cin,K) b:(Cout,) ->
    (N, Cout, L + 2*padding - dilation*(K-1)), time on the lane axis."""
    n, cin, L = x.shape
    cout, _, K = w.shape
    rf = dilation * (K - 1)
    lout = L + 2 * padding - rf
    assert lout > 0

    if lout <= TL_MAX:
        tl, n_l, lout_p = lout, 1, lout
    else:
        tl = TL_MAX
        assert tl % 128 == 0              # keeps the multiple_of hint valid
        n_l = pl.cdiv(lout, tl)
        lout_p = n_l * tl
    lin_p = lout_p + rf

    # TODO(synk): at production sizes write consumer-padded producer outputs
    # instead of this wrapper-side pad (extra activation HBM pass).
    xp = jnp.pad(x.astype(ACT_DTYPE),
                 ((0, 0), (0, 0), (padding, lin_p - padding - L)))
    # w2d[co, k*Cin + ci] = w[co, ci, k]  (matches in-kernel tap stacking order)
    w2d = jnp.transpose(w, (0, 2, 1)).reshape(cout, K * cin).astype(ACT_DTYPE)
    b2 = b.reshape(cout, 1).astype(jnp.float32)

    out = pl.pallas_call(
        functools.partial(_conv_kernel, K=K, dilation=dilation, TL=tl,
                          n_l_tiles=n_l, pre_act=pre_act, act=act),
        out_shape=jax.ShapeDtypeStruct((n, cout, lout_p), out_dtype),
        grid=(n, n_l),
        in_specs=[
            pl.BlockSpec((None, cin, lin_p), lambda i, j: (i, 0, 0)),
            pl.BlockSpec((cout, K * cin), lambda i, j: (0, 0)),
            pl.BlockSpec((cout, 1), lambda i, j: (0, 0)),
        ],
        out_specs=pl.BlockSpec((None, cout, tl), lambda i, j: (i, 0, j)),
        compiler_params=pltpu.CompilerParams(
            dimension_semantics=("parallel", "parallel"),
            vmem_limit_bytes=VMEM_LIMIT,
        ),
    )(xp, w2d, b2)
    if lout_p != lout:
        out = out[..., :lout]
    return out


def conv1d(x, w, b, *, stride=1, padding=0, dilation=1, pre_act="none",
           act="none", out_dtype=ACT_DTYPE):
    """General Conv1d.  stride>1 is rewritten as a stride-1 conv on the
    phase-decomposed input (Cin*stride channels, ceil(K/stride) taps) —
    no K-fold im2col expansion in HBM and no wasted strided compute."""
    if stride == 1:
        return _conv1d_s1(x, w, b, dilation=dilation, padding=padding,
                          pre_act=pre_act, act=act, out_dtype=out_dtype)
    assert dilation == 1
    n, cin, L = x.shape
    cout, _, K = w.shape
    s = stride
    lp = L + 2 * padding
    lout = (lp - K) // s + 1
    kq = -(-K // s)
    lp_t = max(lp, (lout + kq - 1) * s)
    lp_t = -(-lp_t // s) * s
    xp = jnp.pad(x, ((0, 0), (0, 0), (padding, lp_t - padding - L)))
    lph = lp_t // s
    # x_phase[(r, cin), u] = x_padded[cin, u*s + r]
    xph = xp.reshape(n, cin, lph, s).transpose(0, 3, 1, 2).reshape(n, s * cin, lph)
    wp = jnp.pad(w, ((0, 0), (0, 0), (0, kq * s - K)))
    # w2[co, (r, cin), q] = w[co, cin, q*s + r]
    w2 = wp.reshape(cout, cin, kq, s).transpose(0, 3, 1, 2).reshape(cout, s * cin, kq)
    y = _conv1d_s1(xph, w2, b, dilation=1, padding=0, pre_act=pre_act, act=act,
                   out_dtype=out_dtype)
    return y[..., :lout]


def conv_transpose1d(x, w, b, *, stride, padding, pre_act="none", act="none",
                     out_dtype=ACT_DTYPE):
    """Polyphase ConvTranspose1d as a SINGLE fused kernel call.
    x:(N,Cin,L); w:(Cin,Cout,K) (PyTorch layout).  All `stride` phase filters are
    stacked into one (s*Cout, Cin, jr_max) weight (zero-padded taps), so x is read
    once and pre-leaky is applied once; phases are interleaved by a cheap reshape."""
    n, cin, L = x.shape
    _, cout, K = w.shape
    s = stride
    lout = (L - 1) * s + K - 2 * padding
    jrs = [(K - 1 - r) // s + 1 for r in range(s)]
    jr_max = max(jrs)
    filters = []
    for r in range(s):
        jr = jrs[r]
        taps = jnp.array([(jr - 1 - i) * s + r for i in range(jr)], jnp.int32)
        h_r = jnp.transpose(w[:, :, taps], (1, 0, 2))        # (Cout, Cin, jr), reversed
        if jr < jr_max:
            h_r = jnp.pad(h_r, ((0, 0), (0, 0), (jr_max - jr, 0)))
        filters.append(h_r)
    w_stack = jnp.concatenate(filters, axis=0)               # (s*Cout, Cin, jr_max)
    b_stack = jnp.tile(b, s)                                  # (s*Cout,)

    y = _conv1d_s1(x, w_stack, b_stack, dilation=1, padding=jr_max - 1,
                   pre_act=pre_act, act=act, out_dtype=out_dtype)
    umax = y.shape[-1]                                        # L + jr_max - 1
    # yfull[n, co, u*s + r] = y[n, r*Cout + co, u]
    yfull = jnp.transpose(y.reshape(n, s, cout, umax), (0, 2, 3, 1))
    yfull = yfull.reshape(n, cout, umax * s)
    return yfull[..., padding:padding + lout]


def resblock_fused(x, convs):
    """Whole ResBlock ( for d in dils: x <- conv_d(leaky(x)) + x ) in one kernel."""
    n, c, L = x.shape
    K = convs[0]["w"].shape[-1]
    dils = [cv["dilation"] for cv in convs]
    pads = [d * (K - 1) // 2 for d in dils]
    total = sum(pads)
    lp = L + 2 * total
    # TODO(synk): single-tile kernel (whole L resident); tile time with halos for
    # production waveform lengths.
    assert lp <= 4096
    xp = jnp.pad(x.astype(ACT_DTYPE), ((0, 0), (0, 0), (total, total)))
    w_all = jnp.stack([jnp.transpose(cv["w"], (0, 2, 1)).reshape(c, K * c)
                       for cv in convs]).astype(ACT_DTYPE)    # (n_convs, C, K*C)
    b_all = jnp.stack([cv["b"].reshape(c, 1) for cv in convs]).astype(jnp.float32)

    nc = len(convs)
    return pl.pallas_call(
        functools.partial(_resblock_kernel, K=K, dils=tuple(dils),
                          pads=tuple(pads), L=L),
        out_shape=jax.ShapeDtypeStruct((n, c, L), ACT_DTYPE),
        grid=(n,),
        in_specs=[
            pl.BlockSpec((None, c, lp), lambda i: (i, 0, 0)),
            pl.BlockSpec((nc, c, K * c), lambda i: (0, 0, 0)),
            pl.BlockSpec((nc, c, 1), lambda i: (0, 0, 0)),
        ],
        out_specs=pl.BlockSpec((None, c, L), lambda i: (i, 0, 0)),
        compiler_params=pltpu.CompilerParams(
            dimension_semantics=("parallel",),
            vmem_limit_bytes=VMEM_LIMIT,
        ),
    )(xp, w_all, b_all)


def conv2d_kx1(x, w, b, *, stride_h, padding_h, act="none"):
    """x:(N,Cin,H,W); w:(Cout,Cin,Kh,1) -> (N,Cout,Hout,W).
    Implemented as a dilation=W conv along the flattened H*W lane axis (keeps the
    period on lanes -> denser stores, fewer grid steps); the H-stride is a cheap
    strided slice of the same-computed result."""
    n, cin, h, wdt = x.shape
    cout, _, kh, _ = w.shape
    xf = x.reshape(n, cin, h * wdt)
    y = _conv1d_s1(xf, w[..., 0], b, dilation=wdt, padding=padding_h * wdt, act=act)
    hc = h + 2 * padding_h - kh + 1
    y = y.reshape(n, cout, hc, wdt)
    if stride_h > 1:
        y = y[:, :, ::stride_h, :]
    return y


def avg_pool1d(x, k=4, s=2, p=2):
    """AvgPool1d(count_include_pad=True) as a strided conv with constant taps."""
    n, c, L = x.shape
    assert c == 1  # MSD only pools the 1-channel waveform
    w = jnp.full((1, 1, k), 1.0 / k, jnp.float32)
    b = jnp.zeros((1,), jnp.float32)
    return conv1d(x, w, b, stride=s, padding=p)


# ----------------------------- parameter init --------------------------------
def _init_conv(key, cout, cin, k, extra_shape=()):
    kw, kb = jax.random.split(key)
    w = jax.random.normal(kw, (cout, cin, k) + extra_shape, jnp.float32) * 0.05
    b = jax.random.normal(kb, (cout,), jnp.float32) * 0.05
    return {"w": w, "b": b}


def init_generator(key):
    keys = iter(jax.random.split(key, 64))
    p = {"conv_pre": _init_conv(next(keys), UP_INIT_CH, N_MELS, 7),
         "ups": [], "resblocks": []}
    ch = UP_INIT_CH
    for r, kz in zip(UP_RATES, UP_KERNELS):
        out_ch = ch // 2
        kw, kb = jax.random.split(next(keys))
        p["ups"].append({
            "w": jax.random.normal(kw, (ch, out_ch, kz), jnp.float32) * 0.05,
            "b": jax.random.normal(kb, (out_ch,), jnp.float32) * 0.05,
            "stride": r, "padding": (kz - r) // 2})
        stage = []
        for kr, dils in zip(RES_KERNELS, RES_DILATIONS):
            rb = []
            for d in dils:
                c = _init_conv(next(keys), out_ch, out_ch, kr)
                c["dilation"] = d
                c["padding"] = d * (kr - 1) // 2
                rb.append(c)
            stage.append(rb)
        p["resblocks"].append(stage)
        ch = out_ch
    p["conv_post"] = _init_conv(next(keys), 1, ch, 7)
    return p


def init_mpd(key):
    discs = []
    for kp in jax.random.split(key, len(PERIODS)):
        keys = jax.random.split(kp, len(MPD_CONVS) + 1)
        convs, cin = [], 1
        for k_, (cout, kh, s, pd) in zip(keys[:-1], MPD_CONVS):
            c = _init_conv(k_, cout, cin, kh, extra_shape=(1,))
            c["stride"], c["pad"] = s, pd
            convs.append(c)
            cin = cout
        post = _init_conv(keys[-1], 1, cin, 3, extra_shape=(1,))
        discs.append({"convs": convs, "post": post})
    return discs


def init_msd(key):
    discs = []
    for kp in jax.random.split(key, MSD_SCALES):
        keys = jax.random.split(kp, len(MSD_CONVS) + 1)
        convs, cin = [], 1
        for k_, (cout, kz, s, pd) in zip(keys[:-1], MSD_CONVS):
            c = _init_conv(k_, cout, cin, kz)
            c["stride"], c["pad"] = s, pd
            convs.append(c)
            cin = cout
        post = _init_conv(keys[-1], 1, cin, 3)
        discs.append({"convs": convs, "post": post})
    return discs


def init_hifigan(key):
    kg, kp, ks = jax.random.split(key, 3)
    return {"generator": init_generator(kg), "mpd": init_mpd(kp), "msd": init_msd(ks)}


# -------------------------------- forward ------------------------------------
def generator_fwd(gp, mel):
    x = conv1d(mel, gp["conv_pre"]["w"], gp["conv_pre"]["b"], padding=3)
    for up, stage in zip(gp["ups"], gp["resblocks"]):
        x = conv_transpose1d(x, up["w"], up["b"], stride=up["stride"],
                             padding=up["padding"], pre_act="leaky")
        xs = None
        for rb in stage:                     # each ResBlock fully fused (1 kernel)
            xr = resblock_fused(x, rb)
            xs = xr if xs is None else xs + xr
        x = xs if len(stage) == 1 else (xs / float(len(stage))).astype(ACT_DTYPE)
    x = conv1d(x, gp["conv_post"]["w"], gp["conv_post"]["b"], padding=3,
               pre_act="leaky", act="tanh", out_dtype=jnp.float32)
    return x  # (N, 1, T) f32


def disc_p_fwd(dp, x, period):
    n, c, t = x.shape
    if t % period != 0:
        n_pad = period - (t % period)
        x = jnp.pad(x, ((0, 0), (0, 0), (0, n_pad)), mode="reflect")
        t = t + n_pad
    x = x.reshape(n, c, t // period, period)
    feats = []
    for cv in dp["convs"]:
        x = conv2d_kx1(x, cv["w"], cv["b"], stride_h=cv["stride"],
                       padding_h=cv["pad"], act="leaky")
        feats.append(x)
    x = conv2d_kx1(x, dp["post"]["w"], dp["post"]["b"], stride_h=1, padding_h=1)
    feats.append(x)
    return x.reshape(n, -1), feats


def disc_s_fwd(dp, x):
    n = x.shape[0]
    feats = []
    for cv in dp["convs"]:
        x = conv1d(x, cv["w"], cv["b"], stride=cv["stride"], padding=cv["pad"],
                   act="leaky")
        feats.append(x)
    x = conv1d(x, dp["post"]["w"], dp["post"]["b"], padding=1)
    feats.append(x)
    return x.reshape(n, -1), feats


def mpd_fwd(mp, wav):
    outs, feats = [], []
    for dp, period in zip(mp, PERIODS):
        o, f = disc_p_fwd(dp, wav, period)
        outs.append(o)
        feats.append(f)
    return outs, feats


def msd_fwd(mp, wav):
    outs, feats = [], []
    x = wav
    for i, dp in enumerate(mp):
        if i > 0:
            x = avg_pool1d(x, k=4, s=2, p=2)
        o, f = disc_s_fwd(dp, x)
        outs.append(o)
        feats.append(f)
    return outs, feats


def hifigan_forward(params, mel):
    waveforms = generator_fwd(params["generator"], mel)
    mpd_out, mpd_feats = mpd_fwd(params["mpd"], waveforms)
    msd_out, msd_feats = msd_fwd(params["msd"], waveforms)
    return waveforms, mpd_out, msd_out, mpd_feats, msd_feats


# ---------------------------------- main --------------------------------------
if __name__ == "__main__":
    key = jax.random.PRNGKey(0)
    pkey, xkey = jax.random.split(key)
    params = init_hifigan(pkey)
    mel = jax.random.normal(xkey, (BATCH, N_MELS, T_MEL), jnp.float32)

    fwd = jax.jit(lambda m: hifigan_forward(params, m))
    outs = fwd(mel)
    jax.block_until_ready(outs)

    waveforms = outs[0]
    assert waveforms.shape == (BATCH, 1, T_MEL * UP_RATES[0] * UP_RATES[1])
    print("KERNEL_OK")
</pallas_src>

<mosaic_0001>
module attributes {stable_mosaic.version = 11 : i64} {
  func.func @_conv_kernel(%arg0: i32, %arg1: i32, %arg2: memref<1x8x14xbf16, #tpu.memory_space<vmem>>, %arg3: memref<16x56xbf16, #tpu.memory_space<vmem>>, %arg4: memref<16x1xf32, #tpu.memory_space<vmem>>, %arg5: memref<1x16x8xbf16, #tpu.memory_space<vmem>>) attributes {dimension_semantics = [#tpu.dimension_semantics<parallel>, #tpu.dimension_semantics<parallel>], iteration_bounds = array<i64: 2, 1>, scalar_prefetch = 0 : i64, scratch_operands = 0 : i64, tpu.core_type = #tpu.core_type<tc>, window_params = [{transform_indices = @transform_0, window_bounds = array<i64: 1, 8, 14>}, {pipeline_mode = #tpu.pipeline_mode<synchronous>, transform_indices = @transform_1, window_bounds = array<i64: 16, 56>}, {pipeline_mode = #tpu.pipeline_mode<synchronous>, transform_indices = @transform_2, window_bounds = array<i64: 16, 1>}, {transform_indices = @transform_3, window_bounds = array<i64: 1, 16, 8>}]} {
    %c0 = arith.constant 0 : index
    %c0_0 = arith.constant 0 : index
    %c0_1 = arith.constant 0 : index
    %0 = vector.load %arg2[%c0, %c0_0, %c0_1] : memref<1x8x14xbf16, #tpu.memory_space<vmem>>, vector<1x8x14xbf16>
    %1 = vector.shape_cast %0 : vector<1x8x14xbf16> to vector<8x14xbf16>
    %2 = vector.extract_strided_slice %1 {offsets = [0, 0], sizes = [8, 8], strides = [1, 1]} : vector<8x14xbf16> to vector<8x8xbf16>
    %3 = vector.extract_strided_slice %1 {offsets = [0, 1], sizes = [8, 8], strides = [1, 1]} : vector<8x14xbf16> to vector<8x8xbf16>
    %4 = vector.extract_strided_slice %1 {offsets = [0, 2], sizes = [8, 8], strides = [1, 1]} : vector<8x14xbf16> to vector<8x8xbf16>
    %5 = vector.extract_strided_slice %1 {offsets = [0, 3], sizes = [8, 8], strides = [1, 1]} : vector<8x14xbf16> to vector<8x8xbf16>
    %6 = vector.extract_strided_slice %1 {offsets = [0, 4], sizes = [8, 8], strides = [1, 1]} : vector<8x14xbf16> to vector<8x8xbf16>
    %7 = vector.extract_strided_slice %1 {offsets = [0, 5], sizes = [8, 8], strides = [1, 1]} : vector<8x14xbf16> to vector<8x8xbf16>
    %8 = vector.extract_strided_slice %1 {offsets = [0, 6], sizes = [8, 8], strides = [1, 1]} : vector<8x14xbf16> to vector<8x8xbf16>
    %9 = tpu.concatenate %2, %3, %4, %5, %6, %7, %8 in 0 : vector<8x8xbf16>, vector<8x8xbf16>, vector<8x8xbf16>, vector<8x8xbf16>, vector<8x8xbf16>, vector<8x8xbf16>, vector<8x8xbf16> -> vector<56x8xbf16>
    %c0_2 = arith.constant 0 : index
    %c0_3 = arith.constant 0 : index
    %10 = vector.load %arg3[%c0_2, %c0_3] : memref<16x56xbf16, #tpu.memory_space<vmem>>, vector<16x56xbf16>
    %cst = arith.constant dense<0.000000e+00> : vector<16x8xf32>
    %11 = tpu.matmul %10, %9, %cst {dimension_numbers = #tpu.dot_dimension_numbers<[1], [0], [0], [1], [0, 0, 1, 1], [], []>} : vector<16x56xbf16>, vector<56x8xbf16>, vector<16x8xf32> -> vector<16x8xf32>
    %c0_4 = arith.constant 0 : index
    %c0_5 = arith.constant 0 : index
    %12 = vector.load %arg4[%c0_4, %c0_5] : memref<16x1xf32, #tpu.memory_space<vmem>>, vector<16x1xf32>
    %13 = vector.broadcast %12 : vector<16x1xf32> to vector<16x8xf32>
    %14 = arith.addf %11, %13 : vector<16x8xf32>
    %15 = arith.truncf %14 : vector<16x8xf32> to vector<16x8xbf16>
    %c0_6 = arith.constant 0 : index
    %c0_7 = arith.constant 0 : index
    %c0_8 = arith.constant 0 : index
    %16 = vector.load %arg5[%c0_6, %c0_7, %c0_8] : memref<1x16x8xbf16, #tpu.memory_space<vmem>>, vector<1x16x8xbf16>
    %17 = vector.shape_cast %16 : vector<1x16x8xbf16> to vector<16x8xbf16>
    %18 = vector.shape_cast %15 : vector<16x8xbf16> to vector<1x16x8xbf16>
    tpu.vector_store %arg5[%c0_6, %c0_7, %c0_8], %18 {strides = array<i32>} : memref<1x16x8xbf16, #tpu.memory_space<vmem>>, vector<1x16x8xbf16>,
    return
  }
  func.func @transform_0(%arg0: i32, %arg1: i32) -> (i32, i32, i32) {
    %c0_i32 = arith.constant 0 : i32
    %c0_i32_0 = arith.constant 0 : i32
    %c0_i32_1 = arith.constant 0 : i32
    return %arg0, %c0_i32, %c0_i32_0 : i32, i32, i32
  }
  func.func @transform_1(%arg0: i32, %arg1: i32) -> (i32, i32) {
    %c0_i32 = arith.constant 0 : i32
    %c0_i32_0 = arith.constant 0 : i32
    %c0_i32_1 = arith.constant 0 : i32
    return %c0_i32, %c0_i32_0 : i32, i32
  }
  func.func @transform_2(%arg0: i32, %arg1: i32) -> (i32, i32) {
    %c0_i32 = arith.constant 0 : i32
    %c0_i32_0 = arith.constant 0 : i32
    %c0_i32_1 = arith.constant 0 : i32
    return %c0_i32, %c0_i32_0 : i32, i32
  }
  func.func @transform_3(%arg0: i32, %arg1: i32) -> (i32, i32, i32) {
    %c0_i32 = arith.constant 0 : i32
    %c0_i32_0 = arith.constant 0 : i32
    return %arg0, %c0_i32, %arg1 : i32, i32, i32
  }
}

module attributes {stable_mosaic.version = 11 : i64} {
  func.func @_conv_kernel(%arg0: i32, %arg1: i32, %arg2: memref<1x8x18xbf16, #tpu.memory_space<vmem>>, %arg3: memref<8x16xbf16, #tpu.memory_space<vmem>>, %arg4: memref<8x1xf32, #tpu.memory_space<vmem>>, %arg5: memref<1x8x17xbf16, #tpu.memory_space<vmem>>) attributes {dimension_semantics = [#tpu.dimension_semantics<parallel>, #tpu.dimension_semantics<parallel>], iteration_bounds = array<i64: 2, 1>, scalar_prefetch = 0 : i64, scratch_operands = 0 : i64, tpu.core_type = #tpu.core_type<tc>, window_params = [{transform_indices = @transform_0, window_bounds = array<i64: 1, 8, 18>}, {pipeline_mode = #tpu.pipeline_mode<synchronous>, transform_indices = @transform_1, window_bounds = array<i64: 8, 16>}, {pipeline_mode = #tpu.pipeline_mode<synchronous>, transform_indices = @transform_2, window_bounds = array<i64: 8, 1>}, {transform_indices = @transform_3, window_bounds = array<i64: 1, 8, 17>}]} {
    %c0 = arith.constant 0 : index
    %c0_0 = arith.constant 0 : index
    %c0_1 = arith.constant 0 : index
    %0 = vector.load %arg2[%c0, %c0_0, %c0_1] : memref<1x8x18xbf16, #tpu.memory_space<vmem>>, vector<1x8x18xbf16>
    %1 = vector.shape_cast %0 : vector<1x8x18xbf16> to vector<8x18xbf16>
    %cst = arith.constant 1.000980e-01 : bf16
    %2 = vector.broadcast %cst : bf16 to vector<8x18xbf16>
    %3 = arith.mulf %2, %1 : vector<8x18xbf16>
    %4 = arith.maximumf %1, %3 : vector<8x18xbf16>
    %5 = vector.extract_strided_slice %4 {offsets = [0, 0], sizes = [8, 17], strides = [1, 1]} : vector<8x18xbf16> to vector<8x17xbf16>
    %6 = vector.extract_strided_slice %4 {offsets = [0, 1], sizes = [8, 17], strides = [1, 1]} : vector<8x18xbf16> to vector<8x17xbf16>
    %7 = tpu.concatenate %5, %6 in 0 : vector<8x17xbf16>, vector<8x17xbf16> -> vector<16x17xbf16>
    %c0_2 = arith.constant 0 : index
    %c0_3 = arith.constant 0 : index
    %8 = vector.load %arg3[%c0_2, %c0_3] : memref<8x16xbf16, #tpu.memory_space<vmem>>, vector<8x16xbf16>
    %cst_4 = arith.constant dense<0.000000e+00> : vector<8x17xf32>
    %9 = tpu.matmul %8, %7, %cst_4 {dimension_numbers = #tpu.dot_dimension_numbers<[1], [0], [0], [1], [0, 0, 1, 1], [], []>} : vector<8x16xbf16>, vector<16x17xbf16>, vector<8x17xf32> -> vector<8x17xf32>
    %c0_5 = arith.constant 0 : index
    %c0_6 = arith.constant 0 : index
    %10 = vector.load %arg4[%c0_5, %c0_6] : memref<8x1xf32, #tpu.memory_space<vmem>>, vector<8x1xf32>
    %11 = vector.broadcast %10 : vector<8x1xf32> to vector<8x17xf32>
    %12 = arith.addf %9, %11 : vector<8x17xf32>
    %13 = arith.truncf %12 : vector<8x17xf32> to vector<8x17xbf16>
    %c0_7 = arith.constant 0 : index
    %c0_8 = arith.constant 0 : index
    %c0_9 = arith.constant 0 : index
    %14 = vector.load %arg5[%c0_7, %c0_8, %c0_9] : memref<1x8x17xbf16, #tpu.memory_space<vmem>>, vector<1x8x17xbf16>
    %15 = vector.shape_cast %14 : vector<1x8x17xbf16> to vector<8x17xbf16>
    %16 = vector.shape_cast %13 : vector<8x17xbf16> to vector<1x8x17xbf16>
    tpu.vector_store %arg5[%c0_7, %c0_8, %c0_9], %16 {strides = array<i32>} : memref<1x8x17xbf16, #tpu.memory_space<vmem>>, vector<1x8x17xbf16>,
    return
  }
  func.func @transform_0(%arg0: i32, %arg1: i32) -> (i32, i32, i32) {
    %c0_i32 = arith.constant 0 : i32
    %c0_i32_0 = arith.constant 0 : i32
    %c0_i32_1 = arith.constant 0 : i32
    return %arg0, %c0_i32, %c0_i32_0 : i32, i32, i32
  }
  func.func @transform_1(%arg0: i32, %arg1: i32) -> (i32, i32) {
    %c0_i32 = arith.constant 0 : i32
    %c0_i32_0 = arith.constant 0 : i32
    %c0_i32_1 = arith.constant 0 : i32
    return %c0_i32, %c0_i32_0 : i32, i32
  }
  func.func @transform_2(%arg0: i32, %arg1: i32) -> (i32, i32) {
    %c0_i32 = arith.constant 0 : i32
    %c0_i32_0 = arith.constant 0 : i32
    %c0_i32_1 = arith.constant 0 : i32
    return %c0_i32, %c0_i32_0 : i32, i32
  }
  func.func @transform_3(%arg0: i32, %arg1: i32) -> (i32, i32, i32) {
    %c0_i32 = arith.constant 0 : i32
    %c0_i32_0 = arith.constant 0 : i32
    return %arg0, %c0_i32, %arg1 : i32, i32, i32
  }
}

module attributes {stable_mosaic.version = 11 : i64} {
  func.func @_conv_kernel(%arg0: i32, %arg1: i32, %arg2: memref<1x16x10xbf16, #tpu.memory_space<vmem>>, %arg3: memref<16x32xbf16, #tpu.memory_space<vmem>>, %arg4: memref<16x1xf32, #tpu.memory_space<vmem>>, %arg5: memref<1x16x9xbf16, #tpu.memory_space<vmem>>) attributes {dimension_semantics = [#tpu.dimension_semantics<parallel>, #tpu.dimension_semantics<parallel>], iteration_bounds = array<i64: 2, 1>, scalar_prefetch = 0 : i64, scratch_operands = 0 : i64, tpu.core_type = #tpu.core_type<tc>, window_params = [{transform_indices = @transform_0, window_bounds = array<i64: 1, 16, 10>}, {pipeline_mode = #tpu.pipeline_mode<synchronous>, transform_indices = @transform_1, window_bounds = array<i64: 16, 32>}, {pipeline_mode = #tpu.pipeline_mode<synchronous>, transform_indices = @transform_2, window_bounds = array<i64: 16, 1>}, {transform_indices = @transform_3, window_bounds = array<i64: 1, 16, 9>}]} {
    %c0 = arith.constant 0 : index
    %c0_0 = arith.constant 0 : index
    %c0_1 = arith.constant 0 : index
    %0 = vector.load %arg2[%c0, %c0_0, %c0_1] : memref<1x16x10xbf16, #tpu.memory_space<vmem>>, vector<1x16x10xbf16>
    %1 = vector.shape_cast %0 : vector<1x16x10xbf16> to vector<16x10xbf16>
    %cst = arith.constant 1.000980e-01 : bf16
    %2 = vector.broadcast %cst : bf16 to vector<16x10xbf16>
    %3 = arith.mulf %2, %1 : vector<16x10xbf16>
    %4 = arith.maximumf %1, %3 : vector<16x10xbf16>
    %5 = vector.extract_strided_slice %4 {offsets = [0, 0], sizes = [16, 9], strides = [1, 1]} : vector<16x10xbf16> to vector<16x9xbf16>
    %6 = vector.extract_strided_slice %4 {offsets = [0, 1], sizes = [16, 9], strides = [1, 1]} : vector<16x10xbf16> to vector<16x9xbf16>
    %7 = tpu.concatenate %5, %6 in 0 : vector<16x9xbf16>, vector<16x9xbf16> -> vector<32x9xbf16>
    %c0_2 = arith.constant 0 : index
    %c0_3 = arith.constant 0 : index
    %8 = vector.load %arg3[%c0_2, %c0_3] : memref<16x32xbf16, #tpu.memory_space<vmem>>, vector<16x32xbf16>
    %cst_4 = arith.constant dense<0.000000e+00> : vector<16x9xf32>
    %9 = tpu.matmul %8, %7, %cst_4 {dimension_numbers = #tpu.dot_dimension_numbers<[1], [0], [0], [1], [0, 0, 1, 1], [], []>} : vector<16x32xbf16>, vector<32x9xbf16>, vector<16x9xf32> -> vector<16x9xf32>
    %c0_5 = arith.constant 0 : index
    %c0_6 = arith.constant 0 : index
    %10 = vector.load %arg4[%c0_5, %c0_6] : memref<16x1xf32, #tpu.memory_space<vmem>>, vector<16x1xf32>
    %11 = vector.broadcast %10 : vector<16x1xf32> to vector<16x9xf32>
    %12 = arith.addf %9, %11 : vector<16x9xf32>
    %13 = arith.truncf %12 : vector<16x9xf32> to vector<16x9xbf16>
    %c0_7 = arith.constant 0 : index
    %c0_8 = arith.constant 0 : index
    %c0_9 = arith.constant 0 : index
    %14 = vector.load %arg5[%c0_7, %c0_8, %c0_9] : memref<1x16x9xbf16, #tpu.memory_space<vmem>>, vector<1x16x9xbf16>
    %15 = vector.shape_cast %14 : vector<1x16x9xbf16> to vector<16x9xbf16>
    %16 = vector.shape_cast %13 : vector<16x9xbf16> to vector<1x16x9xbf16>
    tpu.vector_store %arg5[%c0_7, %c0_8, %c0_9], %16 {strides = array<i32>} : memref<1x16x9xbf16, #tpu.memory_space<vmem>>, vector<1x16x9xbf16>,
    return
  }
  func.func @transform_0(%arg0: i32, %arg1: i32) -> (i32, i32, i32) {
    %c0_i32 = arith.constant 0 : i32
    %c0_i32_0 = arith.constant 0 : i32
    %c0_i32_1 = arith.constant 0 : i32
    return %arg0, %c0_i32, %c0_i32_0 : i32, i32, i32
  }
  func.func @transform_1(%arg0: i32, %arg1: i32) -> (i32, i32) {
    %c0_i32 = arith.constant 0 : i32
    %c0_i32_0 = arith.constant 0 : i32
    %c0_i32_1 = arith.constant 0 : i32
    return %c0_i32, %c0_i32_0 : i32, i32
  }
  func.func @transform_2(%arg0: i32, %arg1: i32) -> (i32, i32) {
    %c0_i32 = arith.constant 0 : i32
    %c0_i32_0 = arith.constant 0 : i32
    %c0_i32_1 = arith.constant 0 : i32
    return %c0_i32, %c0_i32_0 : i32, i32
  }
  func.func @transform_3(%arg0: i32, %arg1: i32) -> (i32, i32, i32) {
    %c0_i32 = arith.constant 0 : i32
    %c0_i32_0 = arith.constant 0 : i32
    return %arg0, %c0_i32, %arg1 : i32, i32, i32
  }
}

module attributes {stable_mosaic.version = 11 : i64} {
  func.func @_resblock_kernel(%arg0: i32, %arg1: memref<1x8x24xbf16, #tpu.memory_space<vmem>>, %arg2: memref<2x8x24xbf16, #tpu.memory_space<vmem>>, %arg3: memref<2x8x1xf32, #tpu.memory_space<vmem>>, %arg4: memref<1x8x16xbf16, #tpu.memory_space<vmem>>) attributes {dimension_semantics = [#tpu.dimension_semantics<parallel>], iteration_bounds = array<i64: 2>, scalar_prefetch = 0 : i64, scratch_operands = 0 : i64, tpu.core_type = #tpu.core_type<tc>, window_params = [{transform_indices = @transform_0, window_bounds = array<i64: 1, 8, 24>}, {pipeline_mode = #tpu.pipeline_mode<synchronous>, transform_indices = @transform_1, window_bounds = array<i64: 2, 8, 24>}, {pipeline_mode = #tpu.pipeline_mode<synchronous>, transform_indices = @transform_2, window_bounds = array<i64: 2, 8, 1>}, {transform_indices = @transform_3, window_bounds = array<i64: 1, 8, 16>}]} {
    %c0 = arith.constant 0 : index
    %c0_0 = arith.constant 0 : index
    %c0_1 = arith.constant 0 : index
    %0 = vector.load %arg1[%c0, %c0_0, %c0_1] : memref<1x8x24xbf16, #tpu.memory_space<vmem>>, vector<1x8x24xbf16>
    %1 = vector.shape_cast %0 : vector<1x8x24xbf16> to vector<8x24xbf16>
    %2 = arith.extf %1 : vector<8x24xbf16> to vector<8x24xf32>
    %cst = arith.constant 1.000000e-01 : f32
    %3 = vector.broadcast %cst : f32 to vector<8x24xf32>
    %4 = arith.mulf %3, %2 : vector<8x24xf32>
    %5 = arith.maximumf %2, %4 : vector<8x24xf32>
    %6 = arith.truncf %5 : vector<8x24xf32> to vector<8x24xbf16>
    %7 = vector.extract_strided_slice %6 {offsets = [0, 0], sizes = [8, 22], strides = [1, 1]} : vector<8x24xbf16> to vector<8x22xbf16>
    %8 = vector.extract_strided_slice %6 {offsets = [0, 1], sizes = [8, 22], strides = [1, 1]} : vector<8x24xbf16> to vector<8x22xbf16>
    %9 = vector.extract_strided_slice %6 {offsets = [0, 2], sizes = [8, 22], strides = [1, 1]} : vector<8x24xbf16> to vector<8x22xbf16>
    %10 = tpu.concatenate %7, %8, %9 in 0 : vector<8x22xbf16>, vector<8x22xbf16>, vector<8x22xbf16> -> vector<24x22xbf16>
    %c0_2 = arith.constant 0 : index
    %c0_3 = arith.constant 0 : index
    %c0_4 = arith.constant 0 : index
    %11 = vector.load %arg2[%c0_2, %c0_3, %c0_4] : memref<2x8x24xbf16, #tpu.memory_space<vmem>>, vector<1x8x24xbf16>
    %12 = vector.shape_cast %11 : vector<1x8x24xbf16> to vector<8x24xbf16>
    %cst_5 = arith.constant dense<0.000000e+00> : vector<8x22xf32>
    %13 = tpu.matmul %12, %10, %cst_5 {dimension_numbers = #tpu.dot_dimension_numbers<[1], [0], [0], [1], [0, 0, 1, 1], [], []>} : vector<8x24xbf16>, vector<24x22xbf16>, vector<8x22xf32> -> vector<8x22xf32>
    %c0_6 = arith.constant 0 : index
    %c0_7 = arith.constant 0 : index
    %c0_8 = arith.constant 0 : index
    %14 = vector.load %arg3[%c0_6, %c0_7, %c0_8] : memref<2x8x1xf32, #tpu.memory_space<vmem>>, vector<1x8x1xf32>
    %15 = vector.shape_cast %14 : vector<1x8x1xf32> to vector<8x1xf32>
    %16 = vector.broadcast %15 : vector<8x1xf32> to vector<8x22xf32>
    %17 = arith.addf %13, %16 : vector<8x22xf32>
    %18 = vector.extract_strided_slice %2 {offsets = [0, 1], sizes = [8, 22], strides = [1, 1]} : vector<8x24xf32> to vector<8x22xf32>
    %19 = arith.addf %17, %18 : vector<8x22xf32>
    %20 = tpu.iota {dimensions = array<i32: 1>} : vector<8x22xi32>
    %c3_i32 = arith.constant 3 : i32
    %21 = vector.broadcast %c3_i32 : i32 to vector<8x22xi32>
    %22 = arith.cmpi sge, %20, %21 : vector<8x22xi32>
    %c19_i32 = arith.constant 19 : i32
    %23 = vector.broadcast %c19_i32 : i32 to vector<8x22xi32>
    %24 = arith.cmpi slt, %20, %23 : vector<8x22xi32>
    %25 = arith.andi %22, %24 : vector<8x22xi1>
    %cst_9 = arith.constant 0.000000e+00 : f32
    %26 = vector.broadcast %cst_9 : f32 to vector<8x22xf32>
    %27 = arith.select %25, %19, %26 : vector<8x22xi1>, vector<8x22xf32>
    %cst_10 = arith.constant 1.000000e-01 : f32
    %28 = vector.broadcast %cst_10 : f32 to vector<8x22xf32>
    %29 = arith.mulf %28, %27 : vector<8x22xf32>
    %30 = arith.maximumf %27, %29 : vector<8x22xf32>
    %31 = arith.truncf %30 : vector<8x22xf32> to vector<8x22xbf16>
    %32 = vector.extract_strided_slice %31 {offsets = [0, 0], sizes = [8, 16], strides = [1, 1]} : vector<8x22xbf16> to vector<8x16xbf16>
    %33 = vector.extract_strided_slice %31 {offsets = [0, 3], sizes = [8, 16], strides = [1, 1]} : vector<8x22xbf16> to vector<8x16xbf16>
    %34 = vector.extract_strided_slice %31 {offsets = [0, 6], sizes = [8, 16], strides = [1, 1]} : vector<8x22xbf16> to vector<8x16xbf16>
    %35 = tpu.concatenate %32, %33, %34 in 0 : vector<8x16xbf16>, vector<8x16xbf16>, vector<8x16xbf16> -> vector<24x16xbf16>
    %c1 = arith.constant 1 : index
    %c0_11 = arith.constant 0 : index
    %c0_12 = arith.constant 0 : index
    %36 = vector.load %arg2[%c1, %c0_11, %c0_12] : memref<2x8x24xbf16, #tpu.memory_space<vmem>>, vector<1x8x24xbf16>
    %37 = vector.shape_cast %36 : vector<1x8x24xbf16> to vector<8x24xbf16>
    %cst_13 = arith.constant dense<0.000000e+00> : vector<8x16xf32>
    %38 = tpu.matmul %37, %35, %cst_13 {dimension_numbers = #tpu.dot_dimension_numbers<[1], [0], [0], [1], [0, 0, 1, 1], [], []>} : vector<8x24xbf16>, vector<24x16xbf16>, vector<8x16xf32> -> vector<8x16xf32>
    %c1_14 = arith.constant 1 : index
    %c0_15 = arith.constant 0 : index
    %c0_16 = arith.constant 0 : index
    %39 = vector.load %arg3[%c1_14, %c0_15, %c0_16] : memref<2x8x1xf32, #tpu.memory_space<vmem>>, vector<1x8x1xf32>
    %40 = vector.shape_cast %39 : vector<1x8x1xf32> to vector<8x1xf32>
    %41 = vector.broadcast %40 : vector<8x1xf32> to vector<8x16xf32>
    %42 = arith.addf %38, %41 : vector<8x16xf32>
    %43 = vector.extract_strided_slice %27 {offsets = [0, 3], sizes = [8, 16], strides = [1, 1]} : vector<8x22xf32> to vector<8x16xf32>
    %44 = arith.addf %42, %43 : vector<8x16xf32>
    %45 = arith.truncf %44 : vector<8x16xf32> to vector<8x16xbf16>
    %c0_17 = arith.constant 0 : index
    %c0_18 = arith.constant 0 : index
    %c0_19 = arith.constant 0 : index
    %46 = vector.load %arg4[%c0_17, %c0_18, %c0_19] : memref<1x8x16xbf16, #tpu.memory_space<vmem>>, vector<1x8x16xbf16>
    %47 = vector.shape_cast %46 : vector<1x8x16xbf16> to vector<8x16xbf16>
    %48 = vector.shape_cast %45 : vector<8x16xbf16> to vector<1x8x16xbf16>
    tpu.vector_store %arg4[%c0_17, %c0_18, %c0_19], %48 {strides = array<i32>} : memref<1x8x16xbf16, #tpu.memory_space<vmem>>, vector<1x8x16xbf16>,
    return
  }
  func.func @transform_0(%arg0: i32) -> (i32, i32, i32) {
    %c0_i32 = arith.constant 0 : i32
    %c0_i32_0 = arith.constant 0 : i32
    %c0_i32_1 = arith.constant 0 : i32
    return %arg0, %c0_i32, %c0_i32_0 : i32, i32, i32
  }
  func.func @transform_1(%arg0: i32) -> (i32, i32, i32) {
    %c0_i32 = arith.constant 0 : i32
    %c0_i32_0 = arith.constant 0 : i32
    %c0_i32_1 = arith.constant 0 : i32
    %c0_i32_2 = arith.constant 0 : i32
    return %c0_i32, %c0_i32_0, %c0_i32_1 : i32, i32, i32
  }
  func.func @transform_2(%arg0: i32) -> (i32, i32, i32) {
    %c0_i32 = arith.constant 0 : i32
    %c0_i32_0 = arith.constant 0 : i32
    %c0_i32_1 = arith.constant 0 : i32
    %c0_i32_2 = arith.constant 0 : i32
    return %c0_i32, %c0_i32_0, %c0_i32_1 : i32, i32, i32
  }
  func.func @transform_3(%arg0: i32) -> (i32, i32, i32) {
    %c0_i32 = arith.constant 0 : i32
    %c0_i32_0 = arith.constant 0 : i32
    %c0_i32_1 = arith.constant 0 : i32
    return %arg0, %c0_i32, %c0_i32_0 : i32, i32, i32
  }
}

module attributes {stable_mosaic.version = 11 : i64} {
  func.func @_conv_kernel(%arg0: i32, %arg1: i32, %arg2: memref<1x4x38xbf16, #tpu.memory_space<vmem>>, %arg3: memref<1x28xbf16, #tpu.memory_space<vmem>>, %arg4: memref<1x1xf32, #tpu.memory_space<vmem>>, %arg5: memref<1x1x32xf32, #tpu.memory_space<vmem>>) attributes {dimension_semantics = [#tpu.dimension_semantics<parallel>, #tpu.dimension_semantics<parallel>], iteration_bounds = array<i64: 2, 1>, scalar_prefetch = 0 : i64, scratch_operands = 0 : i64, tpu.core_type = #tpu.core_type<tc>, window_params = [{transform_indices = @transform_0, window_bounds = array<i64: 1, 4, 38>}, {pipeline_mode = #tpu.pipeline_mode<synchronous>, transform_indices = @transform_1, window_bounds = array<i64: 1, 28>}, {pipeline_mode = #tpu.pipeline_mode<synchronous>, transform_indices = @transform_2, window_bounds = array<i64: 1, 1>}, {transform_indices = @transform_3, window_bounds = array<i64: 1, 1, 32>}]} {
    %c0 = arith.constant 0 : index
    %c0_0 = arith.constant 0 : index
    %c0_1 = arith.constant 0 : index
    %0 = vector.load %arg2[%c0, %c0_0, %c0_1] : memref<1x4x38xbf16, #tpu.memory_space<vmem>>, vector<1x4x38xbf16>
    %1 = vector.shape_cast %0 : vector<1x4x38xbf16> to vector<4x38xbf16>
    %cst = arith.constant 1.000980e-01 : bf16
    %2 = vector.broadcast %cst : bf16 to vector<4x38xbf16>
    %3 = arith.mulf %2, %1 : vector<4x38xbf16>
    %4 = arith.maximumf %1, %3 : vector<4x38xbf16>
    %5 = vector.extract_strided_slice %4 {offsets = [0, 0], sizes = [4, 32], strides = [1, 1]} : vector<4x38xbf16> to vector<4x32xbf16>
    %6 = vector.extract_strided_slice %4 {offsets = [0, 1], sizes = [4, 32], strides = [1, 1]} : vector<4x38xbf16> to vector<4x32xbf16>
    %7 = vector.extract_strided_slice %4 {offsets = [0, 2], sizes = [4, 32], strides = [1, 1]} : vector<4x38xbf16> to vector<4x32xbf16>
    %8 = vector.extract_strided_slice %4 {offsets = [0, 3], sizes = [4, 32], strides = [1, 1]} : vector<4x38xbf16> to vector<4x32xbf16>
    %9 = vector.extract_strided_slice %4 {offsets = [0, 4], sizes = [4, 32], strides = [1, 1]} : vector<4x38xbf16> to vector<4x32xbf16>
    %10 = vector.extract_strided_slice %4 {offsets = [0, 5], sizes = [4, 32], strides = [1, 1]} : vector<4x38xbf16> to vector<4x32xbf16>
    %11 = vector.extract_strided_slice %4 {offsets = [0, 6], sizes = [4, 32], strides = [1, 1]} : vector<4x38xbf16> to vector<4x32xbf16>
    %12 = tpu.concatenate %5, %6, %7, %8, %9, %10, %11 in 0 : vector<4x32xbf16>, vector<4x32xbf16>, vector<4x32xbf16>, vector<4x32xbf16>, vector<4x32xbf16>, vector<4x32xbf16>, vector<4x32xbf16> -> vector<28x32xbf16>
    %c0_2 = arith.constant 0 : index
    %c0_3 = arith.constant 0 : index
    %13 = vector.load %arg3[%c0_2, %c0_3] : memref<1x28xbf16, #tpu.memory_space<vmem>>, vector<1x28xbf16>
    %cst_4 = arith.constant dense<0.000000e+00> : vector<1x32xf32>
    %14 = tpu.matmul %13, %12, %cst_4 {dimension_numbers = #tpu.dot_dimension_numbers<[1], [0], [0], [1], [0, 0, 1, 1], [], []>} : vector<1x28xbf16>, vector<28x32xbf16>, vector<1x32xf32> -> vector<1x32xf32>
    %c0_5 = arith.constant 0 : index
    %c0_6 = arith.constant 0 : index
    %15 = vector.load %arg4[%c0_5, %c0_6] : memref<1x1xf32, #tpu.memory_space<vmem>>, vector<1x1xf32>
    %16 = vector.broadcast %15 : vector<1x1xf32> to vector<1x32xf32>
    %17 = arith.addf %14, %16 : vector<1x32xf32>
    %18 = math.tanh %17 : vector<1x32xf32>
    %c0_7 = arith.constant 0 : index
    %c0_8 = arith.constant 0 : index
    %c0_9 = arith.constant 0 : index
    %19 = vector.load %arg5[%c0_7, %c0_8, %c0_9] : memref<1x1x32xf32, #tpu.memory_space<vmem>>, vector<1x1x32xf32>
    %20 = vector.shape_cast %19 : vector<1x1x32xf32> to vector<1x32xf32>
    %21 = vector.shape_cast %18 : vector<1x32xf32> to vector<1x1x32xf32>
    tpu.vector_store %arg5[%c0_7, %c0_8, %c0_9], %21 {strides = array<i32>} : memref<1x1x32xf32, #tpu.memory_space<vmem>>, vector<1x1x32xf32>,
    return
  }
  func.func @transform_0(%arg0: i32, %arg1: i32) -> (i32, i32, i32) {
    %c0_i32 = arith.constant 0 : i32
    %c0_i32_0 = arith.constant 0 : i32
    %c0_i32_1 = arith.constant 0 : i32
    return %arg0, %c0_i32, %c0_i32_0 : i32, i32, i32
  }
  func.func @transform_1(%arg0: i32, %arg1: i32) -> (i32, i32) {
    %c0_i32 = arith.constant 0 : i32
    %c0_i32_0 = arith.constant 0 : i32
    %c0_i32_1 = arith.constant 0 : i32
    return %c0_i32, %c0_i32_0 : i32, i32
  }
  func.func @transform_2(%arg0: i32, %arg1: i32) -> (i32, i32) {
    %c0_i32 = arith.constant 0 : i32
    %c0_i32_0 = arith.constant 0 : i32
    %c0_i32_1 = arith.constant 0 : i32
    return %c0_i32, %c0_i32_0 : i32, i32
  }
  func.func @transform_3(%arg0: i32, %arg1: i32) -> (i32, i32, i32) {
    %c0_i32 = arith.constant 0 : i32
    %c0_i32_0 = arith.constant 0 : i32
    return %arg0, %c0_i32, %arg1 : i32, i32, i32
  }
}

module attributes {stable_mosaic.version = 11 : i64} {
  func.func @_resblock_kernel(%arg0: i32, %arg1: memref<1x4x40xbf16, #tpu.memory_space<vmem>>, %arg2: memref<2x4x12xbf16, #tpu.memory_space<vmem>>, %arg3: memref<2x4x1xf32, #tpu.memory_space<vmem>>, %arg4: memref<1x4x32xbf16, #tpu.memory_space<vmem>>) attributes {dimension_semantics = [#tpu.dimension_semantics<parallel>], iteration_bounds = array<i64: 2>, scalar_prefetch = 0 : i64, scratch_operands = 0 : i64, tpu.core_type = #tpu.core_type<tc>, window_params = [{transform_indices = @transform_0, window_bounds = array<i64: 1, 4, 40>}, {pipeline_mode = #tpu.pipeline_mode<synchronous>, transform_indices = @transform_1, window_bounds = array<i64: 2, 4, 12>}, {pipeline_mode = #tpu.pipeline_mode<synchronous>, transform_indices = @transform_2, window_bounds = array<i64: 2, 4, 1>}, {transform_indices = @transform_3, window_bounds = array<i64: 1, 4, 32>}]} {
    %c0 = arith.constant 0 : index
    %c0_0 = arith.constant 0 : index
    %c0_1 = arith.constant 0 : index
    %0 = vector.load %arg1[%c0, %c0_0, %c0_1] : memref<1x4x40xbf16, #tpu.memory_space<vmem>>, vector<1x4x40xbf16>
    %1 = vector.shape_cast %0 : vector<1x4x40xbf16> to vector<4x40xbf16>
    %2 = arith.extf %1 : vector<4x40xbf16> to vector<4x40xf32>
    %cst = arith.constant 1.000000e-01 : f32
    %3 = vector.broadcast %cst : f32 to vector<4x40xf32>
    %4 = arith.mulf %3, %2 : vector<4x40xf32>
    %5 = arith.maximumf %2, %4 : vector<4x40xf32>
    %6 = arith.truncf %5 : vector<4x40xf32> to vector<4x40xbf16>
    %7 = vector.extract_strided_slice %6 {offsets = [0, 0], sizes = [4, 38], strides = [1, 1]} : vector<4x40xbf16> to vector<4x38xbf16>
    %8 = vector.extract_strided_slice %6 {offsets = [0, 1], sizes = [4, 38], strides = [1, 1]} : vector<4x40xbf16> to vector<4x38xbf16>
    %9 = vector.extract_strided_slice %6 {offsets = [0, 2], sizes = [4, 38], strides = [1, 1]} : vector<4x40xbf16> to vector<4x38xbf16>
    %10 = tpu.concatenate %7, %8, %9 in 0 : vector<4x38xbf16>, vector<4x38xbf16>, vector<4x38xbf16> -> vector<12x38xbf16>
    %c0_2 = arith.constant 0 : index
    %c0_3 = arith.constant 0 : index
    %c0_4 = arith.constant 0 : index
    %11 = vector.load %arg2[%c0_2, %c0_3, %c0_4] : memref<2x4x12xbf16, #tpu.memory_space<vmem>>, vector<1x4x12xbf16>
    %12 = vector.shape_cast %11 : vector<1x4x12xbf16> to vector<4x12xbf16>
    %cst_5 = arith.constant dense<0.000000e+00> : vector<4x38xf32>
    %13 = tpu.matmul %12, %10, %cst_5 {dimension_numbers = #tpu.dot_dimension_numbers<[1], [0], [0], [1], [0, 0, 1, 1], [], []>} : vector<4x12xbf16>, vector<12x38xbf16>, vector<4x38xf32> -> vector<4x38xf32>
    %c0_6 = arith.constant 0 : index
    %c0_7 = arith.constant 0 : index
    %c0_8 = arith.constant 0 : index
    %14 = vector.load %arg3[%c0_6, %c0_7, %c0_8] : memref<2x4x1xf32, #tpu.memory_space<vmem>>, vector<1x4x1xf32>
    %15 = vector.shape_cast %14 : vector<1x4x1xf32> to vector<4x1xf32>
    %16 = vector.broadcast %15 : vector<4x1xf32> to vector<4x38xf32>
    %17 = arith.addf %13, %16 : vector<4x38xf32>
    %18 = vector.extract_strided_slice %2 {offsets = [0, 1], sizes = [4, 38], strides = [1, 1]} : vector<4x40xf32> to vector<4x38xf32>
    %19 = arith.addf %17, %18 : vector<4x38xf32>
    %20 = tpu.iota {dimensions = array<i32: 1>} : vector<4x38xi32>
    %c3_i32 = arith.constant 3 : i32
    %21 = vector.broadcast %c3_i32 : i32 to vector<4x38xi32>
    %22 = arith.cmpi sge, %20, %21 : vector<4x38xi32>
    %c35_i32 = arith.constant 35 : i32
    %23 = vector.broadcast %c35_i32 : i32 to vector<4x38xi32>
    %24 = arith.cmpi slt, %20, %23 : vector<4x38xi32>
    %25 = arith.andi %22, %24 : vector<4x38xi1>
    %cst_9 = arith.constant 0.000000e+00 : f32
    %26 = vector.broadcast %cst_9 : f32 to vector<4x38xf32>
    %27 = arith.select %25, %19, %26 : vector<4x38xi1>, vector<4x38xf32>
    %cst_10 = arith.constant 1.000000e-01 : f32
    %28 = vector.broadcast %cst_10 : f32 to vector<4x38xf32>
    %29 = arith.mulf %28, %27 : vector<4x38xf32>
    %30 = arith.maximumf %27, %29 : vector<4x38xf32>
    %31 = arith.truncf %30 : vector<4x38xf32> to vector<4x38xbf16>
    %32 = vector.extract_strided_slice %31 {offsets = [0, 0], sizes = [4, 32], strides = [1, 1]} : vector<4x38xbf16> to vector<4x32xbf16>
    %33 = vector.extract_strided_slice %31 {offsets = [0, 3], sizes = [4, 32], strides = [1, 1]} : vector<4x38xbf16> to vector<4x32xbf16>
    %34 = vector.extract_strided_slice %31 {offsets = [0, 6], sizes = [4, 32], strides = [1, 1]} : vector<4x38xbf16> to vector<4x32xbf16>
    %35 = tpu.concatenate %32, %33, %34 in 0 : vector<4x32xbf16>, vector<4x32xbf16>, vector<4x32xbf16> -> vector<12x32xbf16>
    %c1 = arith.constant 1 : index
    %c0_11 = arith.constant 0 : index
    %c0_12 = arith.constant 0 : index
    %36 = vector.load %arg2[%c1, %c0_11, %c0_12] : memref<2x4x12xbf16, #tpu.memory_space<vmem>>, vector<1x4x12xbf16>
    %37 = vector.shape_cast %36 : vector<1x4x12xbf16> to vector<4x12xbf16>
    %cst_13 = arith.constant dense<0.000000e+00> : vector<4x32xf32>
    %38 = tpu.matmul %37, %35, %cst_13 {dimension_numbers = #tpu.dot_dimension_numbers<[1], [0], [0], [1], [0, 0, 1, 1], [], []>} : vector<4x12xbf16>, vector<12x32xbf16>, vector<4x32xf32> -> vector<4x32xf32>
    %c1_14 = arith.constant 1 : index
    %c0_15 = arith.constant 0 : index
    %c0_16 = arith.constant 0 : index
    %39 = vector.load %arg3[%c1_14, %c0_15, %c0_16] : memref<2x4x1xf32, #tpu.memory_space<vmem>>, vector<1x4x1xf32>
    %40 = vector.shape_cast %39 : vector<1x4x1xf32> to vector<4x1xf32>
    %41 = vector.broadcast %40 : vector<4x1xf32> to vector<4x32xf32>
    %42 = arith.addf %38, %41 : vector<4x32xf32>
    %43 = vector.extract_strided_slice %27 {offsets = [0, 3], sizes = [4, 32], strides = [1, 1]} : vector<4x38xf32> to vector<4x32xf32>
    %44 = arith.addf %42, %43 : vector<4x32xf32>
    %45 = arith.truncf %44 : vector<4x32xf32> to vector<4x32xbf16>
    %c0_17 = arith.constant 0 : index
    %c0_18 = arith.constant 0 : index
    %c0_19 = arith.constant 0 : index
    %46 = vector.load %arg4[%c0_17, %c0_18, %c0_19] : memref<1x4x32xbf16, #tpu.memory_space<vmem>>, vector<1x4x32xbf16>
    %47 = vector.shape_cast %46 : vector<1x4x32xbf16> to vector<4x32xbf16>
    %48 = vector.shape_cast %45 : vector<4x32xbf16> to vector<1x4x32xbf16>
    tpu.vector_store %arg4[%c0_17, %c0_18, %c0_19], %48 {strides = array<i32>} : memref<1x4x32xbf16, #tpu.memory_space<vmem>>, vector<1x4x32xbf16>,
    return
  }
  func.func @transform_0(%arg0: i32) -> (i32, i32, i32) {
    %c0_i32 = arith.constant 0 : i32
    %c0_i32_0 = arith.constant 0 : i32
    %c0_i32_1 = arith.constant 0 : i32
    return %arg0, %c0_i32, %c0_i32_0 : i32, i32, i32
  }
  func.func @transform_1(%arg0: i32) -> (i32, i32, i32) {
    %c0_i32 = arith.constant 0 : i32
    %c0_i32_0 = arith.constant 0 : i32
    %c0_i32_1 = arith.constant 0 : i32
    %c0_i32_2 = arith.constant 0 : i32
    return %c0_i32, %c0_i32_0, %c0_i32_1 : i32, i32, i32
  }
  func.func @transform_2(%arg0: i32) -> (i32, i32, i32) {
    %c0_i32 = arith.constant 0 : i32
    %c0_i32_0 = arith.constant 0 : i32
    %c0_i32_1 = arith.constant 0 : i32
    %c0_i32_2 = arith.constant 0 : i32
    return %c0_i32, %c0_i32_0, %c0_i32_1 : i32, i32, i32
  }
  func.func @transform_3(%arg0: i32) -> (i32, i32, i32) {
    %c0_i32 = arith.constant 0 : i32
    %c0_i32_0 = arith.constant 0 : i32
    %c0_i32_1 = arith.constant 0 : i32
    return %arg0, %c0_i32, %c0_i32_0 : i32, i32, i32
  }
}

module attributes {stable_mosaic.version = 11 : i64} {
  func.func @_conv_kernel(%arg0: i32, %arg1: i32, %arg2: memref<1x1x40xbf16, #tpu.memory_space<vmem>>, %arg3: memref<4x5xbf16, #tpu.memory_space<vmem>>, %arg4: memref<4x1xf32, #tpu.memory_space<vmem>>, %arg5: memref<1x4x32xbf16, #tpu.memory_space<vmem>>) attributes {dimension_semantics = [#tpu.dimension_semantics<parallel>, #tpu.dimension_semantics<parallel>], iteration_bounds = array<i64: 2, 1>, scalar_prefetch = 0 : i64, scratch_operands = 0 : i64, tpu.core_type = #tpu.core_type<tc>, window_params = [{transform_indices = @transform_0, window_bounds = array<i64: 1, 1, 40>}, {pipeline_mode = #tpu.pipeline_mode<synchronous>, transform_indices = @transform_1, window_bounds = array<i64: 4, 5>}, {pipeline_mode = #tpu.pipeline_mode<synchronous>, transform_indices = @transform_2, window_bounds = array<i64: 4, 1>}, {transform_indices = @transform_3, window_bounds = array<i64: 1, 4, 32>}]} {
    %c0 = arith.constant 0 : index
    %c0_0 = arith.constant 0 : index
    %c0_1 = arith.constant 0 : index
    %0 = vector.load %arg2[%c0, %c0_0, %c0_1] : memref<1x1x40xbf16, #tpu.memory_space<vmem>>, vector<1x1x40xbf16>
    %1 = vector.shape_cast %0 : vector<1x1x40xbf16> to vector<1x40xbf16>
    %2 = vector.extract_strided_slice %1 {offsets = [0, 0], sizes = [1, 32], strides = [1, 1]} : vector<1x40xbf16> to vector<1x32xbf16>
    %3 = vector.extract_strided_slice %1 {offsets = [0, 2], sizes = [1, 32], strides = [1, 1]} : vector<1x40xbf16> to vector<1x32xbf16>
    %4 = vector.extract_strided_slice %1 {offsets = [0, 4], sizes = [1, 32], strides = [1, 1]} : vector<1x40xbf16> to vector<1x32xbf16>
    %5 = vector.extract_strided_slice %1 {offsets = [0, 6], sizes = [1, 32], strides = [1, 1]} : vector<1x40xbf16> to vector<1x32xbf16>
    %6 = vector.extract_strided_slice %1 {offsets = [0, 8], sizes = [1, 32], strides = [1, 1]} : vector<1x40xbf16> to vector<1x32xbf16>
    %7 = tpu.concatenate %2, %3, %4, %5, %6 in 0 : vector<1x32xbf16>, vector<1x32xbf16>, vector<1x32xbf16>, vector<1x32xbf16>, vector<1x32xbf16> -> vector<5x32xbf16>
    %c0_2 = arith.constant 0 : index
    %c0_3 = arith.constant 0 : index
    %8 = vector.load %arg3[%c0_2, %c0_3] : memref<4x5xbf16, #tpu.memory_space<vmem>>, vector<4x5xbf16>
    %cst = arith.constant dense<0.000000e+00> : vector<4x32xf32>
    %9 = tpu.matmul %8, %7, %cst {dimension_numbers = #tpu.dot_dimension_numbers<[1], [0], [0], [1], [0, 0, 1, 1], [], []>} : vector<4x5xbf16>, vector<5x32xbf16>, vector<4x32xf32> -> vector<4x32xf32>
    %c0_4 = arith.constant 0 : index
    %c0_5 = arith.constant 0 : index
    %10 = vector.load %arg4[%c0_4, %c0_5] : memref<4x1xf32, #tpu.memory_space<vmem>>, vector<4x1xf32>
    %11 = vector.broadcast %10 : vector<4x1xf32> to vector<4x32xf32>
    %12 = arith.addf %9, %11 : vector<4x32xf32>
    %cst_6 = arith.constant 1.000000e-01 : f32
    %13 = vector.broadcast %cst_6 : f32 to vector<4x32xf32>
    %14 = arith.mulf %13, %12 : vector<4x32xf32>
    %15 = arith.maximumf %12, %14 : vector<4x32xf32>
    %16 = arith.truncf %15 : vector<4x32xf32> to vector<4x32xbf16>
    %c0_7 = arith.constant 0 : index
    %c0_8 = arith.constant 0 : index
    %c0_9 = arith.constant 0 : index
    %17 = vector.load %arg5[%c0_7, %c0_8, %c0_9] : memref<1x4x32xbf16, #tpu.memory_space<vmem>>, vector<1x4x32xbf16>
    %18 = vector.shape_cast %17 : vector<1x4x32xbf16> to vector<4x32xbf16>
    %19 = vector.shape_cast %16 : vector<4x32xbf16> to vector<1x4x32xbf16>
    tpu.vector_store %arg5[%c0_7, %c0_8, %c0_9], %19 {strides = array<i32>} : memref<1x4x32xbf16, #tpu.memory_space<vmem>>, vector<1x4x32xbf16>,
    return
  }
  func.func @transform_0(%arg0: i32, %arg1: i32) -> (i32, i32, i32) {
    %c0_i32 = arith.constant 0 : i32
    %c0_i32_0 = arith.constant 0 : i32
    %c0_i32_1 = arith.constant 0 : i32
    return %arg0, %c0_i32, %c0_i32_0 : i32, i32, i32
  }
  func.func @transform_1(%arg0: i32, %arg1: i32) -> (i32, i32) {
    %c0_i32 = arith.constant 0 : i32
    %c0_i32_0 = arith.constant 0 : i32
    %c0_i32_1 = arith.constant 0 : i32
    return %c0_i32, %c0_i32_0 : i32, i32
  }
  func.func @transform_2(%arg0: i32, %arg1: i32) -> (i32, i32) {
    %c0_i32 = arith.constant 0 : i32
    %c0_i32_0 = arith.constant 0 : i32
    %c0_i32_1 = arith.constant 0 : i32
    return %c0_i32, %c0_i32_0 : i32, i32
  }
  func.func @transform_3(%arg0: i32, %arg1: i32) -> (i32, i32, i32) {
    %c0_i32 = arith.constant 0 : i32
    %c0_i32_0 = arith.constant 0 : i32
    return %arg0, %c0_i32, %arg1 : i32, i32, i32
  }
}

module attributes {stable_mosaic.version = 11 : i64} {
  func.func @_conv_kernel(%arg0: i32, %arg1: i32, %arg2: memref<1x4x20xbf16, #tpu.memory_space<vmem>>, %arg3: memref<8x20xbf16, #tpu.memory_space<vmem>>, %arg4: memref<8x1xf32, #tpu.memory_space<vmem>>, %arg5: memref<1x8x12xbf16, #tpu.memory_space<vmem>>) attributes {dimension_semantics = [#tpu.dimension_semantics<parallel>, #tpu.dimension_semantics<parallel>], iteration_bounds = array<i64: 2, 1>, scalar_prefetch = 0 : i64, scratch_operands = 0 : i64, tpu.core_type = #tpu.core_type<tc>, window_params = [{transform_indices = @transform_0, window_bounds = array<i64: 1, 4, 20>}, {pipeline_mode = #tpu.pipeline_mode<synchronous>, transform_indices = @transform_1, window_bounds = array<i64: 8, 20>}, {pipeline_mode = #tpu.pipeline_mode<synchronous>, transform_indices = @transform_2, window_bounds = array<i64: 8, 1>}, {transform_indices = @transform_3, window_bounds = array<i64: 1, 8, 12>}]} {
    %c0 = arith.constant 0 : index
    %c0_0 = arith.constant 0 : index
    %c0_1 = arith.constant 0 : index
    %0 = vector.load %arg2[%c0, %c0_0, %c0_1] : memref<1x4x20xbf16, #tpu.memory_space<vmem>>, vector<1x4x20xbf16>
    %1 = vector.shape_cast %0 : vector<1x4x20xbf16> to vector<4x20xbf16>
    %2 = vector.extract_strided_slice %1 {offsets = [0, 0], sizes = [4, 12], strides = [1, 1]} : vector<4x20xbf16> to vector<4x12xbf16>
    %3 = vector.extract_strided_slice %1 {offsets = [0, 2], sizes = [4, 12], strides = [1, 1]} : vector<4x20xbf16> to vector<4x12xbf16>
    %4 = vector.extract_strided_slice %1 {offsets = [0, 4], sizes = [4, 12], strides = [1, 1]} : vector<4x20xbf16> to vector<4x12xbf16>
    %5 = vector.extract_strided_slice %1 {offsets = [0, 6], sizes = [4, 12], strides = [1, 1]} : vector<4x20xbf16> to vector<4x12xbf16>
    %6 = vector.extract_strided_slice %1 {offsets = [0, 8], sizes = [4, 12], strides = [1, 1]} : vector<4x20xbf16> to vector<4x12xbf16>
    %7 = tpu.concatenate %2, %3, %4, %5, %6 in 0 : vector<4x12xbf16>, vector<4x12xbf16>, vector<4x12xbf16>, vector<4x12xbf16>, vector<4x12xbf16> -> vector<20x12xbf16>
    %c0_2 = arith.constant 0 : index
    %c0_3 = arith.constant 0 : index
    %8 = vector.load %arg3[%c0_2, %c0_3] : memref<8x20xbf16, #tpu.memory_space<vmem>>, vector<8x20xbf16>
    %cst = arith.constant dense<0.000000e+00> : vector<8x12xf32>
    %9 = tpu.matmul %8, %7, %cst {dimension_numbers = #tpu.dot_dimension_numbers<[1], [0], [0], [1], [0, 0, 1, 1], [], []>} : vector<8x20xbf16>, vector<20x12xbf16>, vector<8x12xf32> -> vector<8x12xf32>
    %c0_4 = arith.constant 0 : index
    %c0_5 = arith.constant 0 : index
    %10 = vector.load %arg4[%c0_4, %c0_5] : memref<8x1xf32, #tpu.memory_space<vmem>>, vector<8x1xf32>
    %11 = vector.broadcast %10 : vector<8x1xf32> to vector<8x12xf32>
    %12 = arith.addf %9, %11 : vector<8x12xf32>
    %cst_6 = arith.constant 1.000000e-01 : f32
    %13 = vector.broadcast %cst_6 : f32 to vector<8x12xf32>
    %14 = arith.mulf %13, %12 : vector<8x12xf32>
    %15 = arith.maximumf %12, %14 : vector<8x12xf32>
    %16 = arith.truncf %15 : vector<8x12xf32> to vector<8x12xbf16>
    %c0_7 = arith.constant 0 : index
    %c0_8 = arith.constant 0 : index
    %c0_9 = arith.constant 0 : index
    %17 = vector.load %arg5[%c0_7, %c0_8, %c0_9] : memref<1x8x12xbf16, #tpu.memory_space<vmem>>, vector<1x8x12xbf16>
    %18 = vector.shape_cast %17 : vector<1x8x12xbf16> to vector<8x12xbf16>
    %19 = vector.shape_cast %16 : vector<8x12xbf16> to vector<1x8x12xbf16>
    tpu.vector_store %arg5[%c0_7, %c0_8, %c0_9], %19 {strides = array<i32>} : memref<1x8x12xbf16, #tpu.memory_space<vmem>>, vector<1x8x12xbf16>,
    return
  }
  func.func @transform_0(%arg0: i32, %arg1: i32) -> (i32, i32, i32) {
    %c0_i32 = arith.constant 0 : i32
    %c0_i32_0 = arith.constant 0 : i32
    %c0_i32_1 = arith.constant 0 : i32
    return %arg0, %c0_i32, %c0_i32_0 : i32, i32, i32
  }
  func.func @transform_1(%arg0: i32, %arg1: i32) -> (i32, i32) {
    %c0_i32 = arith.constant 0 : i32
    %c0_i32_0 = arith.constant 0 : i32
    %c0_i32_1 = arith.constant 0 : i32
    return %c0_i32, %c0_i32_0 : i32, i32
  }
  func.func @transform_2(%arg0: i32, %arg1: i32) -> (i32, i32) {
    %c0_i32 = arith.constant 0 : i32
    %c0_i32_0 = arith.constant 0 : i32
    %c0_i32_1 = arith.constant 0 : i32
    return %c0_i32, %c0_i32_0 : i32, i32
  }
  func.func @transform_3(%arg0: i32, %arg1: i32) -> (i32, i32, i32) {
    %c0_i32 = arith.constant 0 : i32
    %c0_i32_0 = arith.constant 0 : i32
    return %arg0, %c0_i32, %arg1 : i32, i32, i32
  }
}

module attributes {stable_mosaic.version = 11 : i64} {
  func.func @_conv_kernel(%arg0: i32, %arg1: i32, %arg2: memref<1x8x12xbf16, #tpu.memory_space<vmem>>, %arg3: memref<8x40xbf16, #tpu.memory_space<vmem>>, %arg4: memref<8x1xf32, #tpu.memory_space<vmem>>, %arg5: memref<1x8x4xbf16, #tpu.memory_space<vmem>>) attributes {dimension_semantics = [#tpu.dimension_semantics<parallel>, #tpu.dimension_semantics<parallel>], iteration_bounds = array<i64: 2, 1>, scalar_prefetch = 0 : i64, scratch_operands = 0 : i64, tpu.core_type = #tpu.core_type<tc>, window_params = [{transform_indices = @transform_0, window_bounds = array<i64: 1, 8, 12>}, {pipeline_mode = #tpu.pipeline_mode<synchronous>, transform_indices = @transform_1, window_bounds = array<i64: 8, 40>}, {pipeline_mode = #tpu.pipeline_mode<synchronous>, transform_indices = @transform_2, window_bounds = array<i64: 8, 1>}, {transform_indices = @transform_3, window_bounds = array<i64: 1, 8, 4>}]} {
    %c0 = arith.constant 0 : index
    %c0_0 = arith.constant 0 : index
    %c0_1 = arith.constant 0 : index
    %0 = vector.load %arg2[%c0, %c0_0, %c0_1] : memref<1x8x12xbf16, #tpu.memory_space<vmem>>, vector<1x8x12xbf16>
    %1 = vector.shape_cast %0 : vector<1x8x12xbf16> to vector<8x12xbf16>
    %2 = vector.extract_strided_slice %1 {offsets = [0, 0], sizes = [8, 4], strides = [1, 1]} : vector<8x12xbf16> to vector<8x4xbf16>
    %3 = vector.extract_strided_slice %1 {offsets = [0, 2], sizes = [8, 4], strides = [1, 1]} : vector<8x12xbf16> to vector<8x4xbf16>
    %4 = vector.extract_strided_slice %1 {offsets = [0, 4], sizes = [8, 4], strides = [1, 1]} : vector<8x12xbf16> to vector<8x4xbf16>
    %5 = vector.extract_strided_slice %1 {offsets = [0, 6], sizes = [8, 4], strides = [1, 1]} : vector<8x12xbf16> to vector<8x4xbf16>
    %6 = vector.extract_strided_slice %1 {offsets = [0, 8], sizes = [8, 4], strides = [1, 1]} : vector<8x12xbf16> to vector<8x4xbf16>
    %7 = tpu.concatenate %2, %3, %4, %5, %6 in 0 : vector<8x4xbf16>, vector<8x4xbf16>, vector<8x4xbf16>, vector<8x4xbf16>, vector<8x4xbf16> -> vector<40x4xbf16>
    %c0_2 = arith.constant 0 : index
    %c0_3 = arith.constant 0 : index
    %8 = vector.load %arg3[%c0_2, %c0_3] : memref<8x40xbf16, #tpu.memory_space<vmem>>, vector<8x40xbf16>
    %cst = arith.constant dense<0.000000e+00> : vector<8x4xf32>
    %9 = tpu.matmul %8, %7, %cst {dimension_numbers = #tpu.dot_dimension_numbers<[1], [0], [0], [1], [0, 0, 1, 1], [], []>} : vector<8x40xbf16>, vector<40x4xbf16>, vector<8x4xf32> -> vector<8x4xf32>
    %c0_4 = arith.constant 0 : index
    %c0_5 = arith.constant 0 : index
    %10 = vector.load %arg4[%c0_4, %c0_5] : memref<8x1xf32, #tpu.memory_space<vmem>>, vector<8x1xf32>
    %11 = vector.broadcast %10 : vector<8x1xf32> to vector<8x4xf32>
    %12 = arith.addf %9, %11 : vector<8x4xf32>
    %cst_6 = arith.constant 1.000000e-01 : f32
    %13 = vector.broadcast %cst_6 : f32 to vector<8x4xf32>
    %14 = arith.mulf %13, %12 : vector<8x4xf32>
    %15 = arith.maximumf %12, %14 : vector<8x4xf32>
    %16 = arith.truncf %15 : vector<8x4xf32> to vector<8x4xbf16>
    %c0_7 = arith.constant 0 : index
    %c0_8 = arith.constant 0 : index
    %c0_9 = arith.constant 0 : index
    %17 = vector.load %arg5[%c0_7, %c0_8, %c0_9] : memref<1x8x4xbf16, #tpu.memory_space<vmem>>, vector<1x8x4xbf16>
    %18 = vector.shape_cast %17 : vector<1x8x4xbf16> to vector<8x4xbf16>
    %19 = vector.shape_cast %16 : vector<8x4xbf16> to vector<1x8x4xbf16>
    tpu.vector_store %arg5[%c0_7, %c0_8, %c0_9], %19 {strides = array<i32>} : memref<1x8x4xbf16, #tpu.memory_space<vmem>>, vector<1x8x4xbf16>,
    return
  }
  func.func @transform_0(%arg0: i32, %arg1: i32) -> (i32, i32, i32) {
    %c0_i32 = arith.constant 0 : i32
    %c0_i32_0 = arith.constant 0 : i32
    %c0_i32_1 = arith.constant 0 : i32
    return %arg0, %c0_i32, %c0_i32_0 : i32, i32, i32
  }
  func.func @transform_1(%arg0: i32, %arg1: i32) -> (i32, i32) {
    %c0_i32 = arith.constant 0 : i32
    %c0_i32_0 = arith.constant 0 : i32
    %c0_i32_1 = arith.constant 0 : i32
    return %c0_i32, %c0_i32_0 : i32, i32
  }
  func.func @transform_2(%arg0: i32, %arg1: i32) -> (i32, i32) {
    %c0_i32 = arith.constant 0 : i32
    %c0_i32_0 = arith.constant 0 : i32
    %c0_i32_1 = arith.constant 0 : i32
    return %c0_i32, %c0_i32_0 : i32, i32
  }
  func.func @transform_3(%arg0: i32, %arg1: i32) -> (i32, i32, i32) {
    %c0_i32 = arith.constant 0 : i32
    %c0_i32_0 = arith.constant 0 : i32
    return %arg0, %c0_i32, %arg1 : i32, i32, i32
  }
}

module attributes {stable_mosaic.version = 11 : i64} {
  func.func @_conv_kernel(%arg0: i32, %arg1: i32, %arg2: memref<1x8x8xbf16, #tpu.memory_space<vmem>>, %arg3: memref<1x24xbf16, #tpu.memory_space<vmem>>, %arg4: memref<1x1xf32, #tpu.memory_space<vmem>>, %arg5: memref<1x1x4xbf16, #tpu.memory_space<vmem>>) attributes {dimension_semantics = [#tpu.dimension_semantics<parallel>, #tpu.dimension_semantics<parallel>], iteration_bounds = array<i64: 2, 1>, scalar_prefetch = 0 : i64, scratch_operands = 0 : i64, tpu.core_type = #tpu.core_type<tc>, window_params = [{transform_indices = @transform_0, window_bounds = array<i64: 1, 8, 8>}, {pipeline_mode = #tpu.pipeline_mode<synchronous>, transform_indices = @transform_1, window_bounds = array<i64: 1, 24>}, {pipeline_mode = #tpu.pipeline_mode<synchronous>, transform_indices = @transform_2, window_bounds = array<i64: 1, 1>}, {transform_indices = @transform_3, window_bounds = array<i64: 1, 1, 4>}]} {
    %c0 = arith.constant 0 : index
    %c0_0 = arith.constant 0 : index
    %c0_1 = arith.constant 0 : index
    %0 = vector.load %arg2[%c0, %c0_0, %c0_1] : memref<1x8x8xbf16, #tpu.memory_space<vmem>>, vector<1x8x8xbf16>
    %1 = vector.shape_cast %0 : vector<1x8x8xbf16> to vector<8x8xbf16>
    %2 = vector.extract_strided_slice %1 {offsets = [0, 0], sizes = [8, 4], strides = [1, 1]} : vector<8x8xbf16> to vector<8x4xbf16>
    %3 = vector.extract_strided_slice %1 {offsets = [0, 2], sizes = [8, 4], strides = [1, 1]} : vector<8x8xbf16> to vector<8x4xbf16>
    %4 = vector.extract_strided_slice %1 {offsets = [0, 4], sizes = [8, 4], strides = [1, 1]} : vector<8x8xbf16> to vector<8x4xbf16>
    %5 = tpu.concatenate %2, %3, %4 in 0 : vector<8x4xbf16>, vector<8x4xbf16>, vector<8x4xbf16> -> vector<24x4xbf16>
    %c0_2 = arith.constant 0 : index
    %c0_3 = arith.constant 0 : index
    %6 = vector.load %arg3[%c0_2, %c0_3] : memref<1x24xbf16, #tpu.memory_space<vmem>>, vector<1x24xbf16>
    %cst = arith.constant dense<0.000000e+00> : vector<1x4xf32>
    %7 = tpu.matmul %6, %5, %cst {dimension_numbers = #tpu.dot_dimension_numbers<[1], [0], [0], [1], [0, 0, 1, 1], [], []>} : vector<1x24xbf16>, vector<24x4xbf16>, vector<1x4xf32> -> vector<1x4xf32>
    %c0_4 = arith.constant 0 : index
    %c0_5 = arith.constant 0 : index
    %8 = vector.load %arg4[%c0_4, %c0_5] : memref<1x1xf32, #tpu.memory_space<vmem>>, vector<1x1xf32>
    %9 = vector.broadcast %8 : vector<1x1xf32> to vector<1x4xf32>
    %10 = arith.addf %7, %9 : vector<1x4xf32>
    %11 = arith.truncf %10 : vector<1x4xf32> to vector<1x4xbf16>
    %c0_6 = arith.constant 0 : index
    %c0_7 = arith.constant 0 : index
    %c0_8 = arith.constant 0 : index
    %12 = vector.load %arg5[%c0_6, %c0_7, %c0_8] : memref<1x1x4xbf16, #tpu.memory_space<vmem>>, vector<1x1x4xbf16>
    %13 = vector.shape_cast %12 : vector<1x1x4xbf16> to vector<1x4xbf16>
    %14 = vector.shape_cast %11 : vector<1x4xbf16> to vector<1x1x4xbf16>
    tpu.vector_store %arg5[%c0_6, %c0_7, %c0_8], %14 {strides = array<i32>} : memref<1x1x4xbf16, #tpu.memory_space<vmem>>, vector<1x1x4xbf16>,
    return
  }
  func.func @transform_0(%arg0: i32, %arg1: i32) -> (i32, i32, i32) {
    %c0_i32 = arith.constant 0 : i32
    %c0_i32_0 = arith.constant 0 : i32
    %c0_i32_1 = arith.constant 0 : i32
    return %arg0, %c0_i32, %c0_i32_0 : i32, i32, i32
  }
  func.func @transform_1(%arg0: i32, %arg1: i32) -> (i32, i32) {
    %c0_i32 = arith.constant 0 : i32
    %c0_i32_0 = arith.constant 0 : i32
    %c0_i32_1 = arith.constant 0 : i32
    return %c0_i32, %c0_i32_0 : i32, i32
  }
  func.func @transform_2(%arg0: i32, %arg1: i32) -> (i32, i32) {
    %c0_i32 = arith.constant 0 : i32
    %c0_i32_0 = arith.constant 0 : i32
    %c0_i32_1 = arith.constant 0 : i32
    return %c0_i32, %c0_i32_0 : i32, i32
  }
  func.func @transform_3(%arg0: i32, %arg1: i32) -> (i32, i32, i32) {
    %c0_i32 = arith.constant 0 : i32
    %c0_i32_0 = arith.constant 0 : i32
    return %arg0, %c0_i32, %arg1 : i32, i32, i32
  }
}

module attributes {stable_mosaic.version = 11 : i64} {
  func.func @_conv_kernel(%arg0: i32, %arg1: i32, %arg2: memref<1x1x45xbf16, #tpu.memory_space<vmem>>, %arg3: memref<4x5xbf16, #tpu.memory_space<vmem>>, %arg4: memref<4x1xf32, #tpu.memory_space<vmem>>, %arg5: memref<1x4x33xbf16, #tpu.memory_space<vmem>>) attributes {dimension_semantics = [#tpu.dimension_semantics<parallel>, #tpu.dimension_semantics<parallel>], iteration_bounds = array<i64: 2, 1>, scalar_prefetch = 0 : i64, scratch_operands = 0 : i64, tpu.core_type = #tpu.core_type<tc>, window_params = [{transform_indices = @transform_0, window_bounds = array<i64: 1, 1, 45>}, {pipeline_mode = #tpu.pipeline_mode<synchronous>, transform_indices = @transform_1, window_bounds = array<i64: 4, 5>}, {pipeline_mode = #tpu.pipeline_mode<synchronous>, transform_indices = @transform_2, window_bounds = array<i64: 4, 1>}, {transform_indices = @transform_3, window_bounds = array<i64: 1, 4, 33>}]} {
    %c0 = arith.constant 0 : index
    %c0_0 = arith.constant 0 : index
    %c0_1 = arith.constant 0 : index
    %0 = vector.load %arg2[%c0, %c0_0, %c0_1] : memref<1x1x45xbf16, #tpu.memory_space<vmem>>, vector<1x1x45xbf16>
    %1 = vector.shape_cast %0 : vector<1x1x45xbf16> to vector<1x45xbf16>
    %2 = vector.extract_strided_slice %1 {offsets = [0, 0], sizes = [1, 33], strides = [1, 1]} : vector<1x45xbf16> to vector<1x33xbf16>
    %3 = vector.extract_strided_slice %1 {offsets = [0, 3], sizes = [1, 33], strides = [1, 1]} : vector<1x45xbf16> to vector<1x33xbf16>
    %4 = vector.extract_strided_slice %1 {offsets = [0, 6], sizes = [1, 33], strides = [1, 1]} : vector<1x45xbf16> to vector<1x33xbf16>
    %5 = vector.extract_strided_slice %1 {offsets = [0, 9], sizes = [1, 33], strides = [1, 1]} : vector<1x45xbf16> to vector<1x33xbf16>
    %6 = vector.extract_strided_slice %1 {offsets = [0, 12], sizes = [1, 33], strides = [1, 1]} : vector<1x45xbf16> to vector<1x33xbf16>
    %7 = tpu.concatenate %2, %3, %4, %5, %6 in 0 : vector<1x33xbf16>, vector<1x33xbf16>, vector<1x33xbf16>, vector<1x33xbf16>, vector<1x33xbf16> -> vector<5x33xbf16>
    %c0_2 = arith.constant 0 : index
    %c0_3 = arith.constant 0 : index
    %8 = vector.load %arg3[%c0_2, %c0_3] : memref<4x5xbf16, #tpu.memory_space<vmem>>, vector<4x5xbf16>
    %cst = arith.constant dense<0.000000e+00> : vector<4x33xf32>
    %9 = tpu.matmul %8, %7, %cst {dimension_numbers = #tpu.dot_dimension_numbers<[1], [0], [0], [1], [0, 0, 1, 1], [], []>} : vector<4x5xbf16>, vector<5x33xbf16>, vector<4x33xf32> -> vector<4x33xf32>
    %c0_4 = arith.constant 0 : index
    %c0_5 = arith.constant 0 : index
    %10 = vector.load %arg4[%c0_4, %c0_5] : memref<4x1xf32, #tpu.memory_space<vmem>>, vector<4x1xf32>
    %11 = vector.broadcast %10 : vector<4x1xf32> to vector<4x33xf32>
    %12 = arith.addf %9, %11 : vector<4x33xf32>
    %cst_6 = arith.constant 1.000000e-01 : f32
    %13 = vector.broadcast %cst_6 : f32 to vector<4x33xf32>
    %14 = arith.mulf %13, %12 : vector<4x33xf32>
    %15 = arith.maximumf %12, %14 : vector<4x33xf32>
    %16 = arith.truncf %15 : vector<4x33xf32> to vector<4x33xbf16>
    %c0_7 = arith.constant 0 : index
    %c0_8 = arith.constant 0 : index
    %c0_9 = arith.constant 0 : index
    %17 = vector.load %arg5[%c0_7, %c0_8, %c0_9] : memref<1x4x33xbf16, #tpu.memory_space<vmem>>, vector<1x4x33xbf16>
    %18 = vector.shape_cast %17 : vector<1x4x33xbf16> to vector<4x33xbf16>
    %19 = vector.shape_cast %16 : vector<4x33xbf16> to vector<1x4x33xbf16>
    tpu.vector_store %arg5[%c0_7, %c0_8, %c0_9], %19 {strides = array<i32>} : memref<1x4x33xbf16, #tpu.memory_space<vmem>>, vector<1x4x33xbf16>,
    return
  }
  func.func @transform_0(%arg0: i32, %arg1: i32) -> (i32, i32, i32) {
    %c0_i32 = arith.constant 0 : i32
    %c0_i32_0 = arith.constant 0 : i32
    %c0_i32_1 = arith.constant 0 : i32
    return %arg0, %c0_i32, %c0_i32_0 : i32, i32, i32
  }
  func.func @transform_1(%arg0: i32, %arg1: i32) -> (i32, i32) {
    %c0_i32 = arith.constant 0 : i32
    %c0_i32_0 = arith.constant 0 : i32
    %c0_i32_1 = arith.constant 0 : i32
    return %c0_i32, %c0_i32_0 : i32, i32
  }
  func.func @transform_2(%arg0: i32, %arg1: i32) -> (i32, i32) {
    %c0_i32 = arith.constant 0 : i32
    %c0_i32_0 = arith.constant 0 : i32
    %c0_i32_1 = arith.constant 0 : i32
    return %c0_i32, %c0_i32_0 : i32, i32
  }
  func.func @transform_3(%arg0: i32, %arg1: i32) -> (i32, i32, i32) {
    %c0_i32 = arith.constant 0 : i32
    %c0_i32_0 = arith.constant 0 : i32
    return %arg0, %c0_i32, %arg1 : i32, i32, i32
  }
}

module attributes {stable_mosaic.version = 11 : i64} {
  func.func @_conv_kernel(%arg0: i32, %arg1: i32, %arg2: memref<1x8x18xbf16, #tpu.memory_space<vmem>>, %arg3: memref<8x40xbf16, #tpu.memory_space<vmem>>, %arg4: memref<8x1xf32, #tpu.memory_space<vmem>>, %arg5: memref<1x8x6xbf16, #tpu.memory_space<vmem>>) attributes {dimension_semantics = [#tpu.dimension_semantics<parallel>, #tpu.dimension_semantics<parallel>], iteration_bounds = array<i64: 2, 1>, scalar_prefetch = 0 : i64, scratch_operands = 0 : i64, tpu.core_type = #tpu.core_type<tc>, window_params = [{transform_indices = @transform_0, window_bounds = array<i64: 1, 8, 18>}, {pipeline_mode = #tpu.pipeline_mode<synchronous>, transform_indices = @transform_1, window_bounds = array<i64: 8, 40>}, {pipeline_mode = #tpu.pipeline_mode<synchronous>, transform_indices = @transform_2, window_bounds = array<i64: 8, 1>}, {transform_indices = @transform_3, window_bounds = array<i64: 1, 8, 6>}]} {
    %c0 = arith.constant 0 : index
    %c0_0 = arith.constant 0 : index
    %c0_1 = arith.constant 0 : index
    %0 = vector.load %arg2[%c0, %c0_0, %c0_1] : memref<1x8x18xbf16, #tpu.memory_space<vmem>>, vector<1x8x18xbf16>
    %1 = vector.shape_cast %0 : vector<1x8x18xbf16> to vector<8x18xbf16>
    %2 = vector.extract_strided_slice %1 {offsets = [0, 0], sizes = [8, 6], strides = [1, 1]} : vector<8x18xbf16> to vector<8x6xbf16>
    %3 = vector.extract_strided_slice %1 {offsets = [0, 3], sizes = [8, 6], strides = [1, 1]} : vector<8x18xbf16> to vector<8x6xbf16>
    %4 = vector.extract_strided_slice %1 {offsets = [0, 6], sizes = [8, 6], strides = [1, 1]} : vector<8x18xbf16> to vector<8x6xbf16>
    %5 = vector.extract_strided_slice %1 {offsets = [0, 9], sizes = [8, 6], strides = [1, 1]} : vector<8x18xbf16> to vector<8x6xbf16>
    %6 = vector.extract_strided_slice %1 {offsets = [0, 12], sizes = [8, 6], strides = [1, 1]} : vector<8x18xbf16> to vector<8x6xbf16>
    %7 = tpu.concatenate %2, %3, %4, %5, %6 in 0 : vector<8x6xbf16>, vector<8x6xbf16>, vector<8x6xbf16>, vector<8x6xbf16>, vector<8x6xbf16> -> vector<40x6xbf16>
    %c0_2 = arith.constant 0 : index
    %c0_3 = arith.constant 0 : index
    %8 = vector.load %arg3[%c0_2, %c0_3] : memref<8x40xbf16, #tpu.memory_space<vmem>>, vector<8x40xbf16>
    %cst = arith.constant dense<0.000000e+00> : vector<8x6xf32>
    %9 = tpu.matmul %8, %7, %cst {dimension_numbers = #tpu.dot_dimension_numbers<[1], [0], [0], [1], [0, 0, 1, 1], [], []>} : vector<8x40xbf16>, vector<40x6xbf16>, vector<8x6xf32> -> vector<8x6xf32>
    %c0_4 = arith.constant 0 : index
    %c0_5 = arith.constant 0 : index
    %10 = vector.load %arg4[%c0_4, %c0_5] : memref<8x1xf32, #tpu.memory_space<vmem>>, vector<8x1xf32>
    %11 = vector.broadcast %10 : vector<8x1xf32> to vector<8x6xf32>
    %12 = arith.addf %9, %11 : vector<8x6xf32>
    %cst_6 = arith.constant 1.000000e-01 : f32
    %13 = vector.broadcast %cst_6 : f32 to vector<8x6xf32>
    %14 = arith.mulf %13, %12 : vector<8x6xf32>
    %15 = arith.maximumf %12, %14 : vector<8x6xf32>
    %16 = arith.truncf %15 : vector<8x6xf32> to vector<8x6xbf16>
    %c0_7 = arith.constant 0 : index
    %c0_8 = arith.constant 0 : index
    %c0_9 = arith.constant 0 : index
    %17 = vector.load %arg5[%c0_7, %c0_8, %c0_9] : memref<1x8x6xbf16, #tpu.memory_space<vmem>>, vector<1x8x6xbf16>
    %18 = vector.shape_cast %17 : vector<1x8x6xbf16> to vector<8x6xbf16>
    %19 = vector.shape_cast %16 : vector<8x6xbf16> to vector<1x8x6xbf16>
    tpu.vector_store %arg5[%c0_7, %c0_8, %c0_9], %19 {strides = array<i32>} : memref<1x8x6xbf16, #tpu.memory_space<vmem>>, vector<1x8x6xbf16>,
    return
  }
  func.func @transform_0(%arg0: i32, %arg1: i32) -> (i32, i32, i32) {
    %c0_i32 = arith.constant 0 : i32
    %c0_i32_0 = arith.constant 0 : i32
    %c0_i32_1 = arith.constant 0 : i32
    return %arg0, %c0_i32, %c0_i32_0 : i32, i32, i32
  }
  func.func @transform_1(%arg0: i32, %arg1: i32) -> (i32, i32) {
    %c0_i32 = arith.constant 0 : i32
    %c0_i32_0 = arith.constant 0 : i32
    %c0_i32_1 = arith.constant 0 : i32
    return %c0_i32, %c0_i32_0 : i32, i32
  }
  func.func @transform_2(%arg0: i32, %arg1: i32) -> (i32, i32) {
    %c0_i32 = arith.constant 0 : i32
    %c0_i32_0 = arith.constant 0 : i32
    %c0_i32_1 = arith.constant 0 : i32
    return %c0_i32, %c0_i32_0 : i32, i32
  }
  func.func @transform_3(%arg0: i32, %arg1: i32) -> (i32, i32, i32) {
    %c0_i32 = arith.constant 0 : i32
    %c0_i32_0 = arith.constant 0 : i32
    return %arg0, %c0_i32, %arg1 : i32, i32, i32
  }
}

module attributes {stable_mosaic.version = 11 : i64} {
  func.func @_conv_kernel(%arg0: i32, %arg1: i32, %arg2: memref<1x4x24xbf16, #tpu.memory_space<vmem>>, %arg3: memref<8x20xbf16, #tpu.memory_space<vmem>>, %arg4: memref<8x1xf32, #tpu.memory_space<vmem>>, %arg5: memref<1x8x12xbf16, #tpu.memory_space<vmem>>) attributes {dimension_semantics = [#tpu.dimension_semantics<parallel>, #tpu.dimension_semantics<parallel>], iteration_bounds = array<i64: 2, 1>, scalar_prefetch = 0 : i64, scratch_operands = 0 : i64, tpu.core_type = #tpu.core_type<tc>, window_params = [{transform_indices = @transform_0, window_bounds = array<i64: 1, 4, 24>}, {pipeline_mode = #tpu.pipeline_mode<synchronous>, transform_indices = @transform_1, window_bounds = array<i64: 8, 20>}, {pipeline_mode = #tpu.pipeline_mode<synchronous>, transform_indices = @transform_2, window_bounds = array<i64: 8, 1>}, {transform_indices = @transform_3, window_bounds = array<i64: 1, 8, 12>}]} {
    %c0 = arith.constant 0 : index
    %c0_0 = arith.constant 0 : index
    %c0_1 = arith.constant 0 : index
    %0 = vector.load %arg2[%c0, %c0_0, %c0_1] : memref<1x4x24xbf16, #tpu.memory_space<vmem>>, vector<1x4x24xbf16>
    %1 = vector.shape_cast %0 : vector<1x4x24xbf16> to vector<4x24xbf16>
    %2 = vector.extract_strided_slice %1 {offsets = [0, 0], sizes = [4, 12], strides = [1, 1]} : vector<4x24xbf16> to vector<4x12xbf16>
    %3 = vector.extract_strided_slice %1 {offsets = [0, 3], sizes = [4, 12], strides = [1, 1]} : vector<4x24xbf16> to vector<4x12xbf16>
    %4 = vector.extract_strided_slice %1 {offsets = [0, 6], sizes = [4, 12], strides = [1, 1]} : vector<4x24xbf16> to vector<4x12xbf16>
    %5 = vector.extract_strided_slice %1 {offsets = [0, 9], sizes = [4, 12], strides = [1, 1]} : vector<4x24xbf16> to vector<4x12xbf16>
    %6 = vector.extract_strided_slice %1 {offsets = [0, 12], sizes = [4, 12], strides = [1, 1]} : vector<4x24xbf16> to vector<4x12xbf16>
    %7 = tpu.concatenate %2, %3, %4, %5, %6 in 0 : vector<4x12xbf16>, vector<4x12xbf16>, vector<4x12xbf16>, vector<4x12xbf16>, vector<4x12xbf16> -> vector<20x12xbf16>
    %c0_2 = arith.constant 0 : index
    %c0_3 = arith.constant 0 : index
    %8 = vector.load %arg3[%c0_2, %c0_3] : memref<8x20xbf16, #tpu.memory_space<vmem>>, vector<8x20xbf16>
    %cst = arith.constant dense<0.000000e+00> : vector<8x12xf32>
    %9 = tpu.matmul %8, %7, %cst {dimension_numbers = #tpu.dot_dimension_numbers<[1], [0], [0], [1], [0, 0, 1, 1], [], []>} : vector<8x20xbf16>, vector<20x12xbf16>, vector<8x12xf32> -> vector<8x12xf32>
    %c0_4 = arith.constant 0 : index
    %c0_5 = arith.constant 0 : index
    %10 = vector.load %arg4[%c0_4, %c0_5] : memref<8x1xf32, #tpu.memory_space<vmem>>, vector<8x1xf32>
    %11 = vector.broadcast %10 : vector<8x1xf32> to vector<8x12xf32>
    %12 = arith.addf %9, %11 : vector<8x12xf32>
    %cst_6 = arith.constant 1.000000e-01 : f32
    %13 = vector.broadcast %cst_6 : f32 to vector<8x12xf32>
    %14 = arith.mulf %13, %12 : vector<8x12xf32>
    %15 = arith.maximumf %12, %14 : vector<8x12xf32>
    %16 = arith.truncf %15 : vector<8x12xf32> to vector<8x12xbf16>
    %c0_7 = arith.constant 0 : index
    %c0_8 = arith.constant 0 : index
    %c0_9 = arith.constant 0 : index
    %17 = vector.load %arg5[%c0_7, %c0_8, %c0_9] : memref<1x8x12xbf16, #tpu.memory_space<vmem>>, vector<1x8x12xbf16>
    %18 = vector.shape_cast %17 : vector<1x8x12xbf16> to vector<8x12xbf16>
    %19 = vector.shape_cast %16 : vector<8x12xbf16> to vector<1x8x12xbf16>
    tpu.vector_store %arg5[%c0_7, %c0_8, %c0_9], %19 {strides = array<i32>} : memref<1x8x12xbf16, #tpu.memory_space<vmem>>, vector<1x8x12xbf16>,
    return
  }
  func.func @transform_0(%arg0: i32, %arg1: i32) -> (i32, i32, i32) {
    %c0_i32 = arith.constant 0 : i32
    %c0_i32_0 = arith.constant 0 : i32
    %c0_i32_1 = arith.constant 0 : i32
    return %arg0, %c0_i32, %c0_i32_0 : i32, i32, i32
  }
  func.func @transform_1(%arg0: i32, %arg1: i32) -> (i32, i32) {
    %c0_i32 = arith.constant 0 : i32
    %c0_i32_0 = arith.constant 0 : i32
    %c0_i32_1 = arith.constant 0 : i32
    return %c0_i32, %c0_i32_0 : i32, i32
  }
  func.func @transform_2(%arg0: i32, %arg1: i32) -> (i32, i32) {
    %c0_i32 = arith.constant 0 : i32
    %c0_i32_0 = arith.constant 0 : i32
    %c0_i32_1 = arith.constant 0 : i32
    return %c0_i32, %c0_i32_0 : i32, i32
  }
  func.func @transform_3(%arg0: i32, %arg1: i32) -> (i32, i32, i32) {
    %c0_i32 = arith.constant 0 : i32
    %c0_i32_0 = arith.constant 0 : i32
    return %arg0, %c0_i32, %arg1 : i32, i32, i32
  }
}

module attributes {stable_mosaic.version = 11 : i64} {
  func.func @_conv_kernel(%arg0: i32, %arg1: i32, %arg2: memref<1x8x12xbf16, #tpu.memory_space<vmem>>, %arg3: memref<1x24xbf16, #tpu.memory_space<vmem>>, %arg4: memref<1x1xf32, #tpu.memory_space<vmem>>, %arg5: memref<1x1x6xbf16, #tpu.memory_space<vmem>>) attributes {dimension_semantics = [#tpu.dimension_semantics<parallel>, #tpu.dimension_semantics<parallel>], iteration_bounds = array<i64: 2, 1>, scalar_prefetch = 0 : i64, scratch_operands = 0 : i64, tpu.core_type = #tpu.core_type<tc>, window_params = [{transform_indices = @transform_0, window_bounds = array<i64: 1, 8, 12>}, {pipeline_mode = #tpu.pipeline_mode<synchronous>, transform_indices = @transform_1, window_bounds = array<i64: 1, 24>}, {pipeline_mode = #tpu.pipeline_mode<synchronous>, transform_indices = @transform_2, window_bounds = array<i64: 1, 1>}, {transform_indices = @transform_3, window_bounds = array<i64: 1, 1, 6>}]} {
    %c0 = arith.constant 0 : index
    %c0_0 = arith.constant 0 : index
    %c0_1 = arith.constant 0 : index
    %0 = vector.load %arg2[%c0, %c0_0, %c0_1] : memref<1x8x12xbf16, #tpu.memory_space<vmem>>, vector<1x8x12xbf16>
    %1 = vector.shape_cast %0 : vector<1x8x12xbf16> to vector<8x12xbf16>
    %2 = vector.extract_strided_slice %1 {offsets = [0, 0], sizes = [8, 6], strides = [1, 1]} : vector<8x12xbf16> to vector<8x6xbf16>
    %3 = vector.extract_strided_slice %1 {offsets = [0, 3], sizes = [8, 6], strides = [1, 1]} : vector<8x12xbf16> to vector<8x6xbf16>
    %4 = vector.extract_strided_slice %1 {offsets = [0, 6], sizes = [8, 6], strides = [1, 1]} : vector<8x12xbf16> to vector<8x6xbf16>
    %5 = tpu.concatenate %2, %3, %4 in 0 : vector<8x6xbf16>, vector<8x6xbf16>, vector<8x6xbf16> -> vector<24x6xbf16>
    %c0_2 = arith.constant 0 : index
    %c0_3 = arith.constant 0 : index
    %6 = vector.load %arg3[%c0_2, %c0_3] : memref<1x24xbf16, #tpu.memory_space<vmem>>, vector<1x24xbf16>
    %cst = arith.constant dense<0.000000e+00> : vector<1x6xf32>
    %7 = tpu.matmul %6, %5, %cst {dimension_numbers = #tpu.dot_dimension_numbers<[1], [0], [0], [1], [0, 0, 1, 1], [], []>} : vector<1x24xbf16>, vector<24x6xbf16>, vector<1x6xf32> -> vector<1x6xf32>
    %c0_4 = arith.constant 0 : index
    %c0_5 = arith.constant 0 : index
    %8 = vector.load %arg4[%c0_4, %c0_5] : memref<1x1xf32, #tpu.memory_space<vmem>>, vector<1x1xf32>
    %9 = vector.broadcast %8 : vector<1x1xf32> to vector<1x6xf32>
    %10 = arith.addf %7, %9 : vector<1x6xf32>
    %11 = arith.truncf %10 : vector<1x6xf32> to vector<1x6xbf16>
    %c0_6 = arith.constant 0 : index
    %c0_7 = arith.constant 0 : index
    %c0_8 = arith.constant 0 : index
    %12 = vector.load %arg5[%c0_6, %c0_7, %c0_8] : memref<1x1x6xbf16, #tpu.memory_space<vmem>>, vector<1x1x6xbf16>
    %13 = vector.shape_cast %12 : vector<1x1x6xbf16> to vector<1x6xbf16>
    %14 = vector.shape_cast %11 : vector<1x6xbf16> to vector<1x1x6xbf16>
    tpu.vector_store %arg5[%c0_6, %c0_7, %c0_8], %14 {strides = array<i32>} : memref<1x1x6xbf16, #tpu.memory_space<vmem>>, vector<1x1x6xbf16>,
    return
  }
  func.func @transform_0(%arg0: i32, %arg1: i32) -> (i32, i32, i32) {
    %c0_i32 = arith.constant 0 : i32
    %c0_i32_0 = arith.constant 0 : i32
    %c0_i32_1 = arith.constant 0 : i32
    return %arg0, %c0_i32, %c0_i32_0 : i32, i32, i32
  }
  func.func @transform_1(%arg0: i32, %arg1: i32) -> (i32, i32) {
    %c0_i32 = arith.constant 0 : i32
    %c0_i32_0 = arith.constant 0 : i32
    %c0_i32_1 = arith.constant 0 : i32
    return %c0_i32, %c0_i32_0 : i32, i32
  }
  func.func @transform_2(%arg0: i32, %arg1: i32) -> (i32, i32) {
    %c0_i32 = arith.constant 0 : i32
    %c0_i32_0 = arith.constant 0 : i32
    %c0_i32_1 = arith.constant 0 : i32
    return %c0_i32, %c0_i32_0 : i32, i32
  }
  func.func @transform_3(%arg0: i32, %arg1: i32) -> (i32, i32, i32) {
    %c0_i32 = arith.constant 0 : i32
    %c0_i32_0 = arith.constant 0 : i32
    return %arg0, %c0_i32, %arg1 : i32, i32, i32
  }
}

module attributes {stable_mosaic.version = 11 : i64} {
  func.func @_conv_kernel(%arg0: i32, %arg1: i32, %arg2: memref<1x8x18xbf16, #tpu.memory_space<vmem>>, %arg3: memref<1x24xbf16, #tpu.memory_space<vmem>>, %arg4: memref<1x1xf32, #tpu.memory_space<vmem>>, %arg5: memref<1x1x16xbf16, #tpu.memory_space<vmem>>) attributes {dimension_semantics = [#tpu.dimension_semantics<parallel>, #tpu.dimension_semantics<parallel>], iteration_bounds = array<i64: 2, 1>, scalar_prefetch = 0 : i64, scratch_operands = 0 : i64, tpu.core_type = #tpu.core_type<tc>, window_params = [{transform_indices = @transform_0, window_bounds = array<i64: 1, 8, 18>}, {pipeline_mode = #tpu.pipeline_mode<synchronous>, transform_indices = @transform_1, window_bounds = array<i64: 1, 24>}, {pipeline_mode = #tpu.pipeline_mode<synchronous>, transform_indices = @transform_2, window_bounds = array<i64: 1, 1>}, {transform_indices = @transform_3, window_bounds = array<i64: 1, 1, 16>}]} {
    %c0 = arith.constant 0 : index
    %c0_0 = arith.constant 0 : index
    %c0_1 = arith.constant 0 : index
    %0 = vector.load %arg2[%c0, %c0_0, %c0_1] : memref<1x8x18xbf16, #tpu.memory_space<vmem>>, vector<1x8x18xbf16>
    %1 = vector.shape_cast %0 : vector<1x8x18xbf16> to vector<8x18xbf16>
    %2 = vector.extract_strided_slice %1 {offsets = [0, 0], sizes = [8, 16], strides = [1, 1]} : vector<8x18xbf16> to vector<8x16xbf16>
    %3 = vector.extract_strided_slice %1 {offsets = [0, 1], sizes = [8, 16], strides = [1, 1]} : vector<8x18xbf16> to vector<8x16xbf16>
    %4 = vector.extract_strided_slice %1 {offsets = [0, 2], sizes = [8, 16], strides = [1, 1]} : vector<8x18xbf16> to vector<8x16xbf16>
    %5 = tpu.concatenate %2, %3, %4 in 0 : vector<8x16xbf16>, vector<8x16xbf16>, vector<8x16xbf16> -> vector<24x16xbf16>
    %c0_2 = arith.constant 0 : index
    %c0_3 = arith.constant 0 : index
    %6 = vector.load %arg3[%c0_2, %c0_3] : memref<1x24xbf16, #tpu.memory_space<vmem>>, vector<1x24xbf16>
    %cst = arith.constant dense<0.000000e+00> : vector<1x16xf32>
    %7 = tpu.matmul %6, %5, %cst {dimension_numbers = #tpu.dot_dimension_numbers<[1], [0], [0], [1], [0, 0, 1, 1], [], []>} : vector<1x24xbf16>, vector<24x16xbf16>, vector<1x16xf32> -> vector<1x16xf32>
    %c0_4 = arith.constant 0 : index
    %c0_5 = arith.constant 0 : index
    %8 = vector.load %arg4[%c0_4, %c0_5] : memref<1x1xf32, #tpu.memory_space<vmem>>, vector<1x1xf32>
    %9 = vector.broadcast %8 : vector<1x1xf32> to vector<1x16xf32>
    %10 = arith.addf %7, %9 : vector<1x16xf32>
    %11 = arith.truncf %10 : vector<1x16xf32> to vector<1x16xbf16>
    %c0_6 = arith.constant 0 : index
    %c0_7 = arith.constant 0 : index
    %c0_8 = arith.constant 0 : index
    %12 = vector.load %arg5[%c0_6, %c0_7, %c0_8] : memref<1x1x16xbf16, #tpu.memory_space<vmem>>, vector<1x1x16xbf16>
    %13 = vector.shape_cast %12 : vector<1x1x16xbf16> to vector<1x16xbf16>
    %14 = vector.shape_cast %11 : vector<1x16xbf16> to vector<1x1x16xbf16>
    tpu.vector_store %arg5[%c0_6, %c0_7, %c0_8], %14 {strides = array<i32>} : memref<1x1x16xbf16, #tpu.memory_space<vmem>>, vector<1x1x16xbf16>,
    return
  }
  func.func @transform_0(%arg0: i32, %arg1: i32) -> (i32, i32, i32) {
    %c0_i32 = arith.constant 0 : i32
    %c0_i32_0 = arith.constant 0 : i32
    %c0_i32_1 = arith.constant 0 : i32
    return %arg0, %c0_i32, %c0_i32_0 : i32, i32, i32
  }
  func.func @transform_1(%arg0: i32, %arg1: i32) -> (i32, i32) {
    %c0_i32 = arith.constant 0 : i32
    %c0_i32_0 = arith.constant 0 : i32
    %c0_i32_1 = arith.constant 0 : i32
    return %c0_i32, %c0_i32_0 : i32, i32
  }
  func.func @transform_2(%arg0: i32, %arg1: i32) -> (i32, i32) {
    %c0_i32 = arith.constant 0 : i32
    %c0_i32_0 = arith.constant 0 : i32
    %c0_i32_1 = arith.constant 0 : i32
    return %c0_i32, %c0_i32_0 : i32, i32
  }
  func.func @transform_3(%arg0: i32, %arg1: i32) -> (i32, i32, i32) {
    %c0_i32 = arith.constant 0 : i32
    %c0_i32_0 = arith.constant 0 : i32
    return %arg0, %c0_i32, %arg1 : i32, i32, i32
  }
}

module attributes {stable_mosaic.version = 11 : i64} {
  func.func @_conv_kernel(%arg0: i32, %arg1: i32, %arg2: memref<1x1x46xbf16, #tpu.memory_space<vmem>>, %arg3: memref<4x15xbf16, #tpu.memory_space<vmem>>, %arg4: memref<4x1xf32, #tpu.memory_space<vmem>>, %arg5: memref<1x4x32xbf16, #tpu.memory_space<vmem>>) attributes {dimension_semantics = [#tpu.dimension_semantics<parallel>, #tpu.dimension_semantics<parallel>], iteration_bounds = array<i64: 2, 1>, scalar_prefetch = 0 : i64, scratch_operands = 0 : i64, tpu.core_type = #tpu.core_type<tc>, window_params = [{transform_indices = @transform_0, window_bounds = array<i64: 1, 1, 46>}, {pipeline_mode = #tpu.pipeline_mode<synchronous>, transform_indices = @transform_1, window_bounds = array<i64: 4, 15>}, {pipeline_mode = #tpu.pipeline_mode<synchronous>, transform_indices = @transform_2, window_bounds = array<i64: 4, 1>}, {transform_indices = @transform_3, window_bounds = array<i64: 1, 4, 32>}]} {
    %c0 = arith.constant 0 : index
    %c0_0 = arith.constant 0 : index
    %c0_1 = arith.constant 0 : index
    %0 = vector.load %arg2[%c0, %c0_0, %c0_1] : memref<1x1x46xbf16, #tpu.memory_space<vmem>>, vector<1x1x46xbf16>
    %1 = vector.shape_cast %0 : vector<1x1x46xbf16> to vector<1x46xbf16>
    %2 = vector.extract_strided_slice %1 {offsets = [0, 0], sizes = [1, 32], strides = [1, 1]} : vector<1x46xbf16> to vector<1x32xbf16>
    %3 = vector.extract_strided_slice %1 {offsets = [0, 1], sizes = [1, 32], strides = [1, 1]} : vector<1x46xbf16> to vector<1x32xbf16>
    %4 = vector.extract_strided_slice %1 {offsets = [0, 2], sizes = [1, 32], strides = [1, 1]} : vector<1x46xbf16> to vector<1x32xbf16>
    %5 = vector.extract_strided_slice %1 {offsets = [0, 3], sizes = [1, 32], strides = [1, 1]} : vector<1x46xbf16> to vector<1x32xbf16>
    %6 = vector.extract_strided_slice %1 {offsets = [0, 4], sizes = [1, 32], strides = [1, 1]} : vector<1x46xbf16> to vector<1x32xbf16>
    %7 = vector.extract_strided_slice %1 {offsets = [0, 5], sizes = [1, 32], strides = [1, 1]} : vector<1x46xbf16> to vector<1x32xbf16>
    %8 = vector.extract_strided_slice %1 {offsets = [0, 6], sizes = [1, 32], strides = [1, 1]} : vector<1x46xbf16> to vector<1x32xbf16>
    %9 = vector.extract_strided_slice %1 {offsets = [0, 7], sizes = [1, 32], strides = [1, 1]} : vector<1x46xbf16> to vector<1x32xbf16>
    %10 = vector.extract_strided_slice %1 {offsets = [0, 8], sizes = [1, 32], strides = [1, 1]} : vector<1x46xbf16> to vector<1x32xbf16>
    %11 = vector.extract_strided_slice %1 {offsets = [0, 9], sizes = [1, 32], strides = [1, 1]} : vector<1x46xbf16> to vector<1x32xbf16>
    %12 = vector.extract_strided_slice %1 {offsets = [0, 10], sizes = [1, 32], strides = [1, 1]} : vector<1x46xbf16> to vector<1x32xbf16>
    %13 = vector.extract_strided_slice %1 {offsets = [0, 11], sizes = [1, 32], strides = [1, 1]} : vector<1x46xbf16> to vector<1x32xbf16>
    %14 = vector.extract_strided_slice %1 {offsets = [0, 12], sizes = [1, 32], strides = [1, 1]} : vector<1x46xbf16> to vector<1x32xbf16>
    %15 = vector.extract_strided_slice %1 {offsets = [0, 13], sizes = [1, 32], strides = [1, 1]} : vector<1x46xbf16> to vector<1x32xbf16>
    %16 = vector.extract_strided_slice %1 {offsets = [0, 14], sizes = [1, 32], strides = [1, 1]} : vector<1x46xbf16> to vector<1x32xbf16>
    %17 = tpu.concatenate %2, %3, %4, %5, %6, %7, %8, %9, %10, %11, %12, %13, %14, %15, %16 in 0 : vector<1x32xbf16>, vector<1x32xbf16>, vector<1x32xbf16>, vector<1x32xbf16>, vector<1x32xbf16>, vector<1x32xbf16>, vector<1x32xbf16>, vector<1x32xbf16>, vector<1x32xbf16>, vector<1x32xbf16>, vector<1x32xbf16>, vector<1x32xbf16>, vector<1x32xbf16>, vector<1x32xbf16>, vector<1x32xbf16> -> vector<15x32xbf16>
    %c0_2 = arith.constant 0 : index
    %c0_3 = arith.constant 0 : index
    %18 = vector.load %arg3[%c0_2, %c0_3] : memref<4x15xbf16, #tpu.memory_space<vmem>>, vector<4x15xbf16>
    %cst = arith.constant dense<0.000000e+00> : vector<4x32xf32>
    %19 = tpu.matmul %18, %17, %cst {dimension_numbers = #tpu.dot_dimension_numbers<[1], [0], [0], [1], [0, 0, 1, 1], [], []>} : vector<4x15xbf16>, vector<15x32xbf16>, vector<4x32xf32> -> vector<4x32xf32>
    %c0_4 = arith.constant 0 : index
    %c0_5 = arith.constant 0 : index
    %20 = vector.load %arg4[%c0_4, %c0_5] : memref<4x1xf32, #tpu.memory_space<vmem>>, vector<4x1xf32>
    %21 = vector.broadcast %20 : vector<4x1xf32> to vector<4x32xf32>
    %22 = arith.addf %19, %21 : vector<4x32xf32>
    %cst_6 = arith.constant 1.000000e-01 : f32
    %23 = vector.broadcast %cst_6 : f32 to vector<4x32xf32>
    %24 = arith.mulf %23, %22 : vector<4x32xf32>
    %25 = arith.maximumf %22, %24 : vector<4x32xf32>
    %26 = arith.truncf %25 : vector<4x32xf32> to vector<4x32xbf16>
    %c0_7 = arith.constant 0 : index
    %c0_8 = arith.constant 0 : index
    %c0_9 = arith.constant 0 : index
    %27 = vector.load %arg5[%c0_7, %c0_8, %c0_9] : memref<1x4x32xbf16, #tpu.memory_space<vmem>>, vector<1x4x32xbf16>
    %28 = vector.shape_cast %27 : vector<1x4x32xbf16> to vector<4x32xbf16>
    %29 = vector.shape_cast %26 : vector<4x32xbf16> to vector<1x4x32xbf16>
    tpu.vector_store %arg5[%c0_7, %c0_8, %c0_9], %29 {strides = array<i32>} : memref<1x4x32xbf16, #tpu.memory_space<vmem>>, vector<1x4x32xbf16>,
    return
  }
  func.func @transform_0(%arg0: i32, %arg1: i32) -> (i32, i32, i32) {
    %c0_i32 = arith.constant 0 : i32
    %c0_i32_0 = arith.constant 0 : i32
    %c0_i32_1 = arith.constant 0 : i32
    return %arg0, %c0_i32, %c0_i32_0 : i32, i32, i32
  }
  func.func @transform_1(%arg0: i32, %arg1: i32) -> (i32, i32) {
    %c0_i32 = arith.constant 0 : i32
    %c0_i32_0 = arith.constant 0 : i32
    %c0_i32_1 = arith.constant 0 : i32
    return %c0_i32, %c0_i32_0 : i32, i32
  }
  func.func @transform_2(%arg0: i32, %arg1: i32) -> (i32, i32) {
    %c0_i32 = arith.constant 0 : i32
    %c0_i32_0 = arith.constant 0 : i32
    %c0_i32_1 = arith.constant 0 : i32
    return %c0_i32, %c0_i32_0 : i32, i32
  }
  func.func @transform_3(%arg0: i32, %arg1: i32) -> (i32, i32, i32) {
    %c0_i32 = arith.constant 0 : i32
    %c0_i32_0 = arith.constant 0 : i32
    return %arg0, %c0_i32, %arg1 : i32, i32, i32
  }
}

module attributes {stable_mosaic.version = 11 : i64} {
  func.func @_conv_kernel(%arg0: i32, %arg1: i32, %arg2: memref<1x8x20xbf16, #tpu.memory_space<vmem>>, %arg3: memref<8x40xbf16, #tpu.memory_space<vmem>>, %arg4: memref<8x1xf32, #tpu.memory_space<vmem>>, %arg5: memref<1x8x16xbf16, #tpu.memory_space<vmem>>) attributes {dimension_semantics = [#tpu.dimension_semantics<parallel>, #tpu.dimension_semantics<parallel>], iteration_bounds = array<i64: 2, 1>, scalar_prefetch = 0 : i64, scratch_operands = 0 : i64, tpu.core_type = #tpu.core_type<tc>, window_params = [{transform_indices = @transform_0, window_bounds = array<i64: 1, 8, 20>}, {pipeline_mode = #tpu.pipeline_mode<synchronous>, transform_indices = @transform_1, window_bounds = array<i64: 8, 40>}, {pipeline_mode = #tpu.pipeline_mode<synchronous>, transform_indices = @transform_2, window_bounds = array<i64: 8, 1>}, {transform_indices = @transform_3, window_bounds = array<i64: 1, 8, 16>}]} {
    %c0 = arith.constant 0 : index
    %c0_0 = arith.constant 0 : index
    %c0_1 = arith.constant 0 : index
    %0 = vector.load %arg2[%c0, %c0_0, %c0_1] : memref<1x8x20xbf16, #tpu.memory_space<vmem>>, vector<1x8x20xbf16>
    %1 = vector.shape_cast %0 : vector<1x8x20xbf16> to vector<8x20xbf16>
    %2 = vector.extract_strided_slice %1 {offsets = [0, 0], sizes = [8, 16], strides = [1, 1]} : vector<8x20xbf16> to vector<8x16xbf16>
    %3 = vector.extract_strided_slice %1 {offsets = [0, 1], sizes = [8, 16], strides = [1, 1]} : vector<8x20xbf16> to vector<8x16xbf16>
    %4 = vector.extract_strided_slice %1 {offsets = [0, 2], sizes = [8, 16], strides = [1, 1]} : vector<8x20xbf16> to vector<8x16xbf16>
    %5 = vector.extract_strided_slice %1 {offsets = [0, 3], sizes = [8, 16], strides = [1, 1]} : vector<8x20xbf16> to vector<8x16xbf16>
    %6 = vector.extract_strided_slice %1 {offsets = [0, 4], sizes = [8, 16], strides = [1, 1]} : vector<8x20xbf16> to vector<8x16xbf16>
    %7 = tpu.concatenate %2, %3, %4, %5, %6 in 0 : vector<8x16xbf16>, vector<8x16xbf16>, vector<8x16xbf16>, vector<8x16xbf16>, vector<8x16xbf16> -> vector<40x16xbf16>
    %c0_2 = arith.constant 0 : index
    %c0_3 = arith.constant 0 : index
    %8 = vector.load %arg3[%c0_2, %c0_3] : memref<8x40xbf16, #tpu.memory_space<vmem>>, vector<8x40xbf16>
    %cst = arith.constant dense<0.000000e+00> : vector<8x16xf32>
    %9 = tpu.matmul %8, %7, %cst {dimension_numbers = #tpu.dot_dimension_numbers<[1], [0], [0], [1], [0, 0, 1, 1], [], []>} : vector<8x40xbf16>, vector<40x16xbf16>, vector<8x16xf32> -> vector<8x16xf32>
    %c0_4 = arith.constant 0 : index
    %c0_5 = arith.constant 0 : index
    %10 = vector.load %arg4[%c0_4, %c0_5] : memref<8x1xf32, #tpu.memory_space<vmem>>, vector<8x1xf32>
    %11 = vector.broadcast %10 : vector<8x1xf32> to vector<8x16xf32>
    %12 = arith.addf %9, %11 : vector<8x16xf32>
    %cst_6 = arith.constant 1.000000e-01 : f32
    %13 = vector.broadcast %cst_6 : f32 to vector<8x16xf32>
    %14 = arith.mulf %13, %12 : vector<8x16xf32>
    %15 = arith.maximumf %12, %14 : vector<8x16xf32>
    %16 = arith.truncf %15 : vector<8x16xf32> to vector<8x16xbf16>
    %c0_7 = arith.constant 0 : index
    %c0_8 = arith.constant 0 : index
    %c0_9 = arith.constant 0 : index
    %17 = vector.load %arg5[%c0_7, %c0_8, %c0_9] : memref<1x8x16xbf16, #tpu.memory_space<vmem>>, vector<1x8x16xbf16>
    %18 = vector.shape_cast %17 : vector<1x8x16xbf16> to vector<8x16xbf16>
    %19 = vector.shape_cast %16 : vector<8x16xbf16> to vector<1x8x16xbf16>
    tpu.vector_store %arg5[%c0_7, %c0_8, %c0_9], %19 {strides = array<i32>} : memref<1x8x16xbf16, #tpu.memory_space<vmem>>, vector<1x8x16xbf16>,
    return
  }
  func.func @transform_0(%arg0: i32, %arg1: i32) -> (i32, i32, i32) {
    %c0_i32 = arith.constant 0 : i32
    %c0_i32_0 = arith.constant 0 : i32
    %c0_i32_1 = arith.constant 0 : i32
    return %arg0, %c0_i32, %c0_i32_0 : i32, i32, i32
  }
  func.func @transform_1(%arg0: i32, %arg1: i32) -> (i32, i32) {
    %c0_i32 = arith.constant 0 : i32
    %c0_i32_0 = arith.constant 0 : i32
    %c0_i32_1 = arith.constant 0 : i32
    return %c0_i32, %c0_i32_0 : i32, i32
  }
  func.func @transform_2(%arg0: i32, %arg1: i32) -> (i32, i32) {
    %c0_i32 = arith.constant 0 : i32
    %c0_i32_0 = arith.constant 0 : i32
    %c0_i32_1 = arith.constant 0 : i32
    return %c0_i32, %c0_i32_0 : i32, i32
  }
  func.func @transform_3(%arg0: i32, %arg1: i32) -> (i32, i32, i32) {
    %c0_i32 = arith.constant 0 : i32
    %c0_i32_0 = arith.constant 0 : i32
    return %arg0, %c0_i32, %arg1 : i32, i32, i32
  }
}

module attributes {stable_mosaic.version = 11 : i64} {
  func.func @_conv_kernel(%arg0: i32, %arg1: i32, %arg2: memref<1x2x18xbf16, #tpu.memory_space<vmem>>, %arg3: memref<1x4xbf16, #tpu.memory_space<vmem>>, %arg4: memref<1x1xf32, #tpu.memory_space<vmem>>, %arg5: memref<1x1x17xbf16, #tpu.memory_space<vmem>>) attributes {dimension_semantics = [#tpu.dimension_semantics<parallel>, #tpu.dimension_semantics<parallel>], iteration_bounds = array<i64: 2, 1>, scalar_prefetch = 0 : i64, scratch_operands = 0 : i64, tpu.core_type = #tpu.core_type<tc>, window_params = [{transform_indices = @transform_0, window_bounds = array<i64: 1, 2, 18>}, {pipeline_mode = #tpu.pipeline_mode<synchronous>, transform_indices = @transform_1, window_bounds = array<i64: 1, 4>}, {pipeline_mode = #tpu.pipeline_mode<synchronous>, transform_indices = @transform_2, window_bounds = array<i64: 1, 1>}, {transform_indices = @transform_3, window_bounds = array<i64: 1, 1, 17>}]} {
    %c0 = arith.constant 0 : index
    %c0_0 = arith.constant 0 : index
    %c0_1 = arith.constant 0 : index
    %0 = vector.load %arg2[%c0, %c0_0, %c0_1] : memref<1x2x18xbf16, #tpu.memory_space<vmem>>, vector<1x2x18xbf16>
    %1 = vector.shape_cast %0 : vector<1x2x18xbf16> to vector<2x18xbf16>
    %2 = vector.extract_strided_slice %1 {offsets = [0, 0], sizes = [2, 17], strides = [1, 1]} : vector<2x18xbf16> to vector<2x17xbf16>
    %3 = vector.extract_strided_slice %1 {offsets = [0, 1], sizes = [2, 17], strides = [1, 1]} : vector<2x18xbf16> to vector<2x17xbf16>
    %4 = tpu.concatenate %2, %3 in 0 : vector<2x17xbf16>, vector<2x17xbf16> -> vector<4x17xbf16>
    %c0_2 = arith.constant 0 : index
    %c0_3 = arith.constant 0 : index
    %5 = vector.load %arg3[%c0_2, %c0_3] : memref<1x4xbf16, #tpu.memory_space<vmem>>, vector<1x4xbf16>
    %cst = arith.constant dense<0.000000e+00> : vector<1x17xf32>
    %6 = tpu.matmul %5, %4, %cst {dimension_numbers = #tpu.dot_dimension_numbers<[1], [0], [0], [1], [0, 0, 1, 1], [], []>} : vector<1x4xbf16>, vector<4x17xbf16>, vector<1x17xf32> -> vector<1x17xf32>
    %c0_4 = arith.constant 0 : index
    %c0_5 = arith.constant 0 : index
    %7 = vector.load %arg4[%c0_4, %c0_5] : memref<1x1xf32, #tpu.memory_space<vmem>>, vector<1x1xf32>
    %8 = vector.broadcast %7 : vector<1x1xf32> to vector<1x17xf32>
    %9 = arith.addf %6, %8 : vector<1x17xf32>
    %10 = arith.truncf %9 : vector<1x17xf32> to vector<1x17xbf16>
    %c0_6 = arith.constant 0 : index
    %c0_7 = arith.constant 0 : index
    %c0_8 = arith.constant 0 : index
    %11 = vector.load %arg5[%c0_6, %c0_7, %c0_8] : memref<1x1x17xbf16, #tpu.memory_space<vmem>>, vector<1x1x17xbf16>
    %12 = vector.shape_cast %11 : vector<1x1x17xbf16> to vector<1x17xbf16>
    %13 = vector.shape_cast %10 : vector<1x17xbf16> to vector<1x1x17xbf16>
    tpu.vector_store %arg5[%c0_6, %c0_7, %c0_8], %13 {strides = array<i32>} : memref<1x1x17xbf16, #tpu.memory_space<vmem>>, vector<1x1x17xbf16>,
    return
  }
  func.func @transform_0(%arg0: i32, %arg1: i32) -> (i32, i32, i32) {
    %c0_i32 = arith.constant 0 : i32
    %c0_i32_0 = arith.constant 0 : i32
    %c0_i32_1 = arith.constant 0 : i32
    return %arg0, %c0_i32, %c0_i32_0 : i32, i32, i32
  }
  func.func @transform_1(%arg0: i32, %arg1: i32) -> (i32, i32) {
    %c0_i32 = arith.constant 0 : i32
    %c0_i32_0 = arith.constant 0 : i32
    %c0_i32_1 = arith.constant 0 : i32
    return %c0_i32, %c0_i32_0 : i32, i32
  }
  func.func @transform_2(%arg0: i32, %arg1: i32) -> (i32, i32) {
    %c0_i32 = arith.constant 0 : i32
    %c0_i32_0 = arith.constant 0 : i32
    %c0_i32_1 = arith.constant 0 : i32
    return %c0_i32, %c0_i32_0 : i32, i32
  }
  func.func @transform_3(%arg0: i32, %arg1: i32) -> (i32, i32, i32) {
    %c0_i32 = arith.constant 0 : i32
    %c0_i32_0 = arith.constant 0 : i32
    return %arg0, %c0_i32, %arg1 : i32, i32, i32
  }
}

module attributes {stable_mosaic.version = 11 : i64} {
  func.func @_conv_kernel(%arg0: i32, %arg1: i32, %arg2: memref<1x1x31xbf16, #tpu.memory_space<vmem>>, %arg3: memref<4x15xbf16, #tpu.memory_space<vmem>>, %arg4: memref<4x1xf32, #tpu.memory_space<vmem>>, %arg5: memref<1x4x17xbf16, #tpu.memory_space<vmem>>) attributes {dimension_semantics = [#tpu.dimension_semantics<parallel>, #tpu.dimension_semantics<parallel>], iteration_bounds = array<i64: 2, 1>, scalar_prefetch = 0 : i64, scratch_operands = 0 : i64, tpu.core_type = #tpu.core_type<tc>, window_params = [{transform_indices = @transform_0, window_bounds = array<i64: 1, 1, 31>}, {pipeline_mode = #tpu.pipeline_mode<synchronous>, transform_indices = @transform_1, window_bounds = array<i64: 4, 15>}, {pipeline_mode = #tpu.pipeline_mode<synchronous>, transform_indices = @transform_2, window_bounds = array<i64: 4, 1>}, {transform_indices = @transform_3, window_bounds = array<i64: 1, 4, 17>}]} {
    %c0 = arith.constant 0 : index
    %c0_0 = arith.constant 0 : index
    %c0_1 = arith.constant 0 : index
    %0 = vector.load %arg2[%c0, %c0_0, %c0_1] : memref<1x1x31xbf16, #tpu.memory_space<vmem>>, vector<1x1x31xbf16>
    %1 = vector.shape_cast %0 : vector<1x1x31xbf16> to vector<1x31xbf16>
    %2 = vector.extract_strided_slice %1 {offsets = [0, 0], sizes = [1, 17], strides = [1, 1]} : vector<1x31xbf16> to vector<1x17xbf16>
    %3 = vector.extract_strided_slice %1 {offsets = [0, 1], sizes = [1, 17], strides = [1, 1]} : vector<1x31xbf16> to vector<1x17xbf16>
    %4 = vector.extract_strided_slice %1 {offsets = [0, 2], sizes = [1, 17], strides = [1, 1]} : vector<1x31xbf16> to vector<1x17xbf16>
    %5 = vector.extract_strided_slice %1 {offsets = [0, 3], sizes = [1, 17], strides = [1, 1]} : vector<1x31xbf16> to vector<1x17xbf16>
    %6 = vector.extract_strided_slice %1 {offsets = [0, 4], sizes = [1, 17], strides = [1, 1]} : vector<1x31xbf16> to vector<1x17xbf16>
    %7 = vector.extract_strided_slice %1 {offsets = [0, 5], sizes = [1, 17], strides = [1, 1]} : vector<1x31xbf16> to vector<1x17xbf16>
    %8 = vector.extract_strided_slice %1 {offsets = [0, 6], sizes = [1, 17], strides = [1, 1]} : vector<1x31xbf16> to vector<1x17xbf16>
    %9 = vector.extract_strided_slice %1 {offsets = [0, 7], sizes = [1, 17], strides = [1, 1]} : vector<1x31xbf16> to vector<1x17xbf16>
    %10 = vector.extract_strided_slice %1 {offsets = [0, 8], sizes = [1, 17], strides = [1, 1]} : vector<1x31xbf16> to vector<1x17xbf16>
    %11 = vector.extract_strided_slice %1 {offsets = [0, 9], sizes = [1, 17], strides = [1, 1]} : vector<1x31xbf16> to vector<1x17xbf16>
    %12 = vector.extract_strided_slice %1 {offsets = [0, 10], sizes = [1, 17], strides = [1, 1]} : vector<1x31xbf16> to vector<1x17xbf16>
    %13 = vector.extract_strided_slice %1 {offsets = [0, 11], sizes = [1, 17], strides = [1, 1]} : vector<1x31xbf16> to vector<1x17xbf16>
    %14 = vector.extract_strided_slice %1 {offsets = [0, 12], sizes = [1, 17], strides = [1, 1]} : vector<1x31xbf16> to vector<1x17xbf16>
    %15 = vector.extract_strided_slice %1 {offsets = [0, 13], sizes = [1, 17], strides = [1, 1]} : vector<1x31xbf16> to vector<1x17xbf16>
    %16 = vector.extract_strided_slice %1 {offsets = [0, 14], sizes = [1, 17], strides = [1, 1]} : vector<1x31xbf16> to vector<1x17xbf16>
    %17 = tpu.concatenate %2, %3, %4, %5, %6, %7, %8, %9, %10, %11, %12, %13, %14, %15, %16 in 0 : vector<1x17xbf16>, vector<1x17xbf16>, vector<1x17xbf16>, vector<1x17xbf16>, vector<1x17xbf16>, vector<1x17xbf16>, vector<1x17xbf16>, vector<1x17xbf16>, vector<1x17xbf16>, vector<1x17xbf16>, vector<1x17xbf16>, vector<1x17xbf16>, vector<1x17xbf16>, vector<1x17xbf16>, vector<1x17xbf16> -> vector<15x17xbf16>
    %c0_2 = arith.constant 0 : index
    %c0_3 = arith.constant 0 : index
    %18 = vector.load %arg3[%c0_2, %c0_3] : memref<4x15xbf16, #tpu.memory_space<vmem>>, vector<4x15xbf16>
    %cst = arith.constant dense<0.000000e+00> : vector<4x17xf32>
    %19 = tpu.matmul %18, %17, %cst {dimension_numbers = #tpu.dot_dimension_numbers<[1], [0], [0], [1], [0, 0, 1, 1], [], []>} : vector<4x15xbf16>, vector<15x17xbf16>, vector<4x17xf32> -> vector<4x17xf32>
    %c0_4 = arith.constant 0 : index
    %c0_5 = arith.constant 0 : index
    %20 = vector.load %arg4[%c0_4, %c0_5] : memref<4x1xf32, #tpu.memory_space<vmem>>, vector<4x1xf32>
    %21 = vector.broadcast %20 : vector<4x1xf32> to vector<4x17xf32>
    %22 = arith.addf %19, %21 : vector<4x17xf32>
    %cst_6 = arith.constant 1.000000e-01 : f32
    %23 = vector.broadcast %cst_6 : f32 to vector<4x17xf32>
    %24 = arith.mulf %23, %22 : vector<4x17xf32>
    %25 = arith.maximumf %22, %24 : vector<4x17xf32>
    %26 = arith.truncf %25 : vector<4x17xf32> to vector<4x17xbf16>
    %c0_7 = arith.constant 0 : index
    %c0_8 = arith.constant 0 : index
    %c0_9 = arith.constant 0 : index
    %27 = vector.load %arg5[%c0_7, %c0_8, %c0_9] : memref<1x4x17xbf16, #tpu.memory_space<vmem>>, vector<1x4x17xbf16>
    %28 = vector.shape_cast %27 : vector<1x4x17xbf16> to vector<4x17xbf16>
    %29 = vector.shape_cast %26 : vector<4x17xbf16> to vector<1x4x17xbf16>
    tpu.vector_store %arg5[%c0_7, %c0_8, %c0_9], %29 {strides = array<i32>} : memref<1x4x17xbf16, #tpu.memory_space<vmem>>, vector<1x4x17xbf16>,
    return
  }
  func.func @transform_0(%arg0: i32, %arg1: i32) -> (i32, i32, i32) {
    %c0_i32 = arith.constant 0 : i32
    %c0_i32_0 = arith.constant 0 : i32
    %c0_i32_1 = arith.constant 0 : i32
    return %arg0, %c0_i32, %c0_i32_0 : i32, i32, i32
  }
  func.func @transform_1(%arg0: i32, %arg1: i32) -> (i32, i32) {
    %c0_i32 = arith.constant 0 : i32
    %c0_i32_0 = arith.constant 0 : i32
    %c0_i32_1 = arith.constant 0 : i32
    return %c0_i32, %c0_i32_0 : i32, i32
  }
  func.func @transform_2(%arg0: i32, %arg1: i32) -> (i32, i32) {
    %c0_i32 = arith.constant 0 : i32
    %c0_i32_0 = arith.constant 0 : i32
    %c0_i32_1 = arith.constant 0 : i32
    return %c0_i32, %c0_i32_0 : i32, i32
  }
  func.func @transform_3(%arg0: i32, %arg1: i32) -> (i32, i32, i32) {
    %c0_i32 = arith.constant 0 : i32
    %c0_i32_0 = arith.constant 0 : i32
    return %arg0, %c0_i32, %arg1 : i32, i32, i32
  }
}

module attributes {stable_mosaic.version = 11 : i64} {
  func.func @_conv_kernel(%arg0: i32, %arg1: i32, %arg2: memref<1x8x13xbf16, #tpu.memory_space<vmem>>, %arg3: memref<8x40xbf16, #tpu.memory_space<vmem>>, %arg4: memref<8x1xf32, #tpu.memory_space<vmem>>, %arg5: memref<1x8x9xbf16, #tpu.memory_space<vmem>>) attributes {dimension_semantics = [#tpu.dimension_semantics<parallel>, #tpu.dimension_semantics<parallel>], iteration_bounds = array<i64: 2, 1>, scalar_prefetch = 0 : i64, scratch_operands = 0 : i64, tpu.core_type = #tpu.core_type<tc>, window_params = [{transform_indices = @transform_0, window_bounds = array<i64: 1, 8, 13>}, {pipeline_mode = #tpu.pipeline_mode<synchronous>, transform_indices = @transform_1, window_bounds = array<i64: 8, 40>}, {pipeline_mode = #tpu.pipeline_mode<synchronous>, transform_indices = @transform_2, window_bounds = array<i64: 8, 1>}, {transform_indices = @transform_3, window_bounds = array<i64: 1, 8, 9>}]} {
    %c0 = arith.constant 0 : index
    %c0_0 = arith.constant 0 : index
    %c0_1 = arith.constant 0 : index
    %0 = vector.load %arg2[%c0, %c0_0, %c0_1] : memref<1x8x13xbf16, #tpu.memory_space<vmem>>, vector<1x8x13xbf16>
    %1 = vector.shape_cast %0 : vector<1x8x13xbf16> to vector<8x13xbf16>
    %2 = vector.extract_strided_slice %1 {offsets = [0, 0], sizes = [8, 9], strides = [1, 1]} : vector<8x13xbf16> to vector<8x9xbf16>
    %3 = vector.extract_strided_slice %1 {offsets = [0, 1], sizes = [8, 9], strides = [1, 1]} : vector<8x13xbf16> to vector<8x9xbf16>
    %4 = vector.extract_strided_slice %1 {offsets = [0, 2], sizes = [8, 9], strides = [1, 1]} : vector<8x13xbf16> to vector<8x9xbf16>
    %5 = vector.extract_strided_slice %1 {offsets = [0, 3], sizes = [8, 9], strides = [1, 1]} : vector<8x13xbf16> to vector<8x9xbf16>
    %6 = vector.extract_strided_slice %1 {offsets = [0, 4], sizes = [8, 9], strides = [1, 1]} : vector<8x13xbf16> to vector<8x9xbf16>
    %7 = tpu.concatenate %2, %3, %4, %5, %6 in 0 : vector<8x9xbf16>, vector<8x9xbf16>, vector<8x9xbf16>, vector<8x9xbf16>, vector<8x9xbf16> -> vector<40x9xbf16>
    %c0_2 = arith.constant 0 : index
    %c0_3 = arith.constant 0 : index
    %8 = vector.load %arg3[%c0_2, %c0_3] : memref<8x40xbf16, #tpu.memory_space<vmem>>, vector<8x40xbf16>
    %cst = arith.constant dense<0.000000e+00> : vector<8x9xf32>
    %9 = tpu.matmul %8, %7, %cst {dimension_numbers = #tpu.dot_dimension_numbers<[1], [0], [0], [1], [0, 0, 1, 1], [], []>} : vector<8x40xbf16>, vector<40x9xbf16>, vector<8x9xf32> -> vector<8x9xf32>
    %c0_4 = arith.constant 0 : index
    %c0_5 = arith.constant 0 : index
    %10 = vector.load %arg4[%c0_4, %c0_5] : memref<8x1xf32, #tpu.memory_space<vmem>>, vector<8x1xf32>
    %11 = vector.broadcast %10 : vector<8x1xf32> to vector<8x9xf32>
    %12 = arith.addf %9, %11 : vector<8x9xf32>
    %cst_6 = arith.constant 1.000000e-01 : f32
    %13 = vector.broadcast %cst_6 : f32 to vector<8x9xf32>
    %14 = arith.mulf %13, %12 : vector<8x9xf32>
    %15 = arith.maximumf %12, %14 : vector<8x9xf32>
    %16 = arith.truncf %15 : vector<8x9xf32> to vector<8x9xbf16>
    %c0_7 = arith.constant 0 : index
    %c0_8 = arith.constant 0 : index
    %c0_9 = arith.constant 0 : index
    %17 = vector.load %arg5[%c0_7, %c0_8, %c0_9] : memref<1x8x9xbf16, #tpu.memory_space<vmem>>, vector<1x8x9xbf16>
    %18 = vector.shape_cast %17 : vector<1x8x9xbf16> to vector<8x9xbf16>
    %19 = vector.shape_cast %16 : vector<8x9xbf16> to vector<1x8x9xbf16>
    tpu.vector_store %arg5[%c0_7, %c0_8, %c0_9], %19 {strides = array<i32>} : memref<1x8x9xbf16, #tpu.memory_space<vmem>>, vector<1x8x9xbf16>,
    return
  }
  func.func @transform_0(%arg0: i32, %arg1: i32) -> (i32, i32, i32) {
    %c0_i32 = arith.constant 0 : i32
    %c0_i32_0 = arith.constant 0 : i32
    %c0_i32_1 = arith.constant 0 : i32
    return %arg0, %c0_i32, %c0_i32_0 : i32, i32, i32
  }
  func.func @transform_1(%arg0: i32, %arg1: i32) -> (i32, i32) {
    %c0_i32 = arith.constant 0 : i32
    %c0_i32_0 = arith.constant 0 : i32
    %c0_i32_1 = arith.constant 0 : i32
    return %c0_i32, %c0_i32_0 : i32, i32
  }
  func.func @transform_2(%arg0: i32, %arg1: i32) -> (i32, i32) {
    %c0_i32 = arith.constant 0 : i32
    %c0_i32_0 = arith.constant 0 : i32
    %c0_i32_1 = arith.constant 0 : i32
    return %c0_i32, %c0_i32_0 : i32, i32
  }
  func.func @transform_3(%arg0: i32, %arg1: i32) -> (i32, i32, i32) {
    %c0_i32 = arith.constant 0 : i32
    %c0_i32_0 = arith.constant 0 : i32
    return %arg0, %c0_i32, %arg1 : i32, i32, i32
  }
}

module attributes {stable_mosaic.version = 11 : i64} {
  func.func @_conv_kernel(%arg0: i32, %arg1: i32, %arg2: memref<1x8x11xbf16, #tpu.memory_space<vmem>>, %arg3: memref<1x24xbf16, #tpu.memory_space<vmem>>, %arg4: memref<1x1xf32, #tpu.memory_space<vmem>>, %arg5: memref<1x1x9xbf16, #tpu.memory_space<vmem>>) attributes {dimension_semantics = [#tpu.dimension_semantics<parallel>, #tpu.dimension_semantics<parallel>], iteration_bounds = array<i64: 2, 1>, scalar_prefetch = 0 : i64, scratch_operands = 0 : i64, tpu.core_type = #tpu.core_type<tc>, window_params = [{transform_indices = @transform_0, window_bounds = array<i64: 1, 8, 11>}, {pipeline_mode = #tpu.pipeline_mode<synchronous>, transform_indices = @transform_1, window_bounds = array<i64: 1, 24>}, {pipeline_mode = #tpu.pipeline_mode<synchronous>, transform_indices = @transform_2, window_bounds = array<i64: 1, 1>}, {transform_indices = @transform_3, window_bounds = array<i64: 1, 1, 9>}]} {
    %c0 = arith.constant 0 : index
    %c0_0 = arith.constant 0 : index
    %c0_1 = arith.constant 0 : index
    %0 = vector.load %arg2[%c0, %c0_0, %c0_1] : memref<1x8x11xbf16, #tpu.memory_space<vmem>>, vector<1x8x11xbf16>
    %1 = vector.shape_cast %0 : vector<1x8x11xbf16> to vector<8x11xbf16>
    %2 = vector.extract_strided_slice %1 {offsets = [0, 0], sizes = [8, 9], strides = [1, 1]} : vector<8x11xbf16> to vector<8x9xbf16>
    %3 = vector.extract_strided_slice %1 {offsets = [0, 1], sizes = [8, 9], strides = [1, 1]} : vector<8x11xbf16> to vector<8x9xbf16>
    %4 = vector.extract_strided_slice %1 {offsets = [0, 2], sizes = [8, 9], strides = [1, 1]} : vector<8x11xbf16> to vector<8x9xbf16>
    %5 = tpu.concatenate %2, %3, %4 in 0 : vector<8x9xbf16>, vector<8x9xbf16>, vector<8x9xbf16> -> vector<24x9xbf16>
    %c0_2 = arith.constant 0 : index
    %c0_3 = arith.constant 0 : index
    %6 = vector.load %arg3[%c0_2, %c0_3] : memref<1x24xbf16, #tpu.memory_space<vmem>>, vector<1x24xbf16>
    %cst = arith.constant dense<0.000000e+00> : vector<1x9xf32>
    %7 = tpu.matmul %6, %5, %cst {dimension_numbers = #tpu.dot_dimension_numbers<[1], [0], [0], [1], [0, 0, 1, 1], [], []>} : vector<1x24xbf16>, vector<24x9xbf16>, vector<1x9xf32> -> vector<1x9xf32>
    %c0_4 = arith.constant 0 : index
    %c0_5 = arith.constant 0 : index
    %8 = vector.load %arg4[%c0_4, %c0_5] : memref<1x1xf32, #tpu.memory_space<vmem>>, vector<1x1xf32>
    %9 = vector.broadcast %8 : vector<1x1xf32> to vector<1x9xf32>
    %10 = arith.addf %7, %9 : vector<1x9xf32>
    %11 = arith.truncf %10 : vector<1x9xf32> to vector<1x9xbf16>
    %c0_6 = arith.constant 0 : index
    %c0_7 = arith.constant 0 : index
    %c0_8 = arith.constant 0 : index
    %12 = vector.load %arg5[%c0_6, %c0_7, %c0_8] : memref<1x1x9xbf16, #tpu.memory_space<vmem>>, vector<1x1x9xbf16>
    %13 = vector.shape_cast %12 : vector<1x1x9xbf16> to vector<1x9xbf16>
    %14 = vector.shape_cast %11 : vector<1x9xbf16> to vector<1x1x9xbf16>
    tpu.vector_store %arg5[%c0_6, %c0_7, %c0_8], %14 {strides = array<i32>} : memref<1x1x9xbf16, #tpu.memory_space<vmem>>, vector<1x1x9xbf16>,
    return
  }
  func.func @transform_0(%arg0: i32, %arg1: i32) -> (i32, i32, i32) {
    %c0_i32 = arith.constant 0 : i32
    %c0_i32_0 = arith.constant 0 : i32
    %c0_i32_1 = arith.constant 0 : i32
    return %arg0, %c0_i32, %c0_i32_0 : i32, i32, i32
  }
  func.func @transform_1(%arg0: i32, %arg1: i32) -> (i32, i32) {
    %c0_i32 = arith.constant 0 : i32
    %c0_i32_0 = arith.constant 0 : i32
    %c0_i32_1 = arith.constant 0 : i32
    return %c0_i32, %c0_i32_0 : i32, i32
  }
  func.func @transform_2(%arg0: i32, %arg1: i32) -> (i32, i32) {
    %c0_i32 = arith.constant 0 : i32
    %c0_i32_0 = arith.constant 0 : i32
    %c0_i32_1 = arith.constant 0 : i32
    return %c0_i32, %c0_i32_0 : i32, i32
  }
  func.func @transform_3(%arg0: i32, %arg1: i32) -> (i32, i32, i32) {
    %c0_i32 = arith.constant 0 : i32
    %c0_i32_0 = arith.constant 0 : i32
    return %arg0, %c0_i32, %arg1 : i32, i32, i32
  }
}

module attributes {stable_mosaic.version = 11 : i64} {
  func.func @_conv_kernel(%arg0: i32, %arg1: i32, %arg2: memref<1x2x11xbf16, #tpu.memory_space<vmem>>, %arg3: memref<1x4xbf16, #tpu.memory_space<vmem>>, %arg4: memref<1x1xf32, #tpu.memory_space<vmem>>, %arg5: memref<1x1x10xbf16, #tpu.memory_space<vmem>>) attributes {dimension_semantics = [#tpu.dimension_semantics<parallel>, #tpu.dimension_semantics<parallel>], iteration_bounds = array<i64: 2, 1>, scalar_prefetch = 0 : i64, scratch_operands = 0 : i64, tpu.core_type = #tpu.core_type<tc>, window_params = [{transform_indices = @transform_0, window_bounds = array<i64: 1, 2, 11>}, {pipeline_mode = #tpu.pipeline_mode<synchronous>, transform_indices = @transform_1, window_bounds = array<i64: 1, 4>}, {pipeline_mode = #tpu.pipeline_mode<synchronous>, transform_indices = @transform_2, window_bounds = array<i64: 1, 1>}, {transform_indices = @transform_3, window_bounds = array<i64: 1, 1, 10>}]} {
    %c0 = arith.constant 0 : index
    %c0_0 = arith.constant 0 : index
    %c0_1 = arith.constant 0 : index
    %0 = vector.load %arg2[%c0, %c0_0, %c0_1] : memref<1x2x11xbf16, #tpu.memory_space<vmem>>, vector<1x2x11xbf16>
    %1 = vector.shape_cast %0 : vector<1x2x11xbf16> to vector<2x11xbf16>
    %2 = vector.extract_strided_slice %1 {offsets = [0, 0], sizes = [2, 10], strides = [1, 1]} : vector<2x11xbf16> to vector<2x10xbf16>
    %3 = vector.extract_strided_slice %1 {offsets = [0, 1], sizes = [2, 10], strides = [1, 1]} : vector<2x11xbf16> to vector<2x10xbf16>
    %4 = tpu.concatenate %2, %3 in 0 : vector<2x10xbf16>, vector<2x10xbf16> -> vector<4x10xbf16>
    %c0_2 = arith.constant 0 : index
    %c0_3 = arith.constant 0 : index
    %5 = vector.load %arg3[%c0_2, %c0_3] : memref<1x4xbf16, #tpu.memory_space<vmem>>, vector<1x4xbf16>
    %cst = arith.constant dense<0.000000e+00> : vector<1x10xf32>
    %6 = tpu.matmul %5, %4, %cst {dimension_numbers = #tpu.dot_dimension_numbers<[1], [0], [0], [1], [0, 0, 1, 1], [], []>} : vector<1x4xbf16>, vector<4x10xbf16>, vector<1x10xf32> -> vector<1x10xf32>
    %c0_4 = arith.constant 0 : index
    %c0_5 = arith.constant 0 : index
    %7 = vector.load %arg4[%c0_4, %c0_5] : memref<1x1xf32, #tpu.memory_space<vmem>>, vector<1x1xf32>
    %8 = vector.broadcast %7 : vector<1x1xf32> to vector<1x10xf32>
    %9 = arith.addf %6, %8 : vector<1x10xf32>
    %10 = arith.truncf %9 : vector<1x10xf32> to vector<1x10xbf16>
    %c0_6 = arith.constant 0 : index
    %c0_7 = arith.constant 0 : index
    %c0_8 = arith.constant 0 : index
    %11 = vector.load %arg5[%c0_6, %c0_7, %c0_8] : memref<1x1x10xbf16, #tpu.memory_space<vmem>>, vector<1x1x10xbf16>
    %12 = vector.shape_cast %11 : vector<1x1x10xbf16> to vector<1x10xbf16>
    %13 = vector.shape_cast %10 : vector<1x10xbf16> to vector<1x1x10xbf16>
    tpu.vector_store %arg5[%c0_6, %c0_7, %c0_8], %13 {strides = array<i32>} : memref<1x1x10xbf16, #tpu.memory_space<vmem>>, vector<1x1x10xbf16>,
    return
  }
  func.func @transform_0(%arg0: i32, %arg1: i32) -> (i32, i32, i32) {
    %c0_i32 = arith.constant 0 : i32
    %c0_i32_0 = arith.constant 0 : i32
    %c0_i32_1 = arith.constant 0 : i32
    return %arg0, %c0_i32, %c0_i32_0 : i32, i32, i32
  }
  func.func @transform_1(%arg0: i32, %arg1: i32) -> (i32, i32) {
    %c0_i32 = arith.constant 0 : i32
    %c0_i32_0 = arith.constant 0 : i32
    %c0_i32_1 = arith.constant 0 : i32
    return %c0_i32, %c0_i32_0 : i32, i32
  }
  func.func @transform_2(%arg0: i32, %arg1: i32) -> (i32, i32) {
    %c0_i32 = arith.constant 0 : i32
    %c0_i32_0 = arith.constant 0 : i32
    %c0_i32_1 = arith.constant 0 : i32
    return %c0_i32, %c0_i32_0 : i32, i32
  }
  func.func @transform_3(%arg0: i32, %arg1: i32) -> (i32, i32, i32) {
    %c0_i32 = arith.constant 0 : i32
    %c0_i32_0 = arith.constant 0 : i32
    return %arg0, %c0_i32, %arg1 : i32, i32, i32
  }
}

module attributes {stable_mosaic.version = 11 : i64} {
  func.func @_conv_kernel(%arg0: i32, %arg1: i32, %arg2: memref<1x8x7xbf16, #tpu.memory_space<vmem>>, %arg3: memref<1x24xbf16, #tpu.memory_space<vmem>>, %arg4: memref<1x1xf32, #tpu.memory_space<vmem>>, %arg5: memref<1x1x5xbf16, #tpu.memory_space<vmem>>) attributes {dimension_semantics = [#tpu.dimension_semantics<parallel>, #tpu.dimension_semantics<parallel>], iteration_bounds = array<i64: 2, 1>, scalar_prefetch = 0 : i64, scratch_operands = 0 : i64, tpu.core_type = #tpu.core_type<tc>, window_params = [{transform_indices = @transform_0, window_bounds = array<i64: 1, 8, 7>}, {pipeline_mode = #tpu.pipeline_mode<synchronous>, transform_indices = @transform_1, window_bounds = array<i64: 1, 24>}, {pipeline_mode = #tpu.pipeline_mode<synchronous>, transform_indices = @transform_2, window_bounds = array<i64: 1, 1>}, {transform_indices = @transform_3, window_bounds = array<i64: 1, 1, 5>}]} {
    %c0 = arith.constant 0 : index
    %c0_0 = arith.constant 0 : index
    %c0_1 = arith.constant 0 : index
    %0 = vector.load %arg2[%c0, %c0_0, %c0_1] : memref<1x8x7xbf16, #tpu.memory_space<vmem>>, vector<1x8x7xbf16>
    %1 = vector.shape_cast %0 : vector<1x8x7xbf16> to vector<8x7xbf16>
    %2 = vector.extract_strided_slice %1 {offsets = [0, 0], sizes = [8, 5], strides = [1, 1]} : vector<8x7xbf16> to vector<8x5xbf16>
    %3 = vector.extract_strided_slice %1 {offsets = [0, 1], sizes = [8, 5], strides = [1, 1]} : vector<8x7xbf16> to vector<8x5xbf16>
    %4 = vector.extract_strided_slice %1 {offsets = [0, 2], sizes = [8, 5], strides = [1, 1]} : vector<8x7xbf16> to vector<8x5xbf16>
    %5 = tpu.concatenate %2, %3, %4 in 0 : vector<8x5xbf16>, vector<8x5xbf16>, vector<8x5xbf16> -> vector<24x5xbf16>
    %c0_2 = arith.constant 0 : index
    %c0_3 = arith.constant 0 : index
    %6 = vector.load %arg3[%c0_2, %c0_3] : memref<1x24xbf16, #tpu.memory_space<vmem>>, vector<1x24xbf16>
    %cst = arith.constant dense<0.000000e+00> : vector<1x5xf32>
    %7 = tpu.matmul %6, %5, %cst {dimension_numbers = #tpu.dot_dimension_numbers<[1], [0], [0], [1], [0, 0, 1, 1], [], []>} : vector<1x24xbf16>, vector<24x5xbf16>, vector<1x5xf32> -> vector<1x5xf32>
    %c0_4 = arith.constant 0 : index
    %c0_5 = arith.constant 0 : index
    %8 = vector.load %arg4[%c0_4, %c0_5] : memref<1x1xf32, #tpu.memory_space<vmem>>, vector<1x1xf32>
    %9 = vector.broadcast %8 : vector<1x1xf32> to vector<1x5xf32>
    %10 = arith.addf %7, %9 : vector<1x5xf32>
    %11 = arith.truncf %10 : vector<1x5xf32> to vector<1x5xbf16>
    %c0_6 = arith.constant 0 : index
    %c0_7 = arith.constant 0 : index
    %c0_8 = arith.constant 0 : index
    %12 = vector.load %arg5[%c0_6, %c0_7, %c0_8] : memref<1x1x5xbf16, #tpu.memory_space<vmem>>, vector<1x1x5xbf16>
    %13 = vector.shape_cast %12 : vector<1x1x5xbf16> to vector<1x5xbf16>
    %14 = vector.shape_cast %11 : vector<1x5xbf16> to vector<1x1x5xbf16>
    tpu.vector_store %arg5[%c0_6, %c0_7, %c0_8], %14 {strides = array<i32>} : memref<1x1x5xbf16, #tpu.memory_space<vmem>>, vector<1x1x5xbf16>,
    return
  }
  func.func @transform_0(%arg0: i32, %arg1: i32) -> (i32, i32, i32) {
    %c0_i32 = arith.constant 0 : i32
    %c0_i32_0 = arith.constant 0 : i32
    %c0_i32_1 = arith.constant 0 : i32
    return %arg0, %c0_i32, %c0_i32_0 : i32, i32, i32
  }
  func.func @transform_1(%arg0: i32, %arg1: i32) -> (i32, i32) {
    %c0_i32 = arith.constant 0 : i32
    %c0_i32_0 = arith.constant 0 : i32
    %c0_i32_1 = arith.constant 0 : i32
    return %c0_i32, %c0_i32_0 : i32, i32
  }
  func.func @transform_2(%arg0: i32, %arg1: i32) -> (i32, i32) {
    %c0_i32 = arith.constant 0 : i32
    %c0_i32_0 = arith.constant 0 : i32
    %c0_i32_1 = arith.constant 0 : i32
    return %c0_i32, %c0_i32_0 : i32, i32
  }
  func.func @transform_3(%arg0: i32, %arg1: i32) -> (i32, i32, i32) {
    %c0_i32 = arith.constant 0 : i32
    %c0_i32_0 = arith.constant 0 : i32
    return %arg0, %c0_i32, %arg1 : i32, i32, i32
  }
}

module attributes {stable_mosaic.version = 11 : i64} {
  func.func @_conv_kernel(%arg0: i32, %arg1: i32, %arg2: memref<1x1x23xbf16, #tpu.memory_space<vmem>>, %arg3: memref<4x15xbf16, #tpu.memory_space<vmem>>, %arg4: memref<4x1xf32, #tpu.memory_space<vmem>>, %arg5: memref<1x4x9xbf16, #tpu.memory_space<vmem>>) attributes {dimension_semantics = [#tpu.dimension_semantics<parallel>, #tpu.dimension_semantics<parallel>], iteration_bounds = array<i64: 2, 1>, scalar_prefetch = 0 : i64, scratch_operands = 0 : i64, tpu.core_type = #tpu.core_type<tc>, window_params = [{transform_indices = @transform_0, window_bounds = array<i64: 1, 1, 23>}, {pipeline_mode = #tpu.pipeline_mode<synchronous>, transform_indices = @transform_1, window_bounds = array<i64: 4, 15>}, {pipeline_mode = #tpu.pipeline_mode<synchronous>, transform_indices = @transform_2, window_bounds = array<i64: 4, 1>}, {transform_indices = @transform_3, window_bounds = array<i64: 1, 4, 9>}]} {
    %c0 = arith.constant 0 : index
    %c0_0 = arith.constant 0 : index
    %c0_1 = arith.constant 0 : index
    %0 = vector.load %arg2[%c0, %c0_0, %c0_1] : memref<1x1x23xbf16, #tpu.memory_space<vmem>>, vector<1x1x23xbf16>
    %1 = vector.shape_cast %0 : vector<1x1x23xbf16> to vector<1x23xbf16>
    %2 = vector.extract_strided_slice %1 {offsets = [0, 0], sizes = [1, 9], strides = [1, 1]} : vector<1x23xbf16> to vector<1x9xbf16>
    %3 = vector.extract_strided_slice %1 {offsets = [0, 1], sizes = [1, 9], strides = [1, 1]} : vector<1x23xbf16> to vector<1x9xbf16>
    %4 = vector.extract_strided_slice %1 {offsets = [0, 2], sizes = [1, 9], strides = [1, 1]} : vector<1x23xbf16> to vector<1x9xbf16>
    %5 = vector.extract_strided_slice %1 {offsets = [0, 3], sizes = [1, 9], strides = [1, 1]} : vector<1x23xbf16> to vector<1x9xbf16>
    %6 = vector.extract_strided_slice %1 {offsets = [0, 4], sizes = [1, 9], strides = [1, 1]} : vector<1x23xbf16> to vector<1x9xbf16>
    %7 = vector.extract_strided_slice %1 {offsets = [0, 5], sizes = [1, 9], strides = [1, 1]} : vector<1x23xbf16> to vector<1x9xbf16>
    %8 = vector.extract_strided_slice %1 {offsets = [0, 6], sizes = [1, 9], strides = [1, 1]} : vector<1x23xbf16> to vector<1x9xbf16>
    %9 = vector.extract_strided_slice %1 {offsets = [0, 7], sizes = [1, 9], strides = [1, 1]} : vector<1x23xbf16> to vector<1x9xbf16>
    %10 = vector.extract_strided_slice %1 {offsets = [0, 8], sizes = [1, 9], strides = [1, 1]} : vector<1x23xbf16> to vector<1x9xbf16>
    %11 = vector.extract_strided_slice %1 {offsets = [0, 9], sizes = [1, 9], strides = [1, 1]} : vector<1x23xbf16> to vector<1x9xbf16>
    %12 = vector.extract_strided_slice %1 {offsets = [0, 10], sizes = [1, 9], strides = [1, 1]} : vector<1x23xbf16> to vector<1x9xbf16>
    %13 = vector.extract_strided_slice %1 {offsets = [0, 11], sizes = [1, 9], strides = [1, 1]} : vector<1x23xbf16> to vector<1x9xbf16>
    %14 = vector.extract_strided_slice %1 {offsets = [0, 12], sizes = [1, 9], strides = [1, 1]} : vector<1x23xbf16> to vector<1x9xbf16>
    %15 = vector.extract_strided_slice %1 {offsets = [0, 13], sizes = [1, 9], strides = [1, 1]} : vector<1x23xbf16> to vector<1x9xbf16>
    %16 = vector.extract_strided_slice %1 {offsets = [0, 14], sizes = [1, 9], strides = [1, 1]} : vector<1x23xbf16> to vector<1x9xbf16>
    %17 = tpu.concatenate %2, %3, %4, %5, %6, %7, %8, %9, %10, %11, %12, %13, %14, %15, %16 in 0 : vector<1x9xbf16>, vector<1x9xbf16>, vector<1x9xbf16>, vector<1x9xbf16>, vector<1x9xbf16>, vector<1x9xbf16>, vector<1x9xbf16>, vector<1x9xbf16>, vector<1x9xbf16>, vector<1x9xbf16>, vector<1x9xbf16>, vector<1x9xbf16>, vector<1x9xbf16>, vector<1x9xbf16>, vector<1x9xbf16> -> vector<15x9xbf16>
    %c0_2 = arith.constant 0 : index
    %c0_3 = arith.constant 0 : index
    %18 = vector.load %arg3[%c0_2, %c0_3] : memref<4x15xbf16, #tpu.memory_space<vmem>>, vector<4x15xbf16>
    %cst = arith.constant dense<0.000000e+00> : vector<4x9xf32>
    %19 = tpu.matmul %18, %17, %cst {dimension_numbers = #tpu.dot_dimension_numbers<[1], [0], [0], [1], [0, 0, 1, 1], [], []>} : vector<4x15xbf16>, vector<15x9xbf16>, vector<4x9xf32> -> vector<4x9xf32>
    %c0_4 = arith.constant 0 : index
    %c0_5 = arith.constant 0 : index
    %20 = vector.load %arg4[%c0_4, %c0_5] : memref<4x1xf32, #tpu.memory_space<vmem>>, vector<4x1xf32>
    %21 = vector.broadcast %20 : vector<4x1xf32> to vector<4x9xf32>
    %22 = arith.addf %19, %21 : vector<4x9xf32>
    %cst_6 = arith.constant 1.000000e-01 : f32
    %23 = vector.broadcast %cst_6 : f32 to vector<4x9xf32>
    %24 = arith.mulf %23, %22 : vector<4x9xf32>
    %25 = arith.maximumf %22, %24 : vector<4x9xf32>
    %26 = arith.truncf %25 : vector<4x9xf32> to vector<4x9xbf16>
    %c0_7 = arith.constant 0 : index
    %c0_8 = arith.constant 0 : index
    %c0_9 = arith.constant 0 : index
    %27 = vector.load %arg5[%c0_7, %c0_8, %c0_9] : memref<1x4x9xbf16, #tpu.memory_space<vmem>>, vector<1x4x9xbf16>
    %28 = vector.shape_cast %27 : vector<1x4x9xbf16> to vector<4x9xbf16>
    %29 = vector.shape_cast %26 : vector<4x9xbf16> to vector<1x4x9xbf16>
    tpu.vector_store %arg5[%c0_7, %c0_8, %c0_9], %29 {strides = array<i32>} : memref<1x4x9xbf16, #tpu.memory_space<vmem>>, vector<1x4x9xbf16>,
    return
  }
  func.func @transform_0(%arg0: i32, %arg1: i32) -> (i32, i32, i32) {
    %c0_i32 = arith.constant 0 : i32
    %c0_i32_0 = arith.constant 0 : i32
    %c0_i32_1 = arith.constant 0 : i32
    return %arg0, %c0_i32, %c0_i32_0 : i32, i32, i32
  }
  func.func @transform_1(%arg0: i32, %arg1: i32) -> (i32, i32) {
    %c0_i32 = arith.constant 0 : i32
    %c0_i32_0 = arith.constant 0 : i32
    %c0_i32_1 = arith.constant 0 : i32
    return %c0_i32, %c0_i32_0 : i32, i32
  }
  func.func @transform_2(%arg0: i32, %arg1: i32) -> (i32, i32) {
    %c0_i32 = arith.constant 0 : i32
    %c0_i32_0 = arith.constant 0 : i32
    %c0_i32_1 = arith.constant 0 : i32
    return %c0_i32, %c0_i32_0 : i32, i32
  }
  func.func @transform_3(%arg0: i32, %arg1: i32) -> (i32, i32, i32) {
    %c0_i32 = arith.constant 0 : i32
    %c0_i32_0 = arith.constant 0 : i32
    return %arg0, %c0_i32, %arg1 : i32, i32, i32
  }
}

module attributes {stable_mosaic.version = 11 : i64} {
  func.func @_conv_kernel(%arg0: i32, %arg1: i32, %arg2: memref<1x8x9xbf16, #tpu.memory_space<vmem>>, %arg3: memref<8x40xbf16, #tpu.memory_space<vmem>>, %arg4: memref<8x1xf32, #tpu.memory_space<vmem>>, %arg5: memref<1x8x5xbf16, #tpu.memory_space<vmem>>) attributes {dimension_semantics = [#tpu.dimension_semantics<parallel>, #tpu.dimension_semantics<parallel>], iteration_bounds = array<i64: 2, 1>, scalar_prefetch = 0 : i64, scratch_operands = 0 : i64, tpu.core_type = #tpu.core_type<tc>, window_params = [{transform_indices = @transform_0, window_bounds = array<i64: 1, 8, 9>}, {pipeline_mode = #tpu.pipeline_mode<synchronous>, transform_indices = @transform_1, window_bounds = array<i64: 8, 40>}, {pipeline_mode = #tpu.pipeline_mode<synchronous>, transform_indices = @transform_2, window_bounds = array<i64: 8, 1>}, {transform_indices = @transform_3, window_bounds = array<i64: 1, 8, 5>}]} {
    %c0 = arith.constant 0 : index
    %c0_0 = arith.constant 0 : index
    %c0_1 = arith.constant 0 : index
    %0 = vector.load %arg2[%c0, %c0_0, %c0_1] : memref<1x8x9xbf16, #tpu.memory_space<vmem>>, vector<1x8x9xbf16>
    %1 = vector.shape_cast %0 : vector<1x8x9xbf16> to vector<8x9xbf16>
    %2 = vector.extract_strided_slice %1 {offsets = [0, 0], sizes = [8, 5], strides = [1, 1]} : vector<8x9xbf16> to vector<8x5xbf16>
    %3 = vector.extract_strided_slice %1 {offsets = [0, 1], sizes = [8, 5], strides = [1, 1]} : vector<8x9xbf16> to vector<8x5xbf16>
    %4 = vector.extract_strided_slice %1 {offsets = [0, 2], sizes = [8, 5], strides = [1, 1]} : vector<8x9xbf16> to vector<8x5xbf16>
    %5 = vector.extract_strided_slice %1 {offsets = [0, 3], sizes = [8, 5], strides = [1, 1]} : vector<8x9xbf16> to vector<8x5xbf16>
    %6 = vector.extract_strided_slice %1 {offsets = [0, 4], sizes = [8, 5], strides = [1, 1]} : vector<8x9xbf16> to vector<8x5xbf16>
    %7 = tpu.concatenate %2, %3, %4, %5, %6 in 0 : vector<8x5xbf16>, vector<8x5xbf16>, vector<8x5xbf16>, vector<8x5xbf16>, vector<8x5xbf16> -> vector<40x5xbf16>
    %c0_2 = arith.constant 0 : index
    %c0_3 = arith.constant 0 : index
    %8 = vector.load %arg3[%c0_2, %c0_3] : memref<8x40xbf16, #tpu.memory_space<vmem>>, vector<8x40xbf16>
    %cst = arith.constant dense<0.000000e+00> : vector<8x5xf32>
    %9 = tpu.matmul %8, %7, %cst {dimension_numbers = #tpu.dot_dimension_numbers<[1], [0], [0], [1], [0, 0, 1, 1], [], []>} : vector<8x40xbf16>, vector<40x5xbf16>, vector<8x5xf32> -> vector<8x5xf32>
    %c0_4 = arith.constant 0 : index
    %c0_5 = arith.constant 0 : index
    %10 = vector.load %arg4[%c0_4, %c0_5] : memref<8x1xf32, #tpu.memory_space<vmem>>, vector<8x1xf32>
    %11 = vector.broadcast %10 : vector<8x1xf32> to vector<8x5xf32>
    %12 = arith.addf %9, %11 : vector<8x5xf32>
    %cst_6 = arith.constant 1.000000e-01 : f32
    %13 = vector.broadcast %cst_6 : f32 to vector<8x5xf32>
    %14 = arith.mulf %13, %12 : vector<8x5xf32>
    %15 = arith.maximumf %12, %14 : vector<8x5xf32>
    %16 = arith.truncf %15 : vector<8x5xf32> to vector<8x5xbf16>
    %c0_7 = arith.constant 0 : index
    %c0_8 = arith.constant 0 : index
    %c0_9 = arith.constant 0 : index
    %17 = vector.load %arg5[%c0_7, %c0_8, %c0_9] : memref<1x8x5xbf16, #tpu.memory_space<vmem>>, vector<1x8x5xbf16>
    %18 = vector.shape_cast %17 : vector<1x8x5xbf16> to vector<8x5xbf16>
    %19 = vector.shape_cast %16 : vector<8x5xbf16> to vector<1x8x5xbf16>
    tpu.vector_store %arg5[%c0_7, %c0_8, %c0_9], %19 {strides = array<i32>} : memref<1x8x5xbf16, #tpu.memory_space<vmem>>, vector<1x8x5xbf16>,
    return
  }
  func.func @transform_0(%arg0: i32, %arg1: i32) -> (i32, i32, i32) {
    %c0_i32 = arith.constant 0 : i32
    %c0_i32_0 = arith.constant 0 : i32
    %c0_i32_1 = arith.constant 0 : i32
    return %arg0, %c0_i32, %c0_i32_0 : i32, i32, i32
  }
  func.func @transform_1(%arg0: i32, %arg1: i32) -> (i32, i32) {
    %c0_i32 = arith.constant 0 : i32
    %c0_i32_0 = arith.constant 0 : i32
    %c0_i32_1 = arith.constant 0 : i32
    return %c0_i32, %c0_i32_0 : i32, i32
  }
  func.func @transform_2(%arg0: i32, %arg1: i32) -> (i32, i32) {
    %c0_i32 = arith.constant 0 : i32
    %c0_i32_0 = arith.constant 0 : i32
    %c0_i32_1 = arith.constant 0 : i32
    return %c0_i32, %c0_i32_0 : i32, i32
  }
  func.func @transform_3(%arg0: i32, %arg1: i32) -> (i32, i32, i32) {
    %c0_i32 = arith.constant 0 : i32
    %c0_i32_0 = arith.constant 0 : i32
    return %arg0, %c0_i32, %arg1 : i32, i32, i32
  }
}

</mosaic_0001>

<llo_original>
// kernel: tile.10
$region0: #{tile.10}
  #allocation0 [shape = 's32[1]{0}', space=sflag, size = 0x4, scoped, tag = 'scoped memory for tile.10']
  %s0 = inlined_call_operand.vmem [shape: f32[8], index: 0, kind: input, shape index: {}]
  %s1 = inlined_call_operand.vmem [shape: f32[2,8], index: 1, kind: output, shape index: {}]
  // Predicated region
  $region2: #{tile.10} parent=0 // pred_check
    _
  $region3: #{tile.10} parent=0 // pred_check_branch
    %3 = sbr.rel (0) target = $region5
  $region4: #{tile.10} parent=0 // pred_region
    _
  $region5: #{tile.10} parent=0 // pred_fallthru
    _
  %v4 = vld [vmem:[%s0] ss:$0 sm:$0xff]
  %5 = vst [vmem:[%s1] sm:$0x3] %v4

// kernel: tile.0
$region0: #{tile.0}
  %s0 = inlined_call_operand.vmem [shape: f32[2,8], index: 0, kind: input, shape index: {}]
  %s1 = inlined_call_operand.vmem [shape: f32[16,1], index: 1, kind: output, shape index: {}]
  $region1: #{tile.0} parent=0
    #allocation0 [shape = 'u8[4096]{0}', space=vmem, size = 0x1000, scoped, tag = 'scoped mem for input reshape']
    %s3 = sshllo.u32 0, 2
    %v4 = vld [vmem:[%s0] sm:%s3]
    %5 = vst [vmem:[#allocation0] sm:%s3] %v4
    %v6 = vld [vmem:[#allocation0] sm:$0x3]
    %vm7 = vcmask 7168
    %8 = vst.msk [vmem:[%s1] ss:$8 sm:$0x3] %vm7, %v6
    %v9 = vld [vmem:[#allocation0] sm:$0x3]
    %10 = vrot.lane.b32.xlu0 %v9, 127
    %v11 = vpop.permute.xlu0 %10
    %vm12 = vcmask 7168
    %s13 = scalar_lea.vmem %s1, 1
    %14 = vst.msk [vmem:[%s13] ss:$8 sm:$0x3] %vm12, %v11
    %v15 = vld [vmem:[#allocation0] sm:$0x3]
    %16 = vrot.lane.b32.xlu0 %v15, 126
    %v17 = vpop.permute.xlu0 %16
    %vm18 = vcmask 7168
    %s19 = scalar_lea.vmem %s1, 2
    %20 = vst.msk [vmem:[%s19] ss:$8 sm:$0x3] %vm18, %v17
    %v21 = vld [vmem:[#allocation0] sm:$0x3]
    %22 = vrot.lane.b32.xlu0 %v21, 125
    %v23 = vpop.permute.xlu0 %22
    %vm24 = vcmask 7168
    %s25 = scalar_lea.vmem %s1, 3
    %26 = vst.msk [vmem:[%s25] ss:$8 sm:$0x3] %vm24, %v23
    %v27 = vld [vmem:[#allocation0] sm:$0x3]
    %28 = vrot.lane.b32.xlu0 %v27, 124
    %v29 = vpop.permute.xlu0 %28
    %vm30 = vcmask 7168
    %s31 = scalar_lea.vmem %s1, 4
    %32 = vst.msk [vmem:[%s31] ss:$8 sm:$0x3] %vm30, %v29
    %v33 = vld [vmem:[#allocation0] sm:$0x3]
    %34 = vrot.lane.b32.xlu0 %v33, 123
    %v35 = vpop.permute.xlu0 %34
    %vm36 = vcmask 7168
    %s37 = scalar_lea.vmem %s1, 5
    %38 = vst.msk [vmem:[%s37] ss:$8 sm:$0x3] %vm36, %v35
    %v39 = vld [vmem:[#allocation0] sm:$0x3]
    %40 = vrot.lane.b32.xlu0 %v39, 122
    %v41 = vpop.permute.xlu0 %40
    %vm42 = vcmask 7168
    %s43 = scalar_lea.vmem %s1, 6
    %44 = vst.msk [vmem:[%s43] ss:$8 sm:$0x3] %vm42, %v41
    %v45 = vld [vmem:[#allocation0] sm:$0x3]
    %46 = vrot.lane.b32.xlu0 %v45, 121
    %v47 = vpop.permute.xlu0 %46
    %vm48 = vcmask 7168
    %s49 = scalar_lea.vmem %s1, 7
    %50 = vst.msk [vmem:[%s49] ss:$8 sm:$0x3] %vm48, %v47

// kernel: tile.14
$region0: #{tile.14}
  #allocation0 [shape = 's32[1]{0}', space=sflag, size = 0x4, scoped, tag = 'scoped memory for tile.14']
  %s0 = inlined_call_operand.vmem [shape: f32[4], index: 0, kind: input, shape index: {}]
  %s1 = inlined_call_operand.vmem [shape: f32[2,4], index: 1, kind: output, shape index: {}]
  // Predicated region
  $region2: #{tile.14} parent=0 // pred_check
    _
  $region3: #{tile.14} parent=0 // pred_check_branch
    %3 = sbr.rel (0) target = $region5
  $region4: #{tile.14} parent=0 // pred_region
    _
  $region5: #{tile.14} parent=0 // pred_fallthru
    _
  %v4 = vld [vmem:[%s0] ss:$0 sm:$0xff]
  %5 = vst [vmem:[%s1] sm:$0x3] %v4

// kernel: tile.1
$region0: #{tile.1}
  %s0 = inlined_call_operand.vmem [shape: f32[2,4], index: 0, kind: input, shape index: {}]
  %s1 = inlined_call_operand.vmem [shape: f32[8,1], index: 1, kind: output, shape index: {}]
  $region1: #{tile.1} parent=0
    #allocation0 [shape = 'u8[4096]{0}', space=vmem, size = 0x1000, scoped, tag = 'scoped mem for input reshape']
    %s3 = sshllo.u32 0, 2
    %v4 = vld [vmem:[%s0] sm:%s3]
    %5 = vst [vmem:[#allocation0] sm:%s3] %v4
    %v6 = vld [vmem:[#allocation0] sm:$0x3]
    %vm7 = vcmask 7168
    %8 = vst.msk [vmem:[%s1] ss:$4 sm:$0x3] %vm7, %v6
    %v9 = vld [vmem:[#allocation0] sm:$0x3]
    %10 = vrot.lane.b32.xlu0 %v9, 127
    %v11 = vpop.permute.xlu0 %10
    %vm12 = vcmask 7168
    %s13 = scalar_lea.vmem %s1, 1
    %14 = vst.msk [vmem:[%s13] ss:$4 sm:$0x3] %vm12, %v11
    %v15 = vld [vmem:[#allocation0] sm:$0x3]
    %16 = vrot.lane.b32.xlu0 %v15, 126
    %v17 = vpop.permute.xlu0 %16
    %vm18 = vcmask 7168
    %s19 = scalar_lea.vmem %s1, 2
    %20 = vst.msk [vmem:[%s19] ss:$4 sm:$0x3] %vm18, %v17
    %v21 = vld [vmem:[#allocation0] sm:$0x3]
    %22 = vrot.lane.b32.xlu0 %v21, 125
    %v23 = vpop.permute.xlu0 %22
    %vm24 = vcmask 7168
    %s25 = scalar_lea.vmem %s1, 3
    %26 = vst.msk [vmem:[%s25] ss:$4 sm:$0x3] %vm24, %v23

// kernel: _lambda_.31
$region0: #{_lambda_.31}
  #allocation0 [shape = 'u32[]', space=smem, size = 0x4, offset = 0x4, fixed_abs, tag = 'smem constant byte address 0x4 - core index']
  #allocation1 [shape = 'u32[144,128]{1,0:T(1,128)}', space=vmem, size = 0x12000, scoped, tag = 'internal scratch']
  %s0 = inlined_call_operand.vmem [shape: bf16[2,8,18], index: 0, kind: input, shape index: {}]
  %s1 = inlined_call_operand.vmem [shape: bf16[8,16], index: 1, kind: input, shape index: {}]
  %s2 = inlined_call_operand.vmem [shape: f32[8,1], index: 2, kind: input, shape index: {}]
  %s3 = inlined_call_operand.vmem [shape: bf16[2,8,17], index: 3, kind: output, shape index: {}]
  %s4 = sld [smem:[#allocation0]]
  $region45: #{_lambda_.31} parent=0
    _
  %s6 = ssub.s32 1, %s4
  %s7 = scalar_select 0, %s6, %s4
  loop: start=0, step=1, limit=4
  $region2: #{_lambda_.31} parent=0 // loop_pre_header
    _
  $region3: #{_lambda_.31} parent=0 // loop_header
    %s9 = sphi 0, %s13
    %p10 = scmp.ge.s32.totalorder %s9, 4
    %s16 = sphi 0, %s28
    %s17 = sphi 0, %s24
    %s18 = sphi 0, %s16
    %s19 = sphi 0, %s17
    %s20 = sphi 0, %s18
    %s21 = sphi 0, %s19
    %s31 = sphi 0, %s33
    %s34 = sphi 0, %s31
    %s35 = sphi 0, %s34
    %s51 = sphi 0, %s35
    %s55 = sphi 0, %s55
    %s57 = sphi 0, %s55
    %s58 = sphi 0, %s57
    %s72 = sphi 0, %s58
    %s76 = sphi 0, %s76
    %s78 = sphi 0, %s76
    %s79 = sphi 0, %s78
    %s93 = sphi 0, %s79
    %s101 = sphi 0, %s103
    %s104 = sphi 0, %s101
    %s105 = sphi 0, %s104
    %s121 = sphi 0, %s105
  $region4: #{_lambda_.31} parent=0 // loop_header_branch
    %12 = sbr.rel (%p10) target = $region8
  $region5: #{_lambda_.31} parent=0 // loop_body
    %s14 = ssub.s32 %s9, 1
    %s15 = ssub.s32 %s9, 2
    %s22 = sadd.s32 1, %s17
    %p23 = scmp.ge.s32.totalorder %s22, 1
    %s24 = scalar_select %p23, 0, %s22
    %s25 = sadd.s32 1, %s16
    %s26 = scalar_select %p23, %s25, %s16
    %p27 = scmp.ge.s32.totalorder %s26, 2
    %s28 = scalar_select %p27, 0, %s26
    %s29 = ssub.s32 %s16, %s28
    %p30 = scmp.eq.s32.totalorder %s29, 0
    %s32 = sadd.s32 %s31, 1
    %s33 = scalar_select %p30, %s31, %s32
    %p36 = pneg %p30
    %p37 = scmp.eq.s32.totalorder %s9, 1
    %p38 = por %p36, %p37
    %p39 = scmp.ne.s32.totalorder %s31, %s34
    %p40 = scmp.eq.s32.totalorder %s9, 0
    %p41 = por %p39, %p40
    %p42 = scmp.ne.s32.totalorder %s31, %s34
    %p43 = scmp.eq.s32.totalorder %s14, 1
    %p44 = por %p42, %p43
    %p45 = scmp.ne.s32.totalorder %s34, %s35
    %p46 = scmp.eq.s32.totalorder %s14, 0
    %p47 = por %p45, %p46
    %p48 = scmp.ne.s32.totalorder %s34, %s35
    %p49 = scmp.eq.s32.totalorder %s15, 1
    %p50 = por %p48, %p49
    %p52 = scmp.ne.s32.totalorder %s35, %s51
    %p53 = scmp.eq.s32.totalorder %s15, 0
    %p54 = por %p52, %p53
    %s56 = sadd.s32 %s55, 1
    %p59 = scmp.eq.s32.totalorder %s9, 1
    %p60 = scmp.ne.s32.totalorder %s55, %s57
    %p61 = scmp.eq.s32.totalorder %s9, 0
    %p62 = por %p60, %p61
    %p63 = scmp.ne.s32.totalorder %s55, %s57
    %p64 = scmp.eq.s32.totalorder %s14, 1
    %p65 = por %p63, %p64
    %p66 = scmp.ne.s32.totalorder %s57, %s58
    %p67 = scmp.eq.s32.totalorder %s14, 0
    %p68 = por %p66, %p67
    %p69 = scmp.ne.s32.totalorder %s57, %s58
    %p70 = scmp.eq.s32.totalorder %s15, 1
    %p71 = por %p69, %p70
    %p73 = scmp.ne.s32.totalorder %s58, %s72
    %p74 = scmp.eq.s32.totalorder %s15, 0
    %p75 = por %p73, %p74
    %s77 = sadd.s32 %s76, 1
    %p80 = scmp.eq.s32.totalorder %s9, 1
    %p81 = scmp.ne.s32.totalorder %s76, %s78
    %p82 = scmp.eq.s32.totalorder %s9, 0
    %p83 = por %p81, %p82
    %p84 = scmp.ne.s32.totalorder %s76, %s78
    %p85 = scmp.eq.s32.totalorder %s14, 1
    %p86 = por %p84, %p85
    %p87 = scmp.ne.s32.totalorder %s78, %s79
    %p88 = scmp.eq.s32.totalorder %s14, 0
    %p89 = por %p87, %p88
    %p90 = scmp.ne.s32.totalorder %s78, %s79
    %p91 = scmp.eq.s32.totalorder %s15, 1
    %p92 = por %p90, %p91
    %p94 = scmp.ne.s32.totalorder %s79, %s93
    %p95 = scmp.eq.s32.totalorder %s15, 0
    %p96 = por %p94, %p95
    %s97 = ssub.s32 %s16, %s28
    %s98 = ssub.s32 %s17, %s24
    %s99 = sor.u32 %s97, %s98
    %p100 = scmp.eq.s32.totalorder %s99, 0
    %s102 = sadd.s32 %s101, 1
    %s103 = scalar_select %p100, %s101, %s102
    %p106 = pneg %p100
    %p107 = scmp.eq.s32.totalorder %s9, 1
    %p108 = por %p106, %p107
    %p109 = scmp.ne.s32.totalorder %s101, %s104
    %p110 = scmp.eq.s32.totalorder %s9, 0
    %p111 = por %p109, %p110
    %p112 = scmp.ne.s32.totalorder %s101, %s104
    %p113 = scmp.eq.s32.totalorder %s14, 1
    %p114 = por %p112, %p113
    %p115 = scmp.ne.s32.totalorder %s104, %s105
    %p116 = scmp.eq.s32.totalorder %s14, 0
    %p117 = por %p115, %p116
    %p118 = scmp.ne.s32.totalorder %s104, %s105
    %p119 = scmp.eq.s32.totalorder %s15, 1
    %p120 = por %p118, %p119
    %p122 = scmp.ne.s32.totalorder %s105, %s121
    %p123 = scmp.eq.s32.totalorder %s15, 0
    %p124 = por %p122, %p123
    %p125 = scmp.le.s32.totalorder 1, %s9
    %p126 = scmp.lt.s32.totalorder %s9, 3
    %p127 = pnand %p125, %p126
    %p128 = pneg %p127
    // Predicated region
    $region9: #{_lambda_.31} parent=5 // pred_check
      _
    $region10: #{_lambda_.31} parent=5 // pred_check_branch
      %130 = sbr.rel (%p127) target = $region12
    $region11: #{_lambda_.31} parent=5 // pred_region
      %s131 = ssub.s32 %s9, 1
      // Predicated region
      $region13: #{_lambda_.31} parent=11 // pred_check
        %p132 = pneg %p68
      $region14: #{_lambda_.31} parent=11 // pred_check_branch
        %134 = sbr.rel (%p132) target = $region16
      $region15: #{_lambda_.31} parent=11 // pred_region
        _
      $region16: #{_lambda_.31} parent=11 // pred_fallthru
        _
      // Predicated region
      $region17: #{_lambda_.31} parent=11 // pred_check
        %p135 = pneg %p89
      $region18: #{_lambda_.31} parent=11 // pred_check_branch
        %137 = sbr.rel (%p135) target = $region20
      $region19: #{_lambda_.31} parent=11 // pred_region
        _
      $region20: #{_lambda_.31} parent=11 // pred_fallthru
        _
    $region12: #{_lambda_.31} parent=5 // pred_fallthru
      _
    %p138 = scmp.lt.s32.totalorder %s9, 2
    // Predicated region
    $region21: #{_lambda_.31} parent=5 // pred_check
      %p139 = pneg %p138
    $region22: #{_lambda_.31} parent=5 // pred_check_branch
      %141 = sbr.rel (%p139) target = $region24
    $region23: #{_lambda_.31} parent=5 // pred_region
      // Predicated region
      $region25: #{_lambda_.31} parent=23 // pred_check
        %p142 = pneg %p41
      $region26: #{_lambda_.31} parent=23 // pred_check_branch
        %144 = sbr.rel (%p142) target = $region28
      $region27: #{_lambda_.31} parent=23 // pred_region
        %p145 = scmp.lt.s32.totalorder %s16, 1
        %s146 = scalar_select %p145, %s16, 1
        %s147 = smul.addr %s146, 4
        %s148 = scalar_lea.vmem %s0, %s147
      $region28: #{_lambda_.31} parent=23 // pred_fallthru
        _
    $region24: #{_lambda_.31} parent=5 // pred_fallthru
      _
    %p149 = scmp.le.s32.totalorder 1, %s9
    %p150 = scmp.lt.s32.totalorder %s9, 3
    %p151 = pnand %p149, %p150
    %p152 = pneg %p151
    // Predicated region
    $region29: #{_lambda_.31} parent=5 // pred_check
      _
    $region30: #{_lambda_.31} parent=5 // pred_check_branch
      %154 = sbr.rel (%p151) target = $region32
    $region31: #{_lambda_.31} parent=5 // pred_region
      %s155 = ssub.s32 %s9, 1
      %p156 = scmp.lt.s32.totalorder %s18, 1
      %s157 = scalar_select %p156, %s18, 1
      %s158 = smul.addr %s157, 4
      %s159 = scalar_lea.vmem %s0, %s158
      %p160 = pneg %p47
      %p161 = pneg %p44
      %p162 = pneg %p68
      %p163 = pneg %p65
      %p164 = pneg %p89
      %p165 = pneg %p86
      %p166 = pneg %p117
      %p167 = pneg %p114
      %p168 = scmp.lt.s32.totalorder %s18, 1
      %s169 = scalar_select %p168, %s18, 1
      %p170 = scmp.lt.s32.totalorder %s19, 0
      %s171 = scalar_select %p170, %s19, 0
      %s172 = sadd.s32 %s171, %s169
      %s173 = smul.addr %s172, 4
      %s174 = scalar_lea.vmem %s3, %s173
      %p175 = scmp.lt.s32.totalorder %s18, 1
      %s176 = scalar_select %p175, %s18, 1
      %s177 = smul.addr %s176, 4
      %s178 = scalar_lea.vmem %s0, %s177
      %p179 = scmp.lt.s32.totalorder %s18, 1
      %s180 = scalar_select %p179, %s18, 1
      %p181 = scmp.lt.s32.totalorder %s19, 0
      %s182 = scalar_select %p181, %s19, 0
      %s183 = sadd.s32 %s182, %s180
      %s184 = smul.addr %s183, 4
      %s185 = scalar_lea.vmem %s3, %s184
      %v188 = vld [vmem:[%s178] sm:$0xf]
      %v189 = vmul.bf16 %v188, 1036860877
      %v190 = vmax.bf16 %v188, %v189
      %v192 = vunpack.c.l.b16 %v190
      %v193 = vpack.c.b16 %v192, %v192
      %194 = vrot.lane.b32.xlu0 %v193, 127
      %v195 = vpop.permute.xlu0 %194
      %vm196 = vcmask 1043456
      %v199 = vsel %vm196, %v190, %v195
      %v201 = vld [vmem:[%s1] sm:$0xf]
      %v202 = vld [vmem:[%s2] sm:$0xff]
      %204 = vset.pattern.permute.xlu0 0
      %205 = vperm.xlu0 %204, %v202
      %v206 = vpop.permute.xlu0 %205
      %vm208 = vcmask 130048
      %v210 = vsel %vm208, %v201, 0
      %212 = vmatprep.subr.bf16.mxu0 0
      %213 = vmatpush1.bf16.msra.mxu0 %v199
      %214 = vmatprep.subr.bf16.mxu0 0
      %215 = vmatpush1.bf16.msra.mxu0 0
      %216 = vmatprep.subr.bf16.mxu0 0
      %217 = vmatpush1.bf16.msra.mxu0 0
      %218 = vmatprep.subr.bf16.mxu0 0
      %219 = vmatpush1.bf16.msra.mxu0 0
      %220 = vmatprep.subr.bf16.mxu0 0
      %221 = vmatpush1.bf16.msra.mxu0 0
      %222 = vmatprep.subr.bf16.mxu0 0
      %223 = vmatpush1.bf16.msra.mxu0 0
      %224 = vmatprep.subr.bf16.mxu0 0
      %225 = vmatpush1.bf16.msra.mxu0 0
      %226 = vmatprep.subr.bf16.mxu0 0
      %227 = vmatpush1.bf16.msra.mxu0 0
      %228 = vmatprep.subr.bf16.mxu0 0
      %229 = vmatpush1.bf16.msra.mxu0 0
      %230 = vmatprep.subr.bf16.mxu0 0
      %231 = vmatpush1.bf16.msra.mxu0 0
      %232 = vmatprep.subr.bf16.mxu0 0
      %233 = vmatpush1.bf16.msra.mxu0 0
      %234 = vmatprep.subr.bf16.mxu0 0
      %235 = vmatpush1.bf16.msra.mxu0 0
      %236 = vmatprep.subr.bf16.mxu0 0
      %237 = vmatpush1.bf16.msra.mxu0 0
      %238 = vmatprep.subr.bf16.mxu0 0
      %239 = vmatpush1.bf16.msra.mxu0 0
      %240 = vmatprep.subr.bf16.mxu0 0
      %241 = vmatpush1.bf16.msra.mxu0 0
      %242 = vmatprep.subr.bf16.mxu0 0
      %243 = vmatpush1.bf16.msra.mxu0 0
      %244 = vmatprep.mubr.bf16.mxu0 0
      %245 = vmatmul.mubr.bf16.gmra.mrb[0].mxu0 %v210
      %v246 = vpop.f32.mrb[0].mxu0
      %v247 = vadd.f32 %v206, %v246
      %v248 = vpop.f32.mrb[0].mxu0
      %v249 = vpop.f32.mrb[0].mxu0
      %v250 = vpop.f32.mrb[0].mxu0
      %251 = vdwg.mxu0
      %v252 = vpack.c.bf16 %v247, %v247
      %vm253 = vcmask 134144
      %254 = vst.msk [vmem:[%s185] sm:$0xf] %vm253, %v252
      %p255 = scmp.lt.s32.totalorder %s18, 1
      %s256 = scalar_select %p255, %s18, 1
      %p257 = scmp.lt.s32.totalorder %s19, 0
      %s258 = scalar_select %p257, %s19, 0
      %s259 = sadd.s32 %s258, %s256
      %s260 = smul.addr %s259, 4
      %s261 = scalar_lea.vmem %s3, %s260
      // Predicated region
      $region33: #{_lambda_.31} parent=31 // pred_check
        %p262 = pneg %p114
      $region34: #{_lambda_.31} parent=31 // pred_check_branch
        %264 = sbr.rel (%p262) target = $region36
      $region35: #{_lambda_.31} parent=31 // pred_region
        _
      $region36: #{_lambda_.31} parent=31 // pred_fallthru
        _
    $region32: #{_lambda_.31} parent=5 // pred_fallthru
      _
    %p265 = scmp.le.s32.totalorder 2, %s9
    // Predicated region
    $region37: #{_lambda_.31} parent=5 // pred_check
      %p266 = pneg %p265
    $region38: #{_lambda_.31} parent=5 // pred_check_branch
      %268 = sbr.rel (%p266) target = $region40
    $region39: #{_lambda_.31} parent=5 // pred_region
      %s269 = ssub.s32 %s9, 2
      // Predicated region
      $region41: #{_lambda_.31} parent=39 // pred_check
        %p270 = pneg %p120
      $region42: #{_lambda_.31} parent=39 // pred_check_branch
        %272 = sbr.rel (%p270) target = $region44
      $region43: #{_lambda_.31} parent=39 // pred_region
        %p273 = scmp.lt.s32.totalorder %s20, 1
        %s274 = scalar_select %p273, %s20, 1
        %p275 = scmp.lt.s32.totalorder %s21, 0
        %s276 = scalar_select %p275, %s21, 0
        %s277 = sadd.s32 %s276, %s274
        %s278 = smul.addr %s277, 4
        %s279 = scalar_lea.vmem %s3, %s278
      $region44: #{_lambda_.31} parent=39 // pred_fallthru
        _
    $region40: #{_lambda_.31} parent=5 // pred_fallthru
      _
  $region6: #{_lambda_.31} parent=0 // loop_footer
    %s13 = sadd.s32 1, %s9
  $region7: #{_lambda_.31} parent=0 // loop_footer_branch
    %8 = sbr.rel target = $region3
  $region8: #{_lambda_.31} parent=0 // loop_exit
    _

// kernel: _lambda_.28
$region0: #{_lambda_.28}
  #allocation0 [shape = 'u32[]', space=smem, size = 0x4, offset = 0x4, fixed_abs, tag = 'smem constant byte address 0x4 - core index']
  #allocation1 [shape = 'u32[144,128]{1,0:T(1,128)}', space=vmem, size = 0x12000, scoped, tag = 'internal scratch']
  %s0 = inlined_call_operand.vmem [shape: bf16[2,8,14], index: 0, kind: input, shape index: {}]
  %s1 = inlined_call_operand.vmem [shape: bf16[16,56], index: 1, kind: input, shape index: {}]
  %s2 = inlined_call_operand.vmem [shape: f32[16,1], index: 2, kind: input, shape index: {}]
  %s3 = inlined_call_operand.vmem [shape: bf16[2,16,8], index: 3, kind: output, shape index: {}]
  %s4 = sld [smem:[#allocation0]]
  $region45: #{_lambda_.28} parent=0
    _
  %s6 = ssub.s32 1, %s4
  %s7 = scalar_select 0, %s6, %s4
  loop: start=0, step=1, limit=4
  $region2: #{_lambda_.28} parent=0 // loop_pre_header
    _
  $region3: #{_lambda_.28} parent=0 // loop_header
    %s9 = sphi 0, %s13
    %p10 = scmp.ge.s32.totalorder %s9, 4
    %s16 = sphi 0, %s28
    %s17 = sphi 0, %s24
    %s18 = sphi 0, %s16
    %s19 = sphi 0, %s17
    %s20 = sphi 0, %s18
    %s21 = sphi 0, %s19
    %s31 = sphi 0, %s33
    %s34 = sphi 0, %s31
    %s35 = sphi 0, %s34
    %s51 = sphi 0, %s35
    %s55 = sphi 0, %s55
    %s57 = sphi 0, %s55
    %s58 = sphi 0, %s57
    %s72 = sphi 0, %s58
    %s76 = sphi 0, %s76
    %s78 = sphi 0, %s76
    %s79 = sphi 0, %s78
    %s93 = sphi 0, %s79
    %s101 = sphi 0, %s103
    %s104 = sphi 0, %s101
    %s105 = sphi 0, %s104
    %s121 = sphi 0, %s105
  $region4: #{_lambda_.28} parent=0 // loop_header_branch
    %12 = sbr.rel (%p10) target = $region8
  $region5: #{_lambda_.28} parent=0 // loop_body
    %s14 = ssub.s32 %s9, 1
    %s15 = ssub.s32 %s9, 2
    %s22 = sadd.s32 1, %s17
    %p23 = scmp.ge.s32.totalorder %s22, 1
    %s24 = scalar_select %p23, 0, %s22
    %s25 = sadd.s32 1, %s16
    %s26 = scalar_select %p23, %s25, %s16
    %p27 = scmp.ge.s32.totalorder %s26, 2
    %s28 = scalar_select %p27, 0, %s26
    %s29 = ssub.s32 %s16, %s28
    %p30 = scmp.eq.s32.totalorder %s29, 0
    %s32 = sadd.s32 %s31, 1
    %s33 = scalar_select %p30, %s31, %s32
    %p36 = pneg %p30
    %p37 = scmp.eq.s32.totalorder %s9, 1
    %p38 = por %p36, %p37
    %p39 = scmp.ne.s32.totalorder %s31, %s34
    %p40 = scmp.eq.s32.totalorder %s9, 0
    %p41 = por %p39, %p40
    %p42 = scmp.ne.s32.totalorder %s31, %s34
    %p43 = scmp.eq.s32.totalorder %s14, 1
    %p44 = por %p42, %p43
    %p45 = scmp.ne.s32.totalorder %s34, %s35
    %p46 = scmp.eq.s32.totalorder %s14, 0
    %p47 = por %p45, %p46
    %p48 = scmp.ne.s32.totalorder %s34, %s35
    %p49 = scmp.eq.s32.totalorder %s15, 1
    %p50 = por %p48, %p49
    %p52 = scmp.ne.s32.totalorder %s35, %s51
    %p53 = scmp.eq.s32.totalorder %s15, 0
    %p54 = por %p52, %p53
    %s56 = sadd.s32 %s55, 1
    %p59 = scmp.eq.s32.totalorder %s9, 1
    %p60 = scmp.ne.s32.totalorder %s55, %s57
    %p61 = scmp.eq.s32.totalorder %s9, 0
    %p62 = por %p60, %p61
    %p63 = scmp.ne.s32.totalorder %s55, %s57
    %p64 = scmp.eq.s32.totalorder %s14, 1
    %p65 = por %p63, %p64
    %p66 = scmp.ne.s32.totalorder %s57, %s58
    %p67 = scmp.eq.s32.totalorder %s14, 0
    %p68 = por %p66, %p67
    %p69 = scmp.ne.s32.totalorder %s57, %s58
    %p70 = scmp.eq.s32.totalorder %s15, 1
    %p71 = por %p69, %p70
    %p73 = scmp.ne.s32.totalorder %s58, %s72
    %p74 = scmp.eq.s32.totalorder %s15, 0
    %p75 = por %p73, %p74
    %s77 = sadd.s32 %s76, 1
    %p80 = scmp.eq.s32.totalorder %s9, 1
    %p81 = scmp.ne.s32.totalorder %s76, %s78
    %p82 = scmp.eq.s32.totalorder %s9, 0
    %p83 = por %p81, %p82
    %p84 = scmp.ne.s32.totalorder %s76, %s78
    %p85 = scmp.eq.s32.totalorder %s14, 1
    %p86 = por %p84, %p85
    %p87 = scmp.ne.s32.totalorder %s78, %s79
    %p88 = scmp.eq.s32.totalorder %s14, 0
    %p89 = por %p87, %p88
    %p90 = scmp.ne.s32.totalorder %s78, %s79
    %p91 = scmp.eq.s32.totalorder %s15, 1
    %p92 = por %p90, %p91
    %p94 = scmp.ne.s32.totalorder %s79, %s93
    %p95 = scmp.eq.s32.totalorder %s15, 0
    %p96 = por %p94, %p95
    %s97 = ssub.s32 %s16, %s28
    %s98 = ssub.s32 %s17, %s24
    %s99 = sor.u32 %s97, %s98
    %p100 = scmp.eq.s32.totalorder %s99, 0
    %s102 = sadd.s32 %s101, 1
    %s103 = scalar_select %p100, %s101, %s102
    %p106 = pneg %p100
    %p107 = scmp.eq.s32.totalorder %s9, 1
    %p108 = por %p106, %p107
    %p109 = scmp.ne.s32.totalorder %s101, %s104
    %p110 = scmp.eq.s32.totalorder %s9, 0
    %p111 = por %p109, %p110
    %p112 = scmp.ne.s32.totalorder %s101, %s104
    %p113 = scmp.eq.s32.totalorder %s14, 1
    %p114 = por %p112, %p113
    %p115 = scmp.ne.s32.totalorder %s104, %s105
    %p116 = scmp.eq.s32.totalorder %s14, 0
    %p117 = por %p115, %p116
    %p118 = scmp.ne.s32.totalorder %s104, %s105
    %p119 = scmp.eq.s32.totalorder %s15, 1
    %p120 = por %p118, %p119
    %p122 = scmp.ne.s32.totalorder %s105, %s121
    %p123 = scmp.eq.s32.totalorder %s15, 0
    %p124 = por %p122, %p123
    %p125 = scmp.le.s32.totalorder 1, %s9
    %p126 = scmp.lt.s32.totalorder %s9, 3
    %p127 = pnand %p125, %p126
    %p128 = pneg %p127
    // Predicated region
    $region9: #{_lambda_.28} parent=5 // pred_check
      _
    $region10: #{_lambda_.28} parent=5 // pred_check_branch
      %130 = sbr.rel (%p127) target = $region12
    $region11: #{_lambda_.28} parent=5 // pred_region
      %s131 = ssub.s32 %s9, 1
      // Predicated region
      $region13: #{_lambda_.28} parent=11 // pred_check
        %p132 = pneg %p68
      $region14: #{_lambda_.28} parent=11 // pred_check_branch
        %134 = sbr.rel (%p132) target = $region16
      $region15: #{_lambda_.28} parent=11 // pred_region
        _
      $region16: #{_lambda_.28} parent=11 // pred_fallthru
        _
      // Predicated region
      $region17: #{_lambda_.28} parent=11 // pred_check
        %p135 = pneg %p89
      $region18: #{_lambda_.28} parent=11 // pred_check_branch
        %137 = sbr.rel (%p135) target = $region20
      $region19: #{_lambda_.28} parent=11 // pred_region
        _
      $region20: #{_lambda_.28} parent=11 // pred_fallthru
        _
    $region12: #{_lambda_.28} parent=5 // pred_fallthru
      _
    %p138 = scmp.lt.s32.totalorder %s9, 2
    // Predicated region
    $region21: #{_lambda_.28} parent=5 // pred_check
      %p139 = pneg %p138
    $region22: #{_lambda_.28} parent=5 // pred_check_branch
      %141 = sbr.rel (%p139) target = $region24
    $region23: #{_lambda_.28} parent=5 // pred_region
      // Predicated region
      $region25: #{_lambda_.28} parent=23 // pred_check
        %p142 = pneg %p41
      $region26: #{_lambda_.28} parent=23 // pred_check_branch
        %144 = sbr.rel (%p142) target = $region28
      $region27: #{_lambda_.28} parent=23 // pred_region
        %p145 = scmp.lt.s32.totalorder %s16, 1
        %s146 = scalar_select %p145, %s16, 1
        %s147 = smul.addr %s146, 4
        %s148 = scalar_lea.vmem %s0, %s147
      $region28: #{_lambda_.28} parent=23 // pred_fallthru
        _
    $region24: #{_lambda_.28} parent=5 // pred_fallthru
      _
    %p149 = scmp.le.s32.totalorder 1, %s9
    %p150 = scmp.lt.s32.totalorder %s9, 3
    %p151 = pnand %p149, %p150
    %p152 = pneg %p151
    // Predicated region
    $region29: #{_lambda_.28} parent=5 // pred_check
      _
    $region30: #{_lambda_.28} parent=5 // pred_check_branch
      %154 = sbr.rel (%p151) target = $region32
    $region31: #{_lambda_.28} parent=5 // pred_region
      %s155 = ssub.s32 %s9, 1
      %p156 = scmp.lt.s32.totalorder %s18, 1
      %s157 = scalar_select %p156, %s18, 1
      %s158 = smul.addr %s157, 4
      %s159 = scalar_lea.vmem %s0, %s158
      %p160 = pneg %p47
      %p161 = pneg %p44
      %p162 = pneg %p68
      %p163 = pneg %p65
      %p164 = pneg %p89
      %p165 = pneg %p86
      %p166 = pneg %p117
      %p167 = pneg %p114
      %p168 = scmp.lt.s32.totalorder %s18, 1
      %s169 = scalar_select %p168, %s18, 1
      %p170 = scmp.lt.s32.totalorder %s19, 0
      %s171 = scalar_select %p170, %s19, 0
      %s172 = smul.addr %s169, 2
      %s173 = sadd.s32 %s171, %s172
      %s174 = smul.addr %s173, 4
      %s175 = scalar_lea.vmem %s3, %s174
      %p176 = scmp.lt.s32.totalorder %s18, 1
      %s177 = scalar_select %p176, %s18, 1
      %s178 = smul.addr %s177, 4
      %s179 = scalar_lea.vmem %s0, %s178
      %p180 = scmp.lt.s32.totalorder %s18, 1
      %s181 = scalar_select %p180, %s18, 1
      %p182 = scmp.lt.s32.totalorder %s19, 0
      %s183 = scalar_select %p182, %s19, 0
      %s184 = smul.addr %s181, 2
      %s185 = sadd.s32 %s183, %s184
      %s186 = smul.addr %s185, 4
      %s187 = scalar_lea.vmem %s3, %s186
      %v189 = vld [vmem:[%s179] sm:$0xf]
      %v191 = vunpack.c.l.b16 %v189
      %v192 = vpack.c.b16 %v191, %v191
      %193 = vrot.lane.b32.xlu0 %v192, 127
      %v194 = vpop.permute.xlu0 %193
      %195 = vrot.lane.b32.xlu0 %v192, 126
      %v196 = vpop.permute.xlu0 %195
      %197 = vrot.lane.b32.xlu0 %v192, 125
      %v198 = vpop.permute.xlu0 %197
      %199 = vrot.lane.b32.xlu0 %v192, 124
      %v200 = vpop.permute.xlu0 %199
      %201 = vrot.lane.b32.xlu0 %v192, 123
      %v202 = vpop.permute.xlu0 %201
      %203 = vrot.lane.b32.xlu0 %v192, 122
      %v204 = vpop.permute.xlu0 %203
      %vm205 = vcmask 1043456
      %v208 = vsel %vm205, %v189, %v194
      %v212 = vsel %vm205, %v196, %v198
      %v216 = vsel %vm205, %v200, %v202
      %v218 = vld [vmem:[%s1] sm:$0xf]
      %v219 = vld [vmem:[%s1 + $0x4] sm:$0xf]
      %v220 = vld [vmem:[%s2] sm:$0xff]
      %v221 = vld [vmem:[%s2 + $0x8] sm:$0xff]
      %223 = vset.pattern.permute.xlu0 0
      %224 = vperm.xlu0 %223, %v220
      %v225 = vpop.permute.xlu0 %224
      %228 = vset.pattern.permute.xlu0 0
      %229 = vperm.xlu0 %228, %v221
      %v230 = vpop.permute.xlu0 %229
      %v234 = vunpack.c.l.b16 %v218
      %v235 = vunpack.c.l.b16 %v219
      %v236 = vpack.c.b16 %v235, %v234
      %vm237 = vcmask 457728
      %v239 = vsel %vm237, %v236, 0
      %v242 = vsel %vm205, %v204, 0
      %244 = vmatprep.subr.bf16.mxu0 0
      %245 = vmatpush1.bf16.msra.mxu0 %v208
      %246 = vmatprep.subr.bf16.mxu0 0
      %247 = vmatpush1.bf16.msra.mxu0 %v212
      %248 = vmatprep.subr.bf16.mxu0 0
      %249 = vmatpush1.bf16.msra.mxu0 %v216
      %250 = vmatprep.subr.bf16.mxu0 0
      %251 = vmatpush1.bf16.msra.mxu0 %v242
      %252 = vmatprep.subr.bf16.mxu0 0
      %253 = vmatpush1.bf16.msra.mxu0 0
      %254 = vmatprep.subr.bf16.mxu0 0
      %255 = vmatpush1.bf16.msra.mxu0 0
      %256 = vmatprep.subr.bf16.mxu0 0
      %257 = vmatpush1.bf16.msra.mxu0 0
      %258 = vmatprep.subr.bf16.mxu0 0
      %259 = vmatpush1.bf16.msra.mxu0 0
      %260 = vmatprep.subr.bf16.mxu0 0
      %261 = vmatpush1.bf16.msra.mxu0 0
      %262 = vmatprep.subr.bf16.mxu0 0
      %263 = vmatpush1.bf16.msra.mxu0 0
      %264 = vmatprep.subr.bf16.mxu0 0
      %265 = vmatpush1.bf16.msra.mxu0 0
      %266 = vmatprep.subr.bf16.mxu0 0
      %267 = vmatpush1.bf16.msra.mxu0 0
      %268 = vmatprep.subr.bf16.mxu0 0
      %269 = vmatpush1.bf16.msra.mxu0 0
      %270 = vmatprep.subr.bf16.mxu0 0
      %271 = vmatpush1.bf16.msra.mxu0 0
      %272 = vmatprep.subr.bf16.mxu0 0
      %273 = vmatpush1.bf16.msra.mxu0 0
      %274 = vmatprep.subr.bf16.mxu0 0
      %275 = vmatpush1.bf16.msra.mxu0 0
      %276 = vmatprep.mubr.bf16.mxu0 0
      %277 = vmatmul.mubr.bf16.gmra.mrb[0].mxu0 %v239
      %v278 = vpop.f32.mrb[0].mxu0
      %v279 = vadd.f32 %v225, %v278
      %v280 = vpop.f32.mrb[0].mxu0
      %v281 = vpop.f32.mrb[0].mxu0
      %v282 = vadd.f32 %v230, %v281
      %v283 = vpop.f32.mrb[0].mxu0
      %284 = vdwg.mxu0
      %v285 = vpack.c.bf16 %v282, %v279
      %v287 = vunpack.c.l.b16 %v285
      %v288 = vunpack.c.h.b16 %v285
      %v289 = vpack.c.b16 %v287, %v287
      %v290 = vpack.c.b16 %v288, %v288
      %vm293 = vcmask 60416
      %294 = vst.msk [vmem:[%s187] sm:$0xf] %vm293, %v289
      %295 = vst.msk [vmem:[%s187 + $0x4] sm:$0xf] %vm293, %v290
      %p296 = scmp.lt.s32.totalorder %s18, 1
      %s297 = scalar_select %p296, %s18, 1
      %p298 = scmp.lt.s32.totalorder %s19, 0
      %s299 = scalar_select %p298, %s19, 0
      %s300 = smul.addr %s297, 2
      %s301 = sadd.s32 %s299, %s300
      %s302 = smul.addr %s301, 4
      %s303 = scalar_lea.vmem %s3, %s302
      // Predicated region
      $region33: #{_lambda_.28} parent=31 // pred_check
        %p304 = pneg %p114
      $region34: #{_lambda_.28} parent=31 // pred_check_branch
        %306 = sbr.rel (%p304) target = $region36
      $region35: #{_lambda_.28} parent=31 // pred_region
        _
      $region36: #{_lambda_.28} parent=31 // pred_fallthru
        _
    $region32: #{_lambda_.28} parent=5 // pred_fallthru
      _
    %p307 = scmp.le.s32.totalorder 2, %s9
    // Predicated region
    $region37: #{_lambda_.28} parent=5 // pred_check
      %p308 = pneg %p307
    $region38: #{_lambda_.28} parent=5 // pred_check_branch
      %310 = sbr.rel (%p308) target = $region40
    $region39: #{_lambda_.28} parent=5 // pred_region
      %s311 = ssub.s32 %s9, 2
      // Predicated region
      $region41: #{_lambda_.28} parent=39 // pred_check
        %p312 = pneg %p120
      $region42: #{_lambda_.28} parent=39 // pred_check_branch
        %314 = sbr.rel (%p312) target = $region44
      $region43: #{_lambda_.28} parent=39 // pred_region
        %p315 = scmp.lt.s32.totalorder %s20, 1
        %s316 = scalar_select %p315, %s20, 1
        %p317 = scmp.lt.s32.totalorder %s21, 0
        %s318 = scalar_select %p317, %s21, 0
        %s319 = smul.addr %s316, 2
        %s320 = sadd.s32 %s318, %s319
        %s321 = smul.addr %s320, 4
        %s322 = scalar_lea.vmem %s3, %s321
      $region44: #{_lambda_.28} parent=39 // pred_fallthru
        _
    $region40: #{_lambda_.28} parent=5 // pred_fallthru
      _
  $region6: #{_lambda_.28} parent=0 // loop_footer
    %s13 = sadd.s32 1, %s9
  $region7: #{_lambda_.28} parent=0 // loop_footer_branch
    %8 = sbr.rel target = $region3
  $region8: #{_lambda_.28} parent=0 // loop_exit
    _

// kernel: _lambda_.29
$region0: #{_lambda_.29}
  #allocation0 [shape = 'u32[]', space=smem, size = 0x4, offset = 0x4, fixed_abs, tag = 'smem constant byte address 0x4 - core index']
  #allocation1 [shape = 'u32[144,128]{1,0:T(1,128)}', space=vmem, size = 0x12000, scoped, tag = 'internal scratch']
  %s0 = inlined_call_operand.vmem [shape: bf16[2,16,10], index: 0, kind: input, shape index: {}]
  %s1 = inlined_call_operand.vmem [shape: bf16[16,32], index: 1, kind: input, shape index: {}]
  %s2 = inlined_call_operand.vmem [shape: f32[16,1], index: 2, kind: input, shape index: {}]
  %s3 = inlined_call_operand.vmem [shape: bf16[2,16,9], index: 3, kind: output, shape index: {}]
  %s4 = sld [smem:[#allocation0]]
  $region45: #{_lambda_.29} parent=0
    _
  %s6 = ssub.s32 1, %s4
  %s7 = scalar_select 0, %s6, %s4
  loop: start=0, step=1, limit=4
  $region2: #{_lambda_.29} parent=0 // loop_pre_header
    _
  $region3: #{_lambda_.29} parent=0 // loop_header
    %s9 = sphi 0, %s13
    %p10 = scmp.ge.s32.totalorder %s9, 4
    %s16 = sphi 0, %s28
    %s17 = sphi 0, %s24
    %s18 = sphi 0, %s16
    %s19 = sphi 0, %s17
    %s20 = sphi 0, %s18
    %s21 = sphi 0, %s19
    %s31 = sphi 0, %s33
    %s34 = sphi 0, %s31
    %s35 = sphi 0, %s34
    %s51 = sphi 0, %s35
    %s55 = sphi 0, %s55
    %s57 = sphi 0, %s55
    %s58 = sphi 0, %s57
    %s72 = sphi 0, %s58
    %s76 = sphi 0, %s76
    %s78 = sphi 0, %s76
    %s79 = sphi 0, %s78
    %s93 = sphi 0, %s79
    %s101 = sphi 0, %s103
    %s104 = sphi 0, %s101
    %s105 = sphi 0, %s104
    %s121 = sphi 0, %s105
  $region4: #{_lambda_.29} parent=0 // loop_header_branch
    %12 = sbr.rel (%p10) target = $region8
  $region5: #{_lambda_.29} parent=0 // loop_body
    %s14 = ssub.s32 %s9, 1
    %s15 = ssub.s32 %s9, 2
    %s22 = sadd.s32 1, %s17
    %p23 = scmp.ge.s32.totalorder %s22, 1
    %s24 = scalar_select %p23, 0, %s22
    %s25 = sadd.s32 1, %s16
    %s26 = scalar_select %p23, %s25, %s16
    %p27 = scmp.ge.s32.totalorder %s26, 2
    %s28 = scalar_select %p27, 0, %s26
    %s29 = ssub.s32 %s16, %s28
    %p30 = scmp.eq.s32.totalorder %s29, 0
    %s32 = sadd.s32 %s31, 1
    %s33 = scalar_select %p30, %s31, %s32
    %p36 = pneg %p30
    %p37 = scmp.eq.s32.totalorder %s9, 1
    %p38 = por %p36, %p37
    %p39 = scmp.ne.s32.totalorder %s31, %s34
    %p40 = scmp.eq.s32.totalorder %s9, 0
    %p41 = por %p39, %p40
    %p42 = scmp.ne.s32.totalorder %s31, %s34
    %p43 = scmp.eq.s32.totalorder %s14, 1
    %p44 = por %p42, %p43
    %p45 = scmp.ne.s32.totalorder %s34, %s35
    %p46 = scmp.eq.s32.totalorder %s14, 0
    %p47 = por %p45, %p46
    %p48 = scmp.ne.s32.totalorder %s34, %s35
    %p49 = scmp.eq.s32.totalorder %s15, 1
    %p50 = por %p48, %p49
    %p52 = scmp.ne.s32.totalorder %s35, %s51
    %p53 = scmp.eq.s32.totalorder %s15, 0
    %p54 = por %p52, %p53
    %s56 = sadd.s32 %s55, 1
    %p59 = scmp.eq.s32.totalorder %s9, 1
    %p60 = scmp.ne.s32.totalorder %s55, %s57
    %p61 = scmp.eq.s32.totalorder %s9, 0
    %p62 = por %p60, %p61
    %p63 = scmp.ne.s32.totalorder %s55, %s57
    %p64 = scmp.eq.s32.totalorder %s14, 1
    %p65 = por %p63, %p64
    %p66 = scmp.ne.s32.totalorder %s57, %s58
    %p67 = scmp.eq.s32.totalorder %s14, 0
    %p68 = por %p66, %p67
    %p69 = scmp.ne.s32.totalorder %s57, %s58
    %p70 = scmp.eq.s32.totalorder %s15, 1
    %p71 = por %p69, %p70
    %p73 = scmp.ne.s32.totalorder %s58, %s72
    %p74 = scmp.eq.s32.totalorder %s15, 0
    %p75 = por %p73, %p74
    %s77 = sadd.s32 %s76, 1
    %p80 = scmp.eq.s32.totalorder %s9, 1
    %p81 = scmp.ne.s32.totalorder %s76, %s78
    %p82 = scmp.eq.s32.totalorder %s9, 0
    %p83 = por %p81, %p82
    %p84 = scmp.ne.s32.totalorder %s76, %s78
    %p85 = scmp.eq.s32.totalorder %s14, 1
    %p86 = por %p84, %p85
    %p87 = scmp.ne.s32.totalorder %s78, %s79
    %p88 = scmp.eq.s32.totalorder %s14, 0
    %p89 = por %p87, %p88
    %p90 = scmp.ne.s32.totalorder %s78, %s79
    %p91 = scmp.eq.s32.totalorder %s15, 1
    %p92 = por %p90, %p91
    %p94 = scmp.ne.s32.totalorder %s79, %s93
    %p95 = scmp.eq.s32.totalorder %s15, 0
    %p96 = por %p94, %p95
    %s97 = ssub.s32 %s16, %s28
    %s98 = ssub.s32 %s17, %s24
    %s99 = sor.u32 %s97, %s98
    %p100 = scmp.eq.s32.totalorder %s99, 0
    %s102 = sadd.s32 %s101, 1
    %s103 = scalar_select %p100, %s101, %s102
    %p106 = pneg %p100
    %p107 = scmp.eq.s32.totalorder %s9, 1
    %p108 = por %p106, %p107
    %p109 = scmp.ne.s32.totalorder %s101, %s104
    %p110 = scmp.eq.s32.totalorder %s9, 0
    %p111 = por %p109, %p110
    %p112 = scmp.ne.s32.totalorder %s101, %s104
    %p113 = scmp.eq.s32.totalorder %s14, 1
    %p114 = por %p112, %p113
    %p115 = scmp.ne.s32.totalorder %s104, %s105
    %p116 = scmp.eq.s32.totalorder %s14, 0
    %p117 = por %p115, %p116
    %p118 = scmp.ne.s32.totalorder %s104, %s105
    %p119 = scmp.eq.s32.totalorder %s15, 1
    %p120 = por %p118, %p119
    %p122 = scmp.ne.s32.totalorder %s105, %s121
    %p123 = scmp.eq.s32.totalorder %s15, 0
    %p124 = por %p122, %p123
    %p125 = scmp.le.s32.totalorder 1, %s9
    %p126 = scmp.lt.s32.totalorder %s9, 3
    %p127 = pnand %p125, %p126
    %p128 = pneg %p127
    // Predicated region
    $region9: #{_lambda_.29} parent=5 // pred_check
      _
    $region10: #{_lambda_.29} parent=5 // pred_check_branch
      %130 = sbr.rel (%p127) target = $region12
    $region11: #{_lambda_.29} parent=5 // pred_region
      %s131 = ssub.s32 %s9, 1
      // Predicated region
      $region13: #{_lambda_.29} parent=11 // pred_check
        %p132 = pneg %p68
      $region14: #{_lambda_.29} parent=11 // pred_check_branch
        %134 = sbr.rel (%p132) target = $region16
      $region15: #{_lambda_.29} parent=11 // pred_region
        _
      $region16: #{_lambda_.29} parent=11 // pred_fallthru
        _
      // Predicated region
      $region17: #{_lambda_.29} parent=11 // pred_check
        %p135 = pneg %p89
      $region18: #{_lambda_.29} parent=11 // pred_check_branch
        %137 = sbr.rel (%p135) target = $region20
      $region19: #{_lambda_.29} parent=11 // pred_region
        _
      $region20: #{_lambda_.29} parent=11 // pred_fallthru
        _
    $region12: #{_lambda_.29} parent=5 // pred_fallthru
      _
    %p138 = scmp.lt.s32.totalorder %s9, 2
    // Predicated region
    $region21: #{_lambda_.29} parent=5 // pred_check
      %p139 = pneg %p138
    $region22: #{_lambda_.29} parent=5 // pred_check_branch
      %141 = sbr.rel (%p139) target = $region24
    $region23: #{_lambda_.29} parent=5 // pred_region
      // Predicated region
      $region25: #{_lambda_.29} parent=23 // pred_check
        %p142 = pneg %p41
      $region26: #{_lambda_.29} parent=23 // pred_check_branch
        %144 = sbr.rel (%p142) target = $region28
      $region27: #{_lambda_.29} parent=23 // pred_region
        %p145 = scmp.lt.s32.totalorder %s16, 1
        %s146 = scalar_select %p145, %s16, 1
        %s147 = smul.addr %s146, 2
        %s148 = smul.addr %s147, 4
        %s149 = scalar_lea.vmem %s0, %s148
      $region28: #{_lambda_.29} parent=23 // pred_fallthru
        _
    $region24: #{_lambda_.29} parent=5 // pred_fallthru
      _
    %p150 = scmp.le.s32.totalorder 1, %s9
    %p151 = scmp.lt.s32.totalorder %s9, 3
    %p152 = pnand %p150, %p151
    %p153 = pneg %p152
    // Predicated region
    $region29: #{_lambda_.29} parent=5 // pred_check
      _
    $region30: #{_lambda_.29} parent=5 // pred_check_branch
      %155 = sbr.rel (%p152) target = $region32
    $region31: #{_lambda_.29} parent=5 // pred_region
      %s156 = ssub.s32 %s9, 1
      %p157 = scmp.lt.s32.totalorder %s18, 1
      %s158 = scalar_select %p157, %s18, 1
      %s159 = smul.addr %s158, 2
      %s160 = smul.addr %s159, 4
      %s161 = scalar_lea.vmem %s0, %s160
      %p162 = pneg %p47
      %p163 = pneg %p44
      %p164 = pneg %p68
      %p165 = pneg %p65
      %p166 = pneg %p89
      %p167 = pneg %p86
      %p168 = pneg %p117
      %p169 = pneg %p114
      %p170 = scmp.lt.s32.totalorder %s18, 1
      %s171 = scalar_select %p170, %s18, 1
      %p172 = scmp.lt.s32.totalorder %s19, 0
      %s173 = scalar_select %p172, %s19, 0
      %s174 = smul.addr %s171, 2
      %s175 = sadd.s32 %s173, %s174
      %s176 = smul.addr %s175, 4
      %s177 = scalar_lea.vmem %s3, %s176
      %p178 = scmp.lt.s32.totalorder %s18, 1
      %s179 = scalar_select %p178, %s18, 1
      %s180 = smul.addr %s179, 2
      %s181 = smul.addr %s180, 4
      %s182 = scalar_lea.vmem %s0, %s181
      %p183 = scmp.lt.s32.totalorder %s18, 1
      %s184 = scalar_select %p183, %s18, 1
      %p185 = scmp.lt.s32.totalorder %s19, 0
      %s186 = scalar_select %p185, %s19, 0
      %s187 = smul.addr %s184, 2
      %s188 = sadd.s32 %s186, %s187
      %s189 = smul.addr %s188, 4
      %s190 = scalar_lea.vmem %s3, %s189
      %v193 = vld [vmem:[%s182] sm:$0xf]
      %v194 = vld [vmem:[%s182 + $0x4] sm:$0xf]
      %v195 = vmul.bf16 %v193, 1036860877
      %v196 = vmul.bf16 %v194, 1036860877
      %v197 = vmax.bf16 %v193, %v195
      %v198 = vmax.bf16 %v194, %v196
      %v201 = vunpack.c.l.b16 %v197
      %v202 = vunpack.c.l.b16 %v198
      %v203 = vpack.c.b16 %v202, %v201
      %205 = vrot.lane.b32.xlu0 %v203, 127
      %v206 = vpop.permute.xlu0 %205
      %v208 = vld [vmem:[%s1] sm:$0xf]
      %v209 = vld [vmem:[%s1 + $0x4] sm:$0xf]
      %v210 = vld [vmem:[%s2] sm:$0xff]
      %v211 = vld [vmem:[%s2 + $0x8] sm:$0xff]
      %213 = vset.pattern.permute.xlu0 0
      %214 = vperm.xlu0 %213, %v210
      %v215 = vpop.permute.xlu0 %214
      %218 = vset.pattern.permute.xlu0 0
      %219 = vperm.xlu0 %218, %v211
      %v220 = vpop.permute.xlu0 %219
      %v224 = vunpack.c.l.b16 %v208
      %v225 = vunpack.c.l.b16 %v209
      %v226 = vpack.c.b16 %v225, %v224
      %vm227 = vcmask 261120
      %v229 = vsel %vm227, %v226, 0
      %231 = vmatprep.subr.bf16.mxu0 0
      %232 = vmatpush1.bf16.msra.mxu0 %v203
      %233 = vmatprep.subr.bf16.mxu0 0
      %234 = vmatpush1.bf16.msra.mxu0 %v206
      %235 = vmatprep.subr.bf16.mxu0 0
      %236 = vmatpush1.bf16.msra.mxu0 0
      %237 = vmatprep.subr.bf16.mxu0 0
      %238 = vmatpush1.bf16.msra.mxu0 0
      %239 = vmatprep.subr.bf16.mxu0 0
      %240 = vmatpush1.bf16.msra.mxu0 0
      %241 = vmatprep.subr.bf16.mxu0 0
      %242 = vmatpush1.bf16.msra.mxu0 0
      %243 = vmatprep.subr.bf16.mxu0 0
      %244 = vmatpush1.bf16.msra.mxu0 0
      %245 = vmatprep.subr.bf16.mxu0 0
      %246 = vmatpush1.bf16.msra.mxu0 0
      %247 = vmatprep.subr.bf16.mxu0 0
      %248 = vmatpush1.bf16.msra.mxu0 0
      %249 = vmatprep.subr.bf16.mxu0 0
      %250 = vmatpush1.bf16.msra.mxu0 0
      %251 = vmatprep.subr.bf16.mxu0 0
      %252 = vmatpush1.bf16.msra.mxu0 0
      %253 = vmatprep.subr.bf16.mxu0 0
      %254 = vmatpush1.bf16.msra.mxu0 0
      %255 = vmatprep.subr.bf16.mxu0 0
      %256 = vmatpush1.bf16.msra.mxu0 0
      %257 = vmatprep.subr.bf16.mxu0 0
      %258 = vmatpush1.bf16.msra.mxu0 0
      %259 = vmatprep.subr.bf16.mxu0 0
      %260 = vmatpush1.bf16.msra.mxu0 0
      %261 = vmatprep.subr.bf16.mxu0 0
      %262 = vmatpush1.bf16.msra.mxu0 0
      %263 = vmatprep.mubr.bf16.mxu0 0
      %264 = vmatmul.mubr.bf16.gmra.mrb[0].mxu0 %v229
      %v265 = vpop.f32.mrb[0].mxu0
      %v266 = vadd.f32 %v215, %v265
      %v267 = vpop.f32.mrb[0].mxu0
      %v268 = vpop.f32.mrb[0].mxu0
      %v269 = vadd.f32 %v220, %v268
      %v270 = vpop.f32.mrb[0].mxu0
      %271 = vdwg.mxu0
      %v272 = vpack.c.bf16 %v269, %v266
      %v274 = vunpack.c.l.b16 %v272
      %v275 = vunpack.c.h.b16 %v272
      %v276 = vpack.c.b16 %v274, %v274
      %v277 = vpack.c.b16 %v275, %v275
      %vm280 = vcmask 68608
      %281 = vst.msk [vmem:[%s190] sm:$0xf] %vm280, %v276
      %282 = vst.msk [vmem:[%s190 + $0x4] sm:$0xf] %vm280, %v277
      %p283 = scmp.lt.s32.totalorder %s18, 1
      %s284 = scalar_select %p283, %s18, 1
      %p285 = scmp.lt.s32.totalorder %s19, 0
      %s286 = scalar_select %p285, %s19, 0
      %s287 = smul.addr %s284, 2
      %s288 = sadd.s32 %s286, %s287
      %s289 = smul.addr %s288, 4
      %s290 = scalar_lea.vmem %s3, %s289
      // Predicated region
      $region33: #{_lambda_.29} parent=31 // pred_check
        %p291 = pneg %p114
      $region34: #{_lambda_.29} parent=31 // pred_check_branch
        %293 = sbr.rel (%p291) target = $region36
      $region35: #{_lambda_.29} parent=31 // pred_region
        _
      $region36: #{_lambda_.29} parent=31 // pred_fallthru
        _
    $region32: #{_lambda_.29} parent=5 // pred_fallthru
      _
    %p294 = scmp.le.s32.totalorder 2, %s9
    // Predicated region
    $region37: #{_lambda_.29} parent=5 // pred_check
      %p295 = pneg %p294
    $region38: #{_lambda_.29} parent=5 // pred_check_branch
      %297 = sbr.rel (%p295) target = $region40
    $region39: #{_lambda_.29} parent=5 // pred_region
      %s298 = ssub.s32 %s9, 2
      // Predicated region
      $region41: #{_lambda_.29} parent=39 // pred_check
        %p299 = pneg %p120
      $region42: #{_lambda_.29} parent=39 // pred_check_branch
        %301 = sbr.rel (%p299) target = $region44
      $region43: #{_lambda_.29} parent=39 // pred_region
        %p302 = scmp.lt.s32.totalorder %s20, 1
        %s303 = scalar_select %p302, %s20, 1
        %p304 = scmp.lt.s32.totalorder %s21, 0
        %s305 = scalar_select %p304, %s21, 0
        %s306 = smul.addr %s303, 2
        %s307 = sadd.s32 %s305, %s306
        %s308 = smul.addr %s307, 4
        %s309 = scalar_lea.vmem %s3, %s308
      $region44: #{_lambda_.29} parent=39 // pred_fallthru
        _
    $region40: #{_lambda_.29} parent=5 // pred_fallthru
      _
  $region6: #{_lambda_.29} parent=0 // loop_footer
    %s13 = sadd.s32 1, %s9
  $region7: #{_lambda_.29} parent=0 // loop_footer_branch
    %8 = sbr.rel target = $region3
  $region8: #{_lambda_.29} parent=0 // loop_exit
    _

// kernel: _lambda_.30
$region0: #{_lambda_.30}
  #allocation0 [shape = 'u32[]', space=smem, size = 0x4, offset = 0x4, fixed_abs, tag = 'smem constant byte address 0x4 - core index']
  #allocation1 [shape = 'u32[144,128]{1,0:T(1,128)}', space=vmem, size = 0x12000, scoped, tag = 'internal scratch']
  %s0 = inlined_call_operand.vmem [shape: bf16[2,8,24], index: 0, kind: input, shape index: {}]
  %s1 = inlined_call_operand.vmem [shape: bf16[2,8,24], index: 1, kind: input, shape index: {}]
  %s2 = inlined_call_operand.vmem [shape: f32[2,8,1], index: 2, kind: input, shape index: {}]
  %s3 = inlined_call_operand.vmem [shape: bf16[2,8,16], index: 3, kind: output, shape index: {}]
  %s4 = sld [smem:[#allocation0]]
  $region45: #{_lambda_.30} parent=0
    _
  %s6 = ssub.s32 1, %s4
  %s7 = scalar_select 0, %s6, %s4
  loop: start=0, step=1, limit=4
  $region2: #{_lambda_.30} parent=0 // loop_pre_header
    _
  $region3: #{_lambda_.30} parent=0 // loop_header
    %s9 = sphi 0, %s13
    %p10 = scmp.ge.s32.totalorder %s9, 4
    %s19 = sphi 0, %s21
    %s22 = sphi 0, %s19
    %s23 = sphi 0, %s22
    %s39 = sphi 0, %s23
    %s43 = sphi 0, %s43
    %s45 = sphi 0, %s43
    %s46 = sphi 0, %s45
    %s60 = sphi 0, %s46
    %s64 = sphi 0, %s64
    %s66 = sphi 0, %s64
    %s67 = sphi 0, %s66
    %s81 = sphi 0, %s67
    %s87 = sphi 0, %s89
    %s90 = sphi 0, %s87
    %s91 = sphi 0, %s90
    %s107 = sphi 0, %s91
  $region4: #{_lambda_.30} parent=0 // loop_header_branch
    %12 = sbr.rel (%p10) target = $region8
  $region5: #{_lambda_.30} parent=0 // loop_body
    %s14 = ssub.s32 %s9, 1
    %s15 = ssub.s32 %s9, 2
    %s16 = sadd.s32 %s9, 1
    %s17 = ssub.s32 %s9, %s16
    %p18 = scmp.eq.s32.totalorder %s17, 0
    %s20 = sadd.s32 %s19, 1
    %s21 = scalar_select %p18, %s19, %s20
    %p24 = pneg %p18
    %p25 = scmp.eq.s32.totalorder %s9, 1
    %p26 = por %p24, %p25
    %p27 = scmp.ne.s32.totalorder %s19, %s22
    %p28 = scmp.eq.s32.totalorder %s9, 0
    %p29 = por %p27, %p28
    %p30 = scmp.ne.s32.totalorder %s19, %s22
    %p31 = scmp.eq.s32.totalorder %s14, 1
    %p32 = por %p30, %p31
    %p33 = scmp.ne.s32.totalorder %s22, %s23
    %p34 = scmp.eq.s32.totalorder %s14, 0
    %p35 = por %p33, %p34
    %p36 = scmp.ne.s32.totalorder %s22, %s23
    %p37 = scmp.eq.s32.totalorder %s15, 1
    %p38 = por %p36, %p37
    %p40 = scmp.ne.s32.totalorder %s23, %s39
    %p41 = scmp.eq.s32.totalorder %s15, 0
    %p42 = por %p40, %p41
    %s44 = sadd.s32 %s43, 1
    %p47 = scmp.eq.s32.totalorder %s9, 1
    %p48 = scmp.ne.s32.totalorder %s43, %s45
    %p49 = scmp.eq.s32.totalorder %s9, 0
    %p50 = por %p48, %p49
    %p51 = scmp.ne.s32.totalorder %s43, %s45
    %p52 = scmp.eq.s32.totalorder %s14, 1
    %p53 = por %p51, %p52
    %p54 = scmp.ne.s32.totalorder %s45, %s46
    %p55 = scmp.eq.s32.totalorder %s14, 0
    %p56 = por %p54, %p55
    %p57 = scmp.ne.s32.totalorder %s45, %s46
    %p58 = scmp.eq.s32.totalorder %s15, 1
    %p59 = por %p57, %p58
    %p61 = scmp.ne.s32.totalorder %s46, %s60
    %p62 = scmp.eq.s32.totalorder %s15, 0
    %p63 = por %p61, %p62
    %s65 = sadd.s32 %s64, 1
    %p68 = scmp.eq.s32.totalorder %s9, 1
    %p69 = scmp.ne.s32.totalorder %s64, %s66
    %p70 = scmp.eq.s32.totalorder %s9, 0
    %p71 = por %p69, %p70
    %p72 = scmp.ne.s32.totalorder %s64, %s66
    %p73 = scmp.eq.s32.totalorder %s14, 1
    %p74 = por %p72, %p73
    %p75 = scmp.ne.s32.totalorder %s66, %s67
    %p76 = scmp.eq.s32.totalorder %s14, 0
    %p77 = por %p75, %p76
    %p78 = scmp.ne.s32.totalorder %s66, %s67
    %p79 = scmp.eq.s32.totalorder %s15, 1
    %p80 = por %p78, %p79
    %p82 = scmp.ne.s32.totalorder %s67, %s81
    %p83 = scmp.eq.s32.totalorder %s15, 0
    %p84 = por %p82, %p83
    %s85 = ssub.s32 %s9, %s16
    %p86 = scmp.eq.s32.totalorder %s85, 0
    %s88 = sadd.s32 %s87, 1
    %s89 = scalar_select %p86, %s87, %s88
    %p92 = pneg %p86
    %p93 = scmp.eq.s32.totalorder %s9, 1
    %p94 = por %p92, %p93
    %p95 = scmp.ne.s32.totalorder %s87, %s90
    %p96 = scmp.eq.s32.totalorder %s9, 0
    %p97 = por %p95, %p96
    %p98 = scmp.ne.s32.totalorder %s87, %s90
    %p99 = scmp.eq.s32.totalorder %s14, 1
    %p100 = por %p98, %p99
    %p101 = scmp.ne.s32.totalorder %s90, %s91
    %p102 = scmp.eq.s32.totalorder %s14, 0
    %p103 = por %p101, %p102
    %p104 = scmp.ne.s32.totalorder %s90, %s91
    %p105 = scmp.eq.s32.totalorder %s15, 1
    %p106 = por %p104, %p105
    %p108 = scmp.ne.s32.totalorder %s91, %s107
    %p109 = scmp.eq.s32.totalorder %s15, 0
    %p110 = por %p108, %p109
    %p111 = scmp.le.s32.totalorder 1, %s9
    %p112 = scmp.lt.s32.totalorder %s9, 3
    %p113 = pnand %p111, %p112
    %p114 = pneg %p113
    // Predicated region
    $region9: #{_lambda_.30} parent=5 // pred_check
      _
    $region10: #{_lambda_.30} parent=5 // pred_check_branch
      %116 = sbr.rel (%p113) target = $region12
    $region11: #{_lambda_.30} parent=5 // pred_region
      %s117 = ssub.s32 %s9, 1
      // Predicated region
      $region13: #{_lambda_.30} parent=11 // pred_check
        %p118 = pneg %p56
      $region14: #{_lambda_.30} parent=11 // pred_check_branch
        %120 = sbr.rel (%p118) target = $region16
      $region15: #{_lambda_.30} parent=11 // pred_region
        _
      $region16: #{_lambda_.30} parent=11 // pred_fallthru
        _
      // Predicated region
      $region17: #{_lambda_.30} parent=11 // pred_check
        %p121 = pneg %p77
      $region18: #{_lambda_.30} parent=11 // pred_check_branch
        %123 = sbr.rel (%p121) target = $region20
      $region19: #{_lambda_.30} parent=11 // pred_region
        _
      $region20: #{_lambda_.30} parent=11 // pred_fallthru
        _
    $region12: #{_lambda_.30} parent=5 // pred_fallthru
      _
    %p124 = scmp.lt.s32.totalorder %s9, 2
    // Predicated region
    $region21: #{_lambda_.30} parent=5 // pred_check
      %p125 = pneg %p124
    $region22: #{_lambda_.30} parent=5 // pred_check_branch
      %127 = sbr.rel (%p125) target = $region24
    $region23: #{_lambda_.30} parent=5 // pred_region
      // Predicated region
      $region25: #{_lambda_.30} parent=23 // pred_check
        %p128 = pneg %p29
      $region26: #{_lambda_.30} parent=23 // pred_check_branch
        %130 = sbr.rel (%p128) target = $region28
      $region27: #{_lambda_.30} parent=23 // pred_region
        %p131 = scmp.lt.s32.totalorder %s9, 1
        %s132 = scalar_select %p131, %s9, 1
        %s133 = smul.addr %s132, 4
        %s134 = scalar_lea.vmem %s0, %s133
      $region28: #{_lambda_.30} parent=23 // pred_fallthru
        _
    $region24: #{_lambda_.30} parent=5 // pred_fallthru
      _
    %p135 = scmp.le.s32.totalorder 1, %s9
    %p136 = scmp.lt.s32.totalorder %s9, 3
    %p137 = pnand %p135, %p136
    %p138 = pneg %p137
    // Predicated region
    $region29: #{_lambda_.30} parent=5 // pred_check
      _
    $region30: #{_lambda_.30} parent=5 // pred_check_branch
      %140 = sbr.rel (%p137) target = $region32
    $region31: #{_lambda_.30} parent=5 // pred_region
      %s141 = ssub.s32 %s9, 1
      %p142 = scmp.lt.s32.totalorder %s14, 1
      %s143 = scalar_select %p142, %s14, 1
      %s144 = smul.addr %s143, 4
      %s145 = scalar_lea.vmem %s0, %s144
      %p146 = pneg %p35
      %p147 = pneg %p32
      %p148 = pneg %p56
      %p149 = pneg %p53
      %p150 = pneg %p77
      %p151 = pneg %p74
      %p152 = pneg %p103
      %p153 = pneg %p100
      %p154 = scmp.lt.s32.totalorder %s14, 1
      %s155 = scalar_select %p154, %s14, 1
      %s156 = smul.addr %s155, 4
      %s157 = scalar_lea.vmem %s3, %s156
      %p158 = scmp.lt.s32.totalorder %s14, 1
      %s159 = scalar_select %p158, %s14, 1
      %s160 = smul.addr %s159, 4
      %s161 = scalar_lea.vmem %s0, %s160
      %p162 = scmp.lt.s32.totalorder %s14, 1
      %s163 = scalar_select %p162, %s14, 1
      %s164 = smul.addr %s163, 4
      %s165 = scalar_lea.vmem %s3, %s164
      %v167 = vld [vmem:[%s161] sm:$0xf]
      %v168 = vunpack.c.l.bf16 %v167
      %v169 = vmul.f32 %v168, 0.1
      %v170 = vmax.f32 %v168, %v169
      %v171 = vpack.c.bf16 %v170, %v170
      %v173 = vrot.slane %v171, 4
      %174 = vrot.lane.b32.xlu0 %v173, 127
      %v175 = vpop.permute.xlu0 %174
      %176 = vrot.lane.b32.xlu0 %v171, 126
      %v177 = vpop.permute.xlu0 %176
      %vm178 = vcmask 1043456
      %v181 = vsel %vm178, %v171, %v175
      %v183 = vld [vmem:[%s1] sm:$0xf]
      %v184 = vld [vmem:[%s2] sm:$0xff]
      %186 = vset.pattern.permute.xlu0 0
      %187 = vperm.xlu0 %186, %v184
      %v188 = vpop.permute.xlu0 %187
      %vm190 = vcmask 195584
      %v192 = vsel %vm190, %v183, 0
      %v195 = vsel %vm178, %v177, 0
      %197 = vmatprep.subr.bf16.mxu0 0
      %198 = vmatpush1.bf16.msra.mxu0 %v181
      %199 = vmatprep.subr.bf16.mxu0 0
      %200 = vmatpush1.bf16.msra.mxu0 %v195
      %201 = vmatprep.subr.bf16.mxu0 0
      %202 = vmatpush1.bf16.msra.mxu0 0
      %203 = vmatprep.subr.bf16.mxu0 0
      %204 = vmatpush1.bf16.msra.mxu0 0
      %205 = vmatprep.subr.bf16.mxu0 0
      %206 = vmatpush1.bf16.msra.mxu0 0
      %207 = vmatprep.subr.bf16.mxu0 0
      %208 = vmatpush1.bf16.msra.mxu0 0
      %209 = vmatprep.subr.bf16.mxu0 0
      %210 = vmatpush1.bf16.msra.mxu0 0
      %211 = vmatprep.subr.bf16.mxu0 0
      %212 = vmatpush1.bf16.msra.mxu0 0
      %213 = vmatprep.subr.bf16.mxu0 0
      %214 = vmatpush1.bf16.msra.mxu0 0
      %215 = vmatprep.subr.bf16.mxu0 0
      %216 = vmatpush1.bf16.msra.mxu0 0
      %217 = vmatprep.subr.bf16.mxu0 0
      %218 = vmatpush1.bf16.msra.mxu0 0
      %219 = vmatprep.subr.bf16.mxu0 0
      %220 = vmatpush1.bf16.msra.mxu0 0
      %221 = vmatprep.subr.bf16.mxu0 0
      %222 = vmatpush1.bf16.msra.mxu0 0
      %223 = vmatprep.subr.bf16.mxu0 0
      %224 = vmatpush1.bf16.msra.mxu0 0
      %225 = vmatprep.subr.bf16.mxu0 0
      %226 = vmatpush1.bf16.msra.mxu0 0
      %227 = vmatprep.subr.bf16.mxu0 0
      %228 = vmatpush1.bf16.msra.mxu0 0
      %229 = vmatprep.mubr.bf16.mxu0 0
      %230 = vmatmul.mubr.bf16.gmra.mrb[0].mxu0 %v192
      %v231 = vpop.f32.mrb[0].mxu0
      %v232 = vadd.f32 %v188, %v231
      %v233 = vpop.f32.mrb[0].mxu0
      %v234 = vpop.f32.mrb[0].mxu0
      %v235 = vpop.f32.mrb[0].mxu0
      %236 = vdwg.mxu0
      %238 = vrot.lane.b32.xlu0 %v168, 127
      %v239 = vpop.permute.xlu0 %238
      %v241 = vadd.f32 %v232, %v239
      %v242 = vlaneseq
      %v243 = vand.u32 %v242, 127
      %vm244 = vcmp.ge.s32.totalorder %v243, 3
      %vm245 = vcmp.lt.s32.totalorder %v243, 19
      %vm246 = vmand %vm244, %vm245
      %v247 = vsel %vm246, %v241, 0.0
      %v248 = vmul.f32 %v247, 0.1
      %v249 = vmax.f32 %v247, %v248
      %v250 = vpack.c.bf16 %v249, %v249
      %v252 = vrot.slane %v250, 4
      %253 = vrot.lane.b32.xlu0 %v252, 125
      %v254 = vpop.permute.xlu0 %253
      %255 = vrot.lane.b32.xlu0 %v250, 122
      %v256 = vpop.permute.xlu0 %255
      %v259 = vsel %vm178, %v250, %v254
      %s261 = scalar_lea.vmem %s1, 4
      %v262 = vld [vmem:[%s261] sm:$0xf]
      %s263 = scalar_lea.vmem %s2, 8
      %v264 = vld [vmem:[%s263] sm:$0xff]
      %266 = vset.pattern.permute.xlu0 0
      %267 = vperm.xlu0 %266, %v264
      %v268 = vpop.permute.xlu0 %267
      %v271 = vsel %vm190, %v262, 0
      %v274 = vsel %vm178, %v256, 0
      %276 = vmatprep.subr.bf16.mxu0 0
      %277 = vmatpush1.bf16.msra.mxu0 %v259
      %278 = vmatprep.subr.bf16.mxu0 0
      %279 = vmatpush1.bf16.msra.mxu0 %v274
      %280 = vmatprep.subr.bf16.mxu0 0
      %281 = vmatpush1.bf16.msra.mxu0 0
      %282 = vmatprep.subr.bf16.mxu0 0
      %283 = vmatpush1.bf16.msra.mxu0 0
      %284 = vmatprep.subr.bf16.mxu0 0
      %285 = vmatpush1.bf16.msra.mxu0 0
      %286 = vmatprep.subr.bf16.mxu0 0
      %287 = vmatpush1.bf16.msra.mxu0 0
      %288 = vmatprep.subr.bf16.mxu0 0
      %289 = vmatpush1.bf16.msra.mxu0 0
      %290 = vmatprep.subr.bf16.mxu0 0
      %291 = vmatpush1.bf16.msra.mxu0 0
      %292 = vmatprep.subr.bf16.mxu0 0
      %293 = vmatpush1.bf16.msra.mxu0 0
      %294 = vmatprep.subr.bf16.mxu0 0
      %295 = vmatpush1.bf16.msra.mxu0 0
      %296 = vmatprep.subr.bf16.mxu0 0
      %297 = vmatpush1.bf16.msra.mxu0 0
      %298 = vmatprep.subr.bf16.mxu0 0
      %299 = vmatpush1.bf16.msra.mxu0 0
      %300 = vmatprep.subr.bf16.mxu0 0
      %301 = vmatpush1.bf16.msra.mxu0 0
      %302 = vmatprep.subr.bf16.mxu0 0
      %303 = vmatpush1.bf16.msra.mxu0 0
      %304 = vmatprep.subr.bf16.mxu0 0
      %305 = vmatpush1.bf16.msra.mxu0 0
      %306 = vmatprep.subr.bf16.mxu0 0
      %307 = vmatpush1.bf16.msra.mxu0 0
      %308 = vmatprep.mubr.bf16.mxu0 0
      %309 = vmatmul.mubr.bf16.gmra.mrb[0].mxu0 %v271
      %v310 = vpop.f32.mrb[0].mxu0
      %v311 = vadd.f32 %v268, %v310
      %v312 = vpop.f32.mrb[0].mxu0
      %v313 = vpop.f32.mrb[0].mxu0
      %v314 = vpop.f32.mrb[0].mxu0
      %315 = vdwg.mxu0
      %317 = vrot.lane.b32.xlu0 %v247, 125
      %v318 = vpop.permute.xlu0 %317
      %v320 = vadd.f32 %v311, %v318
      %v321 = vpack.c.bf16 %v320, %v320
      %vm322 = vcmask 125952
      %323 = vst.msk [vmem:[%s165] sm:$0xf] %vm322, %v321
      %p324 = scmp.lt.s32.totalorder %s14, 1
      %s325 = scalar_select %p324, %s14, 1
      %s326 = smul.addr %s325, 4
      %s327 = scalar_lea.vmem %s3, %s326
      // Predicated region
      $region33: #{_lambda_.30} parent=31 // pred_check
        %p328 = pneg %p100
      $region34: #{_lambda_.30} parent=31 // pred_check_branch
        %330 = sbr.rel (%p328) target = $region36
      $region35: #{_lambda_.30} parent=31 // pred_region
        _
      $region36: #{_lambda_.30} parent=31 // pred_fallthru
        _
    $region32: #{_lambda_.30} parent=5 // pred_fallthru
      _
    %p331 = scmp.le.s32.totalorder 2, %s9
    // Predicated region
    $region37: #{_lambda_.30} parent=5 // pred_check
      %p332 = pneg %p331
    $region38: #{_lambda_.30} parent=5 // pred_check_branch
      %334 = sbr.rel (%p332) target = $region40
    $region39: #{_lambda_.30} parent=5 // pred_region
      %s335 = ssub.s32 %s9, 2
      // Predicated region
      $region41: #{_lambda_.30} parent=39 // pred_check
        %p336 = pneg %p106
      $region42: #{_lambda_.30} parent=39 // pred_check_branch
        %338 = sbr.rel (%p336) target = $region44
      $region43: #{_lambda_.30} parent=39 // pred_region
        %p339 = scmp.lt.s32.totalorder %s15, 1
        %s340 = scalar_select %p339, %s15, 1
        %s341 = smul.addr %s340, 4
        %s342 = scalar_lea.vmem %s3, %s341
      $region44: #{_lambda_.30} parent=39 // pred_fallthru
        _
    $region40: #{_lambda_.30} parent=5 // pred_fallthru
      _
  $region6: #{_lambda_.30} parent=0 // loop_footer
    %s13 = sadd.s32 1, %s9
  $region7: #{_lambda_.30} parent=0 // loop_footer_branch
    %8 = sbr.rel target = $region3
  $region8: #{_lambda_.30} parent=0 // loop_exit
    _

// kernel: _lambda_.33
$region0: #{_lambda_.33}
  #allocation0 [shape = 'u32[]', space=smem, size = 0x4, offset = 0x4, fixed_abs, tag = 'smem constant byte address 0x4 - core index']
  #allocation1 [shape = 'u32[144,128]{1,0:T(1,128)}', space=vmem, size = 0x12000, scoped, tag = 'internal scratch']
  #allocation2 [shape = 'f32[1,1]{1,0:T(1,128)S(1)}', space=vmem, size = 0x200, scoped, tag = 'scoped memory for _lambda_.33']
  %s0 = inlined_call_operand.vmem [shape: bf16[2,4,38], index: 0, kind: input, shape index: {}]
  %s1 = inlined_call_operand.vmem [shape: bf16[1,28], index: 1, kind: input, shape index: {}]
  %s2 = inlined_call_operand.<no memory space> [shape: f32[1,1], index: 2, kind: input, shape index: {}]
  %s3 = inlined_call_operand.vmem [shape: f32[2,1,32], index: 3, kind: output, shape index: {}]
  %s4 = sld [smem:[#allocation0]]
  $region45: #{_lambda_.33} parent=0
    _
  %s6 = ssub.s32 1, %s4
  %s7 = scalar_select 0, %s6, %s4
  %v8 = vstv %s2
  %9 = vst [vmem:[#allocation2] sm:$0x1] %v8
  loop: start=0, step=1, limit=4
  $region2: #{_lambda_.33} parent=0 // loop_pre_header
    _
  $region3: #{_lambda_.33} parent=0 // loop_header
    %s11 = sphi 0, %s15
    %p12 = scmp.ge.s32.totalorder %s11, 4
    %s18 = sphi 0, %s30
    %s19 = sphi 0, %s26
    %s20 = sphi 0, %s18
    %s21 = sphi 0, %s19
    %s22 = sphi 0, %s20
    %s23 = sphi 0, %s21
    %s33 = sphi 0, %s35
    %s36 = sphi 0, %s33
    %s37 = sphi 0, %s36
    %s53 = sphi 0, %s37
    %s57 = sphi 0, %s57
    %s59 = sphi 0, %s57
    %s60 = sphi 0, %s59
    %s74 = sphi 0, %s60
    %s78 = sphi 0, %s78
    %s80 = sphi 0, %s78
    %s81 = sphi 0, %s80
    %s95 = sphi 0, %s81
    %s103 = sphi 0, %s105
    %s106 = sphi 0, %s103
    %s107 = sphi 0, %s106
    %s123 = sphi 0, %s107
  $region4: #{_lambda_.33} parent=0 // loop_header_branch
    %14 = sbr.rel (%p12) target = $region8
  $region5: #{_lambda_.33} parent=0 // loop_body
    %s16 = ssub.s32 %s11, 1
    %s17 = ssub.s32 %s11, 2
    %s24 = sadd.s32 1, %s19
    %p25 = scmp.ge.s32.totalorder %s24, 1
    %s26 = scalar_select %p25, 0, %s24
    %s27 = sadd.s32 1, %s18
    %s28 = scalar_select %p25, %s27, %s18
    %p29 = scmp.ge.s32.totalorder %s28, 2
    %s30 = scalar_select %p29, 0, %s28
    %s31 = ssub.s32 %s18, %s30
    %p32 = scmp.eq.s32.totalorder %s31, 0
    %s34 = sadd.s32 %s33, 1
    %s35 = scalar_select %p32, %s33, %s34
    %p38 = pneg %p32
    %p39 = scmp.eq.s32.totalorder %s11, 1
    %p40 = por %p38, %p39
    %p41 = scmp.ne.s32.totalorder %s33, %s36
    %p42 = scmp.eq.s32.totalorder %s11, 0
    %p43 = por %p41, %p42
    %p44 = scmp.ne.s32.totalorder %s33, %s36
    %p45 = scmp.eq.s32.totalorder %s16, 1
    %p46 = por %p44, %p45
    %p47 = scmp.ne.s32.totalorder %s36, %s37
    %p48 = scmp.eq.s32.totalorder %s16, 0
    %p49 = por %p47, %p48
    %p50 = scmp.ne.s32.totalorder %s36, %s37
    %p51 = scmp.eq.s32.totalorder %s17, 1
    %p52 = por %p50, %p51
    %p54 = scmp.ne.s32.totalorder %s37, %s53
    %p55 = scmp.eq.s32.totalorder %s17, 0
    %p56 = por %p54, %p55
    %s58 = sadd.s32 %s57, 1
    %p61 = scmp.eq.s32.totalorder %s11, 1
    %p62 = scmp.ne.s32.totalorder %s57, %s59
    %p63 = scmp.eq.s32.totalorder %s11, 0
    %p64 = por %p62, %p63
    %p65 = scmp.ne.s32.totalorder %s57, %s59
    %p66 = scmp.eq.s32.totalorder %s16, 1
    %p67 = por %p65, %p66
    %p68 = scmp.ne.s32.totalorder %s59, %s60
    %p69 = scmp.eq.s32.totalorder %s16, 0
    %p70 = por %p68, %p69
    %p71 = scmp.ne.s32.totalorder %s59, %s60
    %p72 = scmp.eq.s32.totalorder %s17, 1
    %p73 = por %p71, %p72
    %p75 = scmp.ne.s32.totalorder %s60, %s74
    %p76 = scmp.eq.s32.totalorder %s17, 0
    %p77 = por %p75, %p76
    %s79 = sadd.s32 %s78, 1
    %p82 = scmp.eq.s32.totalorder %s11, 1
    %p83 = scmp.ne.s32.totalorder %s78, %s80
    %p84 = scmp.eq.s32.totalorder %s11, 0
    %p85 = por %p83, %p84
    %p86 = scmp.ne.s32.totalorder %s78, %s80
    %p87 = scmp.eq.s32.totalorder %s16, 1
    %p88 = por %p86, %p87
    %p89 = scmp.ne.s32.totalorder %s80, %s81
    %p90 = scmp.eq.s32.totalorder %s16, 0
    %p91 = por %p89, %p90
    %p92 = scmp.ne.s32.totalorder %s80, %s81
    %p93 = scmp.eq.s32.totalorder %s17, 1
    %p94 = por %p92, %p93
    %p96 = scmp.ne.s32.totalorder %s81, %s95
    %p97 = scmp.eq.s32.totalorder %s17, 0
    %p98 = por %p96, %p97
    %s99 = ssub.s32 %s18, %s30
    %s100 = ssub.s32 %s19, %s26
    %s101 = sor.u32 %s99, %s100
    %p102 = scmp.eq.s32.totalorder %s101, 0
    %s104 = sadd.s32 %s103, 1
    %s105 = scalar_select %p102, %s103, %s104
    %p108 = pneg %p102
    %p109 = scmp.eq.s32.totalorder %s11, 1
    %p110 = por %p108, %p109
    %p111 = scmp.ne.s32.totalorder %s103, %s106
    %p112 = scmp.eq.s32.totalorder %s11, 0
    %p113 = por %p111, %p112
    %p114 = scmp.ne.s32.totalorder %s103, %s106
    %p115 = scmp.eq.s32.totalorder %s16, 1
    %p116 = por %p114, %p115
    %p117 = scmp.ne.s32.totalorder %s106, %s107
    %p118 = scmp.eq.s32.totalorder %s16, 0
    %p119 = por %p117, %p118
    %p120 = scmp.ne.s32.totalorder %s106, %s107
    %p121 = scmp.eq.s32.totalorder %s17, 1
    %p122 = por %p120, %p121
    %p124 = scmp.ne.s32.totalorder %s107, %s123
    %p125 = scmp.eq.s32.totalorder %s17, 0
    %p126 = por %p124, %p125
    %p127 = scmp.le.s32.totalorder 1, %s11
    %p128 = scmp.lt.s32.totalorder %s11, 3
    %p129 = pnand %p127, %p128
    %p130 = pneg %p129
    // Predicated region
    $region9: #{_lambda_.33} parent=5 // pred_check
      _
    $region10: #{_lambda_.33} parent=5 // pred_check_branch
      %132 = sbr.rel (%p129) target = $region12
    $region11: #{_lambda_.33} parent=5 // pred_region
      %s133 = ssub.s32 %s11, 1
      // Predicated region
      $region13: #{_lambda_.33} parent=11 // pred_check
        %p134 = pneg %p70
      $region14: #{_lambda_.33} parent=11 // pred_check_branch
        %136 = sbr.rel (%p134) target = $region16
      $region15: #{_lambda_.33} parent=11 // pred_region
        _
      $region16: #{_lambda_.33} parent=11 // pred_fallthru
        _
      // Predicated region
      $region17: #{_lambda_.33} parent=11 // pred_check
        %p137 = pneg %p91
      $region18: #{_lambda_.33} parent=11 // pred_check_branch
        %139 = sbr.rel (%p137) target = $region20
      $region19: #{_lambda_.33} parent=11 // pred_region
        _
      $region20: #{_lambda_.33} parent=11 // pred_fallthru
        _
    $region12: #{_lambda_.33} parent=5 // pred_fallthru
      _
    %p140 = scmp.lt.s32.totalorder %s11, 2
    // Predicated region
    $region21: #{_lambda_.33} parent=5 // pred_check
      %p141 = pneg %p140
    $region22: #{_lambda_.33} parent=5 // pred_check_branch
      %143 = sbr.rel (%p141) target = $region24
    $region23: #{_lambda_.33} parent=5 // pred_region
      // Predicated region
      $region25: #{_lambda_.33} parent=23 // pred_check
        %p144 = pneg %p43
      $region26: #{_lambda_.33} parent=23 // pred_check_branch
        %146 = sbr.rel (%p144) target = $region28
      $region27: #{_lambda_.33} parent=23 // pred_region
        %p147 = scmp.lt.s32.totalorder %s18, 1
        %s148 = scalar_select %p147, %s18, 1
        %s149 = smul.addr %s148, 2
        %s150 = scalar_lea.vmem %s0, %s149
      $region28: #{_lambda_.33} parent=23 // pred_fallthru
        _
    $region24: #{_lambda_.33} parent=5 // pred_fallthru
      _
    %p151 = scmp.le.s32.totalorder 1, %s11
    %p152 = scmp.lt.s32.totalorder %s11, 3
    %p153 = pnand %p151, %p152
    %p154 = pneg %p153
    // Predicated region
    $region29: #{_lambda_.33} parent=5 // pred_check
      _
    $region30: #{_lambda_.33} parent=5 // pred_check_branch
      %156 = sbr.rel (%p153) target = $region32
    $region31: #{_lambda_.33} parent=5 // pred_region
      %s157 = ssub.s32 %s11, 1
      %p158 = scmp.lt.s32.totalorder %s20, 1
      %s159 = scalar_select %p158, %s20, 1
      %s160 = smul.addr %s159, 2
      %s161 = scalar_lea.vmem %s0, %s160
      %p162 = pneg %p49
      %p163 = pneg %p46
      %p164 = pneg %p70
      %p165 = pneg %p67
      %p166 = pneg %p91
      %p167 = pneg %p88
      %p168 = pneg %p119
      %p169 = pneg %p116
      %p170 = scmp.lt.s32.totalorder %s20, 1
      %s171 = scalar_select %p170, %s20, 1
      %p172 = scmp.lt.s32.totalorder %s21, 0
      %s173 = scalar_select %p172, %s21, 0
      %s174 = sadd.s32 %s173, %s171
      %s175 = scalar_lea.vmem %s3, %s174
      %p176 = scmp.lt.s32.totalorder %s20, 1
      %s177 = scalar_select %p176, %s20, 1
      %s178 = smul.addr %s177, 2
      %s179 = scalar_lea.vmem %s0, %s178
      %p180 = scmp.lt.s32.totalorder %s20, 1
      %s181 = scalar_select %p180, %s20, 1
      %p182 = scmp.lt.s32.totalorder %s21, 0
      %s183 = scalar_select %p182, %s21, 0
      %s184 = sadd.s32 %s183, %s181
      %s185 = scalar_lea.vmem %s3, %s184
      %v188 = vld [vmem:[%s179] sm:$0x3]
      %v189 = vmul.bf16 %v188, 1036860877
      %v190 = vmax.bf16 %v188, %v189
      %v192 = vcombine.low %v190, %v190
      %v194 = vunpack.c.l.s4 1983009808
      %v195 = vunpack.c.0.s8 %v194
      %v196 = vlaneseq
      %v197 = vshrl.u32 %v196, 7
      %v198 = vsub.s32 %v195, %v197
      %v199 = vrot.slane %v192, %v198
      %v201 = vunpack.c.l.s4 1983009808
      %v202 = vunpack.c.0.s8 %v201
      %v203 = vlaneseq
      %v204 = vshrl.u32 %v203, 7
      %v205 = vsub.s32 %v202, %v204
      %v206 = vrot.slane %v190, %v205
      %207 = vrot.lane.b32.xlu0 %v199, 127
      %v208 = vpop.permute.xlu0 %207
      %v209 = vcombine.low %v206, %v206
      %210 = vrot.lane.b32.xlu0 %v209, 126
      %v211 = vpop.permute.xlu0 %210
      %v212 = vcombine.low %v199, %v199
      %213 = vrot.lane.b32.xlu0 %v212, 125
      %v214 = vpop.permute.xlu0 %213
      %215 = vrot.lane.b32.xlu0 %v206, 124
      %v216 = vpop.permute.xlu0 %215
      %217 = vrot.lane.b32.xlu0 %v199, 123
      %v218 = vpop.permute.xlu0 %217
      %219 = vrot.lane.b32.xlu0 %v209, 122
      %v220 = vpop.permute.xlu0 %219
      %vm221 = vcmask 1041408
      %v224 = vsel %vm221, %v190, %v208
      %vm225 = vcmask 1043456
      %v227 = vsel %vm225, %v224, %v211
      %vm228 = vcmask 1045504
      %v230 = vsel %vm228, %v227, %v214
      %v234 = vsel %vm221, %v216, %v218
      %v236 = vsel %vm225, %v234, %v220
      %v237 = vld [vmem:[%s1] sm:$0x1]
      %v238 = vld [vmem:[#allocation2] sm:$0x1]
      %240 = vset.pattern.permute.xlu0 0
      %241 = vperm.xlu0 %240, %v238
      %v242 = vpop.permute.xlu0 %241
      %v244 = vlaneseq
      %v245 = vshrl.u32 %v244, 7
      %v246 = vsub.s32 0, %v245
      %v247 = vrot.slane %v242, %v246
      %vm248 = vcmask 228352
      %v250 = vsel %vm248, %v237, 0
      %v252 = vsel %vm228, %v236, 0
      %254 = vmatprep.subr.bf16.mxu0 0
      %255 = vmatpush1.bf16.msra.mxu0 %v230
      %256 = vmatprep.subr.bf16.mxu0 0
      %257 = vmatpush1.bf16.msra.mxu0 %v252
      %258 = vmatprep.subr.bf16.mxu0 0
      %259 = vmatpush1.bf16.msra.mxu0 0
      %260 = vmatprep.subr.bf16.mxu0 0
      %261 = vmatpush1.bf16.msra.mxu0 0
      %262 = vmatprep.subr.bf16.mxu0 0
      %263 = vmatpush1.bf16.msra.mxu0 0
      %264 = vmatprep.subr.bf16.mxu0 0
      %265 = vmatpush1.bf16.msra.mxu0 0
      %266 = vmatprep.subr.bf16.mxu0 0
      %267 = vmatpush1.bf16.msra.mxu0 0
      %268 = vmatprep.subr.bf16.mxu0 0
      %269 = vmatpush1.bf16.msra.mxu0 0
      %270 = vmatprep.subr.bf16.mxu0 0
      %271 = vmatpush1.bf16.msra.mxu0 0
      %272 = vmatprep.subr.bf16.mxu0 0
      %273 = vmatpush1.bf16.msra.mxu0 0
      %274 = vmatprep.subr.bf16.mxu0 0
      %275 = vmatpush1.bf16.msra.mxu0 0
      %276 = vmatprep.subr.bf16.mxu0 0
      %277 = vmatpush1.bf16.msra.mxu0 0
      %278 = vmatprep.subr.bf16.mxu0 0
      %279 = vmatpush1.bf16.msra.mxu0 0
      %280 = vmatprep.subr.bf16.mxu0 0
      %281 = vmatpush1.bf16.msra.mxu0 0
      %282 = vmatprep.subr.bf16.mxu0 0
      %283 = vmatpush1.bf16.msra.mxu0 0
      %284 = vmatprep.subr.bf16.mxu0 0
      %285 = vmatpush1.bf16.msra.mxu0 0
      %286 = vmatprep.mubr.bf16.mxu0 0
      %287 = vmatmul.mubr.bf16.gmra.mrb[0].mxu0 %v250
      %v288 = vpop.f32.mrb[0].mxu0
      %v289 = vadd.f32 %v247, %v288
      %v290 = vpop.f32.mrb[0].mxu0
      %v291 = vpop.f32.mrb[0].mxu0
      %v292 = vpop.f32.mrb[0].mxu0
      %293 = vdwg.mxu0
      %v294 = vtanh.pop %v289
      %vm295 = vcmask 253952
      %296 = vst.msk [vmem:[%s185] sm:$0x1] %vm295, %v294
      %p297 = scmp.lt.s32.totalorder %s20, 1
      %s298 = scalar_select %p297, %s20, 1
      %p299 = scmp.lt.s32.totalorder %s21, 0
      %s300 = scalar_select %p299, %s21, 0
      %s301 = sadd.s32 %s300, %s298
      %s302 = scalar_lea.vmem %s3, %s301
      // Predicated region
      $region33: #{_lambda_.33} parent=31 // pred_check
        %p303 = pneg %p116
      $region34: #{_lambda_.33} parent=31 // pred_check_branch
        %305 = sbr.rel (%p303) target = $region36
      $region35: #{_lambda_.33} parent=31 // pred_region
        _
      $region36: #{_lambda_.33} parent=31 // pred_fallthru
        _
    $region32: #{_lambda_.33} parent=5 // pred_fallthru
      _
    %p306 = scmp.le.s32.totalorder 2, %s11
    // Predicated region
    $region37: #{_lambda_.33} parent=5 // pred_check
      %p307 = pneg %p306
    $region38: #{_lambda_.33} parent=5 // pred_check_branch
      %309 = sbr.rel (%p307) target = $region40
    $region39: #{_lambda_.33} parent=5 // pred_region
      %s310 = ssub.s32 %s11, 2
      // Predicated region
      $region41: #{_lambda_.33} parent=39 // pred_check
        %p311 = pneg %p122
      $region42: #{_lambda_.33} parent=39 // pred_check_branch
        %313 = sbr.rel (%p311) target = $region44
      $region43: #{_lambda_.33} parent=39 // pred_region
        %p314 = scmp.lt.s32.totalorder %s22, 1
        %s315 = scalar_select %p314, %s22, 1
        %p316 = scmp.lt.s32.totalorder %s23, 0
        %s317 = scalar_select %p316, %s23, 0
        %s318 = sadd.s32 %s317, %s315
        %s319 = scalar_lea.vmem %s3, %s318
      $region44: #{_lambda_.33} parent=39 // pred_fallthru
        _
    $region40: #{_lambda_.33} parent=5 // pred_fallthru
      _
  $region6: #{_lambda_.33} parent=0 // loop_footer
    %s15 = sadd.s32 1, %s11
  $region7: #{_lambda_.33} parent=0 // loop_footer_branch
    %10 = sbr.rel target = $region3
  $region8: #{_lambda_.33} parent=0 // loop_exit
    _

// kernel: _lambda_.32
$region0: #{_lambda_.32}
  #allocation0 [shape = 'u32[]', space=smem, size = 0x4, offset = 0x4, fixed_abs, tag = 'smem constant byte address 0x4 - core index']
  #allocation1 [shape = 'u32[144,128]{1,0:T(1,128)}', space=vmem, size = 0x12000, scoped, tag = 'internal scratch']
  %s0 = inlined_call_operand.vmem [shape: bf16[2,4,40], index: 0, kind: input, shape index: {}]
  %s1 = inlined_call_operand.vmem [shape: bf16[2,4,12], index: 1, kind: input, shape index: {}]
  %s2 = inlined_call_operand.vmem [shape: f32[2,4,1], index: 2, kind: input, shape index: {}]
  %s3 = inlined_call_operand.vmem [shape: bf16[2,4,32], index: 3, kind: output, shape index: {}]
  %s4 = sld [smem:[#allocation0]]
  $region45: #{_lambda_.32} parent=0
    _
  %s6 = ssub.s32 1, %s4
  %s7 = scalar_select 0, %s6, %s4
  loop: start=0, step=1, limit=4
  $region2: #{_lambda_.32} parent=0 // loop_pre_header
    _
  $region3: #{_lambda_.32} parent=0 // loop_header
    %s9 = sphi 0, %s13
    %p10 = scmp.ge.s32.totalorder %s9, 4
    %s19 = sphi 0, %s21
    %s22 = sphi 0, %s19
    %s23 = sphi 0, %s22
    %s39 = sphi 0, %s23
    %s43 = sphi 0, %s43
    %s45 = sphi 0, %s43
    %s46 = sphi 0, %s45
    %s60 = sphi 0, %s46
    %s64 = sphi 0, %s64
    %s66 = sphi 0, %s64
    %s67 = sphi 0, %s66
    %s81 = sphi 0, %s67
    %s87 = sphi 0, %s89
    %s90 = sphi 0, %s87
    %s91 = sphi 0, %s90
    %s107 = sphi 0, %s91
  $region4: #{_lambda_.32} parent=0 // loop_header_branch
    %12 = sbr.rel (%p10) target = $region8
  $region5: #{_lambda_.32} parent=0 // loop_body
    %s14 = ssub.s32 %s9, 1
    %s15 = ssub.s32 %s9, 2
    %s16 = sadd.s32 %s9, 1
    %s17 = ssub.s32 %s9, %s16
    %p18 = scmp.eq.s32.totalorder %s17, 0
    %s20 = sadd.s32 %s19, 1
    %s21 = scalar_select %p18, %s19, %s20
    %p24 = pneg %p18
    %p25 = scmp.eq.s32.totalorder %s9, 1
    %p26 = por %p24, %p25
    %p27 = scmp.ne.s32.totalorder %s19, %s22
    %p28 = scmp.eq.s32.totalorder %s9, 0
    %p29 = por %p27, %p28
    %p30 = scmp.ne.s32.totalorder %s19, %s22
    %p31 = scmp.eq.s32.totalorder %s14, 1
    %p32 = por %p30, %p31
    %p33 = scmp.ne.s32.totalorder %s22, %s23
    %p34 = scmp.eq.s32.totalorder %s14, 0
    %p35 = por %p33, %p34
    %p36 = scmp.ne.s32.totalorder %s22, %s23
    %p37 = scmp.eq.s32.totalorder %s15, 1
    %p38 = por %p36, %p37
    %p40 = scmp.ne.s32.totalorder %s23, %s39
    %p41 = scmp.eq.s32.totalorder %s15, 0
    %p42 = por %p40, %p41
    %s44 = sadd.s32 %s43, 1
    %p47 = scmp.eq.s32.totalorder %s9, 1
    %p48 = scmp.ne.s32.totalorder %s43, %s45
    %p49 = scmp.eq.s32.totalorder %s9, 0
    %p50 = por %p48, %p49
    %p51 = scmp.ne.s32.totalorder %s43, %s45
    %p52 = scmp.eq.s32.totalorder %s14, 1
    %p53 = por %p51, %p52
    %p54 = scmp.ne.s32.totalorder %s45, %s46
    %p55 = scmp.eq.s32.totalorder %s14, 0
    %p56 = por %p54, %p55
    %p57 = scmp.ne.s32.totalorder %s45, %s46
    %p58 = scmp.eq.s32.totalorder %s15, 1
    %p59 = por %p57, %p58
    %p61 = scmp.ne.s32.totalorder %s46, %s60
    %p62 = scmp.eq.s32.totalorder %s15, 0
    %p63 = por %p61, %p62
    %s65 = sadd.s32 %s64, 1
    %p68 = scmp.eq.s32.totalorder %s9, 1
    %p69 = scmp.ne.s32.totalorder %s64, %s66
    %p70 = scmp.eq.s32.totalorder %s9, 0
    %p71 = por %p69, %p70
    %p72 = scmp.ne.s32.totalorder %s64, %s66
    %p73 = scmp.eq.s32.totalorder %s14, 1
    %p74 = por %p72, %p73
    %p75 = scmp.ne.s32.totalorder %s66, %s67
    %p76 = scmp.eq.s32.totalorder %s14, 0
    %p77 = por %p75, %p76
    %p78 = scmp.ne.s32.totalorder %s66, %s67
    %p79 = scmp.eq.s32.totalorder %s15, 1
    %p80 = por %p78, %p79
    %p82 = scmp.ne.s32.totalorder %s67, %s81
    %p83 = scmp.eq.s32.totalorder %s15, 0
    %p84 = por %p82, %p83
    %s85 = ssub.s32 %s9, %s16
    %p86 = scmp.eq.s32.totalorder %s85, 0
    %s88 = sadd.s32 %s87, 1
    %s89 = scalar_select %p86, %s87, %s88
    %p92 = pneg %p86
    %p93 = scmp.eq.s32.totalorder %s9, 1
    %p94 = por %p92, %p93
    %p95 = scmp.ne.s32.totalorder %s87, %s90
    %p96 = scmp.eq.s32.totalorder %s9, 0
    %p97 = por %p95, %p96
    %p98 = scmp.ne.s32.totalorder %s87, %s90
    %p99 = scmp.eq.s32.totalorder %s14, 1
    %p100 = por %p98, %p99
    %p101 = scmp.ne.s32.totalorder %s90, %s91
    %p102 = scmp.eq.s32.totalorder %s14, 0
    %p103 = por %p101, %p102
    %p104 = scmp.ne.s32.totalorder %s90, %s91
    %p105 = scmp.eq.s32.totalorder %s15, 1
    %p106 = por %p104, %p105
    %p108 = scmp.ne.s32.totalorder %s91, %s107
    %p109 = scmp.eq.s32.totalorder %s15, 0
    %p110 = por %p108, %p109
    %p111 = scmp.le.s32.totalorder 1, %s9
    %p112 = scmp.lt.s32.totalorder %s9, 3
    %p113 = pnand %p111, %p112
    %p114 = pneg %p113
    // Predicated region
    $region9: #{_lambda_.32} parent=5 // pred_check
      _
    $region10: #{_lambda_.32} parent=5 // pred_check_branch
      %116 = sbr.rel (%p113) target = $region12
    $region11: #{_lambda_.32} parent=5 // pred_region
      %s117 = ssub.s32 %s9, 1
      // Predicated region
      $region13: #{_lambda_.32} parent=11 // pred_check
        %p118 = pneg %p56
      $region14: #{_lambda_.32} parent=11 // pred_check_branch
        %120 = sbr.rel (%p118) target = $region16
      $region15: #{_lambda_.32} parent=11 // pred_region
        _
      $region16: #{_lambda_.32} parent=11 // pred_fallthru
        _
      // Predicated region
      $region17: #{_lambda_.32} parent=11 // pred_check
        %p121 = pneg %p77
      $region18: #{_lambda_.32} parent=11 // pred_check_branch
        %123 = sbr.rel (%p121) target = $region20
      $region19: #{_lambda_.32} parent=11 // pred_region
        _
      $region20: #{_lambda_.32} parent=11 // pred_fallthru
        _
    $region12: #{_lambda_.32} parent=5 // pred_fallthru
      _
    %p124 = scmp.lt.s32.totalorder %s9, 2
    // Predicated region
    $region21: #{_lambda_.32} parent=5 // pred_check
      %p125 = pneg %p124
    $region22: #{_lambda_.32} parent=5 // pred_check_branch
      %127 = sbr.rel (%p125) target = $region24
    $region23: #{_lambda_.32} parent=5 // pred_region
      // Predicated region
      $region25: #{_lambda_.32} parent=23 // pred_check
        %p128 = pneg %p29
      $region26: #{_lambda_.32} parent=23 // pred_check_branch
        %130 = sbr.rel (%p128) target = $region28
      $region27: #{_lambda_.32} parent=23 // pred_region
        %p131 = scmp.lt.s32.totalorder %s9, 1
        %s132 = scalar_select %p131, %s9, 1
        %s133 = smul.addr %s132, 2
        %s134 = scalar_lea.vmem %s0, %s133
      $region28: #{_lambda_.32} parent=23 // pred_fallthru
        _
    $region24: #{_lambda_.32} parent=5 // pred_fallthru
      _
    %p135 = scmp.le.s32.totalorder 1, %s9
    %p136 = scmp.lt.s32.totalorder %s9, 3
    %p137 = pnand %p135, %p136
    %p138 = pneg %p137
    // Predicated region
    $region29: #{_lambda_.32} parent=5 // pred_check
      _
    $region30: #{_lambda_.32} parent=5 // pred_check_branch
      %140 = sbr.rel (%p137) target = $region32
    $region31: #{_lambda_.32} parent=5 // pred_region
      %s141 = ssub.s32 %s9, 1
      %p142 = scmp.lt.s32.totalorder %s14, 1
      %s143 = scalar_select %p142, %s14, 1
      %s144 = smul.addr %s143, 2
      %s145 = scalar_lea.vmem %s0, %s144
      %p146 = pneg %p35
      %p147 = pneg %p32
      %p148 = pneg %p56
      %p149 = pneg %p53
      %p150 = pneg %p77
      %p151 = pneg %p74
      %p152 = pneg %p103
      %p153 = pneg %p100
      %p154 = scmp.lt.s32.totalorder %s14, 1
      %s155 = scalar_select %p154, %s14, 1
      %s156 = smul.addr %s155, 2
      %s157 = scalar_lea.vmem %s3, %s156
      %p158 = scmp.lt.s32.totalorder %s14, 1
      %s159 = scalar_select %p158, %s14, 1
      %s160 = smul.addr %s159, 2
      %s161 = scalar_lea.vmem %s0, %s160
      %p162 = scmp.lt.s32.totalorder %s14, 1
      %s163 = scalar_select %p162, %s14, 1
      %s164 = smul.addr %s163, 2
      %s165 = scalar_lea.vmem %s3, %s164
      %v167 = vld [vmem:[%s161] sm:$0x3]
      %v168 = vunpack.c.l.bf16 %v167
      %v169 = vmul.f32 %v168, 0.1
      %v170 = vmax.f32 %v168, %v169
      %v171 = vpack.c.bf16 %v170, %v170
      %v173 = vrot.slane %v171, 6
      %174 = vrot.lane.b32.xlu0 %v173, 127
      %v175 = vpop.permute.xlu0 %174
      %v176 = vrot.slane %v171, 4
      %177 = vrot.lane.b32.xlu0 %v176, 126
      %v178 = vpop.permute.xlu0 %177
      %vm179 = vcmask 1041408
      %v182 = vsel %vm179, %v171, %v175
      %vm183 = vcmask 1043456
      %v185 = vsel %vm183, %v182, %v178
      %v186 = vld [vmem:[%s1] sm:$0x3]
      %v187 = vld [vmem:[%s2] sm:$0xf]
      %189 = vset.pattern.permute.xlu0 0
      %190 = vperm.xlu0 %189, %v187
      %v191 = vpop.permute.xlu0 %190
      %vm193 = vcmask 97280
      %v195 = vsel %vm193, %v186, 0
      %vm197 = vcmask 1045504
      %v198 = vsel %vm197, %v185, 0
      %200 = vmatprep.subr.bf16.mxu0 0
      %201 = vmatpush1.bf16.msra.mxu0 %v198
      %202 = vmatprep.subr.bf16.mxu0 0
      %203 = vmatpush1.bf16.msra.mxu0 0
      %204 = vmatprep.subr.bf16.mxu0 0
      %205 = vmatpush1.bf16.msra.mxu0 0
      %206 = vmatprep.subr.bf16.mxu0 0
      %207 = vmatpush1.bf16.msra.mxu0 0
      %208 = vmatprep.subr.bf16.mxu0 0
      %209 = vmatpush1.bf16.msra.mxu0 0
      %210 = vmatprep.subr.bf16.mxu0 0
      %211 = vmatpush1.bf16.msra.mxu0 0
      %212 = vmatprep.subr.bf16.mxu0 0
      %213 = vmatpush1.bf16.msra.mxu0 0
      %214 = vmatprep.subr.bf16.mxu0 0
      %215 = vmatpush1.bf16.msra.mxu0 0
      %216 = vmatprep.subr.bf16.mxu0 0
      %217 = vmatpush1.bf16.msra.mxu0 0
      %218 = vmatprep.subr.bf16.mxu0 0
      %219 = vmatpush1.bf16.msra.mxu0 0
      %220 = vmatprep.subr.bf16.mxu0 0
      %221 = vmatpush1.bf16.msra.mxu0 0
      %222 = vmatprep.subr.bf16.mxu0 0
      %223 = vmatpush1.bf16.msra.mxu0 0
      %224 = vmatprep.subr.bf16.mxu0 0
      %225 = vmatpush1.bf16.msra.mxu0 0
      %226 = vmatprep.subr.bf16.mxu0 0
      %227 = vmatpush1.bf16.msra.mxu0 0
      %228 = vmatprep.subr.bf16.mxu0 0
      %229 = vmatpush1.bf16.msra.mxu0 0
      %230 = vmatprep.subr.bf16.mxu0 0
      %231 = vmatpush1.bf16.msra.mxu0 0
      %232 = vmatprep.mubr.bf16.mxu0 0
      %233 = vmatmul.mubr.bf16.gmra.mrb[0].mxu0 %v195
      %v234 = vpop.f32.mrb[0].mxu0
      %v235 = vadd.f32 %v191, %v234
      %v236 = vpop.f32.mrb[0].mxu0
      %v237 = vpop.f32.mrb[0].mxu0
      %v238 = vpop.f32.mrb[0].mxu0
      %239 = vdwg.mxu0
      %241 = vrot.lane.b32.xlu0 %v168, 127
      %v242 = vpop.permute.xlu0 %241
      %v244 = vadd.f32 %v235, %v242
      %v245 = vlaneseq
      %v246 = vand.u32 %v245, 127
      %vm247 = vcmp.ge.s32.totalorder %v246, 3
      %vm248 = vcmp.lt.s32.totalorder %v246, 35
      %vm249 = vmand %vm247, %vm248
      %v250 = vsel %vm249, %v244, 0.0
      %v251 = vmul.f32 %v250, 0.1
      %v252 = vmax.f32 %v250, %v251
      %v253 = vpack.c.bf16 %v252, %v252
      %v255 = vrot.slane %v253, 6
      %256 = vrot.lane.b32.xlu0 %v255, 125
      %v257 = vpop.permute.xlu0 %256
      %v258 = vrot.slane %v253, 4
      %259 = vrot.lane.b32.xlu0 %v258, 122
      %v260 = vpop.permute.xlu0 %259
      %v263 = vsel %vm179, %v253, %v257
      %v265 = vsel %vm183, %v263, %v260
      %s266 = scalar_lea.vmem %s1, 2
      %v267 = vld [vmem:[%s266] sm:$0x3]
      %s268 = scalar_lea.vmem %s2, 4
      %v269 = vld [vmem:[%s268] sm:$0xf]
      %271 = vset.pattern.permute.xlu0 0
      %272 = vperm.xlu0 %271, %v269
      %v273 = vpop.permute.xlu0 %272
      %v276 = vsel %vm193, %v267, 0
      %v278 = vsel %vm197, %v265, 0
      %280 = vmatprep.subr.bf16.mxu0 0
      %281 = vmatpush1.bf16.msra.mxu0 %v278
      %282 = vmatprep.subr.bf16.mxu0 0
      %283 = vmatpush1.bf16.msra.mxu0 0
      %284 = vmatprep.subr.bf16.mxu0 0
      %285 = vmatpush1.bf16.msra.mxu0 0
      %286 = vmatprep.subr.bf16.mxu0 0
      %287 = vmatpush1.bf16.msra.mxu0 0
      %288 = vmatprep.subr.bf16.mxu0 0
      %289 = vmatpush1.bf16.msra.mxu0 0
      %290 = vmatprep.subr.bf16.mxu0 0
      %291 = vmatpush1.bf16.msra.mxu0 0
      %292 = vmatprep.subr.bf16.mxu0 0
      %293 = vmatpush1.bf16.msra.mxu0 0
      %294 = vmatprep.subr.bf16.mxu0 0
      %295 = vmatpush1.bf16.msra.mxu0 0
      %296 = vmatprep.subr.bf16.mxu0 0
      %297 = vmatpush1.bf16.msra.mxu0 0
      %298 = vmatprep.subr.bf16.mxu0 0
      %299 = vmatpush1.bf16.msra.mxu0 0
      %300 = vmatprep.subr.bf16.mxu0 0
      %301 = vmatpush1.bf16.msra.mxu0 0
      %302 = vmatprep.subr.bf16.mxu0 0
      %303 = vmatpush1.bf16.msra.mxu0 0
      %304 = vmatprep.subr.bf16.mxu0 0
      %305 = vmatpush1.bf16.msra.mxu0 0
      %306 = vmatprep.subr.bf16.mxu0 0
      %307 = vmatpush1.bf16.msra.mxu0 0
      %308 = vmatprep.subr.bf16.mxu0 0
      %309 = vmatpush1.bf16.msra.mxu0 0
      %310 = vmatprep.subr.bf16.mxu0 0
      %311 = vmatpush1.bf16.msra.mxu0 0
      %312 = vmatprep.mubr.bf16.mxu0 0
      %313 = vmatmul.mubr.bf16.gmra.mrb[0].mxu0 %v276
      %v314 = vpop.f32.mrb[0].mxu0
      %v315 = vadd.f32 %v273, %v314
      %v316 = vpop.f32.mrb[0].mxu0
      %v317 = vpop.f32.mrb[0].mxu0
      %v318 = vpop.f32.mrb[0].mxu0
      %319 = vdwg.mxu0
      %321 = vrot.lane.b32.xlu0 %v250, 125
      %v322 = vpop.permute.xlu0 %321
      %v324 = vadd.f32 %v315, %v322
      %v325 = vpack.c.bf16 %v324, %v324
      %vm326 = vcmask 254976
      %327 = vst.msk [vmem:[%s165] sm:$0x3] %vm326, %v325
      %p328 = scmp.lt.s32.totalorder %s14, 1
      %s329 = scalar_select %p328, %s14, 1
      %s330 = smul.addr %s329, 2
      %s331 = scalar_lea.vmem %s3, %s330
      // Predicated region
      $region33: #{_lambda_.32} parent=31 // pred_check
        %p332 = pneg %p100
      $region34: #{_lambda_.32} parent=31 // pred_check_branch
        %334 = sbr.rel (%p332) target = $region36
      $region35: #{_lambda_.32} parent=31 // pred_region
        _
      $region36: #{_lambda_.32} parent=31 // pred_fallthru
        _
    $region32: #{_lambda_.32} parent=5 // pred_fallthru
      _
    %p335 = scmp.le.s32.totalorder 2, %s9
    // Predicated region
    $region37: #{_lambda_.32} parent=5 // pred_check
      %p336 = pneg %p335
    $region38: #{_lambda_.32} parent=5 // pred_check_branch
      %338 = sbr.rel (%p336) target = $region40
    $region39: #{_lambda_.32} parent=5 // pred_region
      %s339 = ssub.s32 %s9, 2
      // Predicated region
      $region41: #{_lambda_.32} parent=39 // pred_check
        %p340 = pneg %p106
      $region42: #{_lambda_.32} parent=39 // pred_check_branch
        %342 = sbr.rel (%p340) target = $region44
      $region43: #{_lambda_.32} parent=39 // pred_region
        %p343 = scmp.lt.s32.totalorder %s15, 1
        %s344 = scalar_select %p343, %s15, 1
        %s345 = smul.addr %s344, 2
        %s346 = scalar_lea.vmem %s3, %s345
      $region44: #{_lambda_.32} parent=39 // pred_fallthru
        _
    $region40: #{_lambda_.32} parent=5 // pred_fallthru
      _
  $region6: #{_lambda_.32} parent=0 // loop_footer
    %s13 = sadd.s32 1, %s9
  $region7: #{_lambda_.32} parent=0 // loop_footer_branch
    %8 = sbr.rel target = $region3
  $region8: #{_lambda_.32} parent=0 // loop_exit
    _

// kernel: _lambda_.34
$region0: #{_lambda_.34}
  #allocation0 [shape = 'u32[]', space=smem, size = 0x4, offset = 0x4, fixed_abs, tag = 'smem constant byte address 0x4 - core index']
  #allocation1 [shape = 'u32[144,128]{1,0:T(1,128)}', space=vmem, size = 0x12000, scoped, tag = 'internal scratch']
  %s0 = inlined_call_operand.vmem [shape: bf16[2,1,40], index: 0, kind: input, shape index: {}]
  %s1 = inlined_call_operand.vmem [shape: bf16[4,5], index: 1, kind: input, shape index: {}]
  %s2 = inlined_call_operand.vmem [shape: f32[4,1], index: 2, kind: input, shape index: {}]
  %s3 = inlined_call_operand.vmem [shape: bf16[2,4,32], index: 3, kind: output, shape index: {}]
  %s4 = sld [smem:[#allocation0]]
  $region45: #{_lambda_.34} parent=0
    _
  %s6 = ssub.s32 1, %s4
  %s7 = scalar_select 0, %s6, %s4
  loop: start=0, step=1, limit=4
  $region2: #{_lambda_.34} parent=0 // loop_pre_header
    _
  $region3: #{_lambda_.34} parent=0 // loop_header
    %s9 = sphi 0, %s13
    %p10 = scmp.ge.s32.totalorder %s9, 4
    %s16 = sphi 0, %s28
    %s17 = sphi 0, %s24
    %s18 = sphi 0, %s16
    %s19 = sphi 0, %s17
    %s20 = sphi 0, %s18
    %s21 = sphi 0, %s19
    %s31 = sphi 0, %s33
    %s34 = sphi 0, %s31
    %s35 = sphi 0, %s34
    %s51 = sphi 0, %s35
    %s55 = sphi 0, %s55
    %s57 = sphi 0, %s55
    %s58 = sphi 0, %s57
    %s72 = sphi 0, %s58
    %s76 = sphi 0, %s76
    %s78 = sphi 0, %s76
    %s79 = sphi 0, %s78
    %s93 = sphi 0, %s79
    %s101 = sphi 0, %s103
    %s104 = sphi 0, %s101
    %s105 = sphi 0, %s104
    %s121 = sphi 0, %s105
  $region4: #{_lambda_.34} parent=0 // loop_header_branch
    %12 = sbr.rel (%p10) target = $region8
  $region5: #{_lambda_.34} parent=0 // loop_body
    %s14 = ssub.s32 %s9, 1
    %s15 = ssub.s32 %s9, 2
    %s22 = sadd.s32 1, %s17
    %p23 = scmp.ge.s32.totalorder %s22, 1
    %s24 = scalar_select %p23, 0, %s22
    %s25 = sadd.s32 1, %s16
    %s26 = scalar_select %p23, %s25, %s16
    %p27 = scmp.ge.s32.totalorder %s26, 2
    %s28 = scalar_select %p27, 0, %s26
    %s29 = ssub.s32 %s16, %s28
    %p30 = scmp.eq.s32.totalorder %s29, 0
    %s32 = sadd.s32 %s31, 1
    %s33 = scalar_select %p30, %s31, %s32
    %p36 = pneg %p30
    %p37 = scmp.eq.s32.totalorder %s9, 1
    %p38 = por %p36, %p37
    %p39 = scmp.ne.s32.totalorder %s31, %s34
    %p40 = scmp.eq.s32.totalorder %s9, 0
    %p41 = por %p39, %p40
    %p42 = scmp.ne.s32.totalorder %s31, %s34
    %p43 = scmp.eq.s32.totalorder %s14, 1
    %p44 = por %p42, %p43
    %p45 = scmp.ne.s32.totalorder %s34, %s35
    %p46 = scmp.eq.s32.totalorder %s14, 0
    %p47 = por %p45, %p46
    %p48 = scmp.ne.s32.totalorder %s34, %s35
    %p49 = scmp.eq.s32.totalorder %s15, 1
    %p50 = por %p48, %p49
    %p52 = scmp.ne.s32.totalorder %s35, %s51
    %p53 = scmp.eq.s32.totalorder %s15, 0
    %p54 = por %p52, %p53
    %s56 = sadd.s32 %s55, 1
    %p59 = scmp.eq.s32.totalorder %s9, 1
    %p60 = scmp.ne.s32.totalorder %s55, %s57
    %p61 = scmp.eq.s32.totalorder %s9, 0
    %p62 = por %p60, %p61
    %p63 = scmp.ne.s32.totalorder %s55, %s57
    %p64 = scmp.eq.s32.totalorder %s14, 1
    %p65 = por %p63, %p64
    %p66 = scmp.ne.s32.totalorder %s57, %s58
    %p67 = scmp.eq.s32.totalorder %s14, 0
    %p68 = por %p66, %p67
    %p69 = scmp.ne.s32.totalorder %s57, %s58
    %p70 = scmp.eq.s32.totalorder %s15, 1
    %p71 = por %p69, %p70
    %p73 = scmp.ne.s32.totalorder %s58, %s72
    %p74 = scmp.eq.s32.totalorder %s15, 0
    %p75 = por %p73, %p74
    %s77 = sadd.s32 %s76, 1
    %p80 = scmp.eq.s32.totalorder %s9, 1
    %p81 = scmp.ne.s32.totalorder %s76, %s78
    %p82 = scmp.eq.s32.totalorder %s9, 0
    %p83 = por %p81, %p82
    %p84 = scmp.ne.s32.totalorder %s76, %s78
    %p85 = scmp.eq.s32.totalorder %s14, 1
    %p86 = por %p84, %p85
    %p87 = scmp.ne.s32.totalorder %s78, %s79
    %p88 = scmp.eq.s32.totalorder %s14, 0
    %p89 = por %p87, %p88
    %p90 = scmp.ne.s32.totalorder %s78, %s79
    %p91 = scmp.eq.s32.totalorder %s15, 1
    %p92 = por %p90, %p91
    %p94 = scmp.ne.s32.totalorder %s79, %s93
    %p95 = scmp.eq.s32.totalorder %s15, 0
    %p96 = por %p94, %p95
    %s97 = ssub.s32 %s16, %s28
    %s98 = ssub.s32 %s17, %s24
    %s99 = sor.u32 %s97, %s98
    %p100 = scmp.eq.s32.totalorder %s99, 0
    %s102 = sadd.s32 %s101, 1
    %s103 = scalar_select %p100, %s101, %s102
    %p106 = pneg %p100
    %p107 = scmp.eq.s32.totalorder %s9, 1
    %p108 = por %p106, %p107
    %p109 = scmp.ne.s32.totalorder %s101, %s104
    %p110 = scmp.eq.s32.totalorder %s9, 0
    %p111 = por %p109, %p110
    %p112 = scmp.ne.s32.totalorder %s101, %s104
    %p113 = scmp.eq.s32.totalorder %s14, 1
    %p114 = por %p112, %p113
    %p115 = scmp.ne.s32.totalorder %s104, %s105
    %p116 = scmp.eq.s32.totalorder %s14, 0
    %p117 = por %p115, %p116
    %p118 = scmp.ne.s32.totalorder %s104, %s105
    %p119 = scmp.eq.s32.totalorder %s15, 1
    %p120 = por %p118, %p119
    %p122 = scmp.ne.s32.totalorder %s105, %s121
    %p123 = scmp.eq.s32.totalorder %s15, 0
    %p124 = por %p122, %p123
    %p125 = scmp.le.s32.totalorder 1, %s9
    %p126 = scmp.lt.s32.totalorder %s9, 3
    %p127 = pnand %p125, %p126
    %p128 = pneg %p127
    // Predicated region
    $region9: #{_lambda_.34} parent=5 // pred_check
      _
    $region10: #{_lambda_.34} parent=5 // pred_check_branch
      %130 = sbr.rel (%p127) target = $region12
    $region11: #{_lambda_.34} parent=5 // pred_region
      %s131 = ssub.s32 %s9, 1
      // Predicated region
      $region13: #{_lambda_.34} parent=11 // pred_check
        %p132 = pneg %p68
      $region14: #{_lambda_.34} parent=11 // pred_check_branch
        %134 = sbr.rel (%p132) target = $region16
      $region15: #{_lambda_.34} parent=11 // pred_region
        _
      $region16: #{_lambda_.34} parent=11 // pred_fallthru
        _
      // Predicated region
      $region17: #{_lambda_.34} parent=11 // pred_check
        %p135 = pneg %p89
      $region18: #{_lambda_.34} parent=11 // pred_check_branch
        %137 = sbr.rel (%p135) target = $region20
      $region19: #{_lambda_.34} parent=11 // pred_region
        _
      $region20: #{_lambda_.34} parent=11 // pred_fallthru
        _
    $region12: #{_lambda_.34} parent=5 // pred_fallthru
      _
    %p138 = scmp.lt.s32.totalorder %s9, 2
    // Predicated region
    $region21: #{_lambda_.34} parent=5 // pred_check
      %p139 = pneg %p138
    $region22: #{_lambda_.34} parent=5 // pred_check_branch
      %141 = sbr.rel (%p139) target = $region24
    $region23: #{_lambda_.34} parent=5 // pred_region
      // Predicated region
      $region25: #{_lambda_.34} parent=23 // pred_check
        %p142 = pneg %p41
      $region26: #{_lambda_.34} parent=23 // pred_check_branch
        %144 = sbr.rel (%p142) target = $region28
      $region27: #{_lambda_.34} parent=23 // pred_region
        %p145 = scmp.lt.s32.totalorder %s16, 1
        %s146 = scalar_select %p145, %s16, 1
        %s147 = scalar_lea.vmem %s0, %s146
      $region28: #{_lambda_.34} parent=23 // pred_fallthru
        _
    $region24: #{_lambda_.34} parent=5 // pred_fallthru
      _
    %p148 = scmp.le.s32.totalorder 1, %s9
    %p149 = scmp.lt.s32.totalorder %s9, 3
    %p150 = pnand %p148, %p149
    %p151 = pneg %p150
    // Predicated region
    $region29: #{_lambda_.34} parent=5 // pred_check
      _
    $region30: #{_lambda_.34} parent=5 // pred_check_branch
      %153 = sbr.rel (%p150) target = $region32
    $region31: #{_lambda_.34} parent=5 // pred_region
      %s154 = ssub.s32 %s9, 1
      %p155 = scmp.lt.s32.totalorder %s18, 1
      %s156 = scalar_select %p155, %s18, 1
      %s157 = scalar_lea.vmem %s0, %s156
      %p158 = pneg %p47
      %p159 = pneg %p44
      %p160 = pneg %p68
      %p161 = pneg %p65
      %p162 = pneg %p89
      %p163 = pneg %p86
      %p164 = pneg %p117
      %p165 = pneg %p114
      %p166 = scmp.lt.s32.totalorder %s18, 1
      %s167 = scalar_select %p166, %s18, 1
      %p168 = scmp.lt.s32.totalorder %s19, 0
      %s169 = scalar_select %p168, %s19, 0
      %s170 = sadd.s32 %s169, %s167
      %s171 = smul.addr %s170, 2
      %s172 = scalar_lea.vmem %s3, %s171
      %p173 = scmp.lt.s32.totalorder %s18, 1
      %s174 = scalar_select %p173, %s18, 1
      %s175 = scalar_lea.vmem %s0, %s174
      %p176 = scmp.lt.s32.totalorder %s18, 1
      %s177 = scalar_select %p176, %s18, 1
      %p178 = scmp.lt.s32.totalorder %s19, 0
      %s179 = scalar_select %p178, %s19, 0
      %s180 = sadd.s32 %s179, %s177
      %s181 = smul.addr %s180, 2
      %s182 = scalar_lea.vmem %s3, %s181
      %v184 = vld [vmem:[%s175] sm:$0x1]
      %v187 = vunpack.c.l.s4 1966171168
      %v188 = vunpack.c.0.s8 %v187
      %v189 = vlaneseq
      %v190 = vshrl.u32 %v189, 7
      %v191 = vsub.s32 %v188, %v190
      %v192 = vrot.slane %v184, %v191
      %v194 = vunpack.c.l.s4 1966171168
      %v195 = vunpack.c.0.s8 %v194
      %v196 = vlaneseq
      %v197 = vshrl.u32 %v196, 7
      %v198 = vsub.s32 %v195, %v197
      %v199 = vrot.slane %v192, %v198
      %v201 = vshll.u32 %v199, 16
      %203 = vrot.lane.b32.xlu0 %v201, 126
      %v204 = vpop.permute.xlu0 %203
      %v206 = vcombine.low %v184, %v184
      %v208 = vunpack.c.l.s4 1966171168
      %v209 = vunpack.c.0.s8 %v208
      %v210 = vlaneseq
      %v211 = vshrl.u32 %v210, 7
      %v212 = vsub.s32 %v209, %v211
      %v213 = vrot.slane %v206, %v212
      %v215 = vunpack.c.l.s4 1966171168
      %v216 = vunpack.c.0.s8 %v215
      %v217 = vlaneseq
      %v218 = vshrl.u32 %v217, 7
      %v219 = vsub.s32 %v216, %v218
      %v220 = vrot.slane %v213, %v219
      %221 = vrot.lane.b32.xlu0 %v220, 124
      %v222 = vpop.permute.xlu0 %221
      %v223 = vrot.slane %v201, 7
      %224 = vrot.lane.b32.xlu0 %v223, 122
      %v225 = vpop.permute.xlu0 %224
      %v227 = vcombine.low %v192, %v192
      %v229 = vunpack.c.l.s4 1966171168
      %v230 = vunpack.c.0.s8 %v229
      %v231 = vlaneseq
      %v232 = vshrl.u32 %v231, 7
      %v233 = vsub.s32 %v230, %v232
      %v234 = vrot.slane %v227, %v233
      %235 = vrot.lane.b32.xlu0 %v234, 120
      %v236 = vpop.permute.xlu0 %235
      %vm237 = vcmask 1040384
      %vm238 = vsmask.f32 256
      %vm239 = vmand %vm237, %vm238
      %v240 = vsel %vm239, %v184, %v204
      %vm241 = vcmask 1040384
      %v244 = vsel %vm241, %v240, %v222
      %vm246 = vcmask 1041408
      %vm247 = vsmask.f32 1280
      %vm248 = vmand %vm246, %vm247
      %v249 = vsel %vm248, %v244, %v225
      %vm250 = vcmask 1041408
      %v253 = vsel %vm250, %v249, %v236
      %v254 = vld [vmem:[%s1] sm:$0x3]
      %v255 = vld [vmem:[%s2] sm:$0xf]
      %257 = vset.pattern.permute.xlu0 0
      %258 = vperm.xlu0 %257, %v255
      %v259 = vpop.permute.xlu0 %258
      %vm261 = vcmask 39936
      %v263 = vsel %vm261, %v254, 0
      %vm265 = vcmask 1042432
      %v266 = vsel %vm250, 4294967295, 65535
      %v267 = vsel %vm265, %v266, 0
      %v268 = vand.u32 %v253, %v267
      %270 = vmatprep.subr.bf16.mxu0 0
      %271 = vmatpush1.bf16.msra.mxu0 %v268
      %272 = vmatprep.subr.bf16.mxu0 0
      %273 = vmatpush1.bf16.msra.mxu0 0
      %274 = vmatprep.subr.bf16.mxu0 0
      %275 = vmatpush1.bf16.msra.mxu0 0
      %276 = vmatprep.subr.bf16.mxu0 0
      %277 = vmatpush1.bf16.msra.mxu0 0
      %278 = vmatprep.subr.bf16.mxu0 0
      %279 = vmatpush1.bf16.msra.mxu0 0
      %280 = vmatprep.subr.bf16.mxu0 0
      %281 = vmatpush1.bf16.msra.mxu0 0
      %282 = vmatprep.subr.bf16.mxu0 0
      %283 = vmatpush1.bf16.msra.mxu0 0
      %284 = vmatprep.subr.bf16.mxu0 0
      %285 = vmatpush1.bf16.msra.mxu0 0
      %286 = vmatprep.subr.bf16.mxu0 0
      %287 = vmatpush1.bf16.msra.mxu0 0
      %288 = vmatprep.subr.bf16.mxu0 0
      %289 = vmatpush1.bf16.msra.mxu0 0
      %290 = vmatprep.subr.bf16.mxu0 0
      %291 = vmatpush1.bf16.msra.mxu0 0
      %292 = vmatprep.subr.bf16.mxu0 0
      %293 = vmatpush1.bf16.msra.mxu0 0
      %294 = vmatprep.subr.bf16.mxu0 0
      %295 = vmatpush1.bf16.msra.mxu0 0
      %296 = vmatprep.subr.bf16.mxu0 0
      %297 = vmatpush1.bf16.msra.mxu0 0
      %298 = vmatprep.subr.bf16.mxu0 0
      %299 = vmatpush1.bf16.msra.mxu0 0
      %300 = vmatprep.subr.bf16.mxu0 0
      %301 = vmatpush1.bf16.msra.mxu0 0
      %302 = vmatprep.mubr.bf16.mxu0 0
      %303 = vmatmul.mubr.bf16.gmra.mrb[0].mxu0 %v263
      %v304 = vpop.f32.mrb[0].mxu0
      %v305 = vadd.f32 %v259, %v304
      %v306 = vpop.f32.mrb[0].mxu0
      %v307 = vpop.f32.mrb[0].mxu0
      %v308 = vpop.f32.mrb[0].mxu0
      %309 = vdwg.mxu0
      %v310 = vmul.f32 %v305, 0.1
      %v311 = vmax.f32 %v305, %v310
      %v312 = vpack.c.bf16 %v311, %v311
      %vm313 = vcmask 254976
      %314 = vst.msk [vmem:[%s182] sm:$0x3] %vm313, %v312
      %p315 = scmp.lt.s32.totalorder %s18, 1
      %s316 = scalar_select %p315, %s18, 1
      %p317 = scmp.lt.s32.totalorder %s19, 0
      %s318 = scalar_select %p317, %s19, 0
      %s319 = sadd.s32 %s318, %s316
      %s320 = smul.addr %s319, 2
      %s321 = scalar_lea.vmem %s3, %s320
      // Predicated region
      $region33: #{_lambda_.34} parent=31 // pred_check
        %p322 = pneg %p114
      $region34: #{_lambda_.34} parent=31 // pred_check_branch
        %324 = sbr.rel (%p322) target = $region36
      $region35: #{_lambda_.34} parent=31 // pred_region
        _
      $region36: #{_lambda_.34} parent=31 // pred_fallthru
        _
    $region32: #{_lambda_.34} parent=5 // pred_fallthru
      _
    %p325 = scmp.le.s32.totalorder 2, %s9
    // Predicated region
    $region37: #{_lambda_.34} parent=5 // pred_check
      %p326 = pneg %p325
    $region38: #{_lambda_.34} parent=5 // pred_check_branch
      %328 = sbr.rel (%p326) target = $region40
    $region39: #{_lambda_.34} parent=5 // pred_region
      %s329 = ssub.s32 %s9, 2
      // Predicated region
      $region41: #{_lambda_.34} parent=39 // pred_check
        %p330 = pneg %p120
      $region42: #{_lambda_.34} parent=39 // pred_check_branch
        %332 = sbr.rel (%p330) target = $region44
      $region43: #{_lambda_.34} parent=39 // pred_region
        %p333 = scmp.lt.s32.totalorder %s20, 1
        %s334 = scalar_select %p333, %s20, 1
        %p335 = scmp.lt.s32.totalorder %s21, 0
        %s336 = scalar_select %p335, %s21, 0
        %s337 = sadd.s32 %s336, %s334
        %s338 = smul.addr %s337, 2
        %s339 = scalar_lea.vmem %s3, %s338
      $region44: #{_lambda_.34} parent=39 // pred_fallthru
        _
    $region40: #{_lambda_.34} parent=5 // pred_fallthru
      _
  $region6: #{_lambda_.34} parent=0 // loop_footer
    %s13 = sadd.s32 1, %s9
  $region7: #{_lambda_.34} parent=0 // loop_footer_branch
    %8 = sbr.rel target = $region3
  $region8: #{_lambda_.34} parent=0 // loop_exit
    _

// kernel: _lambda_.35
$region0: #{_lambda_.35}
  #allocation0 [shape = 'u32[]', space=smem, size = 0x4, offset = 0x4, fixed_abs, tag = 'smem constant byte address 0x4 - core index']
  #allocation1 [shape = 'u32[144,128]{1,0:T(1,128)}', space=vmem, size = 0x12000, scoped, tag = 'internal scratch']
  %s0 = inlined_call_operand.vmem [shape: bf16[2,4,20], index: 0, kind: input, shape index: {}]
  %s1 = inlined_call_operand.vmem [shape: bf16[8,20], index: 1, kind: input, shape index: {}]
  %s2 = inlined_call_operand.vmem [shape: f32[8,1], index: 2, kind: input, shape index: {}]
  %s3 = inlined_call_operand.vmem [shape: bf16[2,8,12], index: 3, kind: output, shape index: {}]
  %s4 = sld [smem:[#allocation0]]
  $region45: #{_lambda_.35} parent=0
    _
  %s6 = ssub.s32 1, %s4
  %s7 = scalar_select 0, %s6, %s4
  loop: start=0, step=1, limit=4
  $region2: #{_lambda_.35} parent=0 // loop_pre_header
    _
  $region3: #{_lambda_.35} parent=0 // loop_header
    %s9 = sphi 0, %s13
    %p10 = scmp.ge.s32.totalorder %s9, 4
    %s16 = sphi 0, %s28
    %s17 = sphi 0, %s24
    %s18 = sphi 0, %s16
    %s19 = sphi 0, %s17
    %s20 = sphi 0, %s18
    %s21 = sphi 0, %s19
    %s31 = sphi 0, %s33
    %s34 = sphi 0, %s31
    %s35 = sphi 0, %s34
    %s51 = sphi 0, %s35
    %s55 = sphi 0, %s55
    %s57 = sphi 0, %s55
    %s58 = sphi 0, %s57
    %s72 = sphi 0, %s58
    %s76 = sphi 0, %s76
    %s78 = sphi 0, %s76
    %s79 = sphi 0, %s78
    %s93 = sphi 0, %s79
    %s101 = sphi 0, %s103
    %s104 = sphi 0, %s101
    %s105 = sphi 0, %s104
    %s121 = sphi 0, %s105
  $region4: #{_lambda_.35} parent=0 // loop_header_branch
    %12 = sbr.rel (%p10) target = $region8
  $region5: #{_lambda_.35} parent=0 // loop_body
    %s14 = ssub.s32 %s9, 1
    %s15 = ssub.s32 %s9, 2
    %s22 = sadd.s32 1, %s17
    %p23 = scmp.ge.s32.totalorder %s22, 1
    %s24 = scalar_select %p23, 0, %s22
    %s25 = sadd.s32 1, %s16
    %s26 = scalar_select %p23, %s25, %s16
    %p27 = scmp.ge.s32.totalorder %s26, 2
    %s28 = scalar_select %p27, 0, %s26
    %s29 = ssub.s32 %s16, %s28
    %p30 = scmp.eq.s32.totalorder %s29, 0
    %s32 = sadd.s32 %s31, 1
    %s33 = scalar_select %p30, %s31, %s32
    %p36 = pneg %p30
    %p37 = scmp.eq.s32.totalorder %s9, 1
    %p38 = por %p36, %p37
    %p39 = scmp.ne.s32.totalorder %s31, %s34
    %p40 = scmp.eq.s32.totalorder %s9, 0
    %p41 = por %p39, %p40
    %p42 = scmp.ne.s32.totalorder %s31, %s34
    %p43 = scmp.eq.s32.totalorder %s14, 1
    %p44 = por %p42, %p43
    %p45 = scmp.ne.s32.totalorder %s34, %s35
    %p46 = scmp.eq.s32.totalorder %s14, 0
    %p47 = por %p45, %p46
    %p48 = scmp.ne.s32.totalorder %s34, %s35
    %p49 = scmp.eq.s32.totalorder %s15, 1
    %p50 = por %p48, %p49
    %p52 = scmp.ne.s32.totalorder %s35, %s51
    %p53 = scmp.eq.s32.totalorder %s15, 0
    %p54 = por %p52, %p53
    %s56 = sadd.s32 %s55, 1
    %p59 = scmp.eq.s32.totalorder %s9, 1
    %p60 = scmp.ne.s32.totalorder %s55, %s57
    %p61 = scmp.eq.s32.totalorder %s9, 0
    %p62 = por %p60, %p61
    %p63 = scmp.ne.s32.totalorder %s55, %s57
    %p64 = scmp.eq.s32.totalorder %s14, 1
    %p65 = por %p63, %p64
    %p66 = scmp.ne.s32.totalorder %s57, %s58
    %p67 = scmp.eq.s32.totalorder %s14, 0
    %p68 = por %p66, %p67
    %p69 = scmp.ne.s32.totalorder %s57, %s58
    %p70 = scmp.eq.s32.totalorder %s15, 1
    %p71 = por %p69, %p70
    %p73 = scmp.ne.s32.totalorder %s58, %s72
    %p74 = scmp.eq.s32.totalorder %s15, 0
    %p75 = por %p73, %p74
    %s77 = sadd.s32 %s76, 1
    %p80 = scmp.eq.s32.totalorder %s9, 1
    %p81 = scmp.ne.s32.totalorder %s76, %s78
    %p82 = scmp.eq.s32.totalorder %s9, 0
    %p83 = por %p81, %p82
    %p84 = scmp.ne.s32.totalorder %s76, %s78
    %p85 = scmp.eq.s32.totalorder %s14, 1
    %p86 = por %p84, %p85
    %p87 = scmp.ne.s32.totalorder %s78, %s79
    %p88 = scmp.eq.s32.totalorder %s14, 0
    %p89 = por %p87, %p88
    %p90 = scmp.ne.s32.totalorder %s78, %s79
    %p91 = scmp.eq.s32.totalorder %s15, 1
    %p92 = por %p90, %p91
    %p94 = scmp.ne.s32.totalorder %s79, %s93
    %p95 = scmp.eq.s32.totalorder %s15, 0
    %p96 = por %p94, %p95
    %s97 = ssub.s32 %s16, %s28
    %s98 = ssub.s32 %s17, %s24
    %s99 = sor.u32 %s97, %s98
    %p100 = scmp.eq.s32.totalorder %s99, 0
    %s102 = sadd.s32 %s101, 1
    %s103 = scalar_select %p100, %s101, %s102
    %p106 = pneg %p100
    %p107 = scmp.eq.s32.totalorder %s9, 1
    %p108 = por %p106, %p107
    %p109 = scmp.ne.s32.totalorder %s101, %s104
    %p110 = scmp.eq.s32.totalorder %s9, 0
    %p111 = por %p109, %p110
    %p112 = scmp.ne.s32.totalorder %s101, %s104
    %p113 = scmp.eq.s32.totalorder %s14, 1
    %p114 = por %p112, %p113
    %p115 = scmp.ne.s32.totalorder %s104, %s105
    %p116 = scmp.eq.s32.totalorder %s14, 0
    %p117 = por %p115, %p116
    %p118 = scmp.ne.s32.totalorder %s104, %s105
    %p119 = scmp.eq.s32.totalorder %s15, 1
    %p120 = por %p118, %p119
    %p122 = scmp.ne.s32.totalorder %s105, %s121
    %p123 = scmp.eq.s32.totalorder %s15, 0
    %p124 = por %p122, %p123
    %p125 = scmp.le.s32.totalorder 1, %s9
    %p126 = scmp.lt.s32.totalorder %s9, 3
    %p127 = pnand %p125, %p126
    %p128 = pneg %p127
    // Predicated region
    $region9: #{_lambda_.35} parent=5 // pred_check
      _
    $region10: #{_lambda_.35} parent=5 // pred_check_branch
      %130 = sbr.rel (%p127) target = $region12
    $region11: #{_lambda_.35} parent=5 // pred_region
      %s131 = ssub.s32 %s9, 1
      // Predicated region
      $region13: #{_lambda_.35} parent=11 // pred_check
        %p132 = pneg %p68
      $region14: #{_lambda_.35} parent=11 // pred_check_branch
        %134 = sbr.rel (%p132) target = $region16
      $region15: #{_lambda_.35} parent=11 // pred_region
        _
      $region16: #{_lambda_.35} parent=11 // pred_fallthru
        _
      // Predicated region
      $region17: #{_lambda_.35} parent=11 // pred_check
        %p135 = pneg %p89
      $region18: #{_lambda_.35} parent=11 // pred_check_branch
        %137 = sbr.rel (%p135) target = $region20
      $region19: #{_lambda_.35} parent=11 // pred_region
        _
      $region20: #{_lambda_.35} parent=11 // pred_fallthru
        _
    $region12: #{_lambda_.35} parent=5 // pred_fallthru
      _
    %p138 = scmp.lt.s32.totalorder %s9, 2
    // Predicated region
    $region21: #{_lambda_.35} parent=5 // pred_check
      %p139 = pneg %p138
    $region22: #{_lambda_.35} parent=5 // pred_check_branch
      %141 = sbr.rel (%p139) target = $region24
    $region23: #{_lambda_.35} parent=5 // pred_region
      // Predicated region
      $region25: #{_lambda_.35} parent=23 // pred_check
        %p142 = pneg %p41
      $region26: #{_lambda_.35} parent=23 // pred_check_branch
        %144 = sbr.rel (%p142) target = $region28
      $region27: #{_lambda_.35} parent=23 // pred_region
        %p145 = scmp.lt.s32.totalorder %s16, 1
        %s146 = scalar_select %p145, %s16, 1
        %s147 = smul.addr %s146, 2
        %s148 = scalar_lea.vmem %s0, %s147
      $region28: #{_lambda_.35} parent=23 // pred_fallthru
        _
    $region24: #{_lambda_.35} parent=5 // pred_fallthru
      _
    %p149 = scmp.le.s32.totalorder 1, %s9
    %p150 = scmp.lt.s32.totalorder %s9, 3
    %p151 = pnand %p149, %p150
    %p152 = pneg %p151
    // Predicated region
    $region29: #{_lambda_.35} parent=5 // pred_check
      _
    $region30: #{_lambda_.35} parent=5 // pred_check_branch
      %154 = sbr.rel (%p151) target = $region32
    $region31: #{_lambda_.35} parent=5 // pred_region
      %s155 = ssub.s32 %s9, 1
      %p156 = scmp.lt.s32.totalorder %s18, 1
      %s157 = scalar_select %p156, %s18, 1
      %s158 = smul.addr %s157, 2
      %s159 = scalar_lea.vmem %s0, %s158
      %p160 = pneg %p47
      %p161 = pneg %p44
      %p162 = pneg %p68
      %p163 = pneg %p65
      %p164 = pneg %p89
      %p165 = pneg %p86
      %p166 = pneg %p117
      %p167 = pneg %p114
      %p168 = scmp.lt.s32.totalorder %s18, 1
      %s169 = scalar_select %p168, %s18, 1
      %p170 = scmp.lt.s32.totalorder %s19, 0
      %s171 = scalar_select %p170, %s19, 0
      %s172 = sadd.s32 %s171, %s169
      %s173 = smul.addr %s172, 4
      %s174 = scalar_lea.vmem %s3, %s173
      %p175 = scmp.lt.s32.totalorder %s18, 1
      %s176 = scalar_select %p175, %s18, 1
      %s177 = smul.addr %s176, 2
      %s178 = scalar_lea.vmem %s0, %s177
      %p179 = scmp.lt.s32.totalorder %s18, 1
      %s180 = scalar_select %p179, %s18, 1
      %p181 = scmp.lt.s32.totalorder %s19, 0
      %s182 = scalar_select %p181, %s19, 0
      %s183 = sadd.s32 %s182, %s180
      %s184 = smul.addr %s183, 4
      %s185 = scalar_lea.vmem %s3, %s184
      %v187 = vld [vmem:[%s178] sm:$0x3]
      %v189 = vcombine.low %v187, %v187
      %v191 = vunpack.c.l.s4 1983009808
      %v192 = vunpack.c.0.s8 %v191
      %v193 = vlaneseq
      %v194 = vshrl.u32 %v193, 7
      %v195 = vsub.s32 %v192, %v194
      %v196 = vrot.slane %v189, %v195
      %v198 = vunpack.c.l.s4 1983009808
      %v199 = vunpack.c.0.s8 %v198
      %v200 = vlaneseq
      %v201 = vshrl.u32 %v200, 7
      %v202 = vsub.s32 %v199, %v201
      %v203 = vrot.slane %v187, %v202
      %204 = vrot.lane.b32.xlu0 %v196, 126
      %v205 = vpop.permute.xlu0 %204
      %v206 = vcombine.low %v203, %v203
      %207 = vrot.lane.b32.xlu0 %v206, 124
      %v208 = vpop.permute.xlu0 %207
      %v209 = vcombine.low %v196, %v196
      %210 = vrot.lane.b32.xlu0 %v209, 122
      %v211 = vpop.permute.xlu0 %210
      %212 = vrot.lane.b32.xlu0 %v203, 120
      %v213 = vpop.permute.xlu0 %212
      %vm214 = vcmask 1041408
      %v217 = vsel %vm214, %v187, %v205
      %vm218 = vcmask 1043456
      %v220 = vsel %vm218, %v217, %v208
      %vm221 = vcmask 1045504
      %v223 = vsel %vm221, %v220, %v211
      %v225 = vld [vmem:[%s1] sm:$0xf]
      %v226 = vld [vmem:[%s2] sm:$0xff]
      %228 = vset.pattern.permute.xlu0 0
      %229 = vperm.xlu0 %228, %v226
      %v230 = vpop.permute.xlu0 %229
      %vm232 = vcmask 162816
      %v234 = vsel %vm232, %v225, 0
      %v237 = vsel %vm214, %v213, 0
      %239 = vmatprep.subr.bf16.mxu0 0
      %240 = vmatpush1.bf16.msra.mxu0 %v223
      %241 = vmatprep.subr.bf16.mxu0 0
      %242 = vmatpush1.bf16.msra.mxu0 %v237
      %243 = vmatprep.subr.bf16.mxu0 0
      %244 = vmatpush1.bf16.msra.mxu0 0
      %245 = vmatprep.subr.bf16.mxu0 0
      %246 = vmatpush1.bf16.msra.mxu0 0
      %247 = vmatprep.subr.bf16.mxu0 0
      %248 = vmatpush1.bf16.msra.mxu0 0
      %249 = vmatprep.subr.bf16.mxu0 0
      %250 = vmatpush1.bf16.msra.mxu0 0
      %251 = vmatprep.subr.bf16.mxu0 0
      %252 = vmatpush1.bf16.msra.mxu0 0
      %253 = vmatprep.subr.bf16.mxu0 0
      %254 = vmatpush1.bf16.msra.mxu0 0
      %255 = vmatprep.subr.bf16.mxu0 0
      %256 = vmatpush1.bf16.msra.mxu0 0
      %257 = vmatprep.subr.bf16.mxu0 0
      %258 = vmatpush1.bf16.msra.mxu0 0
      %259 = vmatprep.subr.bf16.mxu0 0
      %260 = vmatpush1.bf16.msra.mxu0 0
      %261 = vmatprep.subr.bf16.mxu0 0
      %262 = vmatpush1.bf16.msra.mxu0 0
      %263 = vmatprep.subr.bf16.mxu0 0
      %264 = vmatpush1.bf16.msra.mxu0 0
      %265 = vmatprep.subr.bf16.mxu0 0
      %266 = vmatpush1.bf16.msra.mxu0 0
      %267 = vmatprep.subr.bf16.mxu0 0
      %268 = vmatpush1.bf16.msra.mxu0 0
      %269 = vmatprep.subr.bf16.mxu0 0
      %270 = vmatpush1.bf16.msra.mxu0 0
      %271 = vmatprep.mubr.bf16.mxu0 0
      %272 = vmatmul.mubr.bf16.gmra.mrb[0].mxu0 %v234
      %v273 = vpop.f32.mrb[0].mxu0
      %v274 = vadd.f32 %v230, %v273
      %v275 = vpop.f32.mrb[0].mxu0
      %v276 = vpop.f32.mrb[0].mxu0
      %v277 = vpop.f32.mrb[0].mxu0
      %278 = vdwg.mxu0
      %v279 = vmul.f32 %v274, 0.1
      %v280 = vmax.f32 %v274, %v279
      %v281 = vpack.c.bf16 %v280, %v280
      %vm282 = vcmask 93184
      %283 = vst.msk [vmem:[%s185] sm:$0xf] %vm282, %v281
      %p284 = scmp.lt.s32.totalorder %s18, 1
      %s285 = scalar_select %p284, %s18, 1
      %p286 = scmp.lt.s32.totalorder %s19, 0
      %s287 = scalar_select %p286, %s19, 0
      %s288 = sadd.s32 %s287, %s285
      %s289 = smul.addr %s288, 4
      %s290 = scalar_lea.vmem %s3, %s289
      // Predicated region
      $region33: #{_lambda_.35} parent=31 // pred_check
        %p291 = pneg %p114
      $region34: #{_lambda_.35} parent=31 // pred_check_branch
        %293 = sbr.rel (%p291) target = $region36
      $region35: #{_lambda_.35} parent=31 // pred_region
        _
      $region36: #{_lambda_.35} parent=31 // pred_fallthru
        _
    $region32: #{_lambda_.35} parent=5 // pred_fallthru
      _
    %p294 = scmp.le.s32.totalorder 2, %s9
    // Predicated region
    $region37: #{_lambda_.35} parent=5 // pred_check
      %p295 = pneg %p294
    $region38: #{_lambda_.35} parent=5 // pred_check_branch
      %297 = sbr.rel (%p295) target = $region40
    $region39: #{_lambda_.35} parent=5 // pred_region
      %s298 = ssub.s32 %s9, 2
      // Predicated region
      $region41: #{_lambda_.35} parent=39 // pred_check
        %p299 = pneg %p120
      $region42: #{_lambda_.35} parent=39 // pred_check_branch
        %301 = sbr.rel (%p299) target = $region44
      $region43: #{_lambda_.35} parent=39 // pred_region
        %p302 = scmp.lt.s32.totalorder %s20, 1
        %s303 = scalar_select %p302, %s20, 1
        %p304 = scmp.lt.s32.totalorder %s21, 0
        %s305 = scalar_select %p304, %s21, 0
        %s306 = sadd.s32 %s305, %s303
        %s307 = smul.addr %s306, 4
        %s308 = scalar_lea.vmem %s3, %s307
      $region44: #{_lambda_.35} parent=39 // pred_fallthru
        _
    $region40: #{_lambda_.35} parent=5 // pred_fallthru
      _
  $region6: #{_lambda_.35} parent=0 // loop_footer
    %s13 = sadd.s32 1, %s9
  $region7: #{_lambda_.35} parent=0 // loop_footer_branch
    %8 = sbr.rel target = $region3
  $region8: #{_lambda_.35} parent=0 // loop_exit
    _

// kernel: _lambda_.36
$region0: #{_lambda_.36}
  #allocation0 [shape = 'u32[]', space=smem, size = 0x4, offset = 0x4, fixed_abs, tag = 'smem constant byte address 0x4 - core index']
  #allocation1 [shape = 'u32[144,128]{1,0:T(1,128)}', space=vmem, size = 0x12000, scoped, tag = 'internal scratch']
  %s0 = inlined_call_operand.vmem [shape: bf16[2,8,12], index: 0, kind: input, shape index: {}]
  %s1 = inlined_call_operand.vmem [shape: bf16[8,40], index: 1, kind: input, shape index: {}]
  %s2 = inlined_call_operand.vmem [shape: f32[8,1], index: 2, kind: input, shape index: {}]
  %s3 = inlined_call_operand.vmem [shape: bf16[2,8,4], index: 3, kind: output, shape index: {}]
  %s4 = sld [smem:[#allocation0]]
  $region45: #{_lambda_.36} parent=0
    _
  %s6 = ssub.s32 1, %s4
  %s7 = scalar_select 0, %s6, %s4
  loop: start=0, step=1, limit=4
  $region2: #{_lambda_.36} parent=0 // loop_pre_header
    _
  $region3: #{_lambda_.36} parent=0 // loop_header
    %s9 = sphi 0, %s13
    %p10 = scmp.ge.s32.totalorder %s9, 4
    %s16 = sphi 0, %s28
    %s17 = sphi 0, %s24
    %s18 = sphi 0, %s16
    %s19 = sphi 0, %s17
    %s20 = sphi 0, %s18
    %s21 = sphi 0, %s19
    %s31 = sphi 0, %s33
    %s34 = sphi 0, %s31
    %s35 = sphi 0, %s34
    %s51 = sphi 0, %s35
    %s55 = sphi 0, %s55
    %s57 = sphi 0, %s55
    %s58 = sphi 0, %s57
    %s72 = sphi 0, %s58
    %s76 = sphi 0, %s76
    %s78 = sphi 0, %s76
    %s79 = sphi 0, %s78
    %s93 = sphi 0, %s79
    %s101 = sphi 0, %s103
    %s104 = sphi 0, %s101
    %s105 = sphi 0, %s104
    %s121 = sphi 0, %s105
  $region4: #{_lambda_.36} parent=0 // loop_header_branch
    %12 = sbr.rel (%p10) target = $region8
  $region5: #{_lambda_.36} parent=0 // loop_body
    %s14 = ssub.s32 %s9, 1
    %s15 = ssub.s32 %s9, 2
    %s22 = sadd.s32 1, %s17
    %p23 = scmp.ge.s32.totalorder %s22, 1
    %s24 = scalar_select %p23, 0, %s22
    %s25 = sadd.s32 1, %s16
    %s26 = scalar_select %p23, %s25, %s16
    %p27 = scmp.ge.s32.totalorder %s26, 2
    %s28 = scalar_select %p27, 0, %s26
    %s29 = ssub.s32 %s16, %s28
    %p30 = scmp.eq.s32.totalorder %s29, 0
    %s32 = sadd.s32 %s31, 1
    %s33 = scalar_select %p30, %s31, %s32
    %p36 = pneg %p30
    %p37 = scmp.eq.s32.totalorder %s9, 1
    %p38 = por %p36, %p37
    %p39 = scmp.ne.s32.totalorder %s31, %s34
    %p40 = scmp.eq.s32.totalorder %s9, 0
    %p41 = por %p39, %p40
    %p42 = scmp.ne.s32.totalorder %s31, %s34
    %p43 = scmp.eq.s32.totalorder %s14, 1
    %p44 = por %p42, %p43
    %p45 = scmp.ne.s32.totalorder %s34, %s35
    %p46 = scmp.eq.s32.totalorder %s14, 0
    %p47 = por %p45, %p46
    %p48 = scmp.ne.s32.totalorder %s34, %s35
    %p49 = scmp.eq.s32.totalorder %s15, 1
    %p50 = por %p48, %p49
    %p52 = scmp.ne.s32.totalorder %s35, %s51
    %p53 = scmp.eq.s32.totalorder %s15, 0
    %p54 = por %p52, %p53
    %s56 = sadd.s32 %s55, 1
    %p59 = scmp.eq.s32.totalorder %s9, 1
    %p60 = scmp.ne.s32.totalorder %s55, %s57
    %p61 = scmp.eq.s32.totalorder %s9, 0
    %p62 = por %p60, %p61
    %p63 = scmp.ne.s32.totalorder %s55, %s57
    %p64 = scmp.eq.s32.totalorder %s14, 1
    %p65 = por %p63, %p64
    %p66 = scmp.ne.s32.totalorder %s57, %s58
    %p67 = scmp.eq.s32.totalorder %s14, 0
    %p68 = por %p66, %p67
    %p69 = scmp.ne.s32.totalorder %s57, %s58
    %p70 = scmp.eq.s32.totalorder %s15, 1
    %p71 = por %p69, %p70
    %p73 = scmp.ne.s32.totalorder %s58, %s72
    %p74 = scmp.eq.s32.totalorder %s15, 0
    %p75 = por %p73, %p74
    %s77 = sadd.s32 %s76, 1
    %p80 = scmp.eq.s32.totalorder %s9, 1
    %p81 = scmp.ne.s32.totalorder %s76, %s78
    %p82 = scmp.eq.s32.totalorder %s9, 0
    %p83 = por %p81, %p82
    %p84 = scmp.ne.s32.totalorder %s76, %s78
    %p85 = scmp.eq.s32.totalorder %s14, 1
    %p86 = por %p84, %p85
    %p87 = scmp.ne.s32.totalorder %s78, %s79
    %p88 = scmp.eq.s32.totalorder %s14, 0
    %p89 = por %p87, %p88
    %p90 = scmp.ne.s32.totalorder %s78, %s79
    %p91 = scmp.eq.s32.totalorder %s15, 1
    %p92 = por %p90, %p91
    %p94 = scmp.ne.s32.totalorder %s79, %s93
    %p95 = scmp.eq.s32.totalorder %s15, 0
    %p96 = por %p94, %p95
    %s97 = ssub.s32 %s16, %s28
    %s98 = ssub.s32 %s17, %s24
    %s99 = sor.u32 %s97, %s98
    %p100 = scmp.eq.s32.totalorder %s99, 0
    %s102 = sadd.s32 %s101, 1
    %s103 = scalar_select %p100, %s101, %s102
    %p106 = pneg %p100
    %p107 = scmp.eq.s32.totalorder %s9, 1
    %p108 = por %p106, %p107
    %p109 = scmp.ne.s32.totalorder %s101, %s104
    %p110 = scmp.eq.s32.totalorder %s9, 0
    %p111 = por %p109, %p110
    %p112 = scmp.ne.s32.totalorder %s101, %s104
    %p113 = scmp.eq.s32.totalorder %s14, 1
    %p114 = por %p112, %p113
    %p115 = scmp.ne.s32.totalorder %s104, %s105
    %p116 = scmp.eq.s32.totalorder %s14, 0
    %p117 = por %p115, %p116
    %p118 = scmp.ne.s32.totalorder %s104, %s105
    %p119 = scmp.eq.s32.totalorder %s15, 1
    %p120 = por %p118, %p119
    %p122 = scmp.ne.s32.totalorder %s105, %s121
    %p123 = scmp.eq.s32.totalorder %s15, 0
    %p124 = por %p122, %p123
    %p125 = scmp.le.s32.totalorder 1, %s9
    %p126 = scmp.lt.s32.totalorder %s9, 3
    %p127 = pnand %p125, %p126
    %p128 = pneg %p127
    // Predicated region
    $region9: #{_lambda_.36} parent=5 // pred_check
      _
    $region10: #{_lambda_.36} parent=5 // pred_check_branch
      %130 = sbr.rel (%p127) target = $region12
    $region11: #{_lambda_.36} parent=5 // pred_region
      %s131 = ssub.s32 %s9, 1
      // Predicated region
      $region13: #{_lambda_.36} parent=11 // pred_check
        %p132 = pneg %p68
      $region14: #{_lambda_.36} parent=11 // pred_check_branch
        %134 = sbr.rel (%p132) target = $region16
      $region15: #{_lambda_.36} parent=11 // pred_region
        _
      $region16: #{_lambda_.36} parent=11 // pred_fallthru
        _
      // Predicated region
      $region17: #{_lambda_.36} parent=11 // pred_check
        %p135 = pneg %p89
      $region18: #{_lambda_.36} parent=11 // pred_check_branch
        %137 = sbr.rel (%p135) target = $region20
      $region19: #{_lambda_.36} parent=11 // pred_region
        _
      $region20: #{_lambda_.36} parent=11 // pred_fallthru
        _
    $region12: #{_lambda_.36} parent=5 // pred_fallthru
      _
    %p138 = scmp.lt.s32.totalorder %s9, 2
    // Predicated region
    $region21: #{_lambda_.36} parent=5 // pred_check
      %p139 = pneg %p138
    $region22: #{_lambda_.36} parent=5 // pred_check_branch
      %141 = sbr.rel (%p139) target = $region24
    $region23: #{_lambda_.36} parent=5 // pred_region
      // Predicated region
      $region25: #{_lambda_.36} parent=23 // pred_check
        %p142 = pneg %p41
      $region26: #{_lambda_.36} parent=23 // pred_check_branch
        %144 = sbr.rel (%p142) target = $region28
      $region27: #{_lambda_.36} parent=23 // pred_region
        %p145 = scmp.lt.s32.totalorder %s16, 1
        %s146 = scalar_select %p145, %s16, 1
        %s147 = smul.addr %s146, 4
        %s148 = scalar_lea.vmem %s0, %s147
      $region28: #{_lambda_.36} parent=23 // pred_fallthru
        _
    $region24: #{_lambda_.36} parent=5 // pred_fallthru
      _
    %p149 = scmp.le.s32.totalorder 1, %s9
    %p150 = scmp.lt.s32.totalorder %s9, 3
    %p151 = pnand %p149, %p150
    %p152 = pneg %p151
    // Predicated region
    $region29: #{_lambda_.36} parent=5 // pred_check
      _
    $region30: #{_lambda_.36} parent=5 // pred_check_branch
      %154 = sbr.rel (%p151) target = $region32
    $region31: #{_lambda_.36} parent=5 // pred_region
      %s155 = ssub.s32 %s9, 1
      %p156 = scmp.lt.s32.totalorder %s18, 1
      %s157 = scalar_select %p156, %s18, 1
      %s158 = smul.addr %s157, 4
      %s159 = scalar_lea.vmem %s0, %s158
      %p160 = pneg %p47
      %p161 = pneg %p44
      %p162 = pneg %p68
      %p163 = pneg %p65
      %p164 = pneg %p89
      %p165 = pneg %p86
      %p166 = pneg %p117
      %p167 = pneg %p114
      %p168 = scmp.lt.s32.totalorder %s18, 1
      %s169 = scalar_select %p168, %s18, 1
      %p170 = scmp.lt.s32.totalorder %s19, 0
      %s171 = scalar_select %p170, %s19, 0
      %s172 = sadd.s32 %s171, %s169
      %s173 = smul.addr %s172, 4
      %s174 = scalar_lea.vmem %s3, %s173
      %p175 = scmp.lt.s32.totalorder %s18, 1
      %s176 = scalar_select %p175, %s18, 1
      %s177 = smul.addr %s176, 4
      %s178 = scalar_lea.vmem %s0, %s177
      %p179 = scmp.lt.s32.totalorder %s18, 1
      %s180 = scalar_select %p179, %s18, 1
      %p181 = scmp.lt.s32.totalorder %s19, 0
      %s182 = scalar_select %p181, %s19, 0
      %s183 = sadd.s32 %s182, %s180
      %s184 = smul.addr %s183, 4
      %s185 = scalar_lea.vmem %s3, %s184
      %v187 = vld [vmem:[%s178] sm:$0xf]
      %v189 = vunpack.c.l.b16 %v187
      %v190 = vpack.c.b16 %v189, %v189
      %191 = vrot.lane.b32.xlu0 %v190, 126
      %v192 = vpop.permute.xlu0 %191
      %193 = vrot.lane.b32.xlu0 %v190, 124
      %v194 = vpop.permute.xlu0 %193
      %195 = vrot.lane.b32.xlu0 %v190, 122
      %v196 = vpop.permute.xlu0 %195
      %197 = vrot.lane.b32.xlu0 %v190, 120
      %v198 = vpop.permute.xlu0 %197
      %vm199 = vcmask 1043456
      %v202 = vsel %vm199, %v187, %v192
      %v206 = vsel %vm199, %v194, %v196
      %v208 = vld [vmem:[%s1] sm:$0xf]
      %v209 = vld [vmem:[%s2] sm:$0xff]
      %211 = vset.pattern.permute.xlu0 0
      %212 = vperm.xlu0 %211, %v209
      %v213 = vpop.permute.xlu0 %212
      %vm215 = vcmask 326656
      %v217 = vsel %vm215, %v208, 0
      %v220 = vsel %vm199, %v198, 0
      %222 = vmatprep.subr.bf16.mxu0 0
      %223 = vmatpush1.bf16.msra.mxu0 %v202
      %224 = vmatprep.subr.bf16.mxu0 0
      %225 = vmatpush1.bf16.msra.mxu0 %v206
      %226 = vmatprep.subr.bf16.mxu0 0
      %227 = vmatpush1.bf16.msra.mxu0 %v220
      %228 = vmatprep.subr.bf16.mxu0 0
      %229 = vmatpush1.bf16.msra.mxu0 0
      %230 = vmatprep.subr.bf16.mxu0 0
      %231 = vmatpush1.bf16.msra.mxu0 0
      %232 = vmatprep.subr.bf16.mxu0 0
      %233 = vmatpush1.bf16.msra.mxu0 0
      %234 = vmatprep.subr.bf16.mxu0 0
      %235 = vmatpush1.bf16.msra.mxu0 0
      %236 = vmatprep.subr.bf16.mxu0 0
      %237 = vmatpush1.bf16.msra.mxu0 0
      %238 = vmatprep.subr.bf16.mxu0 0
      %239 = vmatpush1.bf16.msra.mxu0 0
      %240 = vmatprep.subr.bf16.mxu0 0
      %241 = vmatpush1.bf16.msra.mxu0 0
      %242 = vmatprep.subr.bf16.mxu0 0
      %243 = vmatpush1.bf16.msra.mxu0 0
      %244 = vmatprep.subr.bf16.mxu0 0
      %245 = vmatpush1.bf16.msra.mxu0 0
      %246 = vmatprep.subr.bf16.mxu0 0
      %247 = vmatpush1.bf16.msra.mxu0 0
      %248 = vmatprep.subr.bf16.mxu0 0
      %249 = vmatpush1.bf16.msra.mxu0 0
      %250 = vmatprep.subr.bf16.mxu0 0
      %251 = vmatpush1.bf16.msra.mxu0 0
      %252 = vmatprep.subr.bf16.mxu0 0
      %253 = vmatpush1.bf16.msra.mxu0 0
      %254 = vmatprep.mubr.bf16.mxu0 0
      %255 = vmatmul.mubr.bf16.gmra.mrb[0].mxu0 %v217
      %v256 = vpop.f32.mrb[0].mxu0
      %v257 = vadd.f32 %v213, %v256
      %v258 = vpop.f32.mrb[0].mxu0
      %v259 = vpop.f32.mrb[0].mxu0
      %v260 = vpop.f32.mrb[0].mxu0
      %261 = vdwg.mxu0
      %v262 = vmul.f32 %v257, 0.1
      %v263 = vmax.f32 %v257, %v262
      %v264 = vpack.c.bf16 %v263, %v263
      %vm265 = vcmask 27648
      %266 = vst.msk [vmem:[%s185] sm:$0xf] %vm265, %v264
      %p267 = scmp.lt.s32.totalorder %s18, 1
      %s268 = scalar_select %p267, %s18, 1
      %p269 = scmp.lt.s32.totalorder %s19, 0
      %s270 = scalar_select %p269, %s19, 0
      %s271 = sadd.s32 %s270, %s268
      %s272 = smul.addr %s271, 4
      %s273 = scalar_lea.vmem %s3, %s272
      // Predicated region
      $region33: #{_lambda_.36} parent=31 // pred_check
        %p274 = pneg %p114
      $region34: #{_lambda_.36} parent=31 // pred_check_branch
        %276 = sbr.rel (%p274) target = $region36
      $region35: #{_lambda_.36} parent=31 // pred_region
        _
      $region36: #{_lambda_.36} parent=31 // pred_fallthru
        _
    $region32: #{_lambda_.36} parent=5 // pred_fallthru
      _
    %p277 = scmp.le.s32.totalorder 2, %s9
    // Predicated region
    $region37: #{_lambda_.36} parent=5 // pred_check
      %p278 = pneg %p277
    $region38: #{_lambda_.36} parent=5 // pred_check_branch
      %280 = sbr.rel (%p278) target = $region40
    $region39: #{_lambda_.36} parent=5 // pred_region
      %s281 = ssub.s32 %s9, 2
      // Predicated region
      $region41: #{_lambda_.36} parent=39 // pred_check
        %p282 = pneg %p120
      $region42: #{_lambda_.36} parent=39 // pred_check_branch
        %284 = sbr.rel (%p282) target = $region44
      $region43: #{_lambda_.36} parent=39 // pred_region
        %p285 = scmp.lt.s32.totalorder %s20, 1
        %s286 = scalar_select %p285, %s20, 1
        %p287 = scmp.lt.s32.totalorder %s21, 0
        %s288 = scalar_select %p287, %s21, 0
        %s289 = sadd.s32 %s288, %s286
        %s290 = smul.addr %s289, 4
        %s291 = scalar_lea.vmem %s3, %s290
      $region44: #{_lambda_.36} parent=39 // pred_fallthru
        _
    $region40: #{_lambda_.36} parent=5 // pred_fallthru
      _
  $region6: #{_lambda_.36} parent=0 // loop_footer
    %s13 = sadd.s32 1, %s9
  $region7: #{_lambda_.36} parent=0 // loop_footer_branch
    %8 = sbr.rel target = $region3
  $region8: #{_lambda_.36} parent=0 // loop_exit
    _

// kernel: _lambda_.37
$region0: #{_lambda_.37}
  #allocation0 [shape = 'u32[]', space=smem, size = 0x4, offset = 0x4, fixed_abs, tag = 'smem constant byte address 0x4 - core index']
  #allocation1 [shape = 'u32[144,128]{1,0:T(1,128)}', space=vmem, size = 0x12000, scoped, tag = 'internal scratch']
  #allocation2 [shape = 'f32[1,1]{1,0:T(1,128)S(1)}', space=vmem, size = 0x200, scoped, tag = 'scoped memory for _lambda_.37']
  %s0 = inlined_call_operand.vmem [shape: bf16[2,8,8], index: 0, kind: input, shape index: {}]
  %s1 = inlined_call_operand.vmem [shape: bf16[1,24], index: 1, kind: input, shape index: {}]
  %s2 = inlined_call_operand.<no memory space> [shape: f32[1,1], index: 2, kind: input, shape index: {}]
  %s3 = inlined_call_operand.vmem [shape: bf16[2,1,4], index: 3, kind: output, shape index: {}]
  %s4 = sld [smem:[#allocation0]]
  $region45: #{_lambda_.37} parent=0
    _
  %s6 = ssub.s32 1, %s4
  %s7 = scalar_select 0, %s6, %s4
  %v8 = vstv %s2
  %9 = vst [vmem:[#allocation2] sm:$0x1] %v8
  loop: start=0, step=1, limit=4
  $region2: #{_lambda_.37} parent=0 // loop_pre_header
    _
  $region3: #{_lambda_.37} parent=0 // loop_header
    %s11 = sphi 0, %s15
    %p12 = scmp.ge.s32.totalorder %s11, 4
    %s18 = sphi 0, %s30
    %s19 = sphi 0, %s26
    %s20 = sphi 0, %s18
    %s21 = sphi 0, %s19
    %s22 = sphi 0, %s20
    %s23 = sphi 0, %s21
    %s33 = sphi 0, %s35
    %s36 = sphi 0, %s33
    %s37 = sphi 0, %s36
    %s53 = sphi 0, %s37
    %s57 = sphi 0, %s57
    %s59 = sphi 0, %s57
    %s60 = sphi 0, %s59
    %s74 = sphi 0, %s60
    %s78 = sphi 0, %s78
    %s80 = sphi 0, %s78
    %s81 = sphi 0, %s80
    %s95 = sphi 0, %s81
    %s103 = sphi 0, %s105
    %s106 = sphi 0, %s103
    %s107 = sphi 0, %s106
    %s123 = sphi 0, %s107
  $region4: #{_lambda_.37} parent=0 // loop_header_branch
    %14 = sbr.rel (%p12) target = $region8
  $region5: #{_lambda_.37} parent=0 // loop_body
    %s16 = ssub.s32 %s11, 1
    %s17 = ssub.s32 %s11, 2
    %s24 = sadd.s32 1, %s19
    %p25 = scmp.ge.s32.totalorder %s24, 1
    %s26 = scalar_select %p25, 0, %s24
    %s27 = sadd.s32 1, %s18
    %s28 = scalar_select %p25, %s27, %s18
    %p29 = scmp.ge.s32.totalorder %s28, 2
    %s30 = scalar_select %p29, 0, %s28
    %s31 = ssub.s32 %s18, %s30
    %p32 = scmp.eq.s32.totalorder %s31, 0
    %s34 = sadd.s32 %s33, 1
    %s35 = scalar_select %p32, %s33, %s34
    %p38 = pneg %p32
    %p39 = scmp.eq.s32.totalorder %s11, 1
    %p40 = por %p38, %p39
    %p41 = scmp.ne.s32.totalorder %s33, %s36
    %p42 = scmp.eq.s32.totalorder %s11, 0
    %p43 = por %p41, %p42
    %p44 = scmp.ne.s32.totalorder %s33, %s36
    %p45 = scmp.eq.s32.totalorder %s16, 1
    %p46 = por %p44, %p45
    %p47 = scmp.ne.s32.totalorder %s36, %s37
    %p48 = scmp.eq.s32.totalorder %s16, 0
    %p49 = por %p47, %p48
    %p50 = scmp.ne.s32.totalorder %s36, %s37
    %p51 = scmp.eq.s32.totalorder %s17, 1
    %p52 = por %p50, %p51
    %p54 = scmp.ne.s32.totalorder %s37, %s53
    %p55 = scmp.eq.s32.totalorder %s17, 0
    %p56 = por %p54, %p55
    %s58 = sadd.s32 %s57, 1
    %p61 = scmp.eq.s32.totalorder %s11, 1
    %p62 = scmp.ne.s32.totalorder %s57, %s59
    %p63 = scmp.eq.s32.totalorder %s11, 0
    %p64 = por %p62, %p63
    %p65 = scmp.ne.s32.totalorder %s57, %s59
    %p66 = scmp.eq.s32.totalorder %s16, 1
    %p67 = por %p65, %p66
    %p68 = scmp.ne.s32.totalorder %s59, %s60
    %p69 = scmp.eq.s32.totalorder %s16, 0
    %p70 = por %p68, %p69
    %p71 = scmp.ne.s32.totalorder %s59, %s60
    %p72 = scmp.eq.s32.totalorder %s17, 1
    %p73 = por %p71, %p72
    %p75 = scmp.ne.s32.totalorder %s60, %s74
    %p76 = scmp.eq.s32.totalorder %s17, 0
    %p77 = por %p75, %p76
    %s79 = sadd.s32 %s78, 1
    %p82 = scmp.eq.s32.totalorder %s11, 1
    %p83 = scmp.ne.s32.totalorder %s78, %s80
    %p84 = scmp.eq.s32.totalorder %s11, 0
    %p85 = por %p83, %p84
    %p86 = scmp.ne.s32.totalorder %s78, %s80
    %p87 = scmp.eq.s32.totalorder %s16, 1
    %p88 = por %p86, %p87
    %p89 = scmp.ne.s32.totalorder %s80, %s81
    %p90 = scmp.eq.s32.totalorder %s16, 0
    %p91 = por %p89, %p90
    %p92 = scmp.ne.s32.totalorder %s80, %s81
    %p93 = scmp.eq.s32.totalorder %s17, 1
    %p94 = por %p92, %p93
    %p96 = scmp.ne.s32.totalorder %s81, %s95
    %p97 = scmp.eq.s32.totalorder %s17, 0
    %p98 = por %p96, %p97
    %s99 = ssub.s32 %s18, %s30
    %s100 = ssub.s32 %s19, %s26
    %s101 = sor.u32 %s99, %s100
    %p102 = scmp.eq.s32.totalorder %s101, 0
    %s104 = sadd.s32 %s103, 1
    %s105 = scalar_select %p102, %s103, %s104
    %p108 = pneg %p102
    %p109 = scmp.eq.s32.totalorder %s11, 1
    %p110 = por %p108, %p109
    %p111 = scmp.ne.s32.totalorder %s103, %s106
    %p112 = scmp.eq.s32.totalorder %s11, 0
    %p113 = por %p111, %p112
    %p114 = scmp.ne.s32.totalorder %s103, %s106
    %p115 = scmp.eq.s32.totalorder %s16, 1
    %p116 = por %p114, %p115
    %p117 = scmp.ne.s32.totalorder %s106, %s107
    %p118 = scmp.eq.s32.totalorder %s16, 0
    %p119 = por %p117, %p118
    %p120 = scmp.ne.s32.totalorder %s106, %s107
    %p121 = scmp.eq.s32.totalorder %s17, 1
    %p122 = por %p120, %p121
    %p124 = scmp.ne.s32.totalorder %s107, %s123
    %p125 = scmp.eq.s32.totalorder %s17, 0
    %p126 = por %p124, %p125
    %p127 = scmp.le.s32.totalorder 1, %s11
    %p128 = scmp.lt.s32.totalorder %s11, 3
    %p129 = pnand %p127, %p128
    %p130 = pneg %p129
    // Predicated region
    $region9: #{_lambda_.37} parent=5 // pred_check
      _
    $region10: #{_lambda_.37} parent=5 // pred_check_branch
      %132 = sbr.rel (%p129) target = $region12
    $region11: #{_lambda_.37} parent=5 // pred_region
      %s133 = ssub.s32 %s11, 1
      // Predicated region
      $region13: #{_lambda_.37} parent=11 // pred_check
        %p134 = pneg %p70
      $region14: #{_lambda_.37} parent=11 // pred_check_branch
        %136 = sbr.rel (%p134) target = $region16
      $region15: #{_lambda_.37} parent=11 // pred_region
        _
      $region16: #{_lambda_.37} parent=11 // pred_fallthru
        _
      // Predicated region
      $region17: #{_lambda_.37} parent=11 // pred_check
        %p137 = pneg %p91
      $region18: #{_lambda_.37} parent=11 // pred_check_branch
        %139 = sbr.rel (%p137) target = $region20
      $region19: #{_lambda_.37} parent=11 // pred_region
        _
      $region20: #{_lambda_.37} parent=11 // pred_fallthru
        _
    $region12: #{_lambda_.37} parent=5 // pred_fallthru
      _
    %p140 = scmp.lt.s32.totalorder %s11, 2
    // Predicated region
    $region21: #{_lambda_.37} parent=5 // pred_check
      %p141 = pneg %p140
    $region22: #{_lambda_.37} parent=5 // pred_check_branch
      %143 = sbr.rel (%p141) target = $region24
    $region23: #{_lambda_.37} parent=5 // pred_region
      // Predicated region
      $region25: #{_lambda_.37} parent=23 // pred_check
        %p144 = pneg %p43
      $region26: #{_lambda_.37} parent=23 // pred_check_branch
        %146 = sbr.rel (%p144) target = $region28
      $region27: #{_lambda_.37} parent=23 // pred_region
        %p147 = scmp.lt.s32.totalorder %s18, 1
        %s148 = scalar_select %p147, %s18, 1
        %s149 = smul.addr %s148, 4
        %s150 = scalar_lea.vmem %s0, %s149
      $region28: #{_lambda_.37} parent=23 // pred_fallthru
        _
    $region24: #{_lambda_.37} parent=5 // pred_fallthru
      _
    %p151 = scmp.le.s32.totalorder 1, %s11
    %p152 = scmp.lt.s32.totalorder %s11, 3
    %p153 = pnand %p151, %p152
    %p154 = pneg %p153
    // Predicated region
    $region29: #{_lambda_.37} parent=5 // pred_check
      _
    $region30: #{_lambda_.37} parent=5 // pred_check_branch
      %156 = sbr.rel (%p153) target = $region32
    $region31: #{_lambda_.37} parent=5 // pred_region
      %s157 = ssub.s32 %s11, 1
      %p158 = scmp.lt.s32.totalorder %s20, 1
      %s159 = scalar_select %p158, %s20, 1
      %s160 = smul.addr %s159, 4
      %s161 = scalar_lea.vmem %s0, %s160
      %p162 = pneg %p49
      %p163 = pneg %p46
      %p164 = pneg %p70
      %p165 = pneg %p67
      %p166 = pneg %p91
      %p167 = pneg %p88
      %p168 = pneg %p119
      %p169 = pneg %p116
      %p170 = scmp.lt.s32.totalorder %s20, 1
      %s171 = scalar_select %p170, %s20, 1
      %p172 = scmp.lt.s32.totalorder %s21, 0
      %s173 = scalar_select %p172, %s21, 0
      %s174 = sadd.s32 %s173, %s171
      %s175 = scalar_lea.vmem %s3, %s174
      %p176 = scmp.lt.s32.totalorder %s20, 1
      %s177 = scalar_select %p176, %s20, 1
      %s178 = smul.addr %s177, 4
      %s179 = scalar_lea.vmem %s0, %s178
      %p180 = scmp.lt.s32.totalorder %s20, 1
      %s181 = scalar_select %p180, %s20, 1
      %p182 = scmp.lt.s32.totalorder %s21, 0
      %s183 = scalar_select %p182, %s21, 0
      %s184 = sadd.s32 %s183, %s181
      %s185 = scalar_lea.vmem %s3, %s184
      %v187 = vld [vmem:[%s179] sm:$0xf]
      %v189 = vunpack.c.l.b16 %v187
      %v190 = vpack.c.b16 %v189, %v189
      %191 = vrot.lane.b32.xlu0 %v190, 126
      %v192 = vpop.permute.xlu0 %191
      %193 = vrot.lane.b32.xlu0 %v190, 124
      %v194 = vpop.permute.xlu0 %193
      %vm195 = vcmask 1043456
      %v198 = vsel %vm195, %v187, %v192
      %v200 = vld [vmem:[%s1] sm:$0x1]
      %v201 = vld [vmem:[#allocation2] sm:$0x1]
      %203 = vset.pattern.permute.xlu0 0
      %204 = vperm.xlu0 %203, %v201
      %v205 = vpop.permute.xlu0 %204
      %v207 = vlaneseq
      %v208 = vshrl.u32 %v207, 7
      %v209 = vsub.s32 0, %v208
      %v210 = vrot.slane %v205, %v209
      %vm211 = vcmask 195584
      %v213 = vsel %vm211, %v200, 0
      %v216 = vsel %vm195, %v194, 0
      %218 = vmatprep.subr.bf16.mxu0 0
      %219 = vmatpush1.bf16.msra.mxu0 %v198
      %220 = vmatprep.subr.bf16.mxu0 0
      %221 = vmatpush1.bf16.msra.mxu0 %v216
      %222 = vmatprep.subr.bf16.mxu0 0
      %223 = vmatpush1.bf16.msra.mxu0 0
      %224 = vmatprep.subr.bf16.mxu0 0
      %225 = vmatpush1.bf16.msra.mxu0 0
      %226 = vmatprep.subr.bf16.mxu0 0
      %227 = vmatpush1.bf16.msra.mxu0 0
      %228 = vmatprep.subr.bf16.mxu0 0
      %229 = vmatpush1.bf16.msra.mxu0 0
      %230 = vmatprep.subr.bf16.mxu0 0
      %231 = vmatpush1.bf16.msra.mxu0 0
      %232 = vmatprep.subr.bf16.mxu0 0
      %233 = vmatpush1.bf16.msra.mxu0 0
      %234 = vmatprep.subr.bf16.mxu0 0
      %235 = vmatpush1.bf16.msra.mxu0 0
      %236 = vmatprep.subr.bf16.mxu0 0
      %237 = vmatpush1.bf16.msra.mxu0 0
      %238 = vmatprep.subr.bf16.mxu0 0
      %239 = vmatpush1.bf16.msra.mxu0 0
      %240 = vmatprep.subr.bf16.mxu0 0
      %241 = vmatpush1.bf16.msra.mxu0 0
      %242 = vmatprep.subr.bf16.mxu0 0
      %243 = vmatpush1.bf16.msra.mxu0 0
      %244 = vmatprep.subr.bf16.mxu0 0
      %245 = vmatpush1.bf16.msra.mxu0 0
      %246 = vmatprep.subr.bf16.mxu0 0
      %247 = vmatpush1.bf16.msra.mxu0 0
      %248 = vmatprep.subr.bf16.mxu0 0
      %249 = vmatpush1.bf16.msra.mxu0 0
      %250 = vmatprep.mubr.bf16.mxu0 0
      %251 = vmatmul.mubr.bf16.gmra.mrb[0].mxu0 %v213
      %v252 = vpop.f32.mrb[0].mxu0
      %v253 = vadd.f32 %v210, %v252
      %v254 = vpop.f32.mrb[0].mxu0
      %v255 = vpop.f32.mrb[0].mxu0
      %v256 = vpop.f32.mrb[0].mxu0
      %257 = vdwg.mxu0
      %v258 = vpack.c.bf16 %v253, %v253
      %vm259 = vcmask 24576
      %vm260 = vsmask.f32 256
      %vm261 = vmand %vm259, %vm260
      %v262 = vld [vmem:[%s185] sm:$0x1]
      %v263 = vsel %vm261, %v258, %v262
      %264 = vst [vmem:[%s185] sm:$0x1] %v263
      %p265 = scmp.lt.s32.totalorder %s20, 1
      %s266 = scalar_select %p265, %s20, 1
      %p267 = scmp.lt.s32.totalorder %s21, 0
      %s268 = scalar_select %p267, %s21, 0
      %s269 = sadd.s32 %s268, %s266
      %s270 = scalar_lea.vmem %s3, %s269
      // Predicated region
      $region33: #{_lambda_.37} parent=31 // pred_check
        %p271 = pneg %p116
      $region34: #{_lambda_.37} parent=31 // pred_check_branch
        %273 = sbr.rel (%p271) target = $region36
      $region35: #{_lambda_.37} parent=31 // pred_region
        _
      $region36: #{_lambda_.37} parent=31 // pred_fallthru
        _
    $region32: #{_lambda_.37} parent=5 // pred_fallthru
      _
    %p274 = scmp.le.s32.totalorder 2, %s11
    // Predicated region
    $region37: #{_lambda_.37} parent=5 // pred_check
      %p275 = pneg %p274
    $region38: #{_lambda_.37} parent=5 // pred_check_branch
      %277 = sbr.rel (%p275) target = $region40
    $region39: #{_lambda_.37} parent=5 // pred_region
      %s278 = ssub.s32 %s11, 2
      // Predicated region
      $region41: #{_lambda_.37} parent=39 // pred_check
        %p279 = pneg %p122
      $region42: #{_lambda_.37} parent=39 // pred_check_branch
        %281 = sbr.rel (%p279) target = $region44
      $region43: #{_lambda_.37} parent=39 // pred_region
        %p282 = scmp.lt.s32.totalorder %s22, 1
        %s283 = scalar_select %p282, %s22, 1
        %p284 = scmp.lt.s32.totalorder %s23, 0
        %s285 = scalar_select %p284, %s23, 0
        %s286 = sadd.s32 %s285, %s283
        %s287 = scalar_lea.vmem %s3, %s286
      $region44: #{_lambda_.37} parent=39 // pred_fallthru
        _
    $region40: #{_lambda_.37} parent=5 // pred_fallthru
      _
  $region6: #{_lambda_.37} parent=0 // loop_footer
    %s15 = sadd.s32 1, %s11
  $region7: #{_lambda_.37} parent=0 // loop_footer_branch
    %10 = sbr.rel target = $region3
  $region8: #{_lambda_.37} parent=0 // loop_exit
    _

// kernel: _lambda_.38
$region0: #{_lambda_.38}
  #allocation0 [shape = 'u32[]', space=smem, size = 0x4, offset = 0x4, fixed_abs, tag = 'smem constant byte address 0x4 - core index']
  #allocation1 [shape = 'u32[144,128]{1,0:T(1,128)}', space=vmem, size = 0x12000, scoped, tag = 'internal scratch']
  %s0 = inlined_call_operand.vmem [shape: bf16[2,1,45], index: 0, kind: input, shape index: {}]
  %s1 = inlined_call_operand.vmem [shape: bf16[4,5], index: 1, kind: input, shape index: {}]
  %s2 = inlined_call_operand.vmem [shape: f32[4,1], index: 2, kind: input, shape index: {}]
  %s3 = inlined_call_operand.vmem [shape: bf16[2,4,33], index: 3, kind: output, shape index: {}]
  %s4 = sld [smem:[#allocation0]]
  $region45: #{_lambda_.38} parent=0
    _
  %s6 = ssub.s32 1, %s4
  %s7 = scalar_select 0, %s6, %s4
  loop: start=0, step=1, limit=4
  $region2: #{_lambda_.38} parent=0 // loop_pre_header
    _
  $region3: #{_lambda_.38} parent=0 // loop_header
    %s9 = sphi 0, %s13
    %p10 = scmp.ge.s32.totalorder %s9, 4
    %s16 = sphi 0, %s28
    %s17 = sphi 0, %s24
    %s18 = sphi 0, %s16
    %s19 = sphi 0, %s17
    %s20 = sphi 0, %s18
    %s21 = sphi 0, %s19
    %s31 = sphi 0, %s33
    %s34 = sphi 0, %s31
    %s35 = sphi 0, %s34
    %s51 = sphi 0, %s35
    %s55 = sphi 0, %s55
    %s57 = sphi 0, %s55
    %s58 = sphi 0, %s57
    %s72 = sphi 0, %s58
    %s76 = sphi 0, %s76
    %s78 = sphi 0, %s76
    %s79 = sphi 0, %s78
    %s93 = sphi 0, %s79
    %s101 = sphi 0, %s103
    %s104 = sphi 0, %s101
    %s105 = sphi 0, %s104
    %s121 = sphi 0, %s105
  $region4: #{_lambda_.38} parent=0 // loop_header_branch
    %12 = sbr.rel (%p10) target = $region8
  $region5: #{_lambda_.38} parent=0 // loop_body
    %s14 = ssub.s32 %s9, 1
    %s15 = ssub.s32 %s9, 2
    %s22 = sadd.s32 1, %s17
    %p23 = scmp.ge.s32.totalorder %s22, 1
    %s24 = scalar_select %p23, 0, %s22
    %s25 = sadd.s32 1, %s16
    %s26 = scalar_select %p23, %s25, %s16
    %p27 = scmp.ge.s32.totalorder %s26, 2
    %s28 = scalar_select %p27, 0, %s26
    %s29 = ssub.s32 %s16, %s28
    %p30 = scmp.eq.s32.totalorder %s29, 0
    %s32 = sadd.s32 %s31, 1
    %s33 = scalar_select %p30, %s31, %s32
    %p36 = pneg %p30
    %p37 = scmp.eq.s32.totalorder %s9, 1
    %p38 = por %p36, %p37
    %p39 = scmp.ne.s32.totalorder %s31, %s34
    %p40 = scmp.eq.s32.totalorder %s9, 0
    %p41 = por %p39, %p40
    %p42 = scmp.ne.s32.totalorder %s31, %s34
    %p43 = scmp.eq.s32.totalorder %s14, 1
    %p44 = por %p42, %p43
    %p45 = scmp.ne.s32.totalorder %s34, %s35
    %p46 = scmp.eq.s32.totalorder %s14, 0
    %p47 = por %p45, %p46
    %p48 = scmp.ne.s32.totalorder %s34, %s35
    %p49 = scmp.eq.s32.totalorder %s15, 1
    %p50 = por %p48, %p49
    %p52 = scmp.ne.s32.totalorder %s35, %s51
    %p53 = scmp.eq.s32.totalorder %s15, 0
    %p54 = por %p52, %p53
    %s56 = sadd.s32 %s55, 1
    %p59 = scmp.eq.s32.totalorder %s9, 1
    %p60 = scmp.ne.s32.totalorder %s55, %s57
    %p61 = scmp.eq.s32.totalorder %s9, 0
    %p62 = por %p60, %p61
    %p63 = scmp.ne.s32.totalorder %s55, %s57
    %p64 = scmp.eq.s32.totalorder %s14, 1
    %p65 = por %p63, %p64
    %p66 = scmp.ne.s32.totalorder %s57, %s58
    %p67 = scmp.eq.s32.totalorder %s14, 0
    %p68 = por %p66, %p67
    %p69 = scmp.ne.s32.totalorder %s57, %s58
    %p70 = scmp.eq.s32.totalorder %s15, 1
    %p71 = por %p69, %p70
    %p73 = scmp.ne.s32.totalorder %s58, %s72
    %p74 = scmp.eq.s32.totalorder %s15, 0
    %p75 = por %p73, %p74
    %s77 = sadd.s32 %s76, 1
    %p80 = scmp.eq.s32.totalorder %s9, 1
    %p81 = scmp.ne.s32.totalorder %s76, %s78
    %p82 = scmp.eq.s32.totalorder %s9, 0
    %p83 = por %p81, %p82
    %p84 = scmp.ne.s32.totalorder %s76, %s78
    %p85 = scmp.eq.s32.totalorder %s14, 1
    %p86 = por %p84, %p85
    %p87 = scmp.ne.s32.totalorder %s78, %s79
    %p88 = scmp.eq.s32.totalorder %s14, 0
    %p89 = por %p87, %p88
    %p90 = scmp.ne.s32.totalorder %s78, %s79
    %p91 = scmp.eq.s32.totalorder %s15, 1
    %p92 = por %p90, %p91
    %p94 = scmp.ne.s32.totalorder %s79, %s93
    %p95 = scmp.eq.s32.totalorder %s15, 0
    %p96 = por %p94, %p95
    %s97 = ssub.s32 %s16, %s28
    %s98 = ssub.s32 %s17, %s24
    %s99 = sor.u32 %s97, %s98
    %p100 = scmp.eq.s32.totalorder %s99, 0
    %s102 = sadd.s32 %s101, 1
    %s103 = scalar_select %p100, %s101, %s102
    %p106 = pneg %p100
    %p107 = scmp.eq.s32.totalorder %s9, 1
    %p108 = por %p106, %p107
    %p109 = scmp.ne.s32.totalorder %s101, %s104
    %p110 = scmp.eq.s32.totalorder %s9, 0
    %p111 = por %p109, %p110
    %p112 = scmp.ne.s32.totalorder %s101, %s104
    %p113 = scmp.eq.s32.totalorder %s14, 1
    %p114 = por %p112, %p113
    %p115 = scmp.ne.s32.totalorder %s104, %s105
    %p116 = scmp.eq.s32.totalorder %s14, 0
    %p117 = por %p115, %p116
    %p118 = scmp.ne.s32.totalorder %s104, %s105
    %p119 = scmp.eq.s32.totalorder %s15, 1
    %p120 = por %p118, %p119
    %p122 = scmp.ne.s32.totalorder %s105, %s121
    %p123 = scmp.eq.s32.totalorder %s15, 0
    %p124 = por %p122, %p123
    %p125 = scmp.le.s32.totalorder 1, %s9
    %p126 = scmp.lt.s32.totalorder %s9, 3
    %p127 = pnand %p125, %p126
    %p128 = pneg %p127
    // Predicated region
    $region9: #{_lambda_.38} parent=5 // pred_check
      _
    $region10: #{_lambda_.38} parent=5 // pred_check_branch
      %130 = sbr.rel (%p127) target = $region12
    $region11: #{_lambda_.38} parent=5 // pred_region
      %s131 = ssub.s32 %s9, 1
      // Predicated region
      $region13: #{_lambda_.38} parent=11 // pred_check
        %p132 = pneg %p68
      $region14: #{_lambda_.38} parent=11 // pred_check_branch
        %134 = sbr.rel (%p132) target = $region16
      $region15: #{_lambda_.38} parent=11 // pred_region
        _
      $region16: #{_lambda_.38} parent=11 // pred_fallthru
        _
      // Predicated region
      $region17: #{_lambda_.38} parent=11 // pred_check
        %p135 = pneg %p89
      $region18: #{_lambda_.38} parent=11 // pred_check_branch
        %137 = sbr.rel (%p135) target = $region20
      $region19: #{_lambda_.38} parent=11 // pred_region
        _
      $region20: #{_lambda_.38} parent=11 // pred_fallthru
        _
    $region12: #{_lambda_.38} parent=5 // pred_fallthru
      _
    %p138 = scmp.lt.s32.totalorder %s9, 2
    // Predicated region
    $region21: #{_lambda_.38} parent=5 // pred_check
      %p139 = pneg %p138
    $region22: #{_lambda_.38} parent=5 // pred_check_branch
      %141 = sbr.rel (%p139) target = $region24
    $region23: #{_lambda_.38} parent=5 // pred_region
      // Predicated region
      $region25: #{_lambda_.38} parent=23 // pred_check
        %p142 = pneg %p41
      $region26: #{_lambda_.38} parent=23 // pred_check_branch
        %144 = sbr.rel (%p142) target = $region28
      $region27: #{_lambda_.38} parent=23 // pred_region
        %p145 = scmp.lt.s32.totalorder %s16, 1
        %s146 = scalar_select %p145, %s16, 1
        %s147 = scalar_lea.vmem %s0, %s146
      $region28: #{_lambda_.38} parent=23 // pred_fallthru
        _
    $region24: #{_lambda_.38} parent=5 // pred_fallthru
      _
    %p148 = scmp.le.s32.totalorder 1, %s9
    %p149 = scmp.lt.s32.totalorder %s9, 3
    %p150 = pnand %p148, %p149
    %p151 = pneg %p150
    // Predicated region
    $region29: #{_lambda_.38} parent=5 // pred_check
      _
    $region30: #{_lambda_.38} parent=5 // pred_check_branch
      %153 = sbr.rel (%p150) target = $region32
    $region31: #{_lambda_.38} parent=5 // pred_region
      %s154 = ssub.s32 %s9, 1
      %p155 = scmp.lt.s32.totalorder %s18, 1
      %s156 = scalar_select %p155, %s18, 1
      %s157 = scalar_lea.vmem %s0, %s156
      %p158 = pneg %p47
      %p159 = pneg %p44
      %p160 = pneg %p68
      %p161 = pneg %p65
      %p162 = pneg %p89
      %p163 = pneg %p86
      %p164 = pneg %p117
      %p165 = pneg %p114
      %p166 = scmp.lt.s32.totalorder %s18, 1
      %s167 = scalar_select %p166, %s18, 1
      %p168 = scmp.lt.s32.totalorder %s19, 0
      %s169 = scalar_select %p168, %s19, 0
      %s170 = sadd.s32 %s169, %s167
      %s171 = smul.addr %s170, 2
      %s172 = scalar_lea.vmem %s3, %s171
      %p173 = scmp.lt.s32.totalorder %s18, 1
      %s174 = scalar_select %p173, %s18, 1
      %s175 = scalar_lea.vmem %s0, %s174
      %p176 = scmp.lt.s32.totalorder %s18, 1
      %s177 = scalar_select %p176, %s18, 1
      %p178 = scmp.lt.s32.totalorder %s19, 0
      %s179 = scalar_select %p178, %s19, 0
      %s180 = sadd.s32 %s179, %s177
      %s181 = smul.addr %s180, 2
      %s182 = scalar_lea.vmem %s3, %s181
      %v184 = vld [vmem:[%s175] sm:$0x1]
      %v187 = vunpack.c.l.s4 1966171168
      %v188 = vunpack.c.0.s8 %v187
      %v189 = vlaneseq
      %v190 = vshrl.u32 %v189, 7
      %v191 = vsub.s32 %v188, %v190
      %v192 = vrot.slane %v184, %v191
      %v194 = vunpack.c.l.s4 1966171168
      %v195 = vunpack.c.0.s8 %v194
      %v196 = vlaneseq
      %v197 = vshrl.u32 %v196, 7
      %v198 = vsub.s32 %v195, %v197
      %v199 = vrot.slane %v192, %v198
      %v201 = vshll.u32 %v199, 16
      %203 = vrot.lane.b32.xlu0 %v201, 125
      %v204 = vpop.permute.xlu0 %203
      %v206 = vcombine.low %v184, %v184
      %v208 = vunpack.c.l.s4 1966171168
      %v209 = vunpack.c.0.s8 %v208
      %v210 = vlaneseq
      %v211 = vshrl.u32 %v210, 7
      %v212 = vsub.s32 %v209, %v211
      %v213 = vrot.slane %v206, %v212
      %v215 = vunpack.c.l.s4 1966171168
      %v216 = vunpack.c.0.s8 %v215
      %v217 = vlaneseq
      %v218 = vshrl.u32 %v217, 7
      %v219 = vsub.s32 %v216, %v218
      %v220 = vrot.slane %v213, %v219
      %221 = vrot.lane.b32.xlu0 %v220, 122
      %v222 = vpop.permute.xlu0 %221
      %v223 = vrot.slane %v201, 7
      %224 = vrot.lane.b32.xlu0 %v223, 119
      %v225 = vpop.permute.xlu0 %224
      %v227 = vcombine.low %v192, %v192
      %v229 = vunpack.c.l.s4 1966171168
      %v230 = vunpack.c.0.s8 %v229
      %v231 = vlaneseq
      %v232 = vshrl.u32 %v231, 7
      %v233 = vsub.s32 %v230, %v232
      %v234 = vrot.slane %v227, %v233
      %235 = vrot.lane.b32.xlu0 %v234, 116
      %v236 = vpop.permute.xlu0 %235
      %vm237 = vcmask 1040384
      %vm238 = vsmask.f32 256
      %vm239 = vmand %vm237, %vm238
      %v240 = vsel %vm239, %v184, %v204
      %vm241 = vcmask 1040384
      %v244 = vsel %vm241, %v240, %v222
      %vm246 = vcmask 1041408
      %vm247 = vsmask.f32 1280
      %vm248 = vmand %vm246, %vm247
      %v249 = vsel %vm248, %v244, %v225
      %vm250 = vcmask 1041408
      %v253 = vsel %vm250, %v249, %v236
      %v254 = vld [vmem:[%s1] sm:$0x3]
      %v255 = vld [vmem:[%s2] sm:$0xf]
      %257 = vset.pattern.permute.xlu0 0
      %258 = vperm.xlu0 %257, %v255
      %v259 = vpop.permute.xlu0 %258
      %vm261 = vcmask 39936
      %v263 = vsel %vm261, %v254, 0
      %vm265 = vcmask 1042432
      %v266 = vsel %vm250, 4294967295, 65535
      %v267 = vsel %vm265, %v266, 0
      %v268 = vand.u32 %v253, %v267
      %270 = vmatprep.subr.bf16.mxu0 0
      %271 = vmatpush1.bf16.msra.mxu0 %v268
      %272 = vmatprep.subr.bf16.mxu0 0
      %273 = vmatpush1.bf16.msra.mxu0 0
      %274 = vmatprep.subr.bf16.mxu0 0
      %275 = vmatpush1.bf16.msra.mxu0 0
      %276 = vmatprep.subr.bf16.mxu0 0
      %277 = vmatpush1.bf16.msra.mxu0 0
      %278 = vmatprep.subr.bf16.mxu0 0
      %279 = vmatpush1.bf16.msra.mxu0 0
      %280 = vmatprep.subr.bf16.mxu0 0
      %281 = vmatpush1.bf16.msra.mxu0 0
      %282 = vmatprep.subr.bf16.mxu0 0
      %283 = vmatpush1.bf16.msra.mxu0 0
      %284 = vmatprep.subr.bf16.mxu0 0
      %285 = vmatpush1.bf16.msra.mxu0 0
      %286 = vmatprep.subr.bf16.mxu0 0
      %287 = vmatpush1.bf16.msra.mxu0 0
      %288 = vmatprep.subr.bf16.mxu0 0
      %289 = vmatpush1.bf16.msra.mxu0 0
      %290 = vmatprep.subr.bf16.mxu0 0
      %291 = vmatpush1.bf16.msra.mxu0 0
      %292 = vmatprep.subr.bf16.mxu0 0
      %293 = vmatpush1.bf16.msra.mxu0 0
      %294 = vmatprep.subr.bf16.mxu0 0
      %295 = vmatpush1.bf16.msra.mxu0 0
      %296 = vmatprep.subr.bf16.mxu0 0
      %297 = vmatpush1.bf16.msra.mxu0 0
      %298 = vmatprep.subr.bf16.mxu0 0
      %299 = vmatpush1.bf16.msra.mxu0 0
      %300 = vmatprep.subr.bf16.mxu0 0
      %301 = vmatpush1.bf16.msra.mxu0 0
      %302 = vmatprep.mubr.bf16.mxu0 0
      %303 = vmatmul.mubr.bf16.gmra.mrb[0].mxu0 %v263
      %v304 = vpop.f32.mrb[0].mxu0
      %v305 = vadd.f32 %v259, %v304
      %v306 = vpop.f32.mrb[0].mxu0
      %v307 = vpop.f32.mrb[0].mxu0
      %v308 = vpop.f32.mrb[0].mxu0
      %309 = vdwg.mxu0
      %v310 = vmul.f32 %v305, 0.1
      %v311 = vmax.f32 %v305, %v310
      %v312 = vpack.c.bf16 %v311, %v311
      %vm313 = vcmask 263168
      %314 = vst.msk [vmem:[%s182] sm:$0x3] %vm313, %v312
      %p315 = scmp.lt.s32.totalorder %s18, 1
      %s316 = scalar_select %p315, %s18, 1
      %p317 = scmp.lt.s32.totalorder %s19, 0
      %s318 = scalar_select %p317, %s19, 0
      %s319 = sadd.s32 %s318, %s316
      %s320 = smul.addr %s319, 2
      %s321 = scalar_lea.vmem %s3, %s320
      // Predicated region
      $region33: #{_lambda_.38} parent=31 // pred_check
        %p322 = pneg %p114
      $region34: #{_lambda_.38} parent=31 // pred_check_branch
        %324 = sbr.rel (%p322) target = $region36
      $region35: #{_lambda_.38} parent=31 // pred_region
        _
      $region36: #{_lambda_.38} parent=31 // pred_fallthru
        _
    $region32: #{_lambda_.38} parent=5 // pred_fallthru
      _
    %p325 = scmp.le.s32.totalorder 2, %s9
    // Predicated region
    $region37: #{_lambda_.38} parent=5 // pred_check
      %p326 = pneg %p325
    $region38: #{_lambda_.38} parent=5 // pred_check_branch
      %328 = sbr.rel (%p326) target = $region40
    $region39: #{_lambda_.38} parent=5 // pred_region
      %s329 = ssub.s32 %s9, 2
      // Predicated region
      $region41: #{_lambda_.38} parent=39 // pred_check
        %p330 = pneg %p120
      $region42: #{_lambda_.38} parent=39 // pred_check_branch
        %332 = sbr.rel (%p330) target = $region44
      $region43: #{_lambda_.38} parent=39 // pred_region
        %p333 = scmp.lt.s32.totalorder %s20, 1
        %s334 = scalar_select %p333, %s20, 1
        %p335 = scmp.lt.s32.totalorder %s21, 0
        %s336 = scalar_select %p335, %s21, 0
        %s337 = sadd.s32 %s336, %s334
        %s338 = smul.addr %s337, 2
        %s339 = scalar_lea.vmem %s3, %s338
      $region44: #{_lambda_.38} parent=39 // pred_fallthru
        _
    $region40: #{_lambda_.38} parent=5 // pred_fallthru
      _
  $region6: #{_lambda_.38} parent=0 // loop_footer
    %s13 = sadd.s32 1, %s9
  $region7: #{_lambda_.38} parent=0 // loop_footer_branch
    %8 = sbr.rel target = $region3
  $region8: #{_lambda_.38} parent=0 // loop_exit
    _

// kernel: _lambda_.40
$region0: #{_lambda_.40}
  #allocation0 [shape = 'u32[]', space=smem, size = 0x4, offset = 0x4, fixed_abs, tag = 'smem constant byte address 0x4 - core index']
  #allocation1 [shape = 'u32[144,128]{1,0:T(1,128)}', space=vmem, size = 0x12000, scoped, tag = 'internal scratch']
  %s0 = inlined_call_operand.vmem [shape: bf16[2,8,18], index: 0, kind: input, shape index: {}]
  %s1 = inlined_call_operand.vmem [shape: bf16[8,40], index: 1, kind: input, shape index: {}]
  %s2 = inlined_call_operand.vmem [shape: f32[8,1], index: 2, kind: input, shape index: {}]
  %s3 = inlined_call_operand.vmem [shape: bf16[2,8,6], index: 3, kind: output, shape index: {}]
  %s4 = sld [smem:[#allocation0]]
  $region45: #{_lambda_.40} parent=0
    _
  %s6 = ssub.s32 1, %s4
  %s7 = scalar_select 0, %s6, %s4
  loop: start=0, step=1, limit=4
  $region2: #{_lambda_.40} parent=0 // loop_pre_header
    _
  $region3: #{_lambda_.40} parent=0 // loop_header
    %s9 = sphi 0, %s13
    %p10 = scmp.ge.s32.totalorder %s9, 4
    %s16 = sphi 0, %s28
    %s17 = sphi 0, %s24
    %s18 = sphi 0, %s16
    %s19 = sphi 0, %s17
    %s20 = sphi 0, %s18
    %s21 = sphi 0, %s19
    %s31 = sphi 0, %s33
    %s34 = sphi 0, %s31
    %s35 = sphi 0, %s34
    %s51 = sphi 0, %s35
    %s55 = sphi 0, %s55
    %s57 = sphi 0, %s55
    %s58 = sphi 0, %s57
    %s72 = sphi 0, %s58
    %s76 = sphi 0, %s76
    %s78 = sphi 0, %s76
    %s79 = sphi 0, %s78
    %s93 = sphi 0, %s79
    %s101 = sphi 0, %s103
    %s104 = sphi 0, %s101
    %s105 = sphi 0, %s104
    %s121 = sphi 0, %s105
  $region4: #{_lambda_.40} parent=0 // loop_header_branch
    %12 = sbr.rel (%p10) target = $region8
  $region5: #{_lambda_.40} parent=0 // loop_body
    %s14 = ssub.s32 %s9, 1
    %s15 = ssub.s32 %s9, 2
    %s22 = sadd.s32 1, %s17
    %p23 = scmp.ge.s32.totalorder %s22, 1
    %s24 = scalar_select %p23, 0, %s22
    %s25 = sadd.s32 1, %s16
    %s26 = scalar_select %p23, %s25, %s16
    %p27 = scmp.ge.s32.totalorder %s26, 2
    %s28 = scalar_select %p27, 0, %s26
    %s29 = ssub.s32 %s16, %s28
    %p30 = scmp.eq.s32.totalorder %s29, 0
    %s32 = sadd.s32 %s31, 1
    %s33 = scalar_select %p30, %s31, %s32
    %p36 = pneg %p30
    %p37 = scmp.eq.s32.totalorder %s9, 1
    %p38 = por %p36, %p37
    %p39 = scmp.ne.s32.totalorder %s31, %s34
    %p40 = scmp.eq.s32.totalorder %s9, 0
    %p41 = por %p39, %p40
    %p42 = scmp.ne.s32.totalorder %s31, %s34
    %p43 = scmp.eq.s32.totalorder %s14, 1
    %p44 = por %p42, %p43
    %p45 = scmp.ne.s32.totalorder %s34, %s35
    %p46 = scmp.eq.s32.totalorder %s14, 0
    %p47 = por %p45, %p46
    %p48 = scmp.ne.s32.totalorder %s34, %s35
    %p49 = scmp.eq.s32.totalorder %s15, 1
    %p50 = por %p48, %p49
    %p52 = scmp.ne.s32.totalorder %s35, %s51
    %p53 = scmp.eq.s32.totalorder %s15, 0
    %p54 = por %p52, %p53
    %s56 = sadd.s32 %s55, 1
    %p59 = scmp.eq.s32.totalorder %s9, 1
    %p60 = scmp.ne.s32.totalorder %s55, %s57
    %p61 = scmp.eq.s32.totalorder %s9, 0
    %p62 = por %p60, %p61
    %p63 = scmp.ne.s32.totalorder %s55, %s57
    %p64 = scmp.eq.s32.totalorder %s14, 1
    %p65 = por %p63, %p64
    %p66 = scmp.ne.s32.totalorder %s57, %s58
    %p67 = scmp.eq.s32.totalorder %s14, 0
    %p68 = por %p66, %p67
    %p69 = scmp.ne.s32.totalorder %s57, %s58
    %p70 = scmp.eq.s32.totalorder %s15, 1
    %p71 = por %p69, %p70
    %p73 = scmp.ne.s32.totalorder %s58, %s72
    %p74 = scmp.eq.s32.totalorder %s15, 0
    %p75 = por %p73, %p74
    %s77 = sadd.s32 %s76, 1
    %p80 = scmp.eq.s32.totalorder %s9, 1
    %p81 = scmp.ne.s32.totalorder %s76, %s78
    %p82 = scmp.eq.s32.totalorder %s9, 0
    %p83 = por %p81, %p82
    %p84 = scmp.ne.s32.totalorder %s76, %s78
    %p85 = scmp.eq.s32.totalorder %s14, 1
    %p86 = por %p84, %p85
    %p87 = scmp.ne.s32.totalorder %s78, %s79
    %p88 = scmp.eq.s32.totalorder %s14, 0
    %p89 = por %p87, %p88
    %p90 = scmp.ne.s32.totalorder %s78, %s79
    %p91 = scmp.eq.s32.totalorder %s15, 1
    %p92 = por %p90, %p91
    %p94 = scmp.ne.s32.totalorder %s79, %s93
    %p95 = scmp.eq.s32.totalorder %s15, 0
    %p96 = por %p94, %p95
    %s97 = ssub.s32 %s16, %s28
    %s98 = ssub.s32 %s17, %s24
    %s99 = sor.u32 %s97, %s98
    %p100 = scmp.eq.s32.totalorder %s99, 0
    %s102 = sadd.s32 %s101, 1
    %s103 = scalar_select %p100, %s101, %s102
    %p106 = pneg %p100
    %p107 = scmp.eq.s32.totalorder %s9, 1
    %p108 = por %p106, %p107
    %p109 = scmp.ne.s32.totalorder %s101, %s104
    %p110 = scmp.eq.s32.totalorder %s9, 0
    %p111 = por %p109, %p110
    %p112 = scmp.ne.s32.totalorder %s101, %s104
    %p113 = scmp.eq.s32.totalorder %s14, 1
    %p114 = por %p112, %p113
    %p115 = scmp.ne.s32.totalorder %s104, %s105
    %p116 = scmp.eq.s32.totalorder %s14, 0
    %p117 = por %p115, %p116
    %p118 = scmp.ne.s32.totalorder %s104, %s105
    %p119 = scmp.eq.s32.totalorder %s15, 1
    %p120 = por %p118, %p119
    %p122 = scmp.ne.s32.totalorder %s105, %s121
    %p123 = scmp.eq.s32.totalorder %s15, 0
    %p124 = por %p122, %p123
    %p125 = scmp.le.s32.totalorder 1, %s9
    %p126 = scmp.lt.s32.totalorder %s9, 3
    %p127 = pnand %p125, %p126
    %p128 = pneg %p127
    // Predicated region
    $region9: #{_lambda_.40} parent=5 // pred_check
      _
    $region10: #{_lambda_.40} parent=5 // pred_check_branch
      %130 = sbr.rel (%p127) target = $region12
    $region11: #{_lambda_.40} parent=5 // pred_region
      %s131 = ssub.s32 %s9, 1
      // Predicated region
      $region13: #{_lambda_.40} parent=11 // pred_check
        %p132 = pneg %p68
      $region14: #{_lambda_.40} parent=11 // pred_check_branch
        %134 = sbr.rel (%p132) target = $region16
      $region15: #{_lambda_.40} parent=11 // pred_region
        _
      $region16: #{_lambda_.40} parent=11 // pred_fallthru
        _
      // Predicated region
      $region17: #{_lambda_.40} parent=11 // pred_check
        %p135 = pneg %p89
      $region18: #{_lambda_.40} parent=11 // pred_check_branch
        %137 = sbr.rel (%p135) target = $region20
      $region19: #{_lambda_.40} parent=11 // pred_region
        _
      $region20: #{_lambda_.40} parent=11 // pred_fallthru
        _
    $region12: #{_lambda_.40} parent=5 // pred_fallthru
      _
    %p138 = scmp.lt.s32.totalorder %s9, 2
    // Predicated region
    $region21: #{_lambda_.40} parent=5 // pred_check
      %p139 = pneg %p138
    $region22: #{_lambda_.40} parent=5 // pred_check_branch
      %141 = sbr.rel (%p139) target = $region24
    $region23: #{_lambda_.40} parent=5 // pred_region
      // Predicated region
      $region25: #{_lambda_.40} parent=23 // pred_check
        %p142 = pneg %p41
      $region26: #{_lambda_.40} parent=23 // pred_check_branch
        %144 = sbr.rel (%p142) target = $region28
      $region27: #{_lambda_.40} parent=23 // pred_region
        %p145 = scmp.lt.s32.totalorder %s16, 1
        %s146 = scalar_select %p145, %s16, 1
        %s147 = smul.addr %s146, 4
        %s148 = scalar_lea.vmem %s0, %s147
      $region28: #{_lambda_.40} parent=23 // pred_fallthru
        _
    $region24: #{_lambda_.40} parent=5 // pred_fallthru
      _
    %p149 = scmp.le.s32.totalorder 1, %s9
    %p150 = scmp.lt.s32.totalorder %s9, 3
    %p151 = pnand %p149, %p150
    %p152 = pneg %p151
    // Predicated region
    $region29: #{_lambda_.40} parent=5 // pred_check
      _
    $region30: #{_lambda_.40} parent=5 // pred_check_branch
      %154 = sbr.rel (%p151) target = $region32
    $region31: #{_lambda_.40} parent=5 // pred_region
      %s155 = ssub.s32 %s9, 1
      %p156 = scmp.lt.s32.totalorder %s18, 1
      %s157 = scalar_select %p156, %s18, 1
      %s158 = smul.addr %s157, 4
      %s159 = scalar_lea.vmem %s0, %s158
      %p160 = pneg %p47
      %p161 = pneg %p44
      %p162 = pneg %p68
      %p163 = pneg %p65
      %p164 = pneg %p89
      %p165 = pneg %p86
      %p166 = pneg %p117
      %p167 = pneg %p114
      %p168 = scmp.lt.s32.totalorder %s18, 1
      %s169 = scalar_select %p168, %s18, 1
      %p170 = scmp.lt.s32.totalorder %s19, 0
      %s171 = scalar_select %p170, %s19, 0
      %s172 = sadd.s32 %s171, %s169
      %s173 = smul.addr %s172, 4
      %s174 = scalar_lea.vmem %s3, %s173
      %p175 = scmp.lt.s32.totalorder %s18, 1
      %s176 = scalar_select %p175, %s18, 1
      %s177 = smul.addr %s176, 4
      %s178 = scalar_lea.vmem %s0, %s177
      %p179 = scmp.lt.s32.totalorder %s18, 1
      %s180 = scalar_select %p179, %s18, 1
      %p181 = scmp.lt.s32.totalorder %s19, 0
      %s182 = scalar_select %p181, %s19, 0
      %s183 = sadd.s32 %s182, %s180
      %s184 = smul.addr %s183, 4
      %s185 = scalar_lea.vmem %s3, %s184
      %v187 = vld [vmem:[%s178] sm:$0xf]
      %v189 = vunpack.c.l.b16 %v187
      %v190 = vpack.c.b16 %v189, %v189
      %191 = vrot.lane.b32.xlu0 %v190, 125
      %v192 = vpop.permute.xlu0 %191
      %193 = vrot.lane.b32.xlu0 %v190, 122
      %v194 = vpop.permute.xlu0 %193
      %195 = vrot.lane.b32.xlu0 %v190, 119
      %v196 = vpop.permute.xlu0 %195
      %197 = vrot.lane.b32.xlu0 %v190, 116
      %v198 = vpop.permute.xlu0 %197
      %vm199 = vcmask 1043456
      %v202 = vsel %vm199, %v187, %v192
      %v206 = vsel %vm199, %v194, %v196
      %v208 = vld [vmem:[%s1] sm:$0xf]
      %v209 = vld [vmem:[%s2] sm:$0xff]
      %211 = vset.pattern.permute.xlu0 0
      %212 = vperm.xlu0 %211, %v209
      %v213 = vpop.permute.xlu0 %212
      %vm215 = vcmask 326656
      %v217 = vsel %vm215, %v208, 0
      %v220 = vsel %vm199, %v198, 0
      %222 = vmatprep.subr.bf16.mxu0 0
      %223 = vmatpush1.bf16.msra.mxu0 %v202
      %224 = vmatprep.subr.bf16.mxu0 0
      %225 = vmatpush1.bf16.msra.mxu0 %v206
      %226 = vmatprep.subr.bf16.mxu0 0
      %227 = vmatpush1.bf16.msra.mxu0 %v220
      %228 = vmatprep.subr.bf16.mxu0 0
      %229 = vmatpush1.bf16.msra.mxu0 0
      %230 = vmatprep.subr.bf16.mxu0 0
      %231 = vmatpush1.bf16.msra.mxu0 0
      %232 = vmatprep.subr.bf16.mxu0 0
      %233 = vmatpush1.bf16.msra.mxu0 0
      %234 = vmatprep.subr.bf16.mxu0 0
      %235 = vmatpush1.bf16.msra.mxu0 0
      %236 = vmatprep.subr.bf16.mxu0 0
      %237 = vmatpush1.bf16.msra.mxu0 0
      %238 = vmatprep.subr.bf16.mxu0 0
      %239 = vmatpush1.bf16.msra.mxu0 0
      %240 = vmatprep.subr.bf16.mxu0 0
      %241 = vmatpush1.bf16.msra.mxu0 0
      %242 = vmatprep.subr.bf16.mxu0 0
      %243 = vmatpush1.bf16.msra.mxu0 0
      %244 = vmatprep.subr.bf16.mxu0 0
      %245 = vmatpush1.bf16.msra.mxu0 0
      %246 = vmatprep.subr.bf16.mxu0 0
      %247 = vmatpush1.bf16.msra.mxu0 0
      %248 = vmatprep.subr.bf16.mxu0 0
      %249 = vmatpush1.bf16.msra.mxu0 0
      %250 = vmatprep.subr.bf16.mxu0 0
      %251 = vmatpush1.bf16.msra.mxu0 0
      %252 = vmatprep.subr.bf16.mxu0 0
      %253 = vmatpush1.bf16.msra.mxu0 0
      %254 = vmatprep.mubr.bf16.mxu0 0
      %255 = vmatmul.mubr.bf16.gmra.mrb[0].mxu0 %v217
      %v256 = vpop.f32.mrb[0].mxu0
      %v257 = vadd.f32 %v213, %v256
      %v258 = vpop.f32.mrb[0].mxu0
      %v259 = vpop.f32.mrb[0].mxu0
      %v260 = vpop.f32.mrb[0].mxu0
      %261 = vdwg.mxu0
      %v262 = vmul.f32 %v257, 0.1
      %v263 = vmax.f32 %v257, %v262
      %v264 = vpack.c.bf16 %v263, %v263
      %vm265 = vcmask 44032
      %266 = vst.msk [vmem:[%s185] sm:$0xf] %vm265, %v264
      %p267 = scmp.lt.s32.totalorder %s18, 1
      %s268 = scalar_select %p267, %s18, 1
      %p269 = scmp.lt.s32.totalorder %s19, 0
      %s270 = scalar_select %p269, %s19, 0
      %s271 = sadd.s32 %s270, %s268
      %s272 = smul.addr %s271, 4
      %s273 = scalar_lea.vmem %s3, %s272
      // Predicated region
      $region33: #{_lambda_.40} parent=31 // pred_check
        %p274 = pneg %p114
      $region34: #{_lambda_.40} parent=31 // pred_check_branch
        %276 = sbr.rel (%p274) target = $region36
      $region35: #{_lambda_.40} parent=31 // pred_region
        _
      $region36: #{_lambda_.40} parent=31 // pred_fallthru
        _
    $region32: #{_lambda_.40} parent=5 // pred_fallthru
      _
    %p277 = scmp.le.s32.totalorder 2, %s9
    // Predicated region
    $region37: #{_lambda_.40} parent=5 // pred_check
      %p278 = pneg %p277
    $region38: #{_lambda_.40} parent=5 // pred_check_branch
      %280 = sbr.rel (%p278) target = $region40
    $region39: #{_lambda_.40} parent=5 // pred_region
      %s281 = ssub.s32 %s9, 2
      // Predicated region
      $region41: #{_lambda_.40} parent=39 // pred_check
        %p282 = pneg %p120
      $region42: #{_lambda_.40} parent=39 // pred_check_branch
        %284 = sbr.rel (%p282) target = $region44
      $region43: #{_lambda_.40} parent=39 // pred_region
        %p285 = scmp.lt.s32.totalorder %s20, 1
        %s286 = scalar_select %p285, %s20, 1
        %p287 = scmp.lt.s32.totalorder %s21, 0
        %s288 = scalar_select %p287, %s21, 0
        %s289 = sadd.s32 %s288, %s286
        %s290 = smul.addr %s289, 4
        %s291 = scalar_lea.vmem %s3, %s290
      $region44: #{_lambda_.40} parent=39 // pred_fallthru
        _
    $region40: #{_lambda_.40} parent=5 // pred_fallthru
      _
  $region6: #{_lambda_.40} parent=0 // loop_footer
    %s13 = sadd.s32 1, %s9
  $region7: #{_lambda_.40} parent=0 // loop_footer_branch
    %8 = sbr.rel target = $region3
  $region8: #{_lambda_.40} parent=0 // loop_exit
    _

// kernel: _lambda_.39
$region0: #{_lambda_.39}
  #allocation0 [shape = 'u32[]', space=smem, size = 0x4, offset = 0x4, fixed_abs, tag = 'smem constant byte address 0x4 - core index']
  #allocation1 [shape = 'u32[144,128]{1,0:T(1,128)}', space=vmem, size = 0x12000, scoped, tag = 'internal scratch']
  %s0 = inlined_call_operand.vmem [shape: bf16[2,4,24], index: 0, kind: input, shape index: {}]
  %s1 = inlined_call_operand.vmem [shape: bf16[8,20], index: 1, kind: input, shape index: {}]
  %s2 = inlined_call_operand.vmem [shape: f32[8,1], index: 2, kind: input, shape index: {}]
  %s3 = inlined_call_operand.vmem [shape: bf16[2,8,12], index: 3, kind: output, shape index: {}]
  %s4 = sld [smem:[#allocation0]]
  $region45: #{_lambda_.39} parent=0
    _
  %s6 = ssub.s32 1, %s4
  %s7 = scalar_select 0, %s6, %s4
  loop: start=0, step=1, limit=4
  $region2: #{_lambda_.39} parent=0 // loop_pre_header
    _
  $region3: #{_lambda_.39} parent=0 // loop_header
    %s9 = sphi 0, %s13
    %p10 = scmp.ge.s32.totalorder %s9, 4
    %s16 = sphi 0, %s28
    %s17 = sphi 0, %s24
    %s18 = sphi 0, %s16
    %s19 = sphi 0, %s17
    %s20 = sphi 0, %s18
    %s21 = sphi 0, %s19
    %s31 = sphi 0, %s33
    %s34 = sphi 0, %s31
    %s35 = sphi 0, %s34
    %s51 = sphi 0, %s35
    %s55 = sphi 0, %s55
    %s57 = sphi 0, %s55
    %s58 = sphi 0, %s57
    %s72 = sphi 0, %s58
    %s76 = sphi 0, %s76
    %s78 = sphi 0, %s76
    %s79 = sphi 0, %s78
    %s93 = sphi 0, %s79
    %s101 = sphi 0, %s103
    %s104 = sphi 0, %s101
    %s105 = sphi 0, %s104
    %s121 = sphi 0, %s105
  $region4: #{_lambda_.39} parent=0 // loop_header_branch
    %12 = sbr.rel (%p10) target = $region8
  $region5: #{_lambda_.39} parent=0 // loop_body
    %s14 = ssub.s32 %s9, 1
    %s15 = ssub.s32 %s9, 2
    %s22 = sadd.s32 1, %s17
    %p23 = scmp.ge.s32.totalorder %s22, 1
    %s24 = scalar_select %p23, 0, %s22
    %s25 = sadd.s32 1, %s16
    %s26 = scalar_select %p23, %s25, %s16
    %p27 = scmp.ge.s32.totalorder %s26, 2
    %s28 = scalar_select %p27, 0, %s26
    %s29 = ssub.s32 %s16, %s28
    %p30 = scmp.eq.s32.totalorder %s29, 0
    %s32 = sadd.s32 %s31, 1
    %s33 = scalar_select %p30, %s31, %s32
    %p36 = pneg %p30
    %p37 = scmp.eq.s32.totalorder %s9, 1
    %p38 = por %p36, %p37
    %p39 = scmp.ne.s32.totalorder %s31, %s34
    %p40 = scmp.eq.s32.totalorder %s9, 0
    %p41 = por %p39, %p40
    %p42 = scmp.ne.s32.totalorder %s31, %s34
    %p43 = scmp.eq.s32.totalorder %s14, 1
    %p44 = por %p42, %p43
    %p45 = scmp.ne.s32.totalorder %s34, %s35
    %p46 = scmp.eq.s32.totalorder %s14, 0
    %p47 = por %p45, %p46
    %p48 = scmp.ne.s32.totalorder %s34, %s35
    %p49 = scmp.eq.s32.totalorder %s15, 1
    %p50 = por %p48, %p49
    %p52 = scmp.ne.s32.totalorder %s35, %s51
    %p53 = scmp.eq.s32.totalorder %s15, 0
    %p54 = por %p52, %p53
    %s56 = sadd.s32 %s55, 1
    %p59 = scmp.eq.s32.totalorder %s9, 1
    %p60 = scmp.ne.s32.totalorder %s55, %s57
    %p61 = scmp.eq.s32.totalorder %s9, 0
    %p62 = por %p60, %p61
    %p63 = scmp.ne.s32.totalorder %s55, %s57
    %p64 = scmp.eq.s32.totalorder %s14, 1
    %p65 = por %p63, %p64
    %p66 = scmp.ne.s32.totalorder %s57, %s58
    %p67 = scmp.eq.s32.totalorder %s14, 0
    %p68 = por %p66, %p67
    %p69 = scmp.ne.s32.totalorder %s57, %s58
    %p70 = scmp.eq.s32.totalorder %s15, 1
    %p71 = por %p69, %p70
    %p73 = scmp.ne.s32.totalorder %s58, %s72
    %p74 = scmp.eq.s32.totalorder %s15, 0
    %p75 = por %p73, %p74
    %s77 = sadd.s32 %s76, 1
    %p80 = scmp.eq.s32.totalorder %s9, 1
    %p81 = scmp.ne.s32.totalorder %s76, %s78
    %p82 = scmp.eq.s32.totalorder %s9, 0
    %p83 = por %p81, %p82
    %p84 = scmp.ne.s32.totalorder %s76, %s78
    %p85 = scmp.eq.s32.totalorder %s14, 1
    %p86 = por %p84, %p85
    %p87 = scmp.ne.s32.totalorder %s78, %s79
    %p88 = scmp.eq.s32.totalorder %s14, 0
    %p89 = por %p87, %p88
    %p90 = scmp.ne.s32.totalorder %s78, %s79
    %p91 = scmp.eq.s32.totalorder %s15, 1
    %p92 = por %p90, %p91
    %p94 = scmp.ne.s32.totalorder %s79, %s93
    %p95 = scmp.eq.s32.totalorder %s15, 0
    %p96 = por %p94, %p95
    %s97 = ssub.s32 %s16, %s28
    %s98 = ssub.s32 %s17, %s24
    %s99 = sor.u32 %s97, %s98
    %p100 = scmp.eq.s32.totalorder %s99, 0
    %s102 = sadd.s32 %s101, 1
    %s103 = scalar_select %p100, %s101, %s102
    %p106 = pneg %p100
    %p107 = scmp.eq.s32.totalorder %s9, 1
    %p108 = por %p106, %p107
    %p109 = scmp.ne.s32.totalorder %s101, %s104
    %p110 = scmp.eq.s32.totalorder %s9, 0
    %p111 = por %p109, %p110
    %p112 = scmp.ne.s32.totalorder %s101, %s104
    %p113 = scmp.eq.s32.totalorder %s14, 1
    %p114 = por %p112, %p113
    %p115 = scmp.ne.s32.totalorder %s104, %s105
    %p116 = scmp.eq.s32.totalorder %s14, 0
    %p117 = por %p115, %p116
    %p118 = scmp.ne.s32.totalorder %s104, %s105
    %p119 = scmp.eq.s32.totalorder %s15, 1
    %p120 = por %p118, %p119
    %p122 = scmp.ne.s32.totalorder %s105, %s121
    %p123 = scmp.eq.s32.totalorder %s15, 0
    %p124 = por %p122, %p123
    %p125 = scmp.le.s32.totalorder 1, %s9
    %p126 = scmp.lt.s32.totalorder %s9, 3
    %p127 = pnand %p125, %p126
    %p128 = pneg %p127
    // Predicated region
    $region9: #{_lambda_.39} parent=5 // pred_check
      _
    $region10: #{_lambda_.39} parent=5 // pred_check_branch
      %130 = sbr.rel (%p127) target = $region12
    $region11: #{_lambda_.39} parent=5 // pred_region
      %s131 = ssub.s32 %s9, 1
      // Predicated region
      $region13: #{_lambda_.39} parent=11 // pred_check
        %p132 = pneg %p68
      $region14: #{_lambda_.39} parent=11 // pred_check_branch
        %134 = sbr.rel (%p132) target = $region16
      $region15: #{_lambda_.39} parent=11 // pred_region
        _
      $region16: #{_lambda_.39} parent=11 // pred_fallthru
        _
      // Predicated region
      $region17: #{_lambda_.39} parent=11 // pred_check
        %p135 = pneg %p89
      $region18: #{_lambda_.39} parent=11 // pred_check_branch
        %137 = sbr.rel (%p135) target = $region20
      $region19: #{_lambda_.39} parent=11 // pred_region
        _
      $region20: #{_lambda_.39} parent=11 // pred_fallthru
        _
    $region12: #{_lambda_.39} parent=5 // pred_fallthru
      _
    %p138 = scmp.lt.s32.totalorder %s9, 2
    // Predicated region
    $region21: #{_lambda_.39} parent=5 // pred_check
      %p139 = pneg %p138
    $region22: #{_lambda_.39} parent=5 // pred_check_branch
      %141 = sbr.rel (%p139) target = $region24
    $region23: #{_lambda_.39} parent=5 // pred_region
      // Predicated region
      $region25: #{_lambda_.39} parent=23 // pred_check
        %p142 = pneg %p41
      $region26: #{_lambda_.39} parent=23 // pred_check_branch
        %144 = sbr.rel (%p142) target = $region28
      $region27: #{_lambda_.39} parent=23 // pred_region
        %p145 = scmp.lt.s32.totalorder %s16, 1
        %s146 = scalar_select %p145, %s16, 1
        %s147 = smul.addr %s146, 2
        %s148 = scalar_lea.vmem %s0, %s147
      $region28: #{_lambda_.39} parent=23 // pred_fallthru
        _
    $region24: #{_lambda_.39} parent=5 // pred_fallthru
      _
    %p149 = scmp.le.s32.totalorder 1, %s9
    %p150 = scmp.lt.s32.totalorder %s9, 3
    %p151 = pnand %p149, %p150
    %p152 = pneg %p151
    // Predicated region
    $region29: #{_lambda_.39} parent=5 // pred_check
      _
    $region30: #{_lambda_.39} parent=5 // pred_check_branch
      %154 = sbr.rel (%p151) target = $region32
    $region31: #{_lambda_.39} parent=5 // pred_region
      %s155 = ssub.s32 %s9, 1
      %p156 = scmp.lt.s32.totalorder %s18, 1
      %s157 = scalar_select %p156, %s18, 1
      %s158 = smul.addr %s157, 2
      %s159 = scalar_lea.vmem %s0, %s158
      %p160 = pneg %p47
      %p161 = pneg %p44
      %p162 = pneg %p68
      %p163 = pneg %p65
      %p164 = pneg %p89
      %p165 = pneg %p86
      %p166 = pneg %p117
      %p167 = pneg %p114
      %p168 = scmp.lt.s32.totalorder %s18, 1
      %s169 = scalar_select %p168, %s18, 1
      %p170 = scmp.lt.s32.totalorder %s19, 0
      %s171 = scalar_select %p170, %s19, 0
      %s172 = sadd.s32 %s171, %s169
      %s173 = smul.addr %s172, 4
      %s174 = scalar_lea.vmem %s3, %s173
      %p175 = scmp.lt.s32.totalorder %s18, 1
      %s176 = scalar_select %p175, %s18, 1
      %s177 = smul.addr %s176, 2
      %s178 = scalar_lea.vmem %s0, %s177
      %p179 = scmp.lt.s32.totalorder %s18, 1
      %s180 = scalar_select %p179, %s18, 1
      %p181 = scmp.lt.s32.totalorder %s19, 0
      %s182 = scalar_select %p181, %s19, 0
      %s183 = sadd.s32 %s182, %s180
      %s184 = smul.addr %s183, 4
      %s185 = scalar_lea.vmem %s3, %s184
      %v187 = vld [vmem:[%s178] sm:$0x3]
      %v189 = vcombine.low %v187, %v187
      %v191 = vunpack.c.l.s4 1983009808
      %v192 = vunpack.c.0.s8 %v191
      %v193 = vlaneseq
      %v194 = vshrl.u32 %v193, 7
      %v195 = vsub.s32 %v192, %v194
      %v196 = vrot.slane %v189, %v195
      %v198 = vunpack.c.l.s4 1983009808
      %v199 = vunpack.c.0.s8 %v198
      %v200 = vlaneseq
      %v201 = vshrl.u32 %v200, 7
      %v202 = vsub.s32 %v199, %v201
      %v203 = vrot.slane %v187, %v202
      %204 = vrot.lane.b32.xlu0 %v196, 125
      %v205 = vpop.permute.xlu0 %204
      %v206 = vcombine.low %v203, %v203
      %207 = vrot.lane.b32.xlu0 %v206, 122
      %v208 = vpop.permute.xlu0 %207
      %v209 = vcombine.low %v196, %v196
      %210 = vrot.lane.b32.xlu0 %v209, 119
      %v211 = vpop.permute.xlu0 %210
      %212 = vrot.lane.b32.xlu0 %v203, 116
      %v213 = vpop.permute.xlu0 %212
      %vm214 = vcmask 1041408
      %v217 = vsel %vm214, %v187, %v205
      %vm218 = vcmask 1043456
      %v220 = vsel %vm218, %v217, %v208
      %vm221 = vcmask 1045504
      %v223 = vsel %vm221, %v220, %v211
      %v225 = vld [vmem:[%s1] sm:$0xf]
      %v226 = vld [vmem:[%s2] sm:$0xff]
      %228 = vset.pattern.permute.xlu0 0
      %229 = vperm.xlu0 %228, %v226
      %v230 = vpop.permute.xlu0 %229
      %vm232 = vcmask 162816
      %v234 = vsel %vm232, %v225, 0
      %v237 = vsel %vm214, %v213, 0
      %239 = vmatprep.subr.bf16.mxu0 0
      %240 = vmatpush1.bf16.msra.mxu0 %v223
      %241 = vmatprep.subr.bf16.mxu0 0
      %242 = vmatpush1.bf16.msra.mxu0 %v237
      %243 = vmatprep.subr.bf16.mxu0 0
      %244 = vmatpush1.bf16.msra.mxu0 0
      %245 = vmatprep.subr.bf16.mxu0 0
      %246 = vmatpush1.bf16.msra.mxu0 0
      %247 = vmatprep.subr.bf16.mxu0 0
      %248 = vmatpush1.bf16.msra.mxu0 0
      %249 = vmatprep.subr.bf16.mxu0 0
      %250 = vmatpush1.bf16.msra.mxu0 0
      %251 = vmatprep.subr.bf16.mxu0 0
      %252 = vmatpush1.bf16.msra.mxu0 0
      %253 = vmatprep.subr.bf16.mxu0 0
      %254 = vmatpush1.bf16.msra.mxu0 0
      %255 = vmatprep.subr.bf16.mxu0 0
      %256 = vmatpush1.bf16.msra.mxu0 0
      %257 = vmatprep.subr.bf16.mxu0 0
      %258 = vmatpush1.bf16.msra.mxu0 0
      %259 = vmatprep.subr.bf16.mxu0 0
      %260 = vmatpush1.bf16.msra.mxu0 0
      %261 = vmatprep.subr.bf16.mxu0 0
      %262 = vmatpush1.bf16.msra.mxu0 0
      %263 = vmatprep.subr.bf16.mxu0 0
      %264 = vmatpush1.bf16.msra.mxu0 0
      %265 = vmatprep.subr.bf16.mxu0 0
      %266 = vmatpush1.bf16.msra.mxu0 0
      %267 = vmatprep.subr.bf16.mxu0 0
      %268 = vmatpush1.bf16.msra.mxu0 0
      %269 = vmatprep.subr.bf16.mxu0 0
      %270 = vmatpush1.bf16.msra.mxu0 0
      %271 = vmatprep.mubr.bf16.mxu0 0
      %272 = vmatmul.mubr.bf16.gmra.mrb[0].mxu0 %v234
      %v273 = vpop.f32.mrb[0].mxu0
      %v274 = vadd.f32 %v230, %v273
      %v275 = vpop.f32.mrb[0].mxu0
      %v276 = vpop.f32.mrb[0].mxu0
      %v277 = vpop.f32.mrb[0].mxu0
      %278 = vdwg.mxu0
      %v279 = vmul.f32 %v274, 0.1
      %v280 = vmax.f32 %v274, %v279
      %v281 = vpack.c.bf16 %v280, %v280
      %vm282 = vcmask 93184
      %283 = vst.msk [vmem:[%s185] sm:$0xf] %vm282, %v281
      %p284 = scmp.lt.s32.totalorder %s18, 1
      %s285 = scalar_select %p284, %s18, 1
      %p286 = scmp.lt.s32.totalorder %s19, 0
      %s287 = scalar_select %p286, %s19, 0
      %s288 = sadd.s32 %s287, %s285
      %s289 = smul.addr %s288, 4
      %s290 = scalar_lea.vmem %s3, %s289
      // Predicated region
      $region33: #{_lambda_.39} parent=31 // pred_check
        %p291 = pneg %p114
      $region34: #{_lambda_.39} parent=31 // pred_check_branch
        %293 = sbr.rel (%p291) target = $region36
      $region35: #{_lambda_.39} parent=31 // pred_region
        _
      $region36: #{_lambda_.39} parent=31 // pred_fallthru
        _
    $region32: #{_lambda_.39} parent=5 // pred_fallthru
      _
    %p294 = scmp.le.s32.totalorder 2, %s9
    // Predicated region
    $region37: #{_lambda_.39} parent=5 // pred_check
      %p295 = pneg %p294
    $region38: #{_lambda_.39} parent=5 // pred_check_branch
      %297 = sbr.rel (%p295) target = $region40
    $region39: #{_lambda_.39} parent=5 // pred_region
      %s298 = ssub.s32 %s9, 2
      // Predicated region
      $region41: #{_lambda_.39} parent=39 // pred_check
        %p299 = pneg %p120
      $region42: #{_lambda_.39} parent=39 // pred_check_branch
        %301 = sbr.rel (%p299) target = $region44
      $region43: #{_lambda_.39} parent=39 // pred_region
        %p302 = scmp.lt.s32.totalorder %s20, 1
        %s303 = scalar_select %p302, %s20, 1
        %p304 = scmp.lt.s32.totalorder %s21, 0
        %s305 = scalar_select %p304, %s21, 0
        %s306 = sadd.s32 %s305, %s303
        %s307 = smul.addr %s306, 4
        %s308 = scalar_lea.vmem %s3, %s307
      $region44: #{_lambda_.39} parent=39 // pred_fallthru
        _
    $region40: #{_lambda_.39} parent=5 // pred_fallthru
      _
  $region6: #{_lambda_.39} parent=0 // loop_footer
    %s13 = sadd.s32 1, %s9
  $region7: #{_lambda_.39} parent=0 // loop_footer_branch
    %8 = sbr.rel target = $region3
  $region8: #{_lambda_.39} parent=0 // loop_exit
    _

// kernel: _lambda_.41
$region0: #{_lambda_.41}
  #allocation0 [shape = 'u32[]', space=smem, size = 0x4, offset = 0x4, fixed_abs, tag = 'smem constant byte address 0x4 - core index']
  #allocation1 [shape = 'u32[144,128]{1,0:T(1,128)}', space=vmem, size = 0x12000, scoped, tag = 'internal scratch']
  #allocation2 [shape = 'f32[1,1]{1,0:T(1,128)S(1)}', space=vmem, size = 0x200, scoped, tag = 'scoped memory for _lambda_.41']
  %s0 = inlined_call_operand.vmem [shape: bf16[2,8,12], index: 0, kind: input, shape index: {}]
  %s1 = inlined_call_operand.vmem [shape: bf16[1,24], index: 1, kind: input, shape index: {}]
  %s2 = inlined_call_operand.<no memory space> [shape: f32[1,1], index: 2, kind: input, shape index: {}]
  %s3 = inlined_call_operand.vmem [shape: bf16[2,1,6], index: 3, kind: output, shape index: {}]
  %s4 = sld [smem:[#allocation0]]
  $region45: #{_lambda_.41} parent=0
    _
  %s6 = ssub.s32 1, %s4
  %s7 = scalar_select 0, %s6, %s4
  %v8 = vstv %s2
  %9 = vst [vmem:[#allocation2] sm:$0x1] %v8
  loop: start=0, step=1, limit=4
  $region2: #{_lambda_.41} parent=0 // loop_pre_header
    _
  $region3: #{_lambda_.41} parent=0 // loop_header
    %s11 = sphi 0, %s15
    %p12 = scmp.ge.s32.totalorder %s11, 4
    %s18 = sphi 0, %s30
    %s19 = sphi 0, %s26
    %s20 = sphi 0, %s18
    %s21 = sphi 0, %s19
    %s22 = sphi 0, %s20
    %s23 = sphi 0, %s21
    %s33 = sphi 0, %s35
    %s36 = sphi 0, %s33
    %s37 = sphi 0, %s36
    %s53 = sphi 0, %s37
    %s57 = sphi 0, %s57
    %s59 = sphi 0, %s57
    %s60 = sphi 0, %s59
    %s74 = sphi 0, %s60
    %s78 = sphi 0, %s78
    %s80 = sphi 0, %s78
    %s81 = sphi 0, %s80
    %s95 = sphi 0, %s81
    %s103 = sphi 0, %s105
    %s106 = sphi 0, %s103
    %s107 = sphi 0, %s106
    %s123 = sphi 0, %s107
  $region4: #{_lambda_.41} parent=0 // loop_header_branch
    %14 = sbr.rel (%p12) target = $region8
  $region5: #{_lambda_.41} parent=0 // loop_body
    %s16 = ssub.s32 %s11, 1
    %s17 = ssub.s32 %s11, 2
    %s24 = sadd.s32 1, %s19
    %p25 = scmp.ge.s32.totalorder %s24, 1
    %s26 = scalar_select %p25, 0, %s24
    %s27 = sadd.s32 1, %s18
    %s28 = scalar_select %p25, %s27, %s18
    %p29 = scmp.ge.s32.totalorder %s28, 2
    %s30 = scalar_select %p29, 0, %s28
    %s31 = ssub.s32 %s18, %s30
    %p32 = scmp.eq.s32.totalorder %s31, 0
    %s34 = sadd.s32 %s33, 1
    %s35 = scalar_select %p32, %s33, %s34
    %p38 = pneg %p32
    %p39 = scmp.eq.s32.totalorder %s11, 1
    %p40 = por %p38, %p39
    %p41 = scmp.ne.s32.totalorder %s33, %s36
    %p42 = scmp.eq.s32.totalorder %s11, 0
    %p43 = por %p41, %p42
    %p44 = scmp.ne.s32.totalorder %s33, %s36
    %p45 = scmp.eq.s32.totalorder %s16, 1
    %p46 = por %p44, %p45
    %p47 = scmp.ne.s32.totalorder %s36, %s37
    %p48 = scmp.eq.s32.totalorder %s16, 0
    %p49 = por %p47, %p48
    %p50 = scmp.ne.s32.totalorder %s36, %s37
    %p51 = scmp.eq.s32.totalorder %s17, 1
    %p52 = por %p50, %p51
    %p54 = scmp.ne.s32.totalorder %s37, %s53
    %p55 = scmp.eq.s32.totalorder %s17, 0
    %p56 = por %p54, %p55
    %s58 = sadd.s32 %s57, 1
    %p61 = scmp.eq.s32.totalorder %s11, 1
    %p62 = scmp.ne.s32.totalorder %s57, %s59
    %p63 = scmp.eq.s32.totalorder %s11, 0
    %p64 = por %p62, %p63
    %p65 = scmp.ne.s32.totalorder %s57, %s59
    %p66 = scmp.eq.s32.totalorder %s16, 1
    %p67 = por %p65, %p66
    %p68 = scmp.ne.s32.totalorder %s59, %s60
    %p69 = scmp.eq.s32.totalorder %s16, 0
    %p70 = por %p68, %p69
    %p71 = scmp.ne.s32.totalorder %s59, %s60
    %p72 = scmp.eq.s32.totalorder %s17, 1
    %p73 = por %p71, %p72
    %p75 = scmp.ne.s32.totalorder %s60, %s74
    %p76 = scmp.eq.s32.totalorder %s17, 0
    %p77 = por %p75, %p76
    %s79 = sadd.s32 %s78, 1
    %p82 = scmp.eq.s32.totalorder %s11, 1
    %p83 = scmp.ne.s32.totalorder %s78, %s80
    %p84 = scmp.eq.s32.totalorder %s11, 0
    %p85 = por %p83, %p84
    %p86 = scmp.ne.s32.totalorder %s78, %s80
    %p87 = scmp.eq.s32.totalorder %s16, 1
    %p88 = por %p86, %p87
    %p89 = scmp.ne.s32.totalorder %s80, %s81
    %p90 = scmp.eq.s32.totalorder %s16, 0
    %p91 = por %p89, %p90
    %p92 = scmp.ne.s32.totalorder %s80, %s81
    %p93 = scmp.eq.s32.totalorder %s17, 1
    %p94 = por %p92, %p93
    %p96 = scmp.ne.s32.totalorder %s81, %s95
    %p97 = scmp.eq.s32.totalorder %s17, 0
    %p98 = por %p96, %p97
    %s99 = ssub.s32 %s18, %s30
    %s100 = ssub.s32 %s19, %s26
    %s101 = sor.u32 %s99, %s100
    %p102 = scmp.eq.s32.totalorder %s101, 0
    %s104 = sadd.s32 %s103, 1
    %s105 = scalar_select %p102, %s103, %s104
    %p108 = pneg %p102
    %p109 = scmp.eq.s32.totalorder %s11, 1
    %p110 = por %p108, %p109
    %p111 = scmp.ne.s32.totalorder %s103, %s106
    %p112 = scmp.eq.s32.totalorder %s11, 0
    %p113 = por %p111, %p112
    %p114 = scmp.ne.s32.totalorder %s103, %s106
    %p115 = scmp.eq.s32.totalorder %s16, 1
    %p116 = por %p114, %p115
    %p117 = scmp.ne.s32.totalorder %s106, %s107
    %p118 = scmp.eq.s32.totalorder %s16, 0
    %p119 = por %p117, %p118
    %p120 = scmp.ne.s32.totalorder %s106, %s107
    %p121 = scmp.eq.s32.totalorder %s17, 1
    %p122 = por %p120, %p121
    %p124 = scmp.ne.s32.totalorder %s107, %s123
    %p125 = scmp.eq.s32.totalorder %s17, 0
    %p126 = por %p124, %p125
    %p127 = scmp.le.s32.totalorder 1, %s11
    %p128 = scmp.lt.s32.totalorder %s11, 3
    %p129 = pnand %p127, %p128
    %p130 = pneg %p129
    // Predicated region
    $region9: #{_lambda_.41} parent=5 // pred_check
      _
    $region10: #{_lambda_.41} parent=5 // pred_check_branch
      %132 = sbr.rel (%p129) target = $region12
    $region11: #{_lambda_.41} parent=5 // pred_region
      %s133 = ssub.s32 %s11, 1
      // Predicated region
      $region13: #{_lambda_.41} parent=11 // pred_check
        %p134 = pneg %p70
      $region14: #{_lambda_.41} parent=11 // pred_check_branch
        %136 = sbr.rel (%p134) target = $region16
      $region15: #{_lambda_.41} parent=11 // pred_region
        _
      $region16: #{_lambda_.41} parent=11 // pred_fallthru
        _
      // Predicated region
      $region17: #{_lambda_.41} parent=11 // pred_check
        %p137 = pneg %p91
      $region18: #{_lambda_.41} parent=11 // pred_check_branch
        %139 = sbr.rel (%p137) target = $region20
      $region19: #{_lambda_.41} parent=11 // pred_region
        _
      $region20: #{_lambda_.41} parent=11 // pred_fallthru
        _
    $region12: #{_lambda_.41} parent=5 // pred_fallthru
      _
    %p140 = scmp.lt.s32.totalorder %s11, 2
    // Predicated region
    $region21: #{_lambda_.41} parent=5 // pred_check
      %p141 = pneg %p140
    $region22: #{_lambda_.41} parent=5 // pred_check_branch
      %143 = sbr.rel (%p141) target = $region24
    $region23: #{_lambda_.41} parent=5 // pred_region
      // Predicated region
      $region25: #{_lambda_.41} parent=23 // pred_check
        %p144 = pneg %p43
      $region26: #{_lambda_.41} parent=23 // pred_check_branch
        %146 = sbr.rel (%p144) target = $region28
      $region27: #{_lambda_.41} parent=23 // pred_region
        %p147 = scmp.lt.s32.totalorder %s18, 1
        %s148 = scalar_select %p147, %s18, 1
        %s149 = smul.addr %s148, 4
        %s150 = scalar_lea.vmem %s0, %s149
      $region28: #{_lambda_.41} parent=23 // pred_fallthru
        _
    $region24: #{_lambda_.41} parent=5 // pred_fallthru
      _
    %p151 = scmp.le.s32.totalorder 1, %s11
    %p152 = scmp.lt.s32.totalorder %s11, 3
    %p153 = pnand %p151, %p152
    %p154 = pneg %p153
    // Predicated region
    $region29: #{_lambda_.41} parent=5 // pred_check
      _
    $region30: #{_lambda_.41} parent=5 // pred_check_branch
      %156 = sbr.rel (%p153) target = $region32
    $region31: #{_lambda_.41} parent=5 // pred_region
      %s157 = ssub.s32 %s11, 1
      %p158 = scmp.lt.s32.totalorder %s20, 1
      %s159 = scalar_select %p158, %s20, 1
      %s160 = smul.addr %s159, 4
      %s161 = scalar_lea.vmem %s0, %s160
      %p162 = pneg %p49
      %p163 = pneg %p46
      %p164 = pneg %p70
      %p165 = pneg %p67
      %p166 = pneg %p91
      %p167 = pneg %p88
      %p168 = pneg %p119
      %p169 = pneg %p116
      %p170 = scmp.lt.s32.totalorder %s20, 1
      %s171 = scalar_select %p170, %s20, 1
      %p172 = scmp.lt.s32.totalorder %s21, 0
      %s173 = scalar_select %p172, %s21, 0
      %s174 = sadd.s32 %s173, %s171
      %s175 = scalar_lea.vmem %s3, %s174
      %p176 = scmp.lt.s32.totalorder %s20, 1
      %s177 = scalar_select %p176, %s20, 1
      %s178 = smul.addr %s177, 4
      %s179 = scalar_lea.vmem %s0, %s178
      %p180 = scmp.lt.s32.totalorder %s20, 1
      %s181 = scalar_select %p180, %s20, 1
      %p182 = scmp.lt.s32.totalorder %s21, 0
      %s183 = scalar_select %p182, %s21, 0
      %s184 = sadd.s32 %s183, %s181
      %s185 = scalar_lea.vmem %s3, %s184
      %v187 = vld [vmem:[%s179] sm:$0xf]
      %v189 = vunpack.c.l.b16 %v187
      %v190 = vpack.c.b16 %v189, %v189
      %191 = vrot.lane.b32.xlu0 %v190, 125
      %v192 = vpop.permute.xlu0 %191
      %193 = vrot.lane.b32.xlu0 %v190, 122
      %v194 = vpop.permute.xlu0 %193
      %vm195 = vcmask 1043456
      %v198 = vsel %vm195, %v187, %v192
      %v200 = vld [vmem:[%s1] sm:$0x1]
      %v201 = vld [vmem:[#allocation2] sm:$0x1]
      %203 = vset.pattern.permute.xlu0 0
      %204 = vperm.xlu0 %203, %v201
      %v205 = vpop.permute.xlu0 %204
      %v207 = vlaneseq
      %v208 = vshrl.u32 %v207, 7
      %v209 = vsub.s32 0, %v208
      %v210 = vrot.slane %v205, %v209
      %vm211 = vcmask 195584
      %v213 = vsel %vm211, %v200, 0
      %v216 = vsel %vm195, %v194, 0
      %218 = vmatprep.subr.bf16.mxu0 0
      %219 = vmatpush1.bf16.msra.mxu0 %v198
      %220 = vmatprep.subr.bf16.mxu0 0
      %221 = vmatpush1.bf16.msra.mxu0 %v216
      %222 = vmatprep.subr.bf16.mxu0 0
      %223 = vmatpush1.bf16.msra.mxu0 0
      %224 = vmatprep.subr.bf16.mxu0 0
      %225 = vmatpush1.bf16.msra.mxu0 0
      %226 = vmatprep.subr.bf16.mxu0 0
      %227 = vmatpush1.bf16.msra.mxu0 0
      %228 = vmatprep.subr.bf16.mxu0 0
      %229 = vmatpush1.bf16.msra.mxu0 0
      %230 = vmatprep.subr.bf16.mxu0 0
      %231 = vmatpush1.bf16.msra.mxu0 0
      %232 = vmatprep.subr.bf16.mxu0 0
      %233 = vmatpush1.bf16.msra.mxu0 0
      %234 = vmatprep.subr.bf16.mxu0 0
      %235 = vmatpush1.bf16.msra.mxu0 0
      %236 = vmatprep.subr.bf16.mxu0 0
      %237 = vmatpush1.bf16.msra.mxu0 0
      %238 = vmatprep.subr.bf16.mxu0 0
      %239 = vmatpush1.bf16.msra.mxu0 0
      %240 = vmatprep.subr.bf16.mxu0 0
      %241 = vmatpush1.bf16.msra.mxu0 0
      %242 = vmatprep.subr.bf16.mxu0 0
      %243 = vmatpush1.bf16.msra.mxu0 0
      %244 = vmatprep.subr.bf16.mxu0 0
      %245 = vmatpush1.bf16.msra.mxu0 0
      %246 = vmatprep.subr.bf16.mxu0 0
      %247 = vmatpush1.bf16.msra.mxu0 0
      %248 = vmatprep.subr.bf16.mxu0 0
      %249 = vmatpush1.bf16.msra.mxu0 0
      %250 = vmatprep.mubr.bf16.mxu0 0
      %251 = vmatmul.mubr.bf16.gmra.mrb[0].mxu0 %v213
      %v252 = vpop.f32.mrb[0].mxu0
      %v253 = vadd.f32 %v210, %v252
      %v254 = vpop.f32.mrb[0].mxu0
      %v255 = vpop.f32.mrb[0].mxu0
      %v256 = vpop.f32.mrb[0].mxu0
      %257 = vdwg.mxu0
      %v258 = vpack.c.bf16 %v253, %v253
      %vm259 = vcmask 40960
      %vm260 = vsmask.f32 256
      %vm261 = vmand %vm259, %vm260
      %v262 = vld [vmem:[%s185] sm:$0x1]
      %v263 = vsel %vm261, %v258, %v262
      %264 = vst [vmem:[%s185] sm:$0x1] %v263
      %p265 = scmp.lt.s32.totalorder %s20, 1
      %s266 = scalar_select %p265, %s20, 1
      %p267 = scmp.lt.s32.totalorder %s21, 0
      %s268 = scalar_select %p267, %s21, 0
      %s269 = sadd.s32 %s268, %s266
      %s270 = scalar_lea.vmem %s3, %s269
      // Predicated region
      $region33: #{_lambda_.41} parent=31 // pred_check
        %p271 = pneg %p116
      $region34: #{_lambda_.41} parent=31 // pred_check_branch
        %273 = sbr.rel (%p271) target = $region36
      $region35: #{_lambda_.41} parent=31 // pred_region
        _
      $region36: #{_lambda_.41} parent=31 // pred_fallthru
        _
    $region32: #{_lambda_.41} parent=5 // pred_fallthru
      _
    %p274 = scmp.le.s32.totalorder 2, %s11
    // Predicated region
    $region37: #{_lambda_.41} parent=5 // pred_check
      %p275 = pneg %p274
    $region38: #{_lambda_.41} parent=5 // pred_check_branch
      %277 = sbr.rel (%p275) target = $region40
    $region39: #{_lambda_.41} parent=5 // pred_region
      %s278 = ssub.s32 %s11, 2
      // Predicated region
      $region41: #{_lambda_.41} parent=39 // pred_check
        %p279 = pneg %p122
      $region42: #{_lambda_.41} parent=39 // pred_check_branch
        %281 = sbr.rel (%p279) target = $region44
      $region43: #{_lambda_.41} parent=39 // pred_region
        %p282 = scmp.lt.s32.totalorder %s22, 1
        %s283 = scalar_select %p282, %s22, 1
        %p284 = scmp.lt.s32.totalorder %s23, 0
        %s285 = scalar_select %p284, %s23, 0
        %s286 = sadd.s32 %s285, %s283
        %s287 = scalar_lea.vmem %s3, %s286
      $region44: #{_lambda_.41} parent=39 // pred_fallthru
        _
    $region40: #{_lambda_.41} parent=5 // pred_fallthru
      _
  $region6: #{_lambda_.41} parent=0 // loop_footer
    %s15 = sadd.s32 1, %s11
  $region7: #{_lambda_.41} parent=0 // loop_footer_branch
    %10 = sbr.rel target = $region3
  $region8: #{_lambda_.41} parent=0 // loop_exit
    _

// kernel: _lambda_.45
$region0: #{_lambda_.45}
  #allocation0 [shape = 'u32[]', space=smem, size = 0x4, offset = 0x4, fixed_abs, tag = 'smem constant byte address 0x4 - core index']
  #allocation1 [shape = 'u32[144,128]{1,0:T(1,128)}', space=vmem, size = 0x12000, scoped, tag = 'internal scratch']
  #allocation2 [shape = 'f32[1,1]{1,0:T(1,128)S(1)}', space=vmem, size = 0x200, scoped, tag = 'scoped memory for _lambda_.45']
  %s0 = inlined_call_operand.vmem [shape: bf16[2,8,18], index: 0, kind: input, shape index: {}]
  %s1 = inlined_call_operand.vmem [shape: bf16[1,24], index: 1, kind: input, shape index: {}]
  %s2 = inlined_call_operand.<no memory space> [shape: f32[1,1], index: 2, kind: input, shape index: {}]
  %s3 = inlined_call_operand.vmem [shape: bf16[2,1,16], index: 3, kind: output, shape index: {}]
  %s4 = sld [smem:[#allocation0]]
  $region45: #{_lambda_.45} parent=0
    _
  %s6 = ssub.s32 1, %s4
  %s7 = scalar_select 0, %s6, %s4
  %v8 = vstv %s2
  %9 = vst [vmem:[#allocation2] sm:$0x1] %v8
  loop: start=0, step=1, limit=4
  $region2: #{_lambda_.45} parent=0 // loop_pre_header
    _
  $region3: #{_lambda_.45} parent=0 // loop_header
    %s11 = sphi 0, %s15
    %p12 = scmp.ge.s32.totalorder %s11, 4
    %s18 = sphi 0, %s30
    %s19 = sphi 0, %s26
    %s20 = sphi 0, %s18
    %s21 = sphi 0, %s19
    %s22 = sphi 0, %s20
    %s23 = sphi 0, %s21
    %s33 = sphi 0, %s35
    %s36 = sphi 0, %s33
    %s37 = sphi 0, %s36
    %s53 = sphi 0, %s37
    %s57 = sphi 0, %s57
    %s59 = sphi 0, %s57
    %s60 = sphi 0, %s59
    %s74 = sphi 0, %s60
    %s78 = sphi 0, %s78
    %s80 = sphi 0, %s78
    %s81 = sphi 0, %s80
    %s95 = sphi 0, %s81
    %s103 = sphi 0, %s105
    %s106 = sphi 0, %s103
    %s107 = sphi 0, %s106
    %s123 = sphi 0, %s107
  $region4: #{_lambda_.45} parent=0 // loop_header_branch
    %14 = sbr.rel (%p12) target = $region8
  $region5: #{_lambda_.45} parent=0 // loop_body
    %s16 = ssub.s32 %s11, 1
    %s17 = ssub.s32 %s11, 2
    %s24 = sadd.s32 1, %s19
    %p25 = scmp.ge.s32.totalorder %s24, 1
    %s26 = scalar_select %p25, 0, %s24
    %s27 = sadd.s32 1, %s18
    %s28 = scalar_select %p25, %s27, %s18
    %p29 = scmp.ge.s32.totalorder %s28, 2
    %s30 = scalar_select %p29, 0, %s28
    %s31 = ssub.s32 %s18, %s30
    %p32 = scmp.eq.s32.totalorder %s31, 0
    %s34 = sadd.s32 %s33, 1
    %s35 = scalar_select %p32, %s33, %s34
    %p38 = pneg %p32
    %p39 = scmp.eq.s32.totalorder %s11, 1
    %p40 = por %p38, %p39
    %p41 = scmp.ne.s32.totalorder %s33, %s36
    %p42 = scmp.eq.s32.totalorder %s11, 0
    %p43 = por %p41, %p42
    %p44 = scmp.ne.s32.totalorder %s33, %s36
    %p45 = scmp.eq.s32.totalorder %s16, 1
    %p46 = por %p44, %p45
    %p47 = scmp.ne.s32.totalorder %s36, %s37
    %p48 = scmp.eq.s32.totalorder %s16, 0
    %p49 = por %p47, %p48
    %p50 = scmp.ne.s32.totalorder %s36, %s37
    %p51 = scmp.eq.s32.totalorder %s17, 1
    %p52 = por %p50, %p51
    %p54 = scmp.ne.s32.totalorder %s37, %s53
    %p55 = scmp.eq.s32.totalorder %s17, 0
    %p56 = por %p54, %p55
    %s58 = sadd.s32 %s57, 1
    %p61 = scmp.eq.s32.totalorder %s11, 1
    %p62 = scmp.ne.s32.totalorder %s57, %s59
    %p63 = scmp.eq.s32.totalorder %s11, 0
    %p64 = por %p62, %p63
    %p65 = scmp.ne.s32.totalorder %s57, %s59
    %p66 = scmp.eq.s32.totalorder %s16, 1
    %p67 = por %p65, %p66
    %p68 = scmp.ne.s32.totalorder %s59, %s60
    %p69 = scmp.eq.s32.totalorder %s16, 0
    %p70 = por %p68, %p69
    %p71 = scmp.ne.s32.totalorder %s59, %s60
    %p72 = scmp.eq.s32.totalorder %s17, 1
    %p73 = por %p71, %p72
    %p75 = scmp.ne.s32.totalorder %s60, %s74
    %p76 = scmp.eq.s32.totalorder %s17, 0
    %p77 = por %p75, %p76
    %s79 = sadd.s32 %s78, 1
    %p82 = scmp.eq.s32.totalorder %s11, 1
    %p83 = scmp.ne.s32.totalorder %s78, %s80
    %p84 = scmp.eq.s32.totalorder %s11, 0
    %p85 = por %p83, %p84
    %p86 = scmp.ne.s32.totalorder %s78, %s80
    %p87 = scmp.eq.s32.totalorder %s16, 1
    %p88 = por %p86, %p87
    %p89 = scmp.ne.s32.totalorder %s80, %s81
    %p90 = scmp.eq.s32.totalorder %s16, 0
    %p91 = por %p89, %p90
    %p92 = scmp.ne.s32.totalorder %s80, %s81
    %p93 = scmp.eq.s32.totalorder %s17, 1
    %p94 = por %p92, %p93
    %p96 = scmp.ne.s32.totalorder %s81, %s95
    %p97 = scmp.eq.s32.totalorder %s17, 0
    %p98 = por %p96, %p97
    %s99 = ssub.s32 %s18, %s30
    %s100 = ssub.s32 %s19, %s26
    %s101 = sor.u32 %s99, %s100
    %p102 = scmp.eq.s32.totalorder %s101, 0
    %s104 = sadd.s32 %s103, 1
    %s105 = scalar_select %p102, %s103, %s104
    %p108 = pneg %p102
    %p109 = scmp.eq.s32.totalorder %s11, 1
    %p110 = por %p108, %p109
    %p111 = scmp.ne.s32.totalorder %s103, %s106
    %p112 = scmp.eq.s32.totalorder %s11, 0
    %p113 = por %p111, %p112
    %p114 = scmp.ne.s32.totalorder %s103, %s106
    %p115 = scmp.eq.s32.totalorder %s16, 1
    %p116 = por %p114, %p115
    %p117 = scmp.ne.s32.totalorder %s106, %s107
    %p118 = scmp.eq.s32.totalorder %s16, 0
    %p119 = por %p117, %p118
    %p120 = scmp.ne.s32.totalorder %s106, %s107
    %p121 = scmp.eq.s32.totalorder %s17, 1
    %p122 = por %p120, %p121
    %p124 = scmp.ne.s32.totalorder %s107, %s123
    %p125 = scmp.eq.s32.totalorder %s17, 0
    %p126 = por %p124, %p125
    %p127 = scmp.le.s32.totalorder 1, %s11
    %p128 = scmp.lt.s32.totalorder %s11, 3
    %p129 = pnand %p127, %p128
    %p130 = pneg %p129
    // Predicated region
    $region9: #{_lambda_.45} parent=5 // pred_check
      _
    $region10: #{_lambda_.45} parent=5 // pred_check_branch
      %132 = sbr.rel (%p129) target = $region12
    $region11: #{_lambda_.45} parent=5 // pred_region
      %s133 = ssub.s32 %s11, 1
      // Predicated region
      $region13: #{_lambda_.45} parent=11 // pred_check
        %p134 = pneg %p70
      $region14: #{_lambda_.45} parent=11 // pred_check_branch
        %136 = sbr.rel (%p134) target = $region16
      $region15: #{_lambda_.45} parent=11 // pred_region
        _
      $region16: #{_lambda_.45} parent=11 // pred_fallthru
        _
      // Predicated region
      $region17: #{_lambda_.45} parent=11 // pred_check
        %p137 = pneg %p91
      $region18: #{_lambda_.45} parent=11 // pred_check_branch
        %139 = sbr.rel (%p137) target = $region20
      $region19: #{_lambda_.45} parent=11 // pred_region
        _
      $region20: #{_lambda_.45} parent=11 // pred_fallthru
        _
    $region12: #{_lambda_.45} parent=5 // pred_fallthru
      _
    %p140 = scmp.lt.s32.totalorder %s11, 2
    // Predicated region
    $region21: #{_lambda_.45} parent=5 // pred_check
      %p141 = pneg %p140
    $region22: #{_lambda_.45} parent=5 // pred_check_branch
      %143 = sbr.rel (%p141) target = $region24
    $region23: #{_lambda_.45} parent=5 // pred_region
      // Predicated region
      $region25: #{_lambda_.45} parent=23 // pred_check
        %p144 = pneg %p43
      $region26: #{_lambda_.45} parent=23 // pred_check_branch
        %146 = sbr.rel (%p144) target = $region28
      $region27: #{_lambda_.45} parent=23 // pred_region
        %p147 = scmp.lt.s32.totalorder %s18, 1
        %s148 = scalar_select %p147, %s18, 1
        %s149 = smul.addr %s148, 4
        %s150 = scalar_lea.vmem %s0, %s149
      $region28: #{_lambda_.45} parent=23 // pred_fallthru
        _
    $region24: #{_lambda_.45} parent=5 // pred_fallthru
      _
    %p151 = scmp.le.s32.totalorder 1, %s11
    %p152 = scmp.lt.s32.totalorder %s11, 3
    %p153 = pnand %p151, %p152
    %p154 = pneg %p153
    // Predicated region
    $region29: #{_lambda_.45} parent=5 // pred_check
      _
    $region30: #{_lambda_.45} parent=5 // pred_check_branch
      %156 = sbr.rel (%p153) target = $region32
    $region31: #{_lambda_.45} parent=5 // pred_region
      %s157 = ssub.s32 %s11, 1
      %p158 = scmp.lt.s32.totalorder %s20, 1
      %s159 = scalar_select %p158, %s20, 1
      %s160 = smul.addr %s159, 4
      %s161 = scalar_lea.vmem %s0, %s160
      %p162 = pneg %p49
      %p163 = pneg %p46
      %p164 = pneg %p70
      %p165 = pneg %p67
      %p166 = pneg %p91
      %p167 = pneg %p88
      %p168 = pneg %p119
      %p169 = pneg %p116
      %p170 = scmp.lt.s32.totalorder %s20, 1
      %s171 = scalar_select %p170, %s20, 1
      %p172 = scmp.lt.s32.totalorder %s21, 0
      %s173 = scalar_select %p172, %s21, 0
      %s174 = sadd.s32 %s173, %s171
      %s175 = scalar_lea.vmem %s3, %s174
      %p176 = scmp.lt.s32.totalorder %s20, 1
      %s177 = scalar_select %p176, %s20, 1
      %s178 = smul.addr %s177, 4
      %s179 = scalar_lea.vmem %s0, %s178
      %p180 = scmp.lt.s32.totalorder %s20, 1
      %s181 = scalar_select %p180, %s20, 1
      %p182 = scmp.lt.s32.totalorder %s21, 0
      %s183 = scalar_select %p182, %s21, 0
      %s184 = sadd.s32 %s183, %s181
      %s185 = scalar_lea.vmem %s3, %s184
      %v187 = vld [vmem:[%s179] sm:$0xf]
      %v189 = vunpack.c.l.b16 %v187
      %v190 = vpack.c.b16 %v189, %v189
      %191 = vrot.lane.b32.xlu0 %v190, 127
      %v192 = vpop.permute.xlu0 %191
      %193 = vrot.lane.b32.xlu0 %v190, 126
      %v194 = vpop.permute.xlu0 %193
      %vm195 = vcmask 1043456
      %v198 = vsel %vm195, %v187, %v192
      %v200 = vld [vmem:[%s1] sm:$0x1]
      %v201 = vld [vmem:[#allocation2] sm:$0x1]
      %203 = vset.pattern.permute.xlu0 0
      %204 = vperm.xlu0 %203, %v201
      %v205 = vpop.permute.xlu0 %204
      %v207 = vlaneseq
      %v208 = vshrl.u32 %v207, 7
      %v209 = vsub.s32 0, %v208
      %v210 = vrot.slane %v205, %v209
      %vm211 = vcmask 195584
      %v213 = vsel %vm211, %v200, 0
      %v216 = vsel %vm195, %v194, 0
      %218 = vmatprep.subr.bf16.mxu0 0
      %219 = vmatpush1.bf16.msra.mxu0 %v198
      %220 = vmatprep.subr.bf16.mxu0 0
      %221 = vmatpush1.bf16.msra.mxu0 %v216
      %222 = vmatprep.subr.bf16.mxu0 0
      %223 = vmatpush1.bf16.msra.mxu0 0
      %224 = vmatprep.subr.bf16.mxu0 0
      %225 = vmatpush1.bf16.msra.mxu0 0
      %226 = vmatprep.subr.bf16.mxu0 0
      %227 = vmatpush1.bf16.msra.mxu0 0
      %228 = vmatprep.subr.bf16.mxu0 0
      %229 = vmatpush1.bf16.msra.mxu0 0
      %230 = vmatprep.subr.bf16.mxu0 0
      %231 = vmatpush1.bf16.msra.mxu0 0
      %232 = vmatprep.subr.bf16.mxu0 0
      %233 = vmatpush1.bf16.msra.mxu0 0
      %234 = vmatprep.subr.bf16.mxu0 0
      %235 = vmatpush1.bf16.msra.mxu0 0
      %236 = vmatprep.subr.bf16.mxu0 0
      %237 = vmatpush1.bf16.msra.mxu0 0
      %238 = vmatprep.subr.bf16.mxu0 0
      %239 = vmatpush1.bf16.msra.mxu0 0
      %240 = vmatprep.subr.bf16.mxu0 0
      %241 = vmatpush1.bf16.msra.mxu0 0
      %242 = vmatprep.subr.bf16.mxu0 0
      %243 = vmatpush1.bf16.msra.mxu0 0
      %244 = vmatprep.subr.bf16.mxu0 0
      %245 = vmatpush1.bf16.msra.mxu0 0
      %246 = vmatprep.subr.bf16.mxu0 0
      %247 = vmatpush1.bf16.msra.mxu0 0
      %248 = vmatprep.subr.bf16.mxu0 0
      %249 = vmatpush1.bf16.msra.mxu0 0
      %250 = vmatprep.mubr.bf16.mxu0 0
      %251 = vmatmul.mubr.bf16.gmra.mrb[0].mxu0 %v213
      %v252 = vpop.f32.mrb[0].mxu0
      %v253 = vadd.f32 %v210, %v252
      %v254 = vpop.f32.mrb[0].mxu0
      %v255 = vpop.f32.mrb[0].mxu0
      %v256 = vpop.f32.mrb[0].mxu0
      %257 = vdwg.mxu0
      %v258 = vpack.c.bf16 %v253, %v253
      %vm259 = vcmask 122880
      %vm260 = vsmask.f32 256
      %vm261 = vmand %vm259, %vm260
      %v262 = vld [vmem:[%s185] sm:$0x1]
      %v263 = vsel %vm261, %v258, %v262
      %264 = vst [vmem:[%s185] sm:$0x1] %v263
      %p265 = scmp.lt.s32.totalorder %s20, 1
      %s266 = scalar_select %p265, %s20, 1
      %p267 = scmp.lt.s32.totalorder %s21, 0
      %s268 = scalar_select %p267, %s21, 0
      %s269 = sadd.s32 %s268, %s266
      %s270 = scalar_lea.vmem %s3, %s269
      // Predicated region
      $region33: #{_lambda_.45} parent=31 // pred_check
        %p271 = pneg %p116
      $region34: #{_lambda_.45} parent=31 // pred_check_branch
        %273 = sbr.rel (%p271) target = $region36
      $region35: #{_lambda_.45} parent=31 // pred_region
        _
      $region36: #{_lambda_.45} parent=31 // pred_fallthru
        _
    $region32: #{_lambda_.45} parent=5 // pred_fallthru
      _
    %p274 = scmp.le.s32.totalorder 2, %s11
    // Predicated region
    $region37: #{_lambda_.45} parent=5 // pred_check
      %p275 = pneg %p274
    $region38: #{_lambda_.45} parent=5 // pred_check_branch
      %277 = sbr.rel (%p275) target = $region40
    $region39: #{_lambda_.45} parent=5 // pred_region
      %s278 = ssub.s32 %s11, 2
      // Predicated region
      $region41: #{_lambda_.45} parent=39 // pred_check
        %p279 = pneg %p122
      $region42: #{_lambda_.45} parent=39 // pred_check_branch
        %281 = sbr.rel (%p279) target = $region44
      $region43: #{_lambda_.45} parent=39 // pred_region
        %p282 = scmp.lt.s32.totalorder %s22, 1
        %s283 = scalar_select %p282, %s22, 1
        %p284 = scmp.lt.s32.totalorder %s23, 0
        %s285 = scalar_select %p284, %s23, 0
        %s286 = sadd.s32 %s285, %s283
        %s287 = scalar_lea.vmem %s3, %s286
      $region44: #{_lambda_.45} parent=39 // pred_fallthru
        _
    $region40: #{_lambda_.45} parent=5 // pred_fallthru
      _
  $region6: #{_lambda_.45} parent=0 // loop_footer
    %s15 = sadd.s32 1, %s11
  $region7: #{_lambda_.45} parent=0 // loop_footer_branch
    %10 = sbr.rel target = $region3
  $region8: #{_lambda_.45} parent=0 // loop_exit
    _

// kernel: _lambda_.42
$region0: #{_lambda_.42}
  #allocation0 [shape = 'u32[]', space=smem, size = 0x4, offset = 0x4, fixed_abs, tag = 'smem constant byte address 0x4 - core index']
  #allocation1 [shape = 'u32[144,128]{1,0:T(1,128)}', space=vmem, size = 0x12000, scoped, tag = 'internal scratch']
  %s0 = inlined_call_operand.vmem [shape: bf16[2,1,46], index: 0, kind: input, shape index: {}]
  %s1 = inlined_call_operand.vmem [shape: bf16[4,15], index: 1, kind: input, shape index: {}]
  %s2 = inlined_call_operand.vmem [shape: f32[4,1], index: 2, kind: input, shape index: {}]
  %s3 = inlined_call_operand.vmem [shape: bf16[2,4,32], index: 3, kind: output, shape index: {}]
  %s4 = sld [smem:[#allocation0]]
  $region45: #{_lambda_.42} parent=0
    _
  %s6 = ssub.s32 1, %s4
  %s7 = scalar_select 0, %s6, %s4
  loop: start=0, step=1, limit=4
  $region2: #{_lambda_.42} parent=0 // loop_pre_header
    _
  $region3: #{_lambda_.42} parent=0 // loop_header
    %s9 = sphi 0, %s13
    %p10 = scmp.ge.s32.totalorder %s9, 4
    %s16 = sphi 0, %s28
    %s17 = sphi 0, %s24
    %s18 = sphi 0, %s16
    %s19 = sphi 0, %s17
    %s20 = sphi 0, %s18
    %s21 = sphi 0, %s19
    %s31 = sphi 0, %s33
    %s34 = sphi 0, %s31
    %s35 = sphi 0, %s34
    %s51 = sphi 0, %s35
    %s55 = sphi 0, %s55
    %s57 = sphi 0, %s55
    %s58 = sphi 0, %s57
    %s72 = sphi 0, %s58
    %s76 = sphi 0, %s76
    %s78 = sphi 0, %s76
    %s79 = sphi 0, %s78
    %s93 = sphi 0, %s79
    %s101 = sphi 0, %s103
    %s104 = sphi 0, %s101
    %s105 = sphi 0, %s104
    %s121 = sphi 0, %s105
  $region4: #{_lambda_.42} parent=0 // loop_header_branch
    %12 = sbr.rel (%p10) target = $region8
  $region5: #{_lambda_.42} parent=0 // loop_body
    %s14 = ssub.s32 %s9, 1
    %s15 = ssub.s32 %s9, 2
    %s22 = sadd.s32 1, %s17
    %p23 = scmp.ge.s32.totalorder %s22, 1
    %s24 = scalar_select %p23, 0, %s22
    %s25 = sadd.s32 1, %s16
    %s26 = scalar_select %p23, %s25, %s16
    %p27 = scmp.ge.s32.totalorder %s26, 2
    %s28 = scalar_select %p27, 0, %s26
    %s29 = ssub.s32 %s16, %s28
    %p30 = scmp.eq.s32.totalorder %s29, 0
    %s32 = sadd.s32 %s31, 1
    %s33 = scalar_select %p30, %s31, %s32
    %p36 = pneg %p30
    %p37 = scmp.eq.s32.totalorder %s9, 1
    %p38 = por %p36, %p37
    %p39 = scmp.ne.s32.totalorder %s31, %s34
    %p40 = scmp.eq.s32.totalorder %s9, 0
    %p41 = por %p39, %p40
    %p42 = scmp.ne.s32.totalorder %s31, %s34
    %p43 = scmp.eq.s32.totalorder %s14, 1
    %p44 = por %p42, %p43
    %p45 = scmp.ne.s32.totalorder %s34, %s35
    %p46 = scmp.eq.s32.totalorder %s14, 0
    %p47 = por %p45, %p46
    %p48 = scmp.ne.s32.totalorder %s34, %s35
    %p49 = scmp.eq.s32.totalorder %s15, 1
    %p50 = por %p48, %p49
    %p52 = scmp.ne.s32.totalorder %s35, %s51
    %p53 = scmp.eq.s32.totalorder %s15, 0
    %p54 = por %p52, %p53
    %s56 = sadd.s32 %s55, 1
    %p59 = scmp.eq.s32.totalorder %s9, 1
    %p60 = scmp.ne.s32.totalorder %s55, %s57
    %p61 = scmp.eq.s32.totalorder %s9, 0
    %p62 = por %p60, %p61
    %p63 = scmp.ne.s32.totalorder %s55, %s57
    %p64 = scmp.eq.s32.totalorder %s14, 1
    %p65 = por %p63, %p64
    %p66 = scmp.ne.s32.totalorder %s57, %s58
    %p67 = scmp.eq.s32.totalorder %s14, 0
    %p68 = por %p66, %p67
    %p69 = scmp.ne.s32.totalorder %s57, %s58
    %p70 = scmp.eq.s32.totalorder %s15, 1
    %p71 = por %p69, %p70
    %p73 = scmp.ne.s32.totalorder %s58, %s72
    %p74 = scmp.eq.s32.totalorder %s15, 0
    %p75 = por %p73, %p74
    %s77 = sadd.s32 %s76, 1
    %p80 = scmp.eq.s32.totalorder %s9, 1
    %p81 = scmp.ne.s32.totalorder %s76, %s78
    %p82 = scmp.eq.s32.totalorder %s9, 0
    %p83 = por %p81, %p82
    %p84 = scmp.ne.s32.totalorder %s76, %s78
    %p85 = scmp.eq.s32.totalorder %s14, 1
    %p86 = por %p84, %p85
    %p87 = scmp.ne.s32.totalorder %s78, %s79
    %p88 = scmp.eq.s32.totalorder %s14, 0
    %p89 = por %p87, %p88
    %p90 = scmp.ne.s32.totalorder %s78, %s79
    %p91 = scmp.eq.s32.totalorder %s15, 1
    %p92 = por %p90, %p91
    %p94 = scmp.ne.s32.totalorder %s79, %s93
    %p95 = scmp.eq.s32.totalorder %s15, 0
    %p96 = por %p94, %p95
    %s97 = ssub.s32 %s16, %s28
    %s98 = ssub.s32 %s17, %s24
    %s99 = sor.u32 %s97, %s98
    %p100 = scmp.eq.s32.totalorder %s99, 0
    %s102 = sadd.s32 %s101, 1
    %s103 = scalar_select %p100, %s101, %s102
    %p106 = pneg %p100
    %p107 = scmp.eq.s32.totalorder %s9, 1
    %p108 = por %p106, %p107
    %p109 = scmp.ne.s32.totalorder %s101, %s104
    %p110 = scmp.eq.s32.totalorder %s9, 0
    %p111 = por %p109, %p110
    %p112 = scmp.ne.s32.totalorder %s101, %s104
    %p113 = scmp.eq.s32.totalorder %s14, 1
    %p114 = por %p112, %p113
    %p115 = scmp.ne.s32.totalorder %s104, %s105
    %p116 = scmp.eq.s32.totalorder %s14, 0
    %p117 = por %p115, %p116
    %p118 = scmp.ne.s32.totalorder %s104, %s105
    %p119 = scmp.eq.s32.totalorder %s15, 1
    %p120 = por %p118, %p119
    %p122 = scmp.ne.s32.totalorder %s105, %s121
    %p123 = scmp.eq.s32.totalorder %s15, 0
    %p124 = por %p122, %p123
    %p125 = scmp.le.s32.totalorder 1, %s9
    %p126 = scmp.lt.s32.totalorder %s9, 3
    %p127 = pnand %p125, %p126
    %p128 = pneg %p127
    // Predicated region
    $region9: #{_lambda_.42} parent=5 // pred_check
      _
    $region10: #{_lambda_.42} parent=5 // pred_check_branch
      %130 = sbr.rel (%p127) target = $region12
    $region11: #{_lambda_.42} parent=5 // pred_region
      %s131 = ssub.s32 %s9, 1
      // Predicated region
      $region13: #{_lambda_.42} parent=11 // pred_check
        %p132 = pneg %p68
      $region14: #{_lambda_.42} parent=11 // pred_check_branch
        %134 = sbr.rel (%p132) target = $region16
      $region15: #{_lambda_.42} parent=11 // pred_region
        _
      $region16: #{_lambda_.42} parent=11 // pred_fallthru
        _
      // Predicated region
      $region17: #{_lambda_.42} parent=11 // pred_check
        %p135 = pneg %p89
      $region18: #{_lambda_.42} parent=11 // pred_check_branch
        %137 = sbr.rel (%p135) target = $region20
      $region19: #{_lambda_.42} parent=11 // pred_region
        _
      $region20: #{_lambda_.42} parent=11 // pred_fallthru
        _
    $region12: #{_lambda_.42} parent=5 // pred_fallthru
      _
    %p138 = scmp.lt.s32.totalorder %s9, 2
    // Predicated region
    $region21: #{_lambda_.42} parent=5 // pred_check
      %p139 = pneg %p138
    $region22: #{_lambda_.42} parent=5 // pred_check_branch
      %141 = sbr.rel (%p139) target = $region24
    $region23: #{_lambda_.42} parent=5 // pred_region
      // Predicated region
      $region25: #{_lambda_.42} parent=23 // pred_check
        %p142 = pneg %p41
      $region26: #{_lambda_.42} parent=23 // pred_check_branch
        %144 = sbr.rel (%p142) target = $region28
      $region27: #{_lambda_.42} parent=23 // pred_region
        %p145 = scmp.lt.s32.totalorder %s16, 1
        %s146 = scalar_select %p145, %s16, 1
        %s147 = scalar_lea.vmem %s0, %s146
      $region28: #{_lambda_.42} parent=23 // pred_fallthru
        _
    $region24: #{_lambda_.42} parent=5 // pred_fallthru
      _
    %p148 = scmp.le.s32.totalorder 1, %s9
    %p149 = scmp.lt.s32.totalorder %s9, 3
    %p150 = pnand %p148, %p149
    %p151 = pneg %p150
    // Predicated region
    $region29: #{_lambda_.42} parent=5 // pred_check
      _
    $region30: #{_lambda_.42} parent=5 // pred_check_branch
      %153 = sbr.rel (%p150) target = $region32
    $region31: #{_lambda_.42} parent=5 // pred_region
      %s154 = ssub.s32 %s9, 1
      %p155 = scmp.lt.s32.totalorder %s18, 1
      %s156 = scalar_select %p155, %s18, 1
      %s157 = scalar_lea.vmem %s0, %s156
      %p158 = pneg %p47
      %p159 = pneg %p44
      %p160 = pneg %p68
      %p161 = pneg %p65
      %p162 = pneg %p89
      %p163 = pneg %p86
      %p164 = pneg %p117
      %p165 = pneg %p114
      %p166 = scmp.lt.s32.totalorder %s18, 1
      %s167 = scalar_select %p166, %s18, 1
      %p168 = scmp.lt.s32.totalorder %s19, 0
      %s169 = scalar_select %p168, %s19, 0
      %s170 = sadd.s32 %s169, %s167
      %s171 = smul.addr %s170, 2
      %s172 = scalar_lea.vmem %s3, %s171
      %p173 = scmp.lt.s32.totalorder %s18, 1
      %s174 = scalar_select %p173, %s18, 1
      %s175 = scalar_lea.vmem %s0, %s174
      %p176 = scmp.lt.s32.totalorder %s18, 1
      %s177 = scalar_select %p176, %s18, 1
      %p178 = scmp.lt.s32.totalorder %s19, 0
      %s179 = scalar_select %p178, %s19, 0
      %s180 = sadd.s32 %s179, %s177
      %s181 = smul.addr %s180, 2
      %s182 = scalar_lea.vmem %s3, %s181
      %v184 = vld [vmem:[%s175] sm:$0x1]
      %v187 = vunpack.c.l.s4 1966171168
      %v188 = vunpack.c.0.s8 %v187
      %v189 = vlaneseq
      %v190 = vshrl.u32 %v189, 7
      %v191 = vsub.s32 %v188, %v190
      %v192 = vrot.slane %v184, %v191
      %v194 = vunpack.c.l.s4 1966171168
      %v195 = vunpack.c.0.s8 %v194
      %v196 = vlaneseq
      %v197 = vshrl.u32 %v196, 7
      %v198 = vsub.s32 %v195, %v197
      %v199 = vrot.slane %v192, %v198
      %v201 = vshll.u32 %v199, 16
      %203 = vrot.lane.b32.xlu0 %v201, 127
      %v204 = vpop.permute.xlu0 %203
      %v206 = vcombine.low %v184, %v184
      %v208 = vunpack.c.l.s4 1966171168
      %v209 = vunpack.c.0.s8 %v208
      %v210 = vlaneseq
      %v211 = vshrl.u32 %v210, 7
      %v212 = vsub.s32 %v209, %v211
      %v213 = vrot.slane %v206, %v212
      %v215 = vunpack.c.l.s4 1966171168
      %v216 = vunpack.c.0.s8 %v215
      %v217 = vlaneseq
      %v218 = vshrl.u32 %v217, 7
      %v219 = vsub.s32 %v216, %v218
      %v220 = vrot.slane %v213, %v219
      %221 = vrot.lane.b32.xlu0 %v220, 126
      %v222 = vpop.permute.xlu0 %221
      %v223 = vrot.slane %v201, 7
      %224 = vrot.lane.b32.xlu0 %v223, 125
      %v225 = vpop.permute.xlu0 %224
      %v227 = vcombine.low %v192, %v192
      %v229 = vunpack.c.l.s4 1966171168
      %v230 = vunpack.c.0.s8 %v229
      %v231 = vlaneseq
      %v232 = vshrl.u32 %v231, 7
      %v233 = vsub.s32 %v230, %v232
      %v234 = vrot.slane %v227, %v233
      %235 = vrot.lane.b32.xlu0 %v234, 124
      %v236 = vpop.permute.xlu0 %235
      %v237 = vrot.slane %v201, 6
      %238 = vrot.lane.b32.xlu0 %v237, 123
      %v239 = vpop.permute.xlu0 %238
      %v241 = vcombine.low %v213, %v213
      %v243 = vunpack.c.l.s4 1966171168
      %v244 = vunpack.c.0.s8 %v243
      %v245 = vlaneseq
      %v246 = vshrl.u32 %v245, 7
      %v247 = vsub.s32 %v244, %v246
      %v248 = vrot.slane %v241, %v247
      %249 = vrot.lane.b32.xlu0 %v248, 122
      %v250 = vpop.permute.xlu0 %249
      %v251 = vrot.slane %v201, 5
      %252 = vrot.lane.b32.xlu0 %v251, 121
      %v253 = vpop.permute.xlu0 %252
      %v255 = vcombine.low %v199, %v199
      %256 = vrot.lane.b32.xlu0 %v255, 120
      %v257 = vpop.permute.xlu0 %256
      %v258 = vrot.slane %v201, 4
      %259 = vrot.lane.b32.xlu0 %v258, 119
      %v260 = vpop.permute.xlu0 %259
      %v262 = vcombine.low %v220, %v220
      %263 = vrot.lane.b32.xlu0 %v262, 118
      %v264 = vpop.permute.xlu0 %263
      %v265 = vrot.slane %v201, 3
      %266 = vrot.lane.b32.xlu0 %v265, 117
      %v267 = vpop.permute.xlu0 %266
      %v269 = vcombine.low %v234, %v234
      %270 = vrot.lane.b32.xlu0 %v269, 116
      %v271 = vpop.permute.xlu0 %270
      %v272 = vrot.slane %v201, 2
      %273 = vrot.lane.b32.xlu0 %v272, 115
      %v274 = vpop.permute.xlu0 %273
      %v276 = vcombine.low %v248, %v248
      %277 = vrot.lane.b32.xlu0 %v276, 114
      %v278 = vpop.permute.xlu0 %277
      %vm279 = vcmask 1040384
      %vm280 = vsmask.f32 256
      %vm281 = vmand %vm279, %vm280
      %v282 = vsel %vm281, %v184, %v204
      %vm283 = vcmask 1040384
      %v286 = vsel %vm283, %v282, %v222
      %vm288 = vcmask 1041408
      %vm289 = vsmask.f32 1280
      %vm290 = vmand %vm288, %vm289
      %v291 = vsel %vm290, %v286, %v225
      %vm292 = vcmask 1041408
      %v295 = vsel %vm292, %v291, %v236
      %vm297 = vcmask 1042432
      %vm298 = vsmask.f32 2304
      %vm299 = vmand %vm297, %vm298
      %v300 = vsel %vm299, %v295, %v239
      %vm301 = vcmask 1042432
      %v304 = vsel %vm301, %v300, %v250
      %vm306 = vcmask 1043456
      %vm307 = vsmask.f32 3328
      %vm308 = vmand %vm306, %vm307
      %v309 = vsel %vm308, %v304, %v253
      %vm310 = vcmask 1043456
      %v313 = vsel %vm310, %v309, %v257
      %vm315 = vcmask 1044480
      %vm316 = vsmask.f32 4352
      %vm317 = vmand %vm315, %vm316
      %v318 = vsel %vm317, %v313, %v260
      %vm319 = vcmask 1044480
      %v322 = vsel %vm319, %v318, %v264
      %vm324 = vcmask 1045504
      %vm325 = vsmask.f32 5376
      %vm326 = vmand %vm324, %vm325
      %v327 = vsel %vm326, %v322, %v267
      %vm328 = vcmask 1045504
      %v331 = vsel %vm328, %v327, %v271
      %vm333 = vcmask 1046528
      %vm334 = vsmask.f32 6400
      %vm335 = vmand %vm333, %vm334
      %v336 = vsel %vm335, %v331, %v274
      %vm337 = vcmask 1046528
      %v340 = vsel %vm337, %v336, %v278
      %v341 = vld [vmem:[%s1] sm:$0x3]
      %v342 = vld [vmem:[%s2] sm:$0xf]
      %344 = vset.pattern.permute.xlu0 0
      %345 = vperm.xlu0 %344, %v342
      %v346 = vpop.permute.xlu0 %345
      %vm348 = vcmask 121856
      %v350 = vsel %vm348, %v341, 0
      %vm352 = vcmask 1047552
      %v353 = vsel %vm337, 4294967295, 65535
      %v354 = vsel %vm352, %v353, 0
      %v355 = vand.u32 %v340, %v354
      %357 = vmatprep.subr.bf16.mxu0 0
      %358 = vmatpush1.bf16.msra.mxu0 %v355
      %359 = vmatprep.subr.bf16.mxu0 0
      %360 = vmatpush1.bf16.msra.mxu0 0
      %361 = vmatprep.subr.bf16.mxu0 0
      %362 = vmatpush1.bf16.msra.mxu0 0
      %363 = vmatprep.subr.bf16.mxu0 0
      %364 = vmatpush1.bf16.msra.mxu0 0
      %365 = vmatprep.subr.bf16.mxu0 0
      %366 = vmatpush1.bf16.msra.mxu0 0
      %367 = vmatprep.subr.bf16.mxu0 0
      %368 = vmatpush1.bf16.msra.mxu0 0
      %369 = vmatprep.subr.bf16.mxu0 0
      %370 = vmatpush1.bf16.msra.mxu0 0
      %371 = vmatprep.subr.bf16.mxu0 0
      %372 = vmatpush1.bf16.msra.mxu0 0
      %373 = vmatprep.subr.bf16.mxu0 0
      %374 = vmatpush1.bf16.msra.mxu0 0
      %375 = vmatprep.subr.bf16.mxu0 0
      %376 = vmatpush1.bf16.msra.mxu0 0
      %377 = vmatprep.subr.bf16.mxu0 0
      %378 = vmatpush1.bf16.msra.mxu0 0
      %379 = vmatprep.subr.bf16.mxu0 0
      %380 = vmatpush1.bf16.msra.mxu0 0
      %381 = vmatprep.subr.bf16.mxu0 0
      %382 = vmatpush1.bf16.msra.mxu0 0
      %383 = vmatprep.subr.bf16.mxu0 0
      %384 = vmatpush1.bf16.msra.mxu0 0
      %385 = vmatprep.subr.bf16.mxu0 0
      %386 = vmatpush1.bf16.msra.mxu0 0
      %387 = vmatprep.subr.bf16.mxu0 0
      %388 = vmatpush1.bf16.msra.mxu0 0
      %389 = vmatprep.mubr.bf16.mxu0 0
      %390 = vmatmul.mubr.bf16.gmra.mrb[0].mxu0 %v350
      %v391 = vpop.f32.mrb[0].mxu0
      %v392 = vadd.f32 %v346, %v391
      %v393 = vpop.f32.mrb[0].mxu0
      %v394 = vpop.f32.mrb[0].mxu0
      %v395 = vpop.f32.mrb[0].mxu0
      %396 = vdwg.mxu0
      %v397 = vmul.f32 %v392, 0.1
      %v398 = vmax.f32 %v392, %v397
      %v399 = vpack.c.bf16 %v398, %v398
      %vm400 = vcmask 254976
      %401 = vst.msk [vmem:[%s182] sm:$0x3] %vm400, %v399
      %p402 = scmp.lt.s32.totalorder %s18, 1
      %s403 = scalar_select %p402, %s18, 1
      %p404 = scmp.lt.s32.totalorder %s19, 0
      %s405 = scalar_select %p404, %s19, 0
      %s406 = sadd.s32 %s405, %s403
      %s407 = smul.addr %s406, 2
      %s408 = scalar_lea.vmem %s3, %s407
      // Predicated region
      $region33: #{_lambda_.42} parent=31 // pred_check
        %p409 = pneg %p114
      $region34: #{_lambda_.42} parent=31 // pred_check_branch
        %411 = sbr.rel (%p409) target = $region36
      $region35: #{_lambda_.42} parent=31 // pred_region
        _
      $region36: #{_lambda_.42} parent=31 // pred_fallthru
        _
    $region32: #{_lambda_.42} parent=5 // pred_fallthru
      _
    %p412 = scmp.le.s32.totalorder 2, %s9
    // Predicated region
    $region37: #{_lambda_.42} parent=5 // pred_check
      %p413 = pneg %p412
    $region38: #{_lambda_.42} parent=5 // pred_check_branch
      %415 = sbr.rel (%p413) target = $region40
    $region39: #{_lambda_.42} parent=5 // pred_region
      %s416 = ssub.s32 %s9, 2
      // Predicated region
      $region41: #{_lambda_.42} parent=39 // pred_check
        %p417 = pneg %p120
      $region42: #{_lambda_.42} parent=39 // pred_check_branch
        %419 = sbr.rel (%p417) target = $region44
      $region43: #{_lambda_.42} parent=39 // pred_region
        %p420 = scmp.lt.s32.totalorder %s20, 1
        %s421 = scalar_select %p420, %s20, 1
        %p422 = scmp.lt.s32.totalorder %s21, 0
        %s423 = scalar_select %p422, %s21, 0
        %s424 = sadd.s32 %s423, %s421
        %s425 = smul.addr %s424, 2
        %s426 = scalar_lea.vmem %s3, %s425
      $region44: #{_lambda_.42} parent=39 // pred_fallthru
        _
    $region40: #{_lambda_.42} parent=5 // pred_fallthru
      _
  $region6: #{_lambda_.42} parent=0 // loop_footer
    %s13 = sadd.s32 1, %s9
  $region7: #{_lambda_.42} parent=0 // loop_footer_branch
    %8 = sbr.rel target = $region3
  $region8: #{_lambda_.42} parent=0 // loop_exit
    _

// kernel: _lambda_.43
$region0: #{_lambda_.43}
  #allocation0 [shape = 'u32[]', space=smem, size = 0x4, offset = 0x4, fixed_abs, tag = 'smem constant byte address 0x4 - core index']
  #allocation1 [shape = 'u32[144,128]{1,0:T(1,128)}', space=vmem, size = 0x12000, scoped, tag = 'internal scratch']
  %s0 = inlined_call_operand.vmem [shape: bf16[2,8,20], index: 0, kind: input, shape index: {}]
  %s1 = inlined_call_operand.vmem [shape: bf16[8,40], index: 1, kind: input, shape index: {}]
  %s2 = inlined_call_operand.vmem [shape: f32[8,1], index: 2, kind: input, shape index: {}]
  %s3 = inlined_call_operand.vmem [shape: bf16[2,8,16], index: 3, kind: output, shape index: {}]
  %s4 = sld [smem:[#allocation0]]
  $region45: #{_lambda_.43} parent=0
    _
  %s6 = ssub.s32 1, %s4
  %s7 = scalar_select 0, %s6, %s4
  loop: start=0, step=1, limit=4
  $region2: #{_lambda_.43} parent=0 // loop_pre_header
    _
  $region3: #{_lambda_.43} parent=0 // loop_header
    %s9 = sphi 0, %s13
    %p10 = scmp.ge.s32.totalorder %s9, 4
    %s16 = sphi 0, %s28
    %s17 = sphi 0, %s24
    %s18 = sphi 0, %s16
    %s19 = sphi 0, %s17
    %s20 = sphi 0, %s18
    %s21 = sphi 0, %s19
    %s31 = sphi 0, %s33
    %s34 = sphi 0, %s31
    %s35 = sphi 0, %s34
    %s51 = sphi 0, %s35
    %s55 = sphi 0, %s55
    %s57 = sphi 0, %s55
    %s58 = sphi 0, %s57
    %s72 = sphi 0, %s58
    %s76 = sphi 0, %s76
    %s78 = sphi 0, %s76
    %s79 = sphi 0, %s78
    %s93 = sphi 0, %s79
    %s101 = sphi 0, %s103
    %s104 = sphi 0, %s101
    %s105 = sphi 0, %s104
    %s121 = sphi 0, %s105
  $region4: #{_lambda_.43} parent=0 // loop_header_branch
    %12 = sbr.rel (%p10) target = $region8
  $region5: #{_lambda_.43} parent=0 // loop_body
    %s14 = ssub.s32 %s9, 1
    %s15 = ssub.s32 %s9, 2
    %s22 = sadd.s32 1, %s17
    %p23 = scmp.ge.s32.totalorder %s22, 1
    %s24 = scalar_select %p23, 0, %s22
    %s25 = sadd.s32 1, %s16
    %s26 = scalar_select %p23, %s25, %s16
    %p27 = scmp.ge.s32.totalorder %s26, 2
    %s28 = scalar_select %p27, 0, %s26
    %s29 = ssub.s32 %s16, %s28
    %p30 = scmp.eq.s32.totalorder %s29, 0
    %s32 = sadd.s32 %s31, 1
    %s33 = scalar_select %p30, %s31, %s32
    %p36 = pneg %p30
    %p37 = scmp.eq.s32.totalorder %s9, 1
    %p38 = por %p36, %p37
    %p39 = scmp.ne.s32.totalorder %s31, %s34
    %p40 = scmp.eq.s32.totalorder %s9, 0
    %p41 = por %p39, %p40
    %p42 = scmp.ne.s32.totalorder %s31, %s34
    %p43 = scmp.eq.s32.totalorder %s14, 1
    %p44 = por %p42, %p43
    %p45 = scmp.ne.s32.totalorder %s34, %s35
    %p46 = scmp.eq.s32.totalorder %s14, 0
    %p47 = por %p45, %p46
    %p48 = scmp.ne.s32.totalorder %s34, %s35
    %p49 = scmp.eq.s32.totalorder %s15, 1
    %p50 = por %p48, %p49
    %p52 = scmp.ne.s32.totalorder %s35, %s51
    %p53 = scmp.eq.s32.totalorder %s15, 0
    %p54 = por %p52, %p53
    %s56 = sadd.s32 %s55, 1
    %p59 = scmp.eq.s32.totalorder %s9, 1
    %p60 = scmp.ne.s32.totalorder %s55, %s57
    %p61 = scmp.eq.s32.totalorder %s9, 0
    %p62 = por %p60, %p61
    %p63 = scmp.ne.s32.totalorder %s55, %s57
    %p64 = scmp.eq.s32.totalorder %s14, 1
    %p65 = por %p63, %p64
    %p66 = scmp.ne.s32.totalorder %s57, %s58
    %p67 = scmp.eq.s32.totalorder %s14, 0
    %p68 = por %p66, %p67
    %p69 = scmp.ne.s32.totalorder %s57, %s58
    %p70 = scmp.eq.s32.totalorder %s15, 1
    %p71 = por %p69, %p70
    %p73 = scmp.ne.s32.totalorder %s58, %s72
    %p74 = scmp.eq.s32.totalorder %s15, 0
    %p75 = por %p73, %p74
    %s77 = sadd.s32 %s76, 1
    %p80 = scmp.eq.s32.totalorder %s9, 1
    %p81 = scmp.ne.s32.totalorder %s76, %s78
    %p82 = scmp.eq.s32.totalorder %s9, 0
    %p83 = por %p81, %p82
    %p84 = scmp.ne.s32.totalorder %s76, %s78
    %p85 = scmp.eq.s32.totalorder %s14, 1
    %p86 = por %p84, %p85
    %p87 = scmp.ne.s32.totalorder %s78, %s79
    %p88 = scmp.eq.s32.totalorder %s14, 0
    %p89 = por %p87, %p88
    %p90 = scmp.ne.s32.totalorder %s78, %s79
    %p91 = scmp.eq.s32.totalorder %s15, 1
    %p92 = por %p90, %p91
    %p94 = scmp.ne.s32.totalorder %s79, %s93
    %p95 = scmp.eq.s32.totalorder %s15, 0
    %p96 = por %p94, %p95
    %s97 = ssub.s32 %s16, %s28
    %s98 = ssub.s32 %s17, %s24
    %s99 = sor.u32 %s97, %s98
    %p100 = scmp.eq.s32.totalorder %s99, 0
    %s102 = sadd.s32 %s101, 1
    %s103 = scalar_select %p100, %s101, %s102
    %p106 = pneg %p100
    %p107 = scmp.eq.s32.totalorder %s9, 1
    %p108 = por %p106, %p107
    %p109 = scmp.ne.s32.totalorder %s101, %s104
    %p110 = scmp.eq.s32.totalorder %s9, 0
    %p111 = por %p109, %p110
    %p112 = scmp.ne.s32.totalorder %s101, %s104
    %p113 = scmp.eq.s32.totalorder %s14, 1
    %p114 = por %p112, %p113
    %p115 = scmp.ne.s32.totalorder %s104, %s105
    %p116 = scmp.eq.s32.totalorder %s14, 0
    %p117 = por %p115, %p116
    %p118 = scmp.ne.s32.totalorder %s104, %s105
    %p119 = scmp.eq.s32.totalorder %s15, 1
    %p120 = por %p118, %p119
    %p122 = scmp.ne.s32.totalorder %s105, %s121
    %p123 = scmp.eq.s32.totalorder %s15, 0
    %p124 = por %p122, %p123
    %p125 = scmp.le.s32.totalorder 1, %s9
    %p126 = scmp.lt.s32.totalorder %s9, 3
    %p127 = pnand %p125, %p126
    %p128 = pneg %p127
    // Predicated region
    $region9: #{_lambda_.43} parent=5 // pred_check
      _
    $region10: #{_lambda_.43} parent=5 // pred_check_branch
      %130 = sbr.rel (%p127) target = $region12
    $region11: #{_lambda_.43} parent=5 // pred_region
      %s131 = ssub.s32 %s9, 1
      // Predicated region
      $region13: #{_lambda_.43} parent=11 // pred_check
        %p132 = pneg %p68
      $region14: #{_lambda_.43} parent=11 // pred_check_branch
        %134 = sbr.rel (%p132) target = $region16
      $region15: #{_lambda_.43} parent=11 // pred_region
        _
      $region16: #{_lambda_.43} parent=11 // pred_fallthru
        _
      // Predicated region
      $region17: #{_lambda_.43} parent=11 // pred_check
        %p135 = pneg %p89
      $region18: #{_lambda_.43} parent=11 // pred_check_branch
        %137 = sbr.rel (%p135) target = $region20
      $region19: #{_lambda_.43} parent=11 // pred_region
        _
      $region20: #{_lambda_.43} parent=11 // pred_fallthru
        _
    $region12: #{_lambda_.43} parent=5 // pred_fallthru
      _
    %p138 = scmp.lt.s32.totalorder %s9, 2
    // Predicated region
    $region21: #{_lambda_.43} parent=5 // pred_check
      %p139 = pneg %p138
    $region22: #{_lambda_.43} parent=5 // pred_check_branch
      %141 = sbr.rel (%p139) target = $region24
    $region23: #{_lambda_.43} parent=5 // pred_region
      // Predicated region
      $region25: #{_lambda_.43} parent=23 // pred_check
        %p142 = pneg %p41
      $region26: #{_lambda_.43} parent=23 // pred_check_branch
        %144 = sbr.rel (%p142) target = $region28
      $region27: #{_lambda_.43} parent=23 // pred_region
        %p145 = scmp.lt.s32.totalorder %s16, 1
        %s146 = scalar_select %p145, %s16, 1
        %s147 = smul.addr %s146, 4
        %s148 = scalar_lea.vmem %s0, %s147
      $region28: #{_lambda_.43} parent=23 // pred_fallthru
        _
    $region24: #{_lambda_.43} parent=5 // pred_fallthru
      _
    %p149 = scmp.le.s32.totalorder 1, %s9
    %p150 = scmp.lt.s32.totalorder %s9, 3
    %p151 = pnand %p149, %p150
    %p152 = pneg %p151
    // Predicated region
    $region29: #{_lambda_.43} parent=5 // pred_check
      _
    $region30: #{_lambda_.43} parent=5 // pred_check_branch
      %154 = sbr.rel (%p151) target = $region32
    $region31: #{_lambda_.43} parent=5 // pred_region
      %s155 = ssub.s32 %s9, 1
      %p156 = scmp.lt.s32.totalorder %s18, 1
      %s157 = scalar_select %p156, %s18, 1
      %s158 = smul.addr %s157, 4
      %s159 = scalar_lea.vmem %s0, %s158
      %p160 = pneg %p47
      %p161 = pneg %p44
      %p162 = pneg %p68
      %p163 = pneg %p65
      %p164 = pneg %p89
      %p165 = pneg %p86
      %p166 = pneg %p117
      %p167 = pneg %p114
      %p168 = scmp.lt.s32.totalorder %s18, 1
      %s169 = scalar_select %p168, %s18, 1
      %p170 = scmp.lt.s32.totalorder %s19, 0
      %s171 = scalar_select %p170, %s19, 0
      %s172 = sadd.s32 %s171, %s169
      %s173 = smul.addr %s172, 4
      %s174 = scalar_lea.vmem %s3, %s173
      %p175 = scmp.lt.s32.totalorder %s18, 1
      %s176 = scalar_select %p175, %s18, 1
      %s177 = smul.addr %s176, 4
      %s178 = scalar_lea.vmem %s0, %s177
      %p179 = scmp.lt.s32.totalorder %s18, 1
      %s180 = scalar_select %p179, %s18, 1
      %p181 = scmp.lt.s32.totalorder %s19, 0
      %s182 = scalar_select %p181, %s19, 0
      %s183 = sadd.s32 %s182, %s180
      %s184 = smul.addr %s183, 4
      %s185 = scalar_lea.vmem %s3, %s184
      %v187 = vld [vmem:[%s178] sm:$0xf]
      %v189 = vunpack.c.l.b16 %v187
      %v190 = vpack.c.b16 %v189, %v189
      %191 = vrot.lane.b32.xlu0 %v190, 127
      %v192 = vpop.permute.xlu0 %191
      %193 = vrot.lane.b32.xlu0 %v190, 126
      %v194 = vpop.permute.xlu0 %193
      %195 = vrot.lane.b32.xlu0 %v190, 125
      %v196 = vpop.permute.xlu0 %195
      %197 = vrot.lane.b32.xlu0 %v190, 124
      %v198 = vpop.permute.xlu0 %197
      %vm199 = vcmask 1043456
      %v202 = vsel %vm199, %v187, %v192
      %v206 = vsel %vm199, %v194, %v196
      %v208 = vld [vmem:[%s1] sm:$0xf]
      %v209 = vld [vmem:[%s2] sm:$0xff]
      %211 = vset.pattern.permute.xlu0 0
      %212 = vperm.xlu0 %211, %v209
      %v213 = vpop.permute.xlu0 %212
      %vm215 = vcmask 326656
      %v217 = vsel %vm215, %v208, 0
      %v220 = vsel %vm199, %v198, 0
      %222 = vmatprep.subr.bf16.mxu0 0
      %223 = vmatpush1.bf16.msra.mxu0 %v202
      %224 = vmatprep.subr.bf16.mxu0 0
      %225 = vmatpush1.bf16.msra.mxu0 %v206
      %226 = vmatprep.subr.bf16.mxu0 0
      %227 = vmatpush1.bf16.msra.mxu0 %v220
      %228 = vmatprep.subr.bf16.mxu0 0
      %229 = vmatpush1.bf16.msra.mxu0 0
      %230 = vmatprep.subr.bf16.mxu0 0
      %231 = vmatpush1.bf16.msra.mxu0 0
      %232 = vmatprep.subr.bf16.mxu0 0
      %233 = vmatpush1.bf16.msra.mxu0 0
      %234 = vmatprep.subr.bf16.mxu0 0
      %235 = vmatpush1.bf16.msra.mxu0 0
      %236 = vmatprep.subr.bf16.mxu0 0
      %237 = vmatpush1.bf16.msra.mxu0 0
      %238 = vmatprep.subr.bf16.mxu0 0
      %239 = vmatpush1.bf16.msra.mxu0 0
      %240 = vmatprep.subr.bf16.mxu0 0
      %241 = vmatpush1.bf16.msra.mxu0 0
      %242 = vmatprep.subr.bf16.mxu0 0
      %243 = vmatpush1.bf16.msra.mxu0 0
      %244 = vmatprep.subr.bf16.mxu0 0
      %245 = vmatpush1.bf16.msra.mxu0 0
      %246 = vmatprep.subr.bf16.mxu0 0
      %247 = vmatpush1.bf16.msra.mxu0 0
      %248 = vmatprep.subr.bf16.mxu0 0
      %249 = vmatpush1.bf16.msra.mxu0 0
      %250 = vmatprep.subr.bf16.mxu0 0
      %251 = vmatpush1.bf16.msra.mxu0 0
      %252 = vmatprep.subr.bf16.mxu0 0
      %253 = vmatpush1.bf16.msra.mxu0 0
      %254 = vmatprep.mubr.bf16.mxu0 0
      %255 = vmatmul.mubr.bf16.gmra.mrb[0].mxu0 %v217
      %v256 = vpop.f32.mrb[0].mxu0
      %v257 = vadd.f32 %v213, %v256
      %v258 = vpop.f32.mrb[0].mxu0
      %v259 = vpop.f32.mrb[0].mxu0
      %v260 = vpop.f32.mrb[0].mxu0
      %261 = vdwg.mxu0
      %v262 = vmul.f32 %v257, 0.1
      %v263 = vmax.f32 %v257, %v262
      %v264 = vpack.c.bf16 %v263, %v263
      %vm265 = vcmask 125952
      %266 = vst.msk [vmem:[%s185] sm:$0xf] %vm265, %v264
      %p267 = scmp.lt.s32.totalorder %s18, 1
      %s268 = scalar_select %p267, %s18, 1
      %p269 = scmp.lt.s32.totalorder %s19, 0
      %s270 = scalar_select %p269, %s19, 0
      %s271 = sadd.s32 %s270, %s268
      %s272 = smul.addr %s271, 4
      %s273 = scalar_lea.vmem %s3, %s272
      // Predicated region
      $region33: #{_lambda_.43} parent=31 // pred_check
        %p274 = pneg %p114
      $region34: #{_lambda_.43} parent=31 // pred_check_branch
        %276 = sbr.rel (%p274) target = $region36
      $region35: #{_lambda_.43} parent=31 // pred_region
        _
      $region36: #{_lambda_.43} parent=31 // pred_fallthru
        _
    $region32: #{_lambda_.43} parent=5 // pred_fallthru
      _
    %p277 = scmp.le.s32.totalorder 2, %s9
    // Predicated region
    $region37: #{_lambda_.43} parent=5 // pred_check
      %p278 = pneg %p277
    $region38: #{_lambda_.43} parent=5 // pred_check_branch
      %280 = sbr.rel (%p278) target = $region40
    $region39: #{_lambda_.43} parent=5 // pred_region
      %s281 = ssub.s32 %s9, 2
      // Predicated region
      $region41: #{_lambda_.43} parent=39 // pred_check
        %p282 = pneg %p120
      $region42: #{_lambda_.43} parent=39 // pred_check_branch
        %284 = sbr.rel (%p282) target = $region44
      $region43: #{_lambda_.43} parent=39 // pred_region
        %p285 = scmp.lt.s32.totalorder %s20, 1
        %s286 = scalar_select %p285, %s20, 1
        %p287 = scmp.lt.s32.totalorder %s21, 0
        %s288 = scalar_select %p287, %s21, 0
        %s289 = sadd.s32 %s288, %s286
        %s290 = smul.addr %s289, 4
        %s291 = scalar_lea.vmem %s3, %s290
      $region44: #{_lambda_.43} parent=39 // pred_fallthru
        _
    $region40: #{_lambda_.43} parent=5 // pred_fallthru
      _
  $region6: #{_lambda_.43} parent=0 // loop_footer
    %s13 = sadd.s32 1, %s9
  $region7: #{_lambda_.43} parent=0 // loop_footer_branch
    %8 = sbr.rel target = $region3
  $region8: #{_lambda_.43} parent=0 // loop_exit
    _

// kernel: _lambda_.46
$region0: #{_lambda_.46}
  #allocation0 [shape = 'u32[]', space=smem, size = 0x4, offset = 0x4, fixed_abs, tag = 'smem constant byte address 0x4 - core index']
  #allocation1 [shape = 'u32[144,128]{1,0:T(1,128)}', space=vmem, size = 0x12000, scoped, tag = 'internal scratch']
  #allocation2 [shape = 'f32[1,1]{1,0:T(1,128)S(1)}', space=vmem, size = 0x200, scoped, tag = 'scoped memory for _lambda_.46']
  %s0 = inlined_call_operand.vmem [shape: bf16[2,2,18], index: 0, kind: input, shape index: {}]
  %s1 = inlined_call_operand.vmem [shape: bf16[1,4], index: 1, kind: input, shape index: {}]
  %s2 = inlined_call_operand.<no memory space> [shape: f32[1,1], index: 2, kind: input, shape index: {}]
  %s3 = inlined_call_operand.vmem [shape: bf16[2,1,17], index: 3, kind: output, shape index: {}]
  %s4 = sld [smem:[#allocation0]]
  $region45: #{_lambda_.46} parent=0
    _
  %s6 = ssub.s32 1, %s4
  %s7 = scalar_select 0, %s6, %s4
  %v8 = vstv %s2
  %9 = vst [vmem:[#allocation2] sm:$0x1] %v8
  loop: start=0, step=1, limit=4
  $region2: #{_lambda_.46} parent=0 // loop_pre_header
    _
  $region3: #{_lambda_.46} parent=0 // loop_header
    %s11 = sphi 0, %s15
    %p12 = scmp.ge.s32.totalorder %s11, 4
    %s18 = sphi 0, %s30
    %s19 = sphi 0, %s26
    %s20 = sphi 0, %s18
    %s21 = sphi 0, %s19
    %s22 = sphi 0, %s20
    %s23 = sphi 0, %s21
    %s33 = sphi 0, %s35
    %s36 = sphi 0, %s33
    %s37 = sphi 0, %s36
    %s53 = sphi 0, %s37
    %s57 = sphi 0, %s57
    %s59 = sphi 0, %s57
    %s60 = sphi 0, %s59
    %s74 = sphi 0, %s60
    %s78 = sphi 0, %s78
    %s80 = sphi 0, %s78
    %s81 = sphi 0, %s80
    %s95 = sphi 0, %s81
    %s103 = sphi 0, %s105
    %s106 = sphi 0, %s103
    %s107 = sphi 0, %s106
    %s123 = sphi 0, %s107
  $region4: #{_lambda_.46} parent=0 // loop_header_branch
    %14 = sbr.rel (%p12) target = $region8
  $region5: #{_lambda_.46} parent=0 // loop_body
    %s16 = ssub.s32 %s11, 1
    %s17 = ssub.s32 %s11, 2
    %s24 = sadd.s32 1, %s19
    %p25 = scmp.ge.s32.totalorder %s24, 1
    %s26 = scalar_select %p25, 0, %s24
    %s27 = sadd.s32 1, %s18
    %s28 = scalar_select %p25, %s27, %s18
    %p29 = scmp.ge.s32.totalorder %s28, 2
    %s30 = scalar_select %p29, 0, %s28
    %s31 = ssub.s32 %s18, %s30
    %p32 = scmp.eq.s32.totalorder %s31, 0
    %s34 = sadd.s32 %s33, 1
    %s35 = scalar_select %p32, %s33, %s34
    %p38 = pneg %p32
    %p39 = scmp.eq.s32.totalorder %s11, 1
    %p40 = por %p38, %p39
    %p41 = scmp.ne.s32.totalorder %s33, %s36
    %p42 = scmp.eq.s32.totalorder %s11, 0
    %p43 = por %p41, %p42
    %p44 = scmp.ne.s32.totalorder %s33, %s36
    %p45 = scmp.eq.s32.totalorder %s16, 1
    %p46 = por %p44, %p45
    %p47 = scmp.ne.s32.totalorder %s36, %s37
    %p48 = scmp.eq.s32.totalorder %s16, 0
    %p49 = por %p47, %p48
    %p50 = scmp.ne.s32.totalorder %s36, %s37
    %p51 = scmp.eq.s32.totalorder %s17, 1
    %p52 = por %p50, %p51
    %p54 = scmp.ne.s32.totalorder %s37, %s53
    %p55 = scmp.eq.s32.totalorder %s17, 0
    %p56 = por %p54, %p55
    %s58 = sadd.s32 %s57, 1
    %p61 = scmp.eq.s32.totalorder %s11, 1
    %p62 = scmp.ne.s32.totalorder %s57, %s59
    %p63 = scmp.eq.s32.totalorder %s11, 0
    %p64 = por %p62, %p63
    %p65 = scmp.ne.s32.totalorder %s57, %s59
    %p66 = scmp.eq.s32.totalorder %s16, 1
    %p67 = por %p65, %p66
    %p68 = scmp.ne.s32.totalorder %s59, %s60
    %p69 = scmp.eq.s32.totalorder %s16, 0
    %p70 = por %p68, %p69
    %p71 = scmp.ne.s32.totalorder %s59, %s60
    %p72 = scmp.eq.s32.totalorder %s17, 1
    %p73 = por %p71, %p72
    %p75 = scmp.ne.s32.totalorder %s60, %s74
    %p76 = scmp.eq.s32.totalorder %s17, 0
    %p77 = por %p75, %p76
    %s79 = sadd.s32 %s78, 1
    %p82 = scmp.eq.s32.totalorder %s11, 1
    %p83 = scmp.ne.s32.totalorder %s78, %s80
    %p84 = scmp.eq.s32.totalorder %s11, 0
    %p85 = por %p83, %p84
    %p86 = scmp.ne.s32.totalorder %s78, %s80
    %p87 = scmp.eq.s32.totalorder %s16, 1
    %p88 = por %p86, %p87
    %p89 = scmp.ne.s32.totalorder %s80, %s81
    %p90 = scmp.eq.s32.totalorder %s16, 0
    %p91 = por %p89, %p90
    %p92 = scmp.ne.s32.totalorder %s80, %s81
    %p93 = scmp.eq.s32.totalorder %s17, 1
    %p94 = por %p92, %p93
    %p96 = scmp.ne.s32.totalorder %s81, %s95
    %p97 = scmp.eq.s32.totalorder %s17, 0
    %p98 = por %p96, %p97
    %s99 = ssub.s32 %s18, %s30
    %s100 = ssub.s32 %s19, %s26
    %s101 = sor.u32 %s99, %s100
    %p102 = scmp.eq.s32.totalorder %s101, 0
    %s104 = sadd.s32 %s103, 1
    %s105 = scalar_select %p102, %s103, %s104
    %p108 = pneg %p102
    %p109 = scmp.eq.s32.totalorder %s11, 1
    %p110 = por %p108, %p109
    %p111 = scmp.ne.s32.totalorder %s103, %s106
    %p112 = scmp.eq.s32.totalorder %s11, 0
    %p113 = por %p111, %p112
    %p114 = scmp.ne.s32.totalorder %s103, %s106
    %p115 = scmp.eq.s32.totalorder %s16, 1
    %p116 = por %p114, %p115
    %p117 = scmp.ne.s32.totalorder %s106, %s107
    %p118 = scmp.eq.s32.totalorder %s16, 0
    %p119 = por %p117, %p118
    %p120 = scmp.ne.s32.totalorder %s106, %s107
    %p121 = scmp.eq.s32.totalorder %s17, 1
    %p122 = por %p120, %p121
    %p124 = scmp.ne.s32.totalorder %s107, %s123
    %p125 = scmp.eq.s32.totalorder %s17, 0
    %p126 = por %p124, %p125
    %p127 = scmp.le.s32.totalorder 1, %s11
    %p128 = scmp.lt.s32.totalorder %s11, 3
    %p129 = pnand %p127, %p128
    %p130 = pneg %p129
    // Predicated region
    $region9: #{_lambda_.46} parent=5 // pred_check
      _
    $region10: #{_lambda_.46} parent=5 // pred_check_branch
      %132 = sbr.rel (%p129) target = $region12
    $region11: #{_lambda_.46} parent=5 // pred_region
      %s133 = ssub.s32 %s11, 1
      // Predicated region
      $region13: #{_lambda_.46} parent=11 // pred_check
        %p134 = pneg %p70
      $region14: #{_lambda_.46} parent=11 // pred_check_branch
        %136 = sbr.rel (%p134) target = $region16
      $region15: #{_lambda_.46} parent=11 // pred_region
        _
      $region16: #{_lambda_.46} parent=11 // pred_fallthru
        _
      // Predicated region
      $region17: #{_lambda_.46} parent=11 // pred_check
        %p137 = pneg %p91
      $region18: #{_lambda_.46} parent=11 // pred_check_branch
        %139 = sbr.rel (%p137) target = $region20
      $region19: #{_lambda_.46} parent=11 // pred_region
        _
      $region20: #{_lambda_.46} parent=11 // pred_fallthru
        _
    $region12: #{_lambda_.46} parent=5 // pred_fallthru
      _
    %p140 = scmp.lt.s32.totalorder %s11, 2
    // Predicated region
    $region21: #{_lambda_.46} parent=5 // pred_check
      %p141 = pneg %p140
    $region22: #{_lambda_.46} parent=5 // pred_check_branch
      %143 = sbr.rel (%p141) target = $region24
    $region23: #{_lambda_.46} parent=5 // pred_region
      // Predicated region
      $region25: #{_lambda_.46} parent=23 // pred_check
        %p144 = pneg %p43
      $region26: #{_lambda_.46} parent=23 // pred_check_branch
        %146 = sbr.rel (%p144) target = $region28
      $region27: #{_lambda_.46} parent=23 // pred_region
        %p147 = scmp.lt.s32.totalorder %s18, 1
        %s148 = scalar_select %p147, %s18, 1
        %s149 = scalar_lea.vmem %s0, %s148
      $region28: #{_lambda_.46} parent=23 // pred_fallthru
        _
    $region24: #{_lambda_.46} parent=5 // pred_fallthru
      _
    %p150 = scmp.le.s32.totalorder 1, %s11
    %p151 = scmp.lt.s32.totalorder %s11, 3
    %p152 = pnand %p150, %p151
    %p153 = pneg %p152
    // Predicated region
    $region29: #{_lambda_.46} parent=5 // pred_check
      _
    $region30: #{_lambda_.46} parent=5 // pred_check_branch
      %155 = sbr.rel (%p152) target = $region32
    $region31: #{_lambda_.46} parent=5 // pred_region
      %s156 = ssub.s32 %s11, 1
      %p157 = scmp.lt.s32.totalorder %s20, 1
      %s158 = scalar_select %p157, %s20, 1
      %s159 = scalar_lea.vmem %s0, %s158
      %p160 = pneg %p49
      %p161 = pneg %p46
      %p162 = pneg %p70
      %p163 = pneg %p67
      %p164 = pneg %p91
      %p165 = pneg %p88
      %p166 = pneg %p119
      %p167 = pneg %p116
      %p168 = scmp.lt.s32.totalorder %s20, 1
      %s169 = scalar_select %p168, %s20, 1
      %p170 = scmp.lt.s32.totalorder %s21, 0
      %s171 = scalar_select %p170, %s21, 0
      %s172 = sadd.s32 %s171, %s169
      %s173 = scalar_lea.vmem %s3, %s172
      %p174 = scmp.lt.s32.totalorder %s20, 1
      %s175 = scalar_select %p174, %s20, 1
      %s176 = scalar_lea.vmem %s0, %s175
      %p177 = scmp.lt.s32.totalorder %s20, 1
      %s178 = scalar_select %p177, %s20, 1
      %p179 = scmp.lt.s32.totalorder %s21, 0
      %s180 = scalar_select %p179, %s21, 0
      %s181 = sadd.s32 %s180, %s178
      %s182 = scalar_lea.vmem %s3, %s181
      %v184 = vld [vmem:[%s176] sm:$0x1]
      %v186 = vcombine.low %v184, %v184
      %v188 = vunpack.c.l.s4 1966171168
      %v189 = vunpack.c.0.s8 %v188
      %v190 = vlaneseq
      %v191 = vshrl.u32 %v190, 7
      %v192 = vsub.s32 %v189, %v191
      %v193 = vrot.slane %v186, %v192
      %v195 = vunpack.c.l.s4 1966171168
      %v196 = vunpack.c.0.s8 %v195
      %v197 = vlaneseq
      %v198 = vshrl.u32 %v197, 7
      %v199 = vsub.s32 %v196, %v198
      %v200 = vrot.slane %v193, %v199
      %201 = vrot.lane.b32.xlu0 %v200, 127
      %v202 = vpop.permute.xlu0 %201
      %vm203 = vcmask 1040384
      %v206 = vsel %vm203, %v184, %v202
      %v207 = vld [vmem:[%s1] sm:$0x1]
      %v208 = vld [vmem:[#allocation2] sm:$0x1]
      %210 = vset.pattern.permute.xlu0 0
      %211 = vperm.xlu0 %210, %v208
      %v212 = vpop.permute.xlu0 %211
      %v214 = vlaneseq
      %v215 = vshrl.u32 %v214, 7
      %v216 = vsub.s32 0, %v215
      %v217 = vrot.slane %v212, %v216
      %vm218 = vcmask 31744
      %v220 = vsel %vm218, %v207, 0
      %vm222 = vcmask 1041408
      %v223 = vsel %vm222, %v206, 0
      %225 = vmatprep.subr.bf16.mxu0 0
      %226 = vmatpush1.bf16.msra.mxu0 %v223
      %227 = vmatprep.subr.bf16.mxu0 0
      %228 = vmatpush1.bf16.msra.mxu0 0
      %229 = vmatprep.subr.bf16.mxu0 0
      %230 = vmatpush1.bf16.msra.mxu0 0
      %231 = vmatprep.subr.bf16.mxu0 0
      %232 = vmatpush1.bf16.msra.mxu0 0
      %233 = vmatprep.subr.bf16.mxu0 0
      %234 = vmatpush1.bf16.msra.mxu0 0
      %235 = vmatprep.subr.bf16.mxu0 0
      %236 = vmatpush1.bf16.msra.mxu0 0
      %237 = vmatprep.subr.bf16.mxu0 0
      %238 = vmatpush1.bf16.msra.mxu0 0
      %239 = vmatprep.subr.bf16.mxu0 0
      %240 = vmatpush1.bf16.msra.mxu0 0
      %241 = vmatprep.subr.bf16.mxu0 0
      %242 = vmatpush1.bf16.msra.mxu0 0
      %243 = vmatprep.subr.bf16.mxu0 0
      %244 = vmatpush1.bf16.msra.mxu0 0
      %245 = vmatprep.subr.bf16.mxu0 0
      %246 = vmatpush1.bf16.msra.mxu0 0
      %247 = vmatprep.subr.bf16.mxu0 0
      %248 = vmatpush1.bf16.msra.mxu0 0
      %249 = vmatprep.subr.bf16.mxu0 0
      %250 = vmatpush1.bf16.msra.mxu0 0
      %251 = vmatprep.subr.bf16.mxu0 0
      %252 = vmatpush1.bf16.msra.mxu0 0
      %253 = vmatprep.subr.bf16.mxu0 0
      %254 = vmatpush1.bf16.msra.mxu0 0
      %255 = vmatprep.subr.bf16.mxu0 0
      %256 = vmatpush1.bf16.msra.mxu0 0
      %257 = vmatprep.mubr.bf16.mxu0 0
      %258 = vmatmul.mubr.bf16.gmra.mrb[0].mxu0 %v220
      %v259 = vpop.f32.mrb[0].mxu0
      %v260 = vadd.f32 %v217, %v259
      %v261 = vpop.f32.mrb[0].mxu0
      %v262 = vpop.f32.mrb[0].mxu0
      %v263 = vpop.f32.mrb[0].mxu0
      %264 = vdwg.mxu0
      %v265 = vpack.c.bf16 %v260, %v260
      %vm266 = vcmask 131072
      %vm267 = vsmask.f32 256
      %vm268 = vmand %vm266, %vm267
      %v269 = vld [vmem:[%s182] sm:$0x1]
      %v270 = vsel %vm268, %v265, %v269
      %271 = vst [vmem:[%s182] sm:$0x1] %v270
      %p272 = scmp.lt.s32.totalorder %s20, 1
      %s273 = scalar_select %p272, %s20, 1
      %p274 = scmp.lt.s32.totalorder %s21, 0
      %s275 = scalar_select %p274, %s21, 0
      %s276 = sadd.s32 %s275, %s273
      %s277 = scalar_lea.vmem %s3, %s276
      // Predicated region
      $region33: #{_lambda_.46} parent=31 // pred_check
        %p278 = pneg %p116
      $region34: #{_lambda_.46} parent=31 // pred_check_branch
        %280 = sbr.rel (%p278) target = $region36
      $region35: #{_lambda_.46} parent=31 // pred_region
        _
      $region36: #{_lambda_.46} parent=31 // pred_fallthru
        _
    $region32: #{_lambda_.46} parent=5 // pred_fallthru
      _
    %p281 = scmp.le.s32.totalorder 2, %s11
    // Predicated region
    $region37: #{_lambda_.46} parent=5 // pred_check
      %p282 = pneg %p281
    $region38: #{_lambda_.46} parent=5 // pred_check_branch
      %284 = sbr.rel (%p282) target = $region40
    $region39: #{_lambda_.46} parent=5 // pred_region
      %s285 = ssub.s32 %s11, 2
      // Predicated region
      $region41: #{_lambda_.46} parent=39 // pred_check
        %p286 = pneg %p122
      $region42: #{_lambda_.46} parent=39 // pred_check_branch
        %288 = sbr.rel (%p286) target = $region44
      $region43: #{_lambda_.46} parent=39 // pred_region
        %p289 = scmp.lt.s32.totalorder %s22, 1
        %s290 = scalar_select %p289, %s22, 1
        %p291 = scmp.lt.s32.totalorder %s23, 0
        %s292 = scalar_select %p291, %s23, 0
        %s293 = sadd.s32 %s292, %s290
        %s294 = scalar_lea.vmem %s3, %s293
      $region44: #{_lambda_.46} parent=39 // pred_fallthru
        _
    $region40: #{_lambda_.46} parent=5 // pred_fallthru
      _
  $region6: #{_lambda_.46} parent=0 // loop_footer
    %s15 = sadd.s32 1, %s11
  $region7: #{_lambda_.46} parent=0 // loop_footer_branch
    %10 = sbr.rel target = $region3
  $region8: #{_lambda_.46} parent=0 // loop_exit
    _

// kernel: _lambda_.48
$region0: #{_lambda_.48}
  #allocation0 [shape = 'u32[]', space=smem, size = 0x4, offset = 0x4, fixed_abs, tag = 'smem constant byte address 0x4 - core index']
  #allocation1 [shape = 'u32[144,128]{1,0:T(1,128)}', space=vmem, size = 0x12000, scoped, tag = 'internal scratch']
  %s0 = inlined_call_operand.vmem [shape: bf16[2,8,13], index: 0, kind: input, shape index: {}]
  %s1 = inlined_call_operand.vmem [shape: bf16[8,40], index: 1, kind: input, shape index: {}]
  %s2 = inlined_call_operand.vmem [shape: f32[8,1], index: 2, kind: input, shape index: {}]
  %s3 = inlined_call_operand.vmem [shape: bf16[2,8,9], index: 3, kind: output, shape index: {}]
  %s4 = sld [smem:[#allocation0]]
  $region45: #{_lambda_.48} parent=0
    _
  %s6 = ssub.s32 1, %s4
  %s7 = scalar_select 0, %s6, %s4
  loop: start=0, step=1, limit=4
  $region2: #{_lambda_.48} parent=0 // loop_pre_header
    _
  $region3: #{_lambda_.48} parent=0 // loop_header
    %s9 = sphi 0, %s13
    %p10 = scmp.ge.s32.totalorder %s9, 4
    %s16 = sphi 0, %s28
    %s17 = sphi 0, %s24
    %s18 = sphi 0, %s16
    %s19 = sphi 0, %s17
    %s20 = sphi 0, %s18
    %s21 = sphi 0, %s19
    %s31 = sphi 0, %s33
    %s34 = sphi 0, %s31
    %s35 = sphi 0, %s34
    %s51 = sphi 0, %s35
    %s55 = sphi 0, %s55
    %s57 = sphi 0, %s55
    %s58 = sphi 0, %s57
    %s72 = sphi 0, %s58
    %s76 = sphi 0, %s76
    %s78 = sphi 0, %s76
    %s79 = sphi 0, %s78
    %s93 = sphi 0, %s79
    %s101 = sphi 0, %s103
    %s104 = sphi 0, %s101
    %s105 = sphi 0, %s104
    %s121 = sphi 0, %s105
  $region4: #{_lambda_.48} parent=0 // loop_header_branch
    %12 = sbr.rel (%p10) target = $region8
  $region5: #{_lambda_.48} parent=0 // loop_body
    %s14 = ssub.s32 %s9, 1
    %s15 = ssub.s32 %s9, 2
    %s22 = sadd.s32 1, %s17
    %p23 = scmp.ge.s32.totalorder %s22, 1
    %s24 = scalar_select %p23, 0, %s22
    %s25 = sadd.s32 1, %s16
    %s26 = scalar_select %p23, %s25, %s16
    %p27 = scmp.ge.s32.totalorder %s26, 2
    %s28 = scalar_select %p27, 0, %s26
    %s29 = ssub.s32 %s16, %s28
    %p30 = scmp.eq.s32.totalorder %s29, 0
    %s32 = sadd.s32 %s31, 1
    %s33 = scalar_select %p30, %s31, %s32
    %p36 = pneg %p30
    %p37 = scmp.eq.s32.totalorder %s9, 1
    %p38 = por %p36, %p37
    %p39 = scmp.ne.s32.totalorder %s31, %s34
    %p40 = scmp.eq.s32.totalorder %s9, 0
    %p41 = por %p39, %p40
    %p42 = scmp.ne.s32.totalorder %s31, %s34
    %p43 = scmp.eq.s32.totalorder %s14, 1
    %p44 = por %p42, %p43
    %p45 = scmp.ne.s32.totalorder %s34, %s35
    %p46 = scmp.eq.s32.totalorder %s14, 0
    %p47 = por %p45, %p46
    %p48 = scmp.ne.s32.totalorder %s34, %s35
    %p49 = scmp.eq.s32.totalorder %s15, 1
    %p50 = por %p48, %p49
    %p52 = scmp.ne.s32.totalorder %s35, %s51
    %p53 = scmp.eq.s32.totalorder %s15, 0
    %p54 = por %p52, %p53
    %s56 = sadd.s32 %s55, 1
    %p59 = scmp.eq.s32.totalorder %s9, 1
    %p60 = scmp.ne.s32.totalorder %s55, %s57
    %p61 = scmp.eq.s32.totalorder %s9, 0
    %p62 = por %p60, %p61
    %p63 = scmp.ne.s32.totalorder %s55, %s57
    %p64 = scmp.eq.s32.totalorder %s14, 1
    %p65 = por %p63, %p64
    %p66 = scmp.ne.s32.totalorder %s57, %s58
    %p67 = scmp.eq.s32.totalorder %s14, 0
    %p68 = por %p66, %p67
    %p69 = scmp.ne.s32.totalorder %s57, %s58
    %p70 = scmp.eq.s32.totalorder %s15, 1
    %p71 = por %p69, %p70
    %p73 = scmp.ne.s32.totalorder %s58, %s72
    %p74 = scmp.eq.s32.totalorder %s15, 0
    %p75 = por %p73, %p74
    %s77 = sadd.s32 %s76, 1
    %p80 = scmp.eq.s32.totalorder %s9, 1
    %p81 = scmp.ne.s32.totalorder %s76, %s78
    %p82 = scmp.eq.s32.totalorder %s9, 0
    %p83 = por %p81, %p82
    %p84 = scmp.ne.s32.totalorder %s76, %s78
    %p85 = scmp.eq.s32.totalorder %s14, 1
    %p86 = por %p84, %p85
    %p87 = scmp.ne.s32.totalorder %s78, %s79
    %p88 = scmp.eq.s32.totalorder %s14, 0
    %p89 = por %p87, %p88
    %p90 = scmp.ne.s32.totalorder %s78, %s79
    %p91 = scmp.eq.s32.totalorder %s15, 1
    %p92 = por %p90, %p91
    %p94 = scmp.ne.s32.totalorder %s79, %s93
    %p95 = scmp.eq.s32.totalorder %s15, 0
    %p96 = por %p94, %p95
    %s97 = ssub.s32 %s16, %s28
    %s98 = ssub.s32 %s17, %s24
    %s99 = sor.u32 %s97, %s98
    %p100 = scmp.eq.s32.totalorder %s99, 0
    %s102 = sadd.s32 %s101, 1
    %s103 = scalar_select %p100, %s101, %s102
    %p106 = pneg %p100
    %p107 = scmp.eq.s32.totalorder %s9, 1
    %p108 = por %p106, %p107
    %p109 = scmp.ne.s32.totalorder %s101, %s104
    %p110 = scmp.eq.s32.totalorder %s9, 0
    %p111 = por %p109, %p110
    %p112 = scmp.ne.s32.totalorder %s101, %s104
    %p113 = scmp.eq.s32.totalorder %s14, 1
    %p114 = por %p112, %p113
    %p115 = scmp.ne.s32.totalorder %s104, %s105
    %p116 = scmp.eq.s32.totalorder %s14, 0
    %p117 = por %p115, %p116
    %p118 = scmp.ne.s32.totalorder %s104, %s105
    %p119 = scmp.eq.s32.totalorder %s15, 1
    %p120 = por %p118, %p119
    %p122 = scmp.ne.s32.totalorder %s105, %s121
    %p123 = scmp.eq.s32.totalorder %s15, 0
    %p124 = por %p122, %p123
    %p125 = scmp.le.s32.totalorder 1, %s9
    %p126 = scmp.lt.s32.totalorder %s9, 3
    %p127 = pnand %p125, %p126
    %p128 = pneg %p127
    // Predicated region
    $region9: #{_lambda_.48} parent=5 // pred_check
      _
    $region10: #{_lambda_.48} parent=5 // pred_check_branch
      %130 = sbr.rel (%p127) target = $region12
    $region11: #{_lambda_.48} parent=5 // pred_region
      %s131 = ssub.s32 %s9, 1
      // Predicated region
      $region13: #{_lambda_.48} parent=11 // pred_check
        %p132 = pneg %p68
      $region14: #{_lambda_.48} parent=11 // pred_check_branch
        %134 = sbr.rel (%p132) target = $region16
      $region15: #{_lambda_.48} parent=11 // pred_region
        _
      $region16: #{_lambda_.48} parent=11 // pred_fallthru
        _
      // Predicated region
      $region17: #{_lambda_.48} parent=11 // pred_check
        %p135 = pneg %p89
      $region18: #{_lambda_.48} parent=11 // pred_check_branch
        %137 = sbr.rel (%p135) target = $region20
      $region19: #{_lambda_.48} parent=11 // pred_region
        _
      $region20: #{_lambda_.48} parent=11 // pred_fallthru
        _
    $region12: #{_lambda_.48} parent=5 // pred_fallthru
      _
    %p138 = scmp.lt.s32.totalorder %s9, 2
    // Predicated region
    $region21: #{_lambda_.48} parent=5 // pred_check
      %p139 = pneg %p138
    $region22: #{_lambda_.48} parent=5 // pred_check_branch
      %141 = sbr.rel (%p139) target = $region24
    $region23: #{_lambda_.48} parent=5 // pred_region
      // Predicated region
      $region25: #{_lambda_.48} parent=23 // pred_check
        %p142 = pneg %p41
      $region26: #{_lambda_.48} parent=23 // pred_check_branch
        %144 = sbr.rel (%p142) target = $region28
      $region27: #{_lambda_.48} parent=23 // pred_region
        %p145 = scmp.lt.s32.totalorder %s16, 1
        %s146 = scalar_select %p145, %s16, 1
        %s147 = smul.addr %s146, 4
        %s148 = scalar_lea.vmem %s0, %s147
      $region28: #{_lambda_.48} parent=23 // pred_fallthru
        _
    $region24: #{_lambda_.48} parent=5 // pred_fallthru
      _
    %p149 = scmp.le.s32.totalorder 1, %s9
    %p150 = scmp.lt.s32.totalorder %s9, 3
    %p151 = pnand %p149, %p150
    %p152 = pneg %p151
    // Predicated region
    $region29: #{_lambda_.48} parent=5 // pred_check
      _
    $region30: #{_lambda_.48} parent=5 // pred_check_branch
      %154 = sbr.rel (%p151) target = $region32
    $region31: #{_lambda_.48} parent=5 // pred_region
      %s155 = ssub.s32 %s9, 1
      %p156 = scmp.lt.s32.totalorder %s18, 1
      %s157 = scalar_select %p156, %s18, 1
      %s158 = smul.addr %s157, 4
      %s159 = scalar_lea.vmem %s0, %s158
      %p160 = pneg %p47
      %p161 = pneg %p44
      %p162 = pneg %p68
      %p163 = pneg %p65
      %p164 = pneg %p89
      %p165 = pneg %p86
      %p166 = pneg %p117
      %p167 = pneg %p114
      %p168 = scmp.lt.s32.totalorder %s18, 1
      %s169 = scalar_select %p168, %s18, 1
      %p170 = scmp.lt.s32.totalorder %s19, 0
      %s171 = scalar_select %p170, %s19, 0
      %s172 = sadd.s32 %s171, %s169
      %s173 = smul.addr %s172, 4
      %s174 = scalar_lea.vmem %s3, %s173
      %p175 = scmp.lt.s32.totalorder %s18, 1
      %s176 = scalar_select %p175, %s18, 1
      %s177 = smul.addr %s176, 4
      %s178 = scalar_lea.vmem %s0, %s177
      %p179 = scmp.lt.s32.totalorder %s18, 1
      %s180 = scalar_select %p179, %s18, 1
      %p181 = scmp.lt.s32.totalorder %s19, 0
      %s182 = scalar_select %p181, %s19, 0
      %s183 = sadd.s32 %s182, %s180
      %s184 = smul.addr %s183, 4
      %s185 = scalar_lea.vmem %s3, %s184
      %v187 = vld [vmem:[%s178] sm:$0xf]
      %v189 = vunpack.c.l.b16 %v187
      %v190 = vpack.c.b16 %v189, %v189
      %191 = vrot.lane.b32.xlu0 %v190, 127
      %v192 = vpop.permute.xlu0 %191
      %193 = vrot.lane.b32.xlu0 %v190, 126
      %v194 = vpop.permute.xlu0 %193
      %195 = vrot.lane.b32.xlu0 %v190, 125
      %v196 = vpop.permute.xlu0 %195
      %197 = vrot.lane.b32.xlu0 %v190, 124
      %v198 = vpop.permute.xlu0 %197
      %vm199 = vcmask 1043456
      %v202 = vsel %vm199, %v187, %v192
      %v206 = vsel %vm199, %v194, %v196
      %v208 = vld [vmem:[%s1] sm:$0xf]
      %v209 = vld [vmem:[%s2] sm:$0xff]
      %211 = vset.pattern.permute.xlu0 0
      %212 = vperm.xlu0 %211, %v209
      %v213 = vpop.permute.xlu0 %212
      %vm215 = vcmask 326656
      %v217 = vsel %vm215, %v208, 0
      %v220 = vsel %vm199, %v198, 0
      %222 = vmatprep.subr.bf16.mxu0 0
      %223 = vmatpush1.bf16.msra.mxu0 %v202
      %224 = vmatprep.subr.bf16.mxu0 0
      %225 = vmatpush1.bf16.msra.mxu0 %v206
      %226 = vmatprep.subr.bf16.mxu0 0
      %227 = vmatpush1.bf16.msra.mxu0 %v220
      %228 = vmatprep.subr.bf16.mxu0 0
      %229 = vmatpush1.bf16.msra.mxu0 0
      %230 = vmatprep.subr.bf16.mxu0 0
      %231 = vmatpush1.bf16.msra.mxu0 0
      %232 = vmatprep.subr.bf16.mxu0 0
      %233 = vmatpush1.bf16.msra.mxu0 0
      %234 = vmatprep.subr.bf16.mxu0 0
      %235 = vmatpush1.bf16.msra.mxu0 0
      %236 = vmatprep.subr.bf16.mxu0 0
      %237 = vmatpush1.bf16.msra.mxu0 0
      %238 = vmatprep.subr.bf16.mxu0 0
      %239 = vmatpush1.bf16.msra.mxu0 0
      %240 = vmatprep.subr.bf16.mxu0 0
      %241 = vmatpush1.bf16.msra.mxu0 0
      %242 = vmatprep.subr.bf16.mxu0 0
      %243 = vmatpush1.bf16.msra.mxu0 0
      %244 = vmatprep.subr.bf16.mxu0 0
      %245 = vmatpush1.bf16.msra.mxu0 0
      %246 = vmatprep.subr.bf16.mxu0 0
      %247 = vmatpush1.bf16.msra.mxu0 0
      %248 = vmatprep.subr.bf16.mxu0 0
      %249 = vmatpush1.bf16.msra.mxu0 0
      %250 = vmatprep.subr.bf16.mxu0 0
      %251 = vmatpush1.bf16.msra.mxu0 0
      %252 = vmatprep.subr.bf16.mxu0 0
      %253 = vmatpush1.bf16.msra.mxu0 0
      %254 = vmatprep.mubr.bf16.mxu0 0
      %255 = vmatmul.mubr.bf16.gmra.mrb[0].mxu0 %v217
      %v256 = vpop.f32.mrb[0].mxu0
      %v257 = vadd.f32 %v213, %v256
      %v258 = vpop.f32.mrb[0].mxu0
      %v259 = vpop.f32.mrb[0].mxu0
      %v260 = vpop.f32.mrb[0].mxu0
      %261 = vdwg.mxu0
      %v262 = vmul.f32 %v257, 0.1
      %v263 = vmax.f32 %v257, %v262
      %v264 = vpack.c.bf16 %v263, %v263
      %vm265 = vcmask 68608
      %266 = vst.msk [vmem:[%s185] sm:$0xf] %vm265, %v264
      %p267 = scmp.lt.s32.totalorder %s18, 1
      %s268 = scalar_select %p267, %s18, 1
      %p269 = scmp.lt.s32.totalorder %s19, 0
      %s270 = scalar_select %p269, %s19, 0
      %s271 = sadd.s32 %s270, %s268
      %s272 = smul.addr %s271, 4
      %s273 = scalar_lea.vmem %s3, %s272
      // Predicated region
      $region33: #{_lambda_.48} parent=31 // pred_check
        %p274 = pneg %p114
      $region34: #{_lambda_.48} parent=31 // pred_check_branch
        %276 = sbr.rel (%p274) target = $region36
      $region35: #{_lambda_.48} parent=31 // pred_region
        _
      $region36: #{_lambda_.48} parent=31 // pred_fallthru
        _
    $region32: #{_lambda_.48} parent=5 // pred_fallthru
      _
    %p277 = scmp.le.s32.totalorder 2, %s9
    // Predicated region
    $region37: #{_lambda_.48} parent=5 // pred_check
      %p278 = pneg %p277
    $region38: #{_lambda_.48} parent=5 // pred_check_branch
      %280 = sbr.rel (%p278) target = $region40
    $region39: #{_lambda_.48} parent=5 // pred_region
      %s281 = ssub.s32 %s9, 2
      // Predicated region
      $region41: #{_lambda_.48} parent=39 // pred_check
        %p282 = pneg %p120
      $region42: #{_lambda_.48} parent=39 // pred_check_branch
        %284 = sbr.rel (%p282) target = $region44
      $region43: #{_lambda_.48} parent=39 // pred_region
        %p285 = scmp.lt.s32.totalorder %s20, 1
        %s286 = scalar_select %p285, %s20, 1
        %p287 = scmp.lt.s32.totalorder %s21, 0
        %s288 = scalar_select %p287, %s21, 0
        %s289 = sadd.s32 %s288, %s286
        %s290 = smul.addr %s289, 4
        %s291 = scalar_lea.vmem %s3, %s290
      $region44: #{_lambda_.48} parent=39 // pred_fallthru
        _
    $region40: #{_lambda_.48} parent=5 // pred_fallthru
      _
  $region6: #{_lambda_.48} parent=0 // loop_footer
    %s13 = sadd.s32 1, %s9
  $region7: #{_lambda_.48} parent=0 // loop_footer_branch
    %8 = sbr.rel target = $region3
  $region8: #{_lambda_.48} parent=0 // loop_exit
    _

// kernel: _lambda_.51
$region0: #{_lambda_.51}
  #allocation0 [shape = 'u32[]', space=smem, size = 0x4, offset = 0x4, fixed_abs, tag = 'smem constant byte address 0x4 - core index']
  #allocation1 [shape = 'u32[144,128]{1,0:T(1,128)}', space=vmem, size = 0x12000, scoped, tag = 'internal scratch']
  #allocation2 [shape = 'f32[1,1]{1,0:T(1,128)S(1)}', space=vmem, size = 0x200, scoped, tag = 'scoped memory for _lambda_.51']
  %s0 = inlined_call_operand.vmem [shape: bf16[2,2,11], index: 0, kind: input, shape index: {}]
  %s1 = inlined_call_operand.vmem [shape: bf16[1,4], index: 1, kind: input, shape index: {}]
  %s2 = inlined_call_operand.<no memory space> [shape: f32[1,1], index: 2, kind: input, shape index: {}]
  %s3 = inlined_call_operand.vmem [shape: bf16[2,1,10], index: 3, kind: output, shape index: {}]
  %s4 = sld [smem:[#allocation0]]
  $region45: #{_lambda_.51} parent=0
    _
  %s6 = ssub.s32 1, %s4
  %s7 = scalar_select 0, %s6, %s4
  %v8 = vstv %s2
  %9 = vst [vmem:[#allocation2] sm:$0x1] %v8
  loop: start=0, step=1, limit=4
  $region2: #{_lambda_.51} parent=0 // loop_pre_header
    _
  $region3: #{_lambda_.51} parent=0 // loop_header
    %s11 = sphi 0, %s15
    %p12 = scmp.ge.s32.totalorder %s11, 4
    %s18 = sphi 0, %s30
    %s19 = sphi 0, %s26
    %s20 = sphi 0, %s18
    %s21 = sphi 0, %s19
    %s22 = sphi 0, %s20
    %s23 = sphi 0, %s21
    %s33 = sphi 0, %s35
    %s36 = sphi 0, %s33
    %s37 = sphi 0, %s36
    %s53 = sphi 0, %s37
    %s57 = sphi 0, %s57
    %s59 = sphi 0, %s57
    %s60 = sphi 0, %s59
    %s74 = sphi 0, %s60
    %s78 = sphi 0, %s78
    %s80 = sphi 0, %s78
    %s81 = sphi 0, %s80
    %s95 = sphi 0, %s81
    %s103 = sphi 0, %s105
    %s106 = sphi 0, %s103
    %s107 = sphi 0, %s106
    %s123 = sphi 0, %s107
  $region4: #{_lambda_.51} parent=0 // loop_header_branch
    %14 = sbr.rel (%p12) target = $region8
  $region5: #{_lambda_.51} parent=0 // loop_body
    %s16 = ssub.s32 %s11, 1
    %s17 = ssub.s32 %s11, 2
    %s24 = sadd.s32 1, %s19
    %p25 = scmp.ge.s32.totalorder %s24, 1
    %s26 = scalar_select %p25, 0, %s24
    %s27 = sadd.s32 1, %s18
    %s28 = scalar_select %p25, %s27, %s18
    %p29 = scmp.ge.s32.totalorder %s28, 2
    %s30 = scalar_select %p29, 0, %s28
    %s31 = ssub.s32 %s18, %s30
    %p32 = scmp.eq.s32.totalorder %s31, 0
    %s34 = sadd.s32 %s33, 1
    %s35 = scalar_select %p32, %s33, %s34
    %p38 = pneg %p32
    %p39 = scmp.eq.s32.totalorder %s11, 1
    %p40 = por %p38, %p39
    %p41 = scmp.ne.s32.totalorder %s33, %s36
    %p42 = scmp.eq.s32.totalorder %s11, 0
    %p43 = por %p41, %p42
    %p44 = scmp.ne.s32.totalorder %s33, %s36
    %p45 = scmp.eq.s32.totalorder %s16, 1
    %p46 = por %p44, %p45
    %p47 = scmp.ne.s32.totalorder %s36, %s37
    %p48 = scmp.eq.s32.totalorder %s16, 0
    %p49 = por %p47, %p48
    %p50 = scmp.ne.s32.totalorder %s36, %s37
    %p51 = scmp.eq.s32.totalorder %s17, 1
    %p52 = por %p50, %p51
    %p54 = scmp.ne.s32.totalorder %s37, %s53
    %p55 = scmp.eq.s32.totalorder %s17, 0
    %p56 = por %p54, %p55
    %s58 = sadd.s32 %s57, 1
    %p61 = scmp.eq.s32.totalorder %s11, 1
    %p62 = scmp.ne.s32.totalorder %s57, %s59
    %p63 = scmp.eq.s32.totalorder %s11, 0
    %p64 = por %p62, %p63
    %p65 = scmp.ne.s32.totalorder %s57, %s59
    %p66 = scmp.eq.s32.totalorder %s16, 1
    %p67 = por %p65, %p66
    %p68 = scmp.ne.s32.totalorder %s59, %s60
    %p69 = scmp.eq.s32.totalorder %s16, 0
    %p70 = por %p68, %p69
    %p71 = scmp.ne.s32.totalorder %s59, %s60
    %p72 = scmp.eq.s32.totalorder %s17, 1
    %p73 = por %p71, %p72
    %p75 = scmp.ne.s32.totalorder %s60, %s74
    %p76 = scmp.eq.s32.totalorder %s17, 0
    %p77 = por %p75, %p76
    %s79 = sadd.s32 %s78, 1
    %p82 = scmp.eq.s32.totalorder %s11, 1
    %p83 = scmp.ne.s32.totalorder %s78, %s80
    %p84 = scmp.eq.s32.totalorder %s11, 0
    %p85 = por %p83, %p84
    %p86 = scmp.ne.s32.totalorder %s78, %s80
    %p87 = scmp.eq.s32.totalorder %s16, 1
    %p88 = por %p86, %p87
    %p89 = scmp.ne.s32.totalorder %s80, %s81
    %p90 = scmp.eq.s32.totalorder %s16, 0
    %p91 = por %p89, %p90
    %p92 = scmp.ne.s32.totalorder %s80, %s81
    %p93 = scmp.eq.s32.totalorder %s17, 1
    %p94 = por %p92, %p93
    %p96 = scmp.ne.s32.totalorder %s81, %s95
    %p97 = scmp.eq.s32.totalorder %s17, 0
    %p98 = por %p96, %p97
    %s99 = ssub.s32 %s18, %s30
    %s100 = ssub.s32 %s19, %s26
    %s101 = sor.u32 %s99, %s100
    %p102 = scmp.eq.s32.totalorder %s101, 0
    %s104 = sadd.s32 %s103, 1
    %s105 = scalar_select %p102, %s103, %s104
    %p108 = pneg %p102
    %p109 = scmp.eq.s32.totalorder %s11, 1
    %p110 = por %p108, %p109
    %p111 = scmp.ne.s32.totalorder %s103, %s106
    %p112 = scmp.eq.s32.totalorder %s11, 0
    %p113 = por %p111, %p112
    %p114 = scmp.ne.s32.totalorder %s103, %s106
    %p115 = scmp.eq.s32.totalorder %s16, 1
    %p116 = por %p114, %p115
    %p117 = scmp.ne.s32.totalorder %s106, %s107
    %p118 = scmp.eq.s32.totalorder %s16, 0
    %p119 = por %p117, %p118
    %p120 = scmp.ne.s32.totalorder %s106, %s107
    %p121 = scmp.eq.s32.totalorder %s17, 1
    %p122 = por %p120, %p121
    %p124 = scmp.ne.s32.totalorder %s107, %s123
    %p125 = scmp.eq.s32.totalorder %s17, 0
    %p126 = por %p124, %p125
    %p127 = scmp.le.s32.totalorder 1, %s11
    %p128 = scmp.lt.s32.totalorder %s11, 3
    %p129 = pnand %p127, %p128
    %p130 = pneg %p129
    // Predicated region
    $region9: #{_lambda_.51} parent=5 // pred_check
      _
    $region10: #{_lambda_.51} parent=5 // pred_check_branch
      %132 = sbr.rel (%p129) target = $region12
    $region11: #{_lambda_.51} parent=5 // pred_region
      %s133 = ssub.s32 %s11, 1
      // Predicated region
      $region13: #{_lambda_.51} parent=11 // pred_check
        %p134 = pneg %p70
      $region14: #{_lambda_.51} parent=11 // pred_check_branch
        %136 = sbr.rel (%p134) target = $region16
      $region15: #{_lambda_.51} parent=11 // pred_region
        _
      $region16: #{_lambda_.51} parent=11 // pred_fallthru
        _
      // Predicated region
      $region17: #{_lambda_.51} parent=11 // pred_check
        %p137 = pneg %p91
      $region18: #{_lambda_.51} parent=11 // pred_check_branch
        %139 = sbr.rel (%p137) target = $region20
      $region19: #{_lambda_.51} parent=11 // pred_region
        _
      $region20: #{_lambda_.51} parent=11 // pred_fallthru
        _
    $region12: #{_lambda_.51} parent=5 // pred_fallthru
      _
    %p140 = scmp.lt.s32.totalorder %s11, 2
    // Predicated region
    $region21: #{_lambda_.51} parent=5 // pred_check
      %p141 = pneg %p140
    $region22: #{_lambda_.51} parent=5 // pred_check_branch
      %143 = sbr.rel (%p141) target = $region24
    $region23: #{_lambda_.51} parent=5 // pred_region
      // Predicated region
      $region25: #{_lambda_.51} parent=23 // pred_check
        %p144 = pneg %p43
      $region26: #{_lambda_.51} parent=23 // pred_check_branch
        %146 = sbr.rel (%p144) target = $region28
      $region27: #{_lambda_.51} parent=23 // pred_region
        %p147 = scmp.lt.s32.totalorder %s18, 1
        %s148 = scalar_select %p147, %s18, 1
        %s149 = scalar_lea.vmem %s0, %s148
      $region28: #{_lambda_.51} parent=23 // pred_fallthru
        _
    $region24: #{_lambda_.51} parent=5 // pred_fallthru
      _
    %p150 = scmp.le.s32.totalorder 1, %s11
    %p151 = scmp.lt.s32.totalorder %s11, 3
    %p152 = pnand %p150, %p151
    %p153 = pneg %p152
    // Predicated region
    $region29: #{_lambda_.51} parent=5 // pred_check
      _
    $region30: #{_lambda_.51} parent=5 // pred_check_branch
      %155 = sbr.rel (%p152) target = $region32
    $region31: #{_lambda_.51} parent=5 // pred_region
      %s156 = ssub.s32 %s11, 1
      %p157 = scmp.lt.s32.totalorder %s20, 1
      %s158 = scalar_select %p157, %s20, 1
      %s159 = scalar_lea.vmem %s0, %s158
      %p160 = pneg %p49
      %p161 = pneg %p46
      %p162 = pneg %p70
      %p163 = pneg %p67
      %p164 = pneg %p91
      %p165 = pneg %p88
      %p166 = pneg %p119
      %p167 = pneg %p116
      %p168 = scmp.lt.s32.totalorder %s20, 1
      %s169 = scalar_select %p168, %s20, 1
      %p170 = scmp.lt.s32.totalorder %s21, 0
      %s171 = scalar_select %p170, %s21, 0
      %s172 = sadd.s32 %s171, %s169
      %s173 = scalar_lea.vmem %s3, %s172
      %p174 = scmp.lt.s32.totalorder %s20, 1
      %s175 = scalar_select %p174, %s20, 1
      %s176 = scalar_lea.vmem %s0, %s175
      %p177 = scmp.lt.s32.totalorder %s20, 1
      %s178 = scalar_select %p177, %s20, 1
      %p179 = scmp.lt.s32.totalorder %s21, 0
      %s180 = scalar_select %p179, %s21, 0
      %s181 = sadd.s32 %s180, %s178
      %s182 = scalar_lea.vmem %s3, %s181
      %v184 = vld [vmem:[%s176] sm:$0x1]
      %v186 = vcombine.low %v184, %v184
      %v188 = vunpack.c.l.s4 1966171168
      %v189 = vunpack.c.0.s8 %v188
      %v190 = vlaneseq
      %v191 = vshrl.u32 %v190, 7
      %v192 = vsub.s32 %v189, %v191
      %v193 = vrot.slane %v186, %v192
      %v195 = vunpack.c.l.s4 1966171168
      %v196 = vunpack.c.0.s8 %v195
      %v197 = vlaneseq
      %v198 = vshrl.u32 %v197, 7
      %v199 = vsub.s32 %v196, %v198
      %v200 = vrot.slane %v193, %v199
      %201 = vrot.lane.b32.xlu0 %v200, 127
      %v202 = vpop.permute.xlu0 %201
      %vm203 = vcmask 1040384
      %v206 = vsel %vm203, %v184, %v202
      %v207 = vld [vmem:[%s1] sm:$0x1]
      %v208 = vld [vmem:[#allocation2] sm:$0x1]
      %210 = vset.pattern.permute.xlu0 0
      %211 = vperm.xlu0 %210, %v208
      %v212 = vpop.permute.xlu0 %211
      %v214 = vlaneseq
      %v215 = vshrl.u32 %v214, 7
      %v216 = vsub.s32 0, %v215
      %v217 = vrot.slane %v212, %v216
      %vm218 = vcmask 31744
      %v220 = vsel %vm218, %v207, 0
      %vm222 = vcmask 1041408
      %v223 = vsel %vm222, %v206, 0
      %225 = vmatprep.subr.bf16.mxu0 0
      %226 = vmatpush1.bf16.msra.mxu0 %v223
      %227 = vmatprep.subr.bf16.mxu0 0
      %228 = vmatpush1.bf16.msra.mxu0 0
      %229 = vmatprep.subr.bf16.mxu0 0
      %230 = vmatpush1.bf16.msra.mxu0 0
      %231 = vmatprep.subr.bf16.mxu0 0
      %232 = vmatpush1.bf16.msra.mxu0 0
      %233 = vmatprep.subr.bf16.mxu0 0
      %234 = vmatpush1.bf16.msra.mxu0 0
      %235 = vmatprep.subr.bf16.mxu0 0
      %236 = vmatpush1.bf16.msra.mxu0 0
      %237 = vmatprep.subr.bf16.mxu0 0
      %238 = vmatpush1.bf16.msra.mxu0 0
      %239 = vmatprep.subr.bf16.mxu0 0
      %240 = vmatpush1.bf16.msra.mxu0 0
      %241 = vmatprep.subr.bf16.mxu0 0
      %242 = vmatpush1.bf16.msra.mxu0 0
      %243 = vmatprep.subr.bf16.mxu0 0
      %244 = vmatpush1.bf16.msra.mxu0 0
      %245 = vmatprep.subr.bf16.mxu0 0
      %246 = vmatpush1.bf16.msra.mxu0 0
      %247 = vmatprep.subr.bf16.mxu0 0
      %248 = vmatpush1.bf16.msra.mxu0 0
      %249 = vmatprep.subr.bf16.mxu0 0
      %250 = vmatpush1.bf16.msra.mxu0 0
      %251 = vmatprep.subr.bf16.mxu0 0
      %252 = vmatpush1.bf16.msra.mxu0 0
      %253 = vmatprep.subr.bf16.mxu0 0
      %254 = vmatpush1.bf16.msra.mxu0 0
      %255 = vmatprep.subr.bf16.mxu0 0
      %256 = vmatpush1.bf16.msra.mxu0 0
      %257 = vmatprep.mubr.bf16.mxu0 0
      %258 = vmatmul.mubr.bf16.gmra.mrb[0].mxu0 %v220
      %v259 = vpop.f32.mrb[0].mxu0
      %v260 = vadd.f32 %v217, %v259
      %v261 = vpop.f32.mrb[0].mxu0
      %v262 = vpop.f32.mrb[0].mxu0
      %v263 = vpop.f32.mrb[0].mxu0
      %264 = vdwg.mxu0
      %v265 = vpack.c.bf16 %v260, %v260
      %vm266 = vcmask 73728
      %vm267 = vsmask.f32 256
      %vm268 = vmand %vm266, %vm267
      %v269 = vld [vmem:[%s182] sm:$0x1]
      %v270 = vsel %vm268, %v265, %v269
      %271 = vst [vmem:[%s182] sm:$0x1] %v270
      %p272 = scmp.lt.s32.totalorder %s20, 1
      %s273 = scalar_select %p272, %s20, 1
      %p274 = scmp.lt.s32.totalorder %s21, 0
      %s275 = scalar_select %p274, %s21, 0
      %s276 = sadd.s32 %s275, %s273
      %s277 = scalar_lea.vmem %s3, %s276
      // Predicated region
      $region33: #{_lambda_.51} parent=31 // pred_check
        %p278 = pneg %p116
      $region34: #{_lambda_.51} parent=31 // pred_check_branch
        %280 = sbr.rel (%p278) target = $region36
      $region35: #{_lambda_.51} parent=31 // pred_region
        _
      $region36: #{_lambda_.51} parent=31 // pred_fallthru
        _
    $region32: #{_lambda_.51} parent=5 // pred_fallthru
      _
    %p281 = scmp.le.s32.totalorder 2, %s11
    // Predicated region
    $region37: #{_lambda_.51} parent=5 // pred_check
      %p282 = pneg %p281
    $region38: #{_lambda_.51} parent=5 // pred_check_branch
      %284 = sbr.rel (%p282) target = $region40
    $region39: #{_lambda_.51} parent=5 // pred_region
      %s285 = ssub.s32 %s11, 2
      // Predicated region
      $region41: #{_lambda_.51} parent=39 // pred_check
        %p286 = pneg %p122
      $region42: #{_lambda_.51} parent=39 // pred_check_branch
        %288 = sbr.rel (%p286) target = $region44
      $region43: #{_lambda_.51} parent=39 // pred_region
        %p289 = scmp.lt.s32.totalorder %s22, 1
        %s290 = scalar_select %p289, %s22, 1
        %p291 = scmp.lt.s32.totalorder %s23, 0
        %s292 = scalar_select %p291, %s23, 0
        %s293 = sadd.s32 %s292, %s290
        %s294 = scalar_lea.vmem %s3, %s293
      $region44: #{_lambda_.51} parent=39 // pred_fallthru
        _
    $region40: #{_lambda_.51} parent=5 // pred_fallthru
      _
  $region6: #{_lambda_.51} parent=0 // loop_footer
    %s15 = sadd.s32 1, %s11
  $region7: #{_lambda_.51} parent=0 // loop_footer_branch
    %10 = sbr.rel target = $region3
  $region8: #{_lambda_.51} parent=0 // loop_exit
    _

// kernel: _lambda_.50
$region0: #{_lambda_.50}
  #allocation0 [shape = 'u32[]', space=smem, size = 0x4, offset = 0x4, fixed_abs, tag = 'smem constant byte address 0x4 - core index']
  #allocation1 [shape = 'u32[144,128]{1,0:T(1,128)}', space=vmem, size = 0x12000, scoped, tag = 'internal scratch']
  #allocation2 [shape = 'f32[1,1]{1,0:T(1,128)S(1)}', space=vmem, size = 0x200, scoped, tag = 'scoped memory for _lambda_.50']
  %s0 = inlined_call_operand.vmem [shape: bf16[2,8,11], index: 0, kind: input, shape index: {}]
  %s1 = inlined_call_operand.vmem [shape: bf16[1,24], index: 1, kind: input, shape index: {}]
  %s2 = inlined_call_operand.<no memory space> [shape: f32[1,1], index: 2, kind: input, shape index: {}]
  %s3 = inlined_call_operand.vmem [shape: bf16[2,1,9], index: 3, kind: output, shape index: {}]
  %s4 = sld [smem:[#allocation0]]
  $region45: #{_lambda_.50} parent=0
    _
  %s6 = ssub.s32 1, %s4
  %s7 = scalar_select 0, %s6, %s4
  %v8 = vstv %s2
  %9 = vst [vmem:[#allocation2] sm:$0x1] %v8
  loop: start=0, step=1, limit=4
  $region2: #{_lambda_.50} parent=0 // loop_pre_header
    _
  $region3: #{_lambda_.50} parent=0 // loop_header
    %s11 = sphi 0, %s15
    %p12 = scmp.ge.s32.totalorder %s11, 4
    %s18 = sphi 0, %s30
    %s19 = sphi 0, %s26
    %s20 = sphi 0, %s18
    %s21 = sphi 0, %s19
    %s22 = sphi 0, %s20
    %s23 = sphi 0, %s21
    %s33 = sphi 0, %s35
    %s36 = sphi 0, %s33
    %s37 = sphi 0, %s36
    %s53 = sphi 0, %s37
    %s57 = sphi 0, %s57
    %s59 = sphi 0, %s57
    %s60 = sphi 0, %s59
    %s74 = sphi 0, %s60
    %s78 = sphi 0, %s78
    %s80 = sphi 0, %s78
    %s81 = sphi 0, %s80
    %s95 = sphi 0, %s81
    %s103 = sphi 0, %s105
    %s106 = sphi 0, %s103
    %s107 = sphi 0, %s106
    %s123 = sphi 0, %s107
  $region4: #{_lambda_.50} parent=0 // loop_header_branch
    %14 = sbr.rel (%p12) target = $region8
  $region5: #{_lambda_.50} parent=0 // loop_body
    %s16 = ssub.s32 %s11, 1
    %s17 = ssub.s32 %s11, 2
    %s24 = sadd.s32 1, %s19
    %p25 = scmp.ge.s32.totalorder %s24, 1
    %s26 = scalar_select %p25, 0, %s24
    %s27 = sadd.s32 1, %s18
    %s28 = scalar_select %p25, %s27, %s18
    %p29 = scmp.ge.s32.totalorder %s28, 2
    %s30 = scalar_select %p29, 0, %s28
    %s31 = ssub.s32 %s18, %s30
    %p32 = scmp.eq.s32.totalorder %s31, 0
    %s34 = sadd.s32 %s33, 1
    %s35 = scalar_select %p32, %s33, %s34
    %p38 = pneg %p32
    %p39 = scmp.eq.s32.totalorder %s11, 1
    %p40 = por %p38, %p39
    %p41 = scmp.ne.s32.totalorder %s33, %s36
    %p42 = scmp.eq.s32.totalorder %s11, 0
    %p43 = por %p41, %p42
    %p44 = scmp.ne.s32.totalorder %s33, %s36
    %p45 = scmp.eq.s32.totalorder %s16, 1
    %p46 = por %p44, %p45
    %p47 = scmp.ne.s32.totalorder %s36, %s37
    %p48 = scmp.eq.s32.totalorder %s16, 0
    %p49 = por %p47, %p48
    %p50 = scmp.ne.s32.totalorder %s36, %s37
    %p51 = scmp.eq.s32.totalorder %s17, 1
    %p52 = por %p50, %p51
    %p54 = scmp.ne.s32.totalorder %s37, %s53
    %p55 = scmp.eq.s32.totalorder %s17, 0
    %p56 = por %p54, %p55
    %s58 = sadd.s32 %s57, 1
    %p61 = scmp.eq.s32.totalorder %s11, 1
    %p62 = scmp.ne.s32.totalorder %s57, %s59
    %p63 = scmp.eq.s32.totalorder %s11, 0
    %p64 = por %p62, %p63
    %p65 = scmp.ne.s32.totalorder %s57, %s59
    %p66 = scmp.eq.s32.totalorder %s16, 1
    %p67 = por %p65, %p66
    %p68 = scmp.ne.s32.totalorder %s59, %s60
    %p69 = scmp.eq.s32.totalorder %s16, 0
    %p70 = por %p68, %p69
    %p71 = scmp.ne.s32.totalorder %s59, %s60
    %p72 = scmp.eq.s32.totalorder %s17, 1
    %p73 = por %p71, %p72
    %p75 = scmp.ne.s32.totalorder %s60, %s74
    %p76 = scmp.eq.s32.totalorder %s17, 0
    %p77 = por %p75, %p76
    %s79 = sadd.s32 %s78, 1
    %p82 = scmp.eq.s32.totalorder %s11, 1
    %p83 = scmp.ne.s32.totalorder %s78, %s80
    %p84 = scmp.eq.s32.totalorder %s11, 0
    %p85 = por %p83, %p84
    %p86 = scmp.ne.s32.totalorder %s78, %s80
    %p87 = scmp.eq.s32.totalorder %s16, 1
    %p88 = por %p86, %p87
    %p89 = scmp.ne.s32.totalorder %s80, %s81
    %p90 = scmp.eq.s32.totalorder %s16, 0
    %p91 = por %p89, %p90
    %p92 = scmp.ne.s32.totalorder %s80, %s81
    %p93 = scmp.eq.s32.totalorder %s17, 1
    %p94 = por %p92, %p93
    %p96 = scmp.ne.s32.totalorder %s81, %s95
    %p97 = scmp.eq.s32.totalorder %s17, 0
    %p98 = por %p96, %p97
    %s99 = ssub.s32 %s18, %s30
    %s100 = ssub.s32 %s19, %s26
    %s101 = sor.u32 %s99, %s100
    %p102 = scmp.eq.s32.totalorder %s101, 0
    %s104 = sadd.s32 %s103, 1
    %s105 = scalar_select %p102, %s103, %s104
    %p108 = pneg %p102
    %p109 = scmp.eq.s32.totalorder %s11, 1
    %p110 = por %p108, %p109
    %p111 = scmp.ne.s32.totalorder %s103, %s106
    %p112 = scmp.eq.s32.totalorder %s11, 0
    %p113 = por %p111, %p112
    %p114 = scmp.ne.s32.totalorder %s103, %s106
    %p115 = scmp.eq.s32.totalorder %s16, 1
    %p116 = por %p114, %p115
    %p117 = scmp.ne.s32.totalorder %s106, %s107
    %p118 = scmp.eq.s32.totalorder %s16, 0
    %p119 = por %p117, %p118
    %p120 = scmp.ne.s32.totalorder %s106, %s107
    %p121 = scmp.eq.s32.totalorder %s17, 1
    %p122 = por %p120, %p121
    %p124 = scmp.ne.s32.totalorder %s107, %s123
    %p125 = scmp.eq.s32.totalorder %s17, 0
    %p126 = por %p124, %p125
    %p127 = scmp.le.s32.totalorder 1, %s11
    %p128 = scmp.lt.s32.totalorder %s11, 3
    %p129 = pnand %p127, %p128
    %p130 = pneg %p129
    // Predicated region
    $region9: #{_lambda_.50} parent=5 // pred_check
      _
    $region10: #{_lambda_.50} parent=5 // pred_check_branch
      %132 = sbr.rel (%p129) target = $region12
    $region11: #{_lambda_.50} parent=5 // pred_region
      %s133 = ssub.s32 %s11, 1
      // Predicated region
      $region13: #{_lambda_.50} parent=11 // pred_check
        %p134 = pneg %p70
      $region14: #{_lambda_.50} parent=11 // pred_check_branch
        %136 = sbr.rel (%p134) target = $region16
      $region15: #{_lambda_.50} parent=11 // pred_region
        _
      $region16: #{_lambda_.50} parent=11 // pred_fallthru
        _
      // Predicated region
      $region17: #{_lambda_.50} parent=11 // pred_check
        %p137 = pneg %p91
      $region18: #{_lambda_.50} parent=11 // pred_check_branch
        %139 = sbr.rel (%p137) target = $region20
      $region19: #{_lambda_.50} parent=11 // pred_region
        _
      $region20: #{_lambda_.50} parent=11 // pred_fallthru
        _
    $region12: #{_lambda_.50} parent=5 // pred_fallthru
      _
    %p140 = scmp.lt.s32.totalorder %s11, 2
    // Predicated region
    $region21: #{_lambda_.50} parent=5 // pred_check
      %p141 = pneg %p140
    $region22: #{_lambda_.50} parent=5 // pred_check_branch
      %143 = sbr.rel (%p141) target = $region24
    $region23: #{_lambda_.50} parent=5 // pred_region
      // Predicated region
      $region25: #{_lambda_.50} parent=23 // pred_check
        %p144 = pneg %p43
      $region26: #{_lambda_.50} parent=23 // pred_check_branch
        %146 = sbr.rel (%p144) target = $region28
      $region27: #{_lambda_.50} parent=23 // pred_region
        %p147 = scmp.lt.s32.totalorder %s18, 1
        %s148 = scalar_select %p147, %s18, 1
        %s149 = smul.addr %s148, 4
        %s150 = scalar_lea.vmem %s0, %s149
      $region28: #{_lambda_.50} parent=23 // pred_fallthru
        _
    $region24: #{_lambda_.50} parent=5 // pred_fallthru
      _
    %p151 = scmp.le.s32.totalorder 1, %s11
    %p152 = scmp.lt.s32.totalorder %s11, 3
    %p153 = pnand %p151, %p152
    %p154 = pneg %p153
    // Predicated region
    $region29: #{_lambda_.50} parent=5 // pred_check
      _
    $region30: #{_lambda_.50} parent=5 // pred_check_branch
      %156 = sbr.rel (%p153) target = $region32
    $region31: #{_lambda_.50} parent=5 // pred_region
      %s157 = ssub.s32 %s11, 1
      %p158 = scmp.lt.s32.totalorder %s20, 1
      %s159 = scalar_select %p158, %s20, 1
      %s160 = smul.addr %s159, 4
      %s161 = scalar_lea.vmem %s0, %s160
      %p162 = pneg %p49
      %p163 = pneg %p46
      %p164 = pneg %p70
      %p165 = pneg %p67
      %p166 = pneg %p91
      %p167 = pneg %p88
      %p168 = pneg %p119
      %p169 = pneg %p116
      %p170 = scmp.lt.s32.totalorder %s20, 1
      %s171 = scalar_select %p170, %s20, 1
      %p172 = scmp.lt.s32.totalorder %s21, 0
      %s173 = scalar_select %p172, %s21, 0
      %s174 = sadd.s32 %s173, %s171
      %s175 = scalar_lea.vmem %s3, %s174
      %p176 = scmp.lt.s32.totalorder %s20, 1
      %s177 = scalar_select %p176, %s20, 1
      %s178 = smul.addr %s177, 4
      %s179 = scalar_lea.vmem %s0, %s178
      %p180 = scmp.lt.s32.totalorder %s20, 1
      %s181 = scalar_select %p180, %s20, 1
      %p182 = scmp.lt.s32.totalorder %s21, 0
      %s183 = scalar_select %p182, %s21, 0
      %s184 = sadd.s32 %s183, %s181
      %s185 = scalar_lea.vmem %s3, %s184
      %v187 = vld [vmem:[%s179] sm:$0xf]
      %v189 = vunpack.c.l.b16 %v187
      %v190 = vpack.c.b16 %v189, %v189
      %191 = vrot.lane.b32.xlu0 %v190, 127
      %v192 = vpop.permute.xlu0 %191
      %193 = vrot.lane.b32.xlu0 %v190, 126
      %v194 = vpop.permute.xlu0 %193
      %vm195 = vcmask 1043456
      %v198 = vsel %vm195, %v187, %v192
      %v200 = vld [vmem:[%s1] sm:$0x1]
      %v201 = vld [vmem:[#allocation2] sm:$0x1]
      %203 = vset.pattern.permute.xlu0 0
      %204 = vperm.xlu0 %203, %v201
      %v205 = vpop.permute.xlu0 %204
      %v207 = vlaneseq
      %v208 = vshrl.u32 %v207, 7
      %v209 = vsub.s32 0, %v208
      %v210 = vrot.slane %v205, %v209
      %vm211 = vcmask 195584
      %v213 = vsel %vm211, %v200, 0
      %v216 = vsel %vm195, %v194, 0
      %218 = vmatprep.subr.bf16.mxu0 0
      %219 = vmatpush1.bf16.msra.mxu0 %v198
      %220 = vmatprep.subr.bf16.mxu0 0
      %221 = vmatpush1.bf16.msra.mxu0 %v216
      %222 = vmatprep.subr.bf16.mxu0 0
      %223 = vmatpush1.bf16.msra.mxu0 0
      %224 = vmatprep.subr.bf16.mxu0 0
      %225 = vmatpush1.bf16.msra.mxu0 0
      %226 = vmatprep.subr.bf16.mxu0 0
      %227 = vmatpush1.bf16.msra.mxu0 0
      %228 = vmatprep.subr.bf16.mxu0 0
      %229 = vmatpush1.bf16.msra.mxu0 0
      %230 = vmatprep.subr.bf16.mxu0 0
      %231 = vmatpush1.bf16.msra.mxu0 0
      %232 = vmatprep.subr.bf16.mxu0 0
      %233 = vmatpush1.bf16.msra.mxu0 0
      %234 = vmatprep.subr.bf16.mxu0 0
      %235 = vmatpush1.bf16.msra.mxu0 0
      %236 = vmatprep.subr.bf16.mxu0 0
      %237 = vmatpush1.bf16.msra.mxu0 0
      %238 = vmatprep.subr.bf16.mxu0 0
      %239 = vmatpush1.bf16.msra.mxu0 0
      %240 = vmatprep.subr.bf16.mxu0 0
      %241 = vmatpush1.bf16.msra.mxu0 0
      %242 = vmatprep.subr.bf16.mxu0 0
      %243 = vmatpush1.bf16.msra.mxu0 0
      %244 = vmatprep.subr.bf16.mxu0 0
      %245 = vmatpush1.bf16.msra.mxu0 0
      %246 = vmatprep.subr.bf16.mxu0 0
      %247 = vmatpush1.bf16.msra.mxu0 0
      %248 = vmatprep.subr.bf16.mxu0 0
      %249 = vmatpush1.bf16.msra.mxu0 0
      %250 = vmatprep.mubr.bf16.mxu0 0
      %251 = vmatmul.mubr.bf16.gmra.mrb[0].mxu0 %v213
      %v252 = vpop.f32.mrb[0].mxu0
      %v253 = vadd.f32 %v210, %v252
      %v254 = vpop.f32.mrb[0].mxu0
      %v255 = vpop.f32.mrb[0].mxu0
      %v256 = vpop.f32.mrb[0].mxu0
      %257 = vdwg.mxu0
      %v258 = vpack.c.bf16 %v253, %v253
      %vm259 = vcmask 65536
      %vm260 = vsmask.f32 256
      %vm261 = vmand %vm259, %vm260
      %v262 = vld [vmem:[%s185] sm:$0x1]
      %v263 = vsel %vm261, %v258, %v262
      %264 = vst [vmem:[%s185] sm:$0x1] %v263
      %p265 = scmp.lt.s32.totalorder %s20, 1
      %s266 = scalar_select %p265, %s20, 1
      %p267 = scmp.lt.s32.totalorder %s21, 0
      %s268 = scalar_select %p267, %s21, 0
      %s269 = sadd.s32 %s268, %s266
      %s270 = scalar_lea.vmem %s3, %s269
      // Predicated region
      $region33: #{_lambda_.50} parent=31 // pred_check
        %p271 = pneg %p116
      $region34: #{_lambda_.50} parent=31 // pred_check_branch
        %273 = sbr.rel (%p271) target = $region36
      $region35: #{_lambda_.50} parent=31 // pred_region
        _
      $region36: #{_lambda_.50} parent=31 // pred_fallthru
        _
    $region32: #{_lambda_.50} parent=5 // pred_fallthru
      _
    %p274 = scmp.le.s32.totalorder 2, %s11
    // Predicated region
    $region37: #{_lambda_.50} parent=5 // pred_check
      %p275 = pneg %p274
    $region38: #{_lambda_.50} parent=5 // pred_check_branch
      %277 = sbr.rel (%p275) target = $region40
    $region39: #{_lambda_.50} parent=5 // pred_region
      %s278 = ssub.s32 %s11, 2
      // Predicated region
      $region41: #{_lambda_.50} parent=39 // pred_check
        %p279 = pneg %p122
      $region42: #{_lambda_.50} parent=39 // pred_check_branch
        %281 = sbr.rel (%p279) target = $region44
      $region43: #{_lambda_.50} parent=39 // pred_region
        %p282 = scmp.lt.s32.totalorder %s22, 1
        %s283 = scalar_select %p282, %s22, 1
        %p284 = scmp.lt.s32.totalorder %s23, 0
        %s285 = scalar_select %p284, %s23, 0
        %s286 = sadd.s32 %s285, %s283
        %s287 = scalar_lea.vmem %s3, %s286
      $region44: #{_lambda_.50} parent=39 // pred_fallthru
        _
    $region40: #{_lambda_.50} parent=5 // pred_fallthru
      _
  $region6: #{_lambda_.50} parent=0 // loop_footer
    %s15 = sadd.s32 1, %s11
  $region7: #{_lambda_.50} parent=0 // loop_footer_branch
    %10 = sbr.rel target = $region3
  $region8: #{_lambda_.50} parent=0 // loop_exit
    _

// kernel: _lambda_.47
$region0: #{_lambda_.47}
  #allocation0 [shape = 'u32[]', space=smem, size = 0x4, offset = 0x4, fixed_abs, tag = 'smem constant byte address 0x4 - core index']
  #allocation1 [shape = 'u32[144,128]{1,0:T(1,128)}', space=vmem, size = 0x12000, scoped, tag = 'internal scratch']
  %s0 = inlined_call_operand.vmem [shape: bf16[2,1,31], index: 0, kind: input, shape index: {}]
  %s1 = inlined_call_operand.vmem [shape: bf16[4,15], index: 1, kind: input, shape index: {}]
  %s2 = inlined_call_operand.vmem [shape: f32[4,1], index: 2, kind: input, shape index: {}]
  %s3 = inlined_call_operand.vmem [shape: bf16[2,4,17], index: 3, kind: output, shape index: {}]
  %s4 = sld [smem:[#allocation0]]
  $region45: #{_lambda_.47} parent=0
    _
  %s6 = ssub.s32 1, %s4
  %s7 = scalar_select 0, %s6, %s4
  loop: start=0, step=1, limit=4
  $region2: #{_lambda_.47} parent=0 // loop_pre_header
    _
  $region3: #{_lambda_.47} parent=0 // loop_header
    %s9 = sphi 0, %s13
    %p10 = scmp.ge.s32.totalorder %s9, 4
    %s16 = sphi 0, %s28
    %s17 = sphi 0, %s24
    %s18 = sphi 0, %s16
    %s19 = sphi 0, %s17
    %s20 = sphi 0, %s18
    %s21 = sphi 0, %s19
    %s31 = sphi 0, %s33
    %s34 = sphi 0, %s31
    %s35 = sphi 0, %s34
    %s51 = sphi 0, %s35
    %s55 = sphi 0, %s55
    %s57 = sphi 0, %s55
    %s58 = sphi 0, %s57
    %s72 = sphi 0, %s58
    %s76 = sphi 0, %s76
    %s78 = sphi 0, %s76
    %s79 = sphi 0, %s78
    %s93 = sphi 0, %s79
    %s101 = sphi 0, %s103
    %s104 = sphi 0, %s101
    %s105 = sphi 0, %s104
    %s121 = sphi 0, %s105
  $region4: #{_lambda_.47} parent=0 // loop_header_branch
    %12 = sbr.rel (%p10) target = $region8
  $region5: #{_lambda_.47} parent=0 // loop_body
    %s14 = ssub.s32 %s9, 1
    %s15 = ssub.s32 %s9, 2
    %s22 = sadd.s32 1, %s17
    %p23 = scmp.ge.s32.totalorder %s22, 1
    %s24 = scalar_select %p23, 0, %s22
    %s25 = sadd.s32 1, %s16
    %s26 = scalar_select %p23, %s25, %s16
    %p27 = scmp.ge.s32.totalorder %s26, 2
    %s28 = scalar_select %p27, 0, %s26
    %s29 = ssub.s32 %s16, %s28
    %p30 = scmp.eq.s32.totalorder %s29, 0
    %s32 = sadd.s32 %s31, 1
    %s33 = scalar_select %p30, %s31, %s32
    %p36 = pneg %p30
    %p37 = scmp.eq.s32.totalorder %s9, 1
    %p38 = por %p36, %p37
    %p39 = scmp.ne.s32.totalorder %s31, %s34
    %p40 = scmp.eq.s32.totalorder %s9, 0
    %p41 = por %p39, %p40
    %p42 = scmp.ne.s32.totalorder %s31, %s34
    %p43 = scmp.eq.s32.totalorder %s14, 1
    %p44 = por %p42, %p43
    %p45 = scmp.ne.s32.totalorder %s34, %s35
    %p46 = scmp.eq.s32.totalorder %s14, 0
    %p47 = por %p45, %p46
    %p48 = scmp.ne.s32.totalorder %s34, %s35
    %p49 = scmp.eq.s32.totalorder %s15, 1
    %p50 = por %p48, %p49
    %p52 = scmp.ne.s32.totalorder %s35, %s51
    %p53 = scmp.eq.s32.totalorder %s15, 0
    %p54 = por %p52, %p53
    %s56 = sadd.s32 %s55, 1
    %p59 = scmp.eq.s32.totalorder %s9, 1
    %p60 = scmp.ne.s32.totalorder %s55, %s57
    %p61 = scmp.eq.s32.totalorder %s9, 0
    %p62 = por %p60, %p61
    %p63 = scmp.ne.s32.totalorder %s55, %s57
    %p64 = scmp.eq.s32.totalorder %s14, 1
    %p65 = por %p63, %p64
    %p66 = scmp.ne.s32.totalorder %s57, %s58
    %p67 = scmp.eq.s32.totalorder %s14, 0
    %p68 = por %p66, %p67
    %p69 = scmp.ne.s32.totalorder %s57, %s58
    %p70 = scmp.eq.s32.totalorder %s15, 1
    %p71 = por %p69, %p70
    %p73 = scmp.ne.s32.totalorder %s58, %s72
    %p74 = scmp.eq.s32.totalorder %s15, 0
    %p75 = por %p73, %p74
    %s77 = sadd.s32 %s76, 1
    %p80 = scmp.eq.s32.totalorder %s9, 1
    %p81 = scmp.ne.s32.totalorder %s76, %s78
    %p82 = scmp.eq.s32.totalorder %s9, 0
    %p83 = por %p81, %p82
    %p84 = scmp.ne.s32.totalorder %s76, %s78
    %p85 = scmp.eq.s32.totalorder %s14, 1
    %p86 = por %p84, %p85
    %p87 = scmp.ne.s32.totalorder %s78, %s79
    %p88 = scmp.eq.s32.totalorder %s14, 0
    %p89 = por %p87, %p88
    %p90 = scmp.ne.s32.totalorder %s78, %s79
    %p91 = scmp.eq.s32.totalorder %s15, 1
    %p92 = por %p90, %p91
    %p94 = scmp.ne.s32.totalorder %s79, %s93
    %p95 = scmp.eq.s32.totalorder %s15, 0
    %p96 = por %p94, %p95
    %s97 = ssub.s32 %s16, %s28
    %s98 = ssub.s32 %s17, %s24
    %s99 = sor.u32 %s97, %s98
    %p100 = scmp.eq.s32.totalorder %s99, 0
    %s102 = sadd.s32 %s101, 1
    %s103 = scalar_select %p100, %s101, %s102
    %p106 = pneg %p100
    %p107 = scmp.eq.s32.totalorder %s9, 1
    %p108 = por %p106, %p107
    %p109 = scmp.ne.s32.totalorder %s101, %s104
    %p110 = scmp.eq.s32.totalorder %s9, 0
    %p111 = por %p109, %p110
    %p112 = scmp.ne.s32.totalorder %s101, %s104
    %p113 = scmp.eq.s32.totalorder %s14, 1
    %p114 = por %p112, %p113
    %p115 = scmp.ne.s32.totalorder %s104, %s105
    %p116 = scmp.eq.s32.totalorder %s14, 0
    %p117 = por %p115, %p116
    %p118 = scmp.ne.s32.totalorder %s104, %s105
    %p119 = scmp.eq.s32.totalorder %s15, 1
    %p120 = por %p118, %p119
    %p122 = scmp.ne.s32.totalorder %s105, %s121
    %p123 = scmp.eq.s32.totalorder %s15, 0
    %p124 = por %p122, %p123
    %p125 = scmp.le.s32.totalorder 1, %s9
    %p126 = scmp.lt.s32.totalorder %s9, 3
    %p127 = pnand %p125, %p126
    %p128 = pneg %p127
    // Predicated region
    $region9: #{_lambda_.47} parent=5 // pred_check
      _
    $region10: #{_lambda_.47} parent=5 // pred_check_branch
      %130 = sbr.rel (%p127) target = $region12
    $region11: #{_lambda_.47} parent=5 // pred_region
      %s131 = ssub.s32 %s9, 1
      // Predicated region
      $region13: #{_lambda_.47} parent=11 // pred_check
        %p132 = pneg %p68
      $region14: #{_lambda_.47} parent=11 // pred_check_branch
        %134 = sbr.rel (%p132) target = $region16
      $region15: #{_lambda_.47} parent=11 // pred_region
        _
      $region16: #{_lambda_.47} parent=11 // pred_fallthru
        _
      // Predicated region
      $region17: #{_lambda_.47} parent=11 // pred_check
        %p135 = pneg %p89
      $region18: #{_lambda_.47} parent=11 // pred_check_branch
        %137 = sbr.rel (%p135) target = $region20
      $region19: #{_lambda_.47} parent=11 // pred_region
        _
      $region20: #{_lambda_.47} parent=11 // pred_fallthru
        _
    $region12: #{_lambda_.47} parent=5 // pred_fallthru
      _
    %p138 = scmp.lt.s32.totalorder %s9, 2
    // Predicated region
    $region21: #{_lambda_.47} parent=5 // pred_check
      %p139 = pneg %p138
    $region22: #{_lambda_.47} parent=5 // pred_check_branch
      %141 = sbr.rel (%p139) target = $region24
    $region23: #{_lambda_.47} parent=5 // pred_region
      // Predicated region
      $region25: #{_lambda_.47} parent=23 // pred_check
        %p142 = pneg %p41
      $region26: #{_lambda_.47} parent=23 // pred_check_branch
        %144 = sbr.rel (%p142) target = $region28
      $region27: #{_lambda_.47} parent=23 // pred_region
        %p145 = scmp.lt.s32.totalorder %s16, 1
        %s146 = scalar_select %p145, %s16, 1
        %s147 = scalar_lea.vmem %s0, %s146
      $region28: #{_lambda_.47} parent=23 // pred_fallthru
        _
    $region24: #{_lambda_.47} parent=5 // pred_fallthru
      _
    %p148 = scmp.le.s32.totalorder 1, %s9
    %p149 = scmp.lt.s32.totalorder %s9, 3
    %p150 = pnand %p148, %p149
    %p151 = pneg %p150
    // Predicated region
    $region29: #{_lambda_.47} parent=5 // pred_check
      _
    $region30: #{_lambda_.47} parent=5 // pred_check_branch
      %153 = sbr.rel (%p150) target = $region32
    $region31: #{_lambda_.47} parent=5 // pred_region
      %s154 = ssub.s32 %s9, 1
      %p155 = scmp.lt.s32.totalorder %s18, 1
      %s156 = scalar_select %p155, %s18, 1
      %s157 = scalar_lea.vmem %s0, %s156
      %p158 = pneg %p47
      %p159 = pneg %p44
      %p160 = pneg %p68
      %p161 = pneg %p65
      %p162 = pneg %p89
      %p163 = pneg %p86
      %p164 = pneg %p117
      %p165 = pneg %p114
      %p166 = scmp.lt.s32.totalorder %s18, 1
      %s167 = scalar_select %p166, %s18, 1
      %p168 = scmp.lt.s32.totalorder %s19, 0
      %s169 = scalar_select %p168, %s19, 0
      %s170 = sadd.s32 %s169, %s167
      %s171 = smul.addr %s170, 2
      %s172 = scalar_lea.vmem %s3, %s171
      %p173 = scmp.lt.s32.totalorder %s18, 1
      %s174 = scalar_select %p173, %s18, 1
      %s175 = scalar_lea.vmem %s0, %s174
      %p176 = scmp.lt.s32.totalorder %s18, 1
      %s177 = scalar_select %p176, %s18, 1
      %p178 = scmp.lt.s32.totalorder %s19, 0
      %s179 = scalar_select %p178, %s19, 0
      %s180 = sadd.s32 %s179, %s177
      %s181 = smul.addr %s180, 2
      %s182 = scalar_lea.vmem %s3, %s181
      %v184 = vld [vmem:[%s175] sm:$0x1]
      %v187 = vunpack.c.l.s4 1966171168
      %v188 = vunpack.c.0.s8 %v187
      %v189 = vlaneseq
      %v190 = vshrl.u32 %v189, 7
      %v191 = vsub.s32 %v188, %v190
      %v192 = vrot.slane %v184, %v191
      %v194 = vunpack.c.l.s4 1966171168
      %v195 = vunpack.c.0.s8 %v194
      %v196 = vlaneseq
      %v197 = vshrl.u32 %v196, 7
      %v198 = vsub.s32 %v195, %v197
      %v199 = vrot.slane %v192, %v198
      %v201 = vshll.u32 %v199, 16
      %203 = vrot.lane.b32.xlu0 %v201, 127
      %v204 = vpop.permute.xlu0 %203
      %v206 = vcombine.low %v184, %v184
      %v208 = vunpack.c.l.s4 1966171168
      %v209 = vunpack.c.0.s8 %v208
      %v210 = vlaneseq
      %v211 = vshrl.u32 %v210, 7
      %v212 = vsub.s32 %v209, %v211
      %v213 = vrot.slane %v206, %v212
      %v215 = vunpack.c.l.s4 1966171168
      %v216 = vunpack.c.0.s8 %v215
      %v217 = vlaneseq
      %v218 = vshrl.u32 %v217, 7
      %v219 = vsub.s32 %v216, %v218
      %v220 = vrot.slane %v213, %v219
      %221 = vrot.lane.b32.xlu0 %v220, 126
      %v222 = vpop.permute.xlu0 %221
      %v223 = vrot.slane %v201, 7
      %224 = vrot.lane.b32.xlu0 %v223, 125
      %v225 = vpop.permute.xlu0 %224
      %v227 = vcombine.low %v192, %v192
      %v229 = vunpack.c.l.s4 1966171168
      %v230 = vunpack.c.0.s8 %v229
      %v231 = vlaneseq
      %v232 = vshrl.u32 %v231, 7
      %v233 = vsub.s32 %v230, %v232
      %v234 = vrot.slane %v227, %v233
      %235 = vrot.lane.b32.xlu0 %v234, 124
      %v236 = vpop.permute.xlu0 %235
      %v237 = vrot.slane %v201, 6
      %238 = vrot.lane.b32.xlu0 %v237, 123
      %v239 = vpop.permute.xlu0 %238
      %v241 = vcombine.low %v213, %v213
      %v243 = vunpack.c.l.s4 1966171168
      %v244 = vunpack.c.0.s8 %v243
      %v245 = vlaneseq
      %v246 = vshrl.u32 %v245, 7
      %v247 = vsub.s32 %v244, %v246
      %v248 = vrot.slane %v241, %v247
      %249 = vrot.lane.b32.xlu0 %v248, 122
      %v250 = vpop.permute.xlu0 %249
      %v251 = vrot.slane %v201, 5
      %252 = vrot.lane.b32.xlu0 %v251, 121
      %v253 = vpop.permute.xlu0 %252
      %v255 = vcombine.low %v199, %v199
      %256 = vrot.lane.b32.xlu0 %v255, 120
      %v257 = vpop.permute.xlu0 %256
      %v258 = vrot.slane %v201, 4
      %259 = vrot.lane.b32.xlu0 %v258, 119
      %v260 = vpop.permute.xlu0 %259
      %v262 = vcombine.low %v220, %v220
      %263 = vrot.lane.b32.xlu0 %v262, 118
      %v264 = vpop.permute.xlu0 %263
      %v265 = vrot.slane %v201, 3
      %266 = vrot.lane.b32.xlu0 %v265, 117
      %v267 = vpop.permute.xlu0 %266
      %v269 = vcombine.low %v234, %v234
      %270 = vrot.lane.b32.xlu0 %v269, 116
      %v271 = vpop.permute.xlu0 %270
      %v272 = vrot.slane %v201, 2
      %273 = vrot.lane.b32.xlu0 %v272, 115
      %v274 = vpop.permute.xlu0 %273
      %v276 = vcombine.low %v248, %v248
      %277 = vrot.lane.b32.xlu0 %v276, 114
      %v278 = vpop.permute.xlu0 %277
      %vm279 = vcmask 1040384
      %vm280 = vsmask.f32 256
      %vm281 = vmand %vm279, %vm280
      %v282 = vsel %vm281, %v184, %v204
      %vm283 = vcmask 1040384
      %v286 = vsel %vm283, %v282, %v222
      %vm288 = vcmask 1041408
      %vm289 = vsmask.f32 1280
      %vm290 = vmand %vm288, %vm289
      %v291 = vsel %vm290, %v286, %v225
      %vm292 = vcmask 1041408
      %v295 = vsel %vm292, %v291, %v236
      %vm297 = vcmask 1042432
      %vm298 = vsmask.f32 2304
      %vm299 = vmand %vm297, %vm298
      %v300 = vsel %vm299, %v295, %v239
      %vm301 = vcmask 1042432
      %v304 = vsel %vm301, %v300, %v250
      %vm306 = vcmask 1043456
      %vm307 = vsmask.f32 3328
      %vm308 = vmand %vm306, %vm307
      %v309 = vsel %vm308, %v304, %v253
      %vm310 = vcmask 1043456
      %v313 = vsel %vm310, %v309, %v257
      %vm315 = vcmask 1044480
      %vm316 = vsmask.f32 4352
      %vm317 = vmand %vm315, %vm316
      %v318 = vsel %vm317, %v313, %v260
      %vm319 = vcmask 1044480
      %v322 = vsel %vm319, %v318, %v264
      %vm324 = vcmask 1045504
      %vm325 = vsmask.f32 5376
      %vm326 = vmand %vm324, %vm325
      %v327 = vsel %vm326, %v322, %v267
      %vm328 = vcmask 1045504
      %v331 = vsel %vm328, %v327, %v271
      %vm333 = vcmask 1046528
      %vm334 = vsmask.f32 6400
      %vm335 = vmand %vm333, %vm334
      %v336 = vsel %vm335, %v331, %v274
      %vm337 = vcmask 1046528
      %v340 = vsel %vm337, %v336, %v278
      %v341 = vld [vmem:[%s1] sm:$0x3]
      %v342 = vld [vmem:[%s2] sm:$0xf]
      %344 = vset.pattern.permute.xlu0 0
      %345 = vperm.xlu0 %344, %v342
      %v346 = vpop.permute.xlu0 %345
      %vm348 = vcmask 121856
      %v350 = vsel %vm348, %v341, 0
      %vm352 = vcmask 1047552
      %v353 = vsel %vm337, 4294967295, 65535
      %v354 = vsel %vm352, %v353, 0
      %v355 = vand.u32 %v340, %v354
      %357 = vmatprep.subr.bf16.mxu0 0
      %358 = vmatpush1.bf16.msra.mxu0 %v355
      %359 = vmatprep.subr.bf16.mxu0 0
      %360 = vmatpush1.bf16.msra.mxu0 0
      %361 = vmatprep.subr.bf16.mxu0 0
      %362 = vmatpush1.bf16.msra.mxu0 0
      %363 = vmatprep.subr.bf16.mxu0 0
      %364 = vmatpush1.bf16.msra.mxu0 0
      %365 = vmatprep.subr.bf16.mxu0 0
      %366 = vmatpush1.bf16.msra.mxu0 0
      %367 = vmatprep.subr.bf16.mxu0 0
      %368 = vmatpush1.bf16.msra.mxu0 0
      %369 = vmatprep.subr.bf16.mxu0 0
      %370 = vmatpush1.bf16.msra.mxu0 0
      %371 = vmatprep.subr.bf16.mxu0 0
      %372 = vmatpush1.bf16.msra.mxu0 0
      %373 = vmatprep.subr.bf16.mxu0 0
      %374 = vmatpush1.bf16.msra.mxu0 0
      %375 = vmatprep.subr.bf16.mxu0 0
      %376 = vmatpush1.bf16.msra.mxu0 0
      %377 = vmatprep.subr.bf16.mxu0 0
      %378 = vmatpush1.bf16.msra.mxu0 0
      %379 = vmatprep.subr.bf16.mxu0 0
      %380 = vmatpush1.bf16.msra.mxu0 0
      %381 = vmatprep.subr.bf16.mxu0 0
      %382 = vmatpush1.bf16.msra.mxu0 0
      %383 = vmatprep.subr.bf16.mxu0 0
      %384 = vmatpush1.bf16.msra.mxu0 0
      %385 = vmatprep.subr.bf16.mxu0 0
      %386 = vmatpush1.bf16.msra.mxu0 0
      %387 = vmatprep.subr.bf16.mxu0 0
      %388 = vmatpush1.bf16.msra.mxu0 0
      %389 = vmatprep.mubr.bf16.mxu0 0
      %390 = vmatmul.mubr.bf16.gmra.mrb[0].mxu0 %v350
      %v391 = vpop.f32.mrb[0].mxu0
      %v392 = vadd.f32 %v346, %v391
      %v393 = vpop.f32.mrb[0].mxu0
      %v394 = vpop.f32.mrb[0].mxu0
      %v395 = vpop.f32.mrb[0].mxu0
      %396 = vdwg.mxu0
      %v397 = vmul.f32 %v392, 0.1
      %v398 = vmax.f32 %v392, %v397
      %v399 = vpack.c.bf16 %v398, %v398
      %vm400 = vcmask 132096
      %401 = vst.msk [vmem:[%s182] sm:$0x3] %vm400, %v399
      %p402 = scmp.lt.s32.totalorder %s18, 1
      %s403 = scalar_select %p402, %s18, 1
      %p404 = scmp.lt.s32.totalorder %s19, 0
      %s405 = scalar_select %p404, %s19, 0
      %s406 = sadd.s32 %s405, %s403
      %s407 = smul.addr %s406, 2
      %s408 = scalar_lea.vmem %s3, %s407
      // Predicated region
      $region33: #{_lambda_.47} parent=31 // pred_check
        %p409 = pneg %p114
      $region34: #{_lambda_.47} parent=31 // pred_check_branch
        %411 = sbr.rel (%p409) target = $region36
      $region35: #{_lambda_.47} parent=31 // pred_region
        _
      $region36: #{_lambda_.47} parent=31 // pred_fallthru
        _
    $region32: #{_lambda_.47} parent=5 // pred_fallthru
      _
    %p412 = scmp.le.s32.totalorder 2, %s9
    // Predicated region
    $region37: #{_lambda_.47} parent=5 // pred_check
      %p413 = pneg %p412
    $region38: #{_lambda_.47} parent=5 // pred_check_branch
      %415 = sbr.rel (%p413) target = $region40
    $region39: #{_lambda_.47} parent=5 // pred_region
      %s416 = ssub.s32 %s9, 2
      // Predicated region
      $region41: #{_lambda_.47} parent=39 // pred_check
        %p417 = pneg %p120
      $region42: #{_lambda_.47} parent=39 // pred_check_branch
        %419 = sbr.rel (%p417) target = $region44
      $region43: #{_lambda_.47} parent=39 // pred_region
        %p420 = scmp.lt.s32.totalorder %s20, 1
        %s421 = scalar_select %p420, %s20, 1
        %p422 = scmp.lt.s32.totalorder %s21, 0
        %s423 = scalar_select %p422, %s21, 0
        %s424 = sadd.s32 %s423, %s421
        %s425 = smul.addr %s424, 2
        %s426 = scalar_lea.vmem %s3, %s425
      $region44: #{_lambda_.47} parent=39 // pred_fallthru
        _
    $region40: #{_lambda_.47} parent=5 // pred_fallthru
      _
  $region6: #{_lambda_.47} parent=0 // loop_footer
    %s13 = sadd.s32 1, %s9
  $region7: #{_lambda_.47} parent=0 // loop_footer_branch
    %8 = sbr.rel target = $region3
  $region8: #{_lambda_.47} parent=0 // loop_exit
    _

// kernel: _lambda_.55
$region0: #{_lambda_.55}
  #allocation0 [shape = 'u32[]', space=smem, size = 0x4, offset = 0x4, fixed_abs, tag = 'smem constant byte address 0x4 - core index']
  #allocation1 [shape = 'u32[144,128]{1,0:T(1,128)}', space=vmem, size = 0x12000, scoped, tag = 'internal scratch']
  #allocation2 [shape = 'f32[1,1]{1,0:T(1,128)S(1)}', space=vmem, size = 0x200, scoped, tag = 'scoped memory for _lambda_.55']
  %s0 = inlined_call_operand.vmem [shape: bf16[2,8,7], index: 0, kind: input, shape index: {}]
  %s1 = inlined_call_operand.vmem [shape: bf16[1,24], index: 1, kind: input, shape index: {}]
  %s2 = inlined_call_operand.<no memory space> [shape: f32[1,1], index: 2, kind: input, shape index: {}]
  %s3 = inlined_call_operand.vmem [shape: bf16[2,1,5], index: 3, kind: output, shape index: {}]
  %s4 = sld [smem:[#allocation0]]
  $region45: #{_lambda_.55} parent=0
    _
  %s6 = ssub.s32 1, %s4
  %s7 = scalar_select 0, %s6, %s4
  %v8 = vstv %s2
  %9 = vst [vmem:[#allocation2] sm:$0x1] %v8
  loop: start=0, step=1, limit=4
  $region2: #{_lambda_.55} parent=0 // loop_pre_header
    _
  $region3: #{_lambda_.55} parent=0 // loop_header
    %s11 = sphi 0, %s15
    %p12 = scmp.ge.s32.totalorder %s11, 4
    %s18 = sphi 0, %s30
    %s19 = sphi 0, %s26
    %s20 = sphi 0, %s18
    %s21 = sphi 0, %s19
    %s22 = sphi 0, %s20
    %s23 = sphi 0, %s21
    %s33 = sphi 0, %s35
    %s36 = sphi 0, %s33
    %s37 = sphi 0, %s36
    %s53 = sphi 0, %s37
    %s57 = sphi 0, %s57
    %s59 = sphi 0, %s57
    %s60 = sphi 0, %s59
    %s74 = sphi 0, %s60
    %s78 = sphi 0, %s78
    %s80 = sphi 0, %s78
    %s81 = sphi 0, %s80
    %s95 = sphi 0, %s81
    %s103 = sphi 0, %s105
    %s106 = sphi 0, %s103
    %s107 = sphi 0, %s106
    %s123 = sphi 0, %s107
  $region4: #{_lambda_.55} parent=0 // loop_header_branch
    %14 = sbr.rel (%p12) target = $region8
  $region5: #{_lambda_.55} parent=0 // loop_body
    %s16 = ssub.s32 %s11, 1
    %s17 = ssub.s32 %s11, 2
    %s24 = sadd.s32 1, %s19
    %p25 = scmp.ge.s32.totalorder %s24, 1
    %s26 = scalar_select %p25, 0, %s24
    %s27 = sadd.s32 1, %s18
    %s28 = scalar_select %p25, %s27, %s18
    %p29 = scmp.ge.s32.totalorder %s28, 2
    %s30 = scalar_select %p29, 0, %s28
    %s31 = ssub.s32 %s18, %s30
    %p32 = scmp.eq.s32.totalorder %s31, 0
    %s34 = sadd.s32 %s33, 1
    %s35 = scalar_select %p32, %s33, %s34
    %p38 = pneg %p32
    %p39 = scmp.eq.s32.totalorder %s11, 1
    %p40 = por %p38, %p39
    %p41 = scmp.ne.s32.totalorder %s33, %s36
    %p42 = scmp.eq.s32.totalorder %s11, 0
    %p43 = por %p41, %p42
    %p44 = scmp.ne.s32.totalorder %s33, %s36
    %p45 = scmp.eq.s32.totalorder %s16, 1
    %p46 = por %p44, %p45
    %p47 = scmp.ne.s32.totalorder %s36, %s37
    %p48 = scmp.eq.s32.totalorder %s16, 0
    %p49 = por %p47, %p48
    %p50 = scmp.ne.s32.totalorder %s36, %s37
    %p51 = scmp.eq.s32.totalorder %s17, 1
    %p52 = por %p50, %p51
    %p54 = scmp.ne.s32.totalorder %s37, %s53
    %p55 = scmp.eq.s32.totalorder %s17, 0
    %p56 = por %p54, %p55
    %s58 = sadd.s32 %s57, 1
    %p61 = scmp.eq.s32.totalorder %s11, 1
    %p62 = scmp.ne.s32.totalorder %s57, %s59
    %p63 = scmp.eq.s32.totalorder %s11, 0
    %p64 = por %p62, %p63
    %p65 = scmp.ne.s32.totalorder %s57, %s59
    %p66 = scmp.eq.s32.totalorder %s16, 1
    %p67 = por %p65, %p66
    %p68 = scmp.ne.s32.totalorder %s59, %s60
    %p69 = scmp.eq.s32.totalorder %s16, 0
    %p70 = por %p68, %p69
    %p71 = scmp.ne.s32.totalorder %s59, %s60
    %p72 = scmp.eq.s32.totalorder %s17, 1
    %p73 = por %p71, %p72
    %p75 = scmp.ne.s32.totalorder %s60, %s74
    %p76 = scmp.eq.s32.totalorder %s17, 0
    %p77 = por %p75, %p76
    %s79 = sadd.s32 %s78, 1
    %p82 = scmp.eq.s32.totalorder %s11, 1
    %p83 = scmp.ne.s32.totalorder %s78, %s80
    %p84 = scmp.eq.s32.totalorder %s11, 0
    %p85 = por %p83, %p84
    %p86 = scmp.ne.s32.totalorder %s78, %s80
    %p87 = scmp.eq.s32.totalorder %s16, 1
    %p88 = por %p86, %p87
    %p89 = scmp.ne.s32.totalorder %s80, %s81
    %p90 = scmp.eq.s32.totalorder %s16, 0
    %p91 = por %p89, %p90
    %p92 = scmp.ne.s32.totalorder %s80, %s81
    %p93 = scmp.eq.s32.totalorder %s17, 1
    %p94 = por %p92, %p93
    %p96 = scmp.ne.s32.totalorder %s81, %s95
    %p97 = scmp.eq.s32.totalorder %s17, 0
    %p98 = por %p96, %p97
    %s99 = ssub.s32 %s18, %s30
    %s100 = ssub.s32 %s19, %s26
    %s101 = sor.u32 %s99, %s100
    %p102 = scmp.eq.s32.totalorder %s101, 0
    %s104 = sadd.s32 %s103, 1
    %s105 = scalar_select %p102, %s103, %s104
    %p108 = pneg %p102
    %p109 = scmp.eq.s32.totalorder %s11, 1
    %p110 = por %p108, %p109
    %p111 = scmp.ne.s32.totalorder %s103, %s106
    %p112 = scmp.eq.s32.totalorder %s11, 0
    %p113 = por %p111, %p112
    %p114 = scmp.ne.s32.totalorder %s103, %s106
    %p115 = scmp.eq.s32.totalorder %s16, 1
    %p116 = por %p114, %p115
    %p117 = scmp.ne.s32.totalorder %s106, %s107
    %p118 = scmp.eq.s32.totalorder %s16, 0
    %p119 = por %p117, %p118
    %p120 = scmp.ne.s32.totalorder %s106, %s107
    %p121 = scmp.eq.s32.totalorder %s17, 1
    %p122 = por %p120, %p121
    %p124 = scmp.ne.s32.totalorder %s107, %s123
    %p125 = scmp.eq.s32.totalorder %s17, 0
    %p126 = por %p124, %p125
    %p127 = scmp.le.s32.totalorder 1, %s11
    %p128 = scmp.lt.s32.totalorder %s11, 3
    %p129 = pnand %p127, %p128
    %p130 = pneg %p129
    // Predicated region
    $region9: #{_lambda_.55} parent=5 // pred_check
      _
    $region10: #{_lambda_.55} parent=5 // pred_check_branch
      %132 = sbr.rel (%p129) target = $region12
    $region11: #{_lambda_.55} parent=5 // pred_region
      %s133 = ssub.s32 %s11, 1
      // Predicated region
      $region13: #{_lambda_.55} parent=11 // pred_check
        %p134 = pneg %p70
      $region14: #{_lambda_.55} parent=11 // pred_check_branch
        %136 = sbr.rel (%p134) target = $region16
      $region15: #{_lambda_.55} parent=11 // pred_region
        _
      $region16: #{_lambda_.55} parent=11 // pred_fallthru
        _
      // Predicated region
      $region17: #{_lambda_.55} parent=11 // pred_check
        %p137 = pneg %p91
      $region18: #{_lambda_.55} parent=11 // pred_check_branch
        %139 = sbr.rel (%p137) target = $region20
      $region19: #{_lambda_.55} parent=11 // pred_region
        _
      $region20: #{_lambda_.55} parent=11 // pred_fallthru
        _
    $region12: #{_lambda_.55} parent=5 // pred_fallthru
      _
    %p140 = scmp.lt.s32.totalorder %s11, 2
    // Predicated region
    $region21: #{_lambda_.55} parent=5 // pred_check
      %p141 = pneg %p140
    $region22: #{_lambda_.55} parent=5 // pred_check_branch
      %143 = sbr.rel (%p141) target = $region24
    $region23: #{_lambda_.55} parent=5 // pred_region
      // Predicated region
      $region25: #{_lambda_.55} parent=23 // pred_check
        %p144 = pneg %p43
      $region26: #{_lambda_.55} parent=23 // pred_check_branch
        %146 = sbr.rel (%p144) target = $region28
      $region27: #{_lambda_.55} parent=23 // pred_region
        %p147 = scmp.lt.s32.totalorder %s18, 1
        %s148 = scalar_select %p147, %s18, 1
        %s149 = smul.addr %s148, 4
        %s150 = scalar_lea.vmem %s0, %s149
      $region28: #{_lambda_.55} parent=23 // pred_fallthru
        _
    $region24: #{_lambda_.55} parent=5 // pred_fallthru
      _
    %p151 = scmp.le.s32.totalorder 1, %s11
    %p152 = scmp.lt.s32.totalorder %s11, 3
    %p153 = pnand %p151, %p152
    %p154 = pneg %p153
    // Predicated region
    $region29: #{_lambda_.55} parent=5 // pred_check
      _
    $region30: #{_lambda_.55} parent=5 // pred_check_branch
      %156 = sbr.rel (%p153) target = $region32
    $region31: #{_lambda_.55} parent=5 // pred_region
      %s157 = ssub.s32 %s11, 1
      %p158 = scmp.lt.s32.totalorder %s20, 1
      %s159 = scalar_select %p158, %s20, 1
      %s160 = smul.addr %s159, 4
      %s161 = scalar_lea.vmem %s0, %s160
      %p162 = pneg %p49
      %p163 = pneg %p46
      %p164 = pneg %p70
      %p165 = pneg %p67
      %p166 = pneg %p91
      %p167 = pneg %p88
      %p168 = pneg %p119
      %p169 = pneg %p116
      %p170 = scmp.lt.s32.totalorder %s20, 1
      %s171 = scalar_select %p170, %s20, 1
      %p172 = scmp.lt.s32.totalorder %s21, 0
      %s173 = scalar_select %p172, %s21, 0
      %s174 = sadd.s32 %s173, %s171
      %s175 = scalar_lea.vmem %s3, %s174
      %p176 = scmp.lt.s32.totalorder %s20, 1
      %s177 = scalar_select %p176, %s20, 1
      %s178 = smul.addr %s177, 4
      %s179 = scalar_lea.vmem %s0, %s178
      %p180 = scmp.lt.s32.totalorder %s20, 1
      %s181 = scalar_select %p180, %s20, 1
      %p182 = scmp.lt.s32.totalorder %s21, 0
      %s183 = scalar_select %p182, %s21, 0
      %s184 = sadd.s32 %s183, %s181
      %s185 = scalar_lea.vmem %s3, %s184
      %v187 = vld [vmem:[%s179] sm:$0xf]
      %v189 = vunpack.c.l.b16 %v187
      %v190 = vpack.c.b16 %v189, %v189
      %191 = vrot.lane.b32.xlu0 %v190, 127
      %v192 = vpop.permute.xlu0 %191
      %193 = vrot.lane.b32.xlu0 %v190, 126
      %v194 = vpop.permute.xlu0 %193
      %vm195 = vcmask 1043456
      %v198 = vsel %vm195, %v187, %v192
      %v200 = vld [vmem:[%s1] sm:$0x1]
      %v201 = vld [vmem:[#allocation2] sm:$0x1]
      %203 = vset.pattern.permute.xlu0 0
      %204 = vperm.xlu0 %203, %v201
      %v205 = vpop.permute.xlu0 %204
      %v207 = vlaneseq
      %v208 = vshrl.u32 %v207, 7
      %v209 = vsub.s32 0, %v208
      %v210 = vrot.slane %v205, %v209
      %vm211 = vcmask 195584
      %v213 = vsel %vm211, %v200, 0
      %v216 = vsel %vm195, %v194, 0
      %218 = vmatprep.subr.bf16.mxu0 0
      %219 = vmatpush1.bf16.msra.mxu0 %v198
      %220 = vmatprep.subr.bf16.mxu0 0
      %221 = vmatpush1.bf16.msra.mxu0 %v216
      %222 = vmatprep.subr.bf16.mxu0 0
      %223 = vmatpush1.bf16.msra.mxu0 0
      %224 = vmatprep.subr.bf16.mxu0 0
      %225 = vmatpush1.bf16.msra.mxu0 0
      %226 = vmatprep.subr.bf16.mxu0 0
      %227 = vmatpush1.bf16.msra.mxu0 0
      %228 = vmatprep.subr.bf16.mxu0 0
      %229 = vmatpush1.bf16.msra.mxu0 0
      %230 = vmatprep.subr.bf16.mxu0 0
      %231 = vmatpush1.bf16.msra.mxu0 0
      %232 = vmatprep.subr.bf16.mxu0 0
      %233 = vmatpush1.bf16.msra.mxu0 0
      %234 = vmatprep.subr.bf16.mxu0 0
      %235 = vmatpush1.bf16.msra.mxu0 0
      %236 = vmatprep.subr.bf16.mxu0 0
      %237 = vmatpush1.bf16.msra.mxu0 0
      %238 = vmatprep.subr.bf16.mxu0 0
      %239 = vmatpush1.bf16.msra.mxu0 0
      %240 = vmatprep.subr.bf16.mxu0 0
      %241 = vmatpush1.bf16.msra.mxu0 0
      %242 = vmatprep.subr.bf16.mxu0 0
      %243 = vmatpush1.bf16.msra.mxu0 0
      %244 = vmatprep.subr.bf16.mxu0 0
      %245 = vmatpush1.bf16.msra.mxu0 0
      %246 = vmatprep.subr.bf16.mxu0 0
      %247 = vmatpush1.bf16.msra.mxu0 0
      %248 = vmatprep.subr.bf16.mxu0 0
      %249 = vmatpush1.bf16.msra.mxu0 0
      %250 = vmatprep.mubr.bf16.mxu0 0
      %251 = vmatmul.mubr.bf16.gmra.mrb[0].mxu0 %v213
      %v252 = vpop.f32.mrb[0].mxu0
      %v253 = vadd.f32 %v210, %v252
      %v254 = vpop.f32.mrb[0].mxu0
      %v255 = vpop.f32.mrb[0].mxu0
      %v256 = vpop.f32.mrb[0].mxu0
      %257 = vdwg.mxu0
      %v258 = vpack.c.bf16 %v253, %v253
      %vm259 = vcmask 32768
      %vm260 = vsmask.f32 256
      %vm261 = vmand %vm259, %vm260
      %v262 = vld [vmem:[%s185] sm:$0x1]
      %v263 = vsel %vm261, %v258, %v262
      %264 = vst [vmem:[%s185] sm:$0x1] %v263
      %p265 = scmp.lt.s32.totalorder %s20, 1
      %s266 = scalar_select %p265, %s20, 1
      %p267 = scmp.lt.s32.totalorder %s21, 0
      %s268 = scalar_select %p267, %s21, 0
      %s269 = sadd.s32 %s268, %s266
      %s270 = scalar_lea.vmem %s3, %s269
      // Predicated region
      $region33: #{_lambda_.55} parent=31 // pred_check
        %p271 = pneg %p116
      $region34: #{_lambda_.55} parent=31 // pred_check_branch
        %273 = sbr.rel (%p271) target = $region36
      $region35: #{_lambda_.55} parent=31 // pred_region
        _
      $region36: #{_lambda_.55} parent=31 // pred_fallthru
        _
    $region32: #{_lambda_.55} parent=5 // pred_fallthru
      _
    %p274 = scmp.le.s32.totalorder 2, %s11
    // Predicated region
    $region37: #{_lambda_.55} parent=5 // pred_check
      %p275 = pneg %p274
    $region38: #{_lambda_.55} parent=5 // pred_check_branch
      %277 = sbr.rel (%p275) target = $region40
    $region39: #{_lambda_.55} parent=5 // pred_region
      %s278 = ssub.s32 %s11, 2
      // Predicated region
      $region41: #{_lambda_.55} parent=39 // pred_check
        %p279 = pneg %p122
      $region42: #{_lambda_.55} parent=39 // pred_check_branch
        %281 = sbr.rel (%p279) target = $region44
      $region43: #{_lambda_.55} parent=39 // pred_region
        %p282 = scmp.lt.s32.totalorder %s22, 1
        %s283 = scalar_select %p282, %s22, 1
        %p284 = scmp.lt.s32.totalorder %s23, 0
        %s285 = scalar_select %p284, %s23, 0
        %s286 = sadd.s32 %s285, %s283
        %s287 = scalar_lea.vmem %s3, %s286
      $region44: #{_lambda_.55} parent=39 // pred_fallthru
        _
    $region40: #{_lambda_.55} parent=5 // pred_fallthru
      _
  $region6: #{_lambda_.55} parent=0 // loop_footer
    %s15 = sadd.s32 1, %s11
  $region7: #{_lambda_.55} parent=0 // loop_footer_branch
    %10 = sbr.rel target = $region3
  $region8: #{_lambda_.55} parent=0 // loop_exit
    _

// kernel: _lambda_.53
$region0: #{_lambda_.53}
  #allocation0 [shape = 'u32[]', space=smem, size = 0x4, offset = 0x4, fixed_abs, tag = 'smem constant byte address 0x4 - core index']
  #allocation1 [shape = 'u32[144,128]{1,0:T(1,128)}', space=vmem, size = 0x12000, scoped, tag = 'internal scratch']
  %s0 = inlined_call_operand.vmem [shape: bf16[2,8,9], index: 0, kind: input, shape index: {}]
  %s1 = inlined_call_operand.vmem [shape: bf16[8,40], index: 1, kind: input, shape index: {}]
  %s2 = inlined_call_operand.vmem [shape: f32[8,1], index: 2, kind: input, shape index: {}]
  %s3 = inlined_call_operand.vmem [shape: bf16[2,8,5], index: 3, kind: output, shape index: {}]
  %s4 = sld [smem:[#allocation0]]
  $region45: #{_lambda_.53} parent=0
    _
  %s6 = ssub.s32 1, %s4
  %s7 = scalar_select 0, %s6, %s4
  loop: start=0, step=1, limit=4
  $region2: #{_lambda_.53} parent=0 // loop_pre_header
    _
  $region3: #{_lambda_.53} parent=0 // loop_header
    %s9 = sphi 0, %s13
    %p10 = scmp.ge.s32.totalorder %s9, 4
    %s16 = sphi 0, %s28
    %s17 = sphi 0, %s24
    %s18 = sphi 0, %s16
    %s19 = sphi 0, %s17
    %s20 = sphi 0, %s18
    %s21 = sphi 0, %s19
    %s31 = sphi 0, %s33
    %s34 = sphi 0, %s31
    %s35 = sphi 0, %s34
    %s51 = sphi 0, %s35
    %s55 = sphi 0, %s55
    %s57 = sphi 0, %s55
    %s58 = sphi 0, %s57
    %s72 = sphi 0, %s58
    %s76 = sphi 0, %s76
    %s78 = sphi 0, %s76
    %s79 = sphi 0, %s78
    %s93 = sphi 0, %s79
    %s101 = sphi 0, %s103
    %s104 = sphi 0, %s101
    %s105 = sphi 0, %s104
    %s121 = sphi 0, %s105
  $region4: #{_lambda_.53} parent=0 // loop_header_branch
    %12 = sbr.rel (%p10) target = $region8
  $region5: #{_lambda_.53} parent=0 // loop_body
    %s14 = ssub.s32 %s9, 1
    %s15 = ssub.s32 %s9, 2
    %s22 = sadd.s32 1, %s17
    %p23 = scmp.ge.s32.totalorder %s22, 1
    %s24 = scalar_select %p23, 0, %s22
    %s25 = sadd.s32 1, %s16
    %s26 = scalar_select %p23, %s25, %s16
    %p27 = scmp.ge.s32.totalorder %s26, 2
    %s28 = scalar_select %p27, 0, %s26
    %s29 = ssub.s32 %s16, %s28
    %p30 = scmp.eq.s32.totalorder %s29, 0
    %s32 = sadd.s32 %s31, 1
    %s33 = scalar_select %p30, %s31, %s32
    %p36 = pneg %p30
    %p37 = scmp.eq.s32.totalorder %s9, 1
    %p38 = por %p36, %p37
    %p39 = scmp.ne.s32.totalorder %s31, %s34
    %p40 = scmp.eq.s32.totalorder %s9, 0
    %p41 = por %p39, %p40
    %p42 = scmp.ne.s32.totalorder %s31, %s34
    %p43 = scmp.eq.s32.totalorder %s14, 1
    %p44 = por %p42, %p43
    %p45 = scmp.ne.s32.totalorder %s34, %s35
    %p46 = scmp.eq.s32.totalorder %s14, 0
    %p47 = por %p45, %p46
    %p48 = scmp.ne.s32.totalorder %s34, %s35
    %p49 = scmp.eq.s32.totalorder %s15, 1
    %p50 = por %p48, %p49
    %p52 = scmp.ne.s32.totalorder %s35, %s51
    %p53 = scmp.eq.s32.totalorder %s15, 0
    %p54 = por %p52, %p53
    %s56 = sadd.s32 %s55, 1
    %p59 = scmp.eq.s32.totalorder %s9, 1
    %p60 = scmp.ne.s32.totalorder %s55, %s57
    %p61 = scmp.eq.s32.totalorder %s9, 0
    %p62 = por %p60, %p61
    %p63 = scmp.ne.s32.totalorder %s55, %s57
    %p64 = scmp.eq.s32.totalorder %s14, 1
    %p65 = por %p63, %p64
    %p66 = scmp.ne.s32.totalorder %s57, %s58
    %p67 = scmp.eq.s32.totalorder %s14, 0
    %p68 = por %p66, %p67
    %p69 = scmp.ne.s32.totalorder %s57, %s58
    %p70 = scmp.eq.s32.totalorder %s15, 1
    %p71 = por %p69, %p70
    %p73 = scmp.ne.s32.totalorder %s58, %s72
    %p74 = scmp.eq.s32.totalorder %s15, 0
    %p75 = por %p73, %p74
    %s77 = sadd.s32 %s76, 1
    %p80 = scmp.eq.s32.totalorder %s9, 1
    %p81 = scmp.ne.s32.totalorder %s76, %s78
    %p82 = scmp.eq.s32.totalorder %s9, 0
    %p83 = por %p81, %p82
    %p84 = scmp.ne.s32.totalorder %s76, %s78
    %p85 = scmp.eq.s32.totalorder %s14, 1
    %p86 = por %p84, %p85
    %p87 = scmp.ne.s32.totalorder %s78, %s79
    %p88 = scmp.eq.s32.totalorder %s14, 0
    %p89 = por %p87, %p88
    %p90 = scmp.ne.s32.totalorder %s78, %s79
    %p91 = scmp.eq.s32.totalorder %s15, 1
    %p92 = por %p90, %p91
    %p94 = scmp.ne.s32.totalorder %s79, %s93
    %p95 = scmp.eq.s32.totalorder %s15, 0
    %p96 = por %p94, %p95
    %s97 = ssub.s32 %s16, %s28
    %s98 = ssub.s32 %s17, %s24
    %s99 = sor.u32 %s97, %s98
    %p100 = scmp.eq.s32.totalorder %s99, 0
    %s102 = sadd.s32 %s101, 1
    %s103 = scalar_select %p100, %s101, %s102
    %p106 = pneg %p100
    %p107 = scmp.eq.s32.totalorder %s9, 1
    %p108 = por %p106, %p107
    %p109 = scmp.ne.s32.totalorder %s101, %s104
    %p110 = scmp.eq.s32.totalorder %s9, 0
    %p111 = por %p109, %p110
    %p112 = scmp.ne.s32.totalorder %s101, %s104
    %p113 = scmp.eq.s32.totalorder %s14, 1
    %p114 = por %p112, %p113
    %p115 = scmp.ne.s32.totalorder %s104, %s105
    %p116 = scmp.eq.s32.totalorder %s14, 0
    %p117 = por %p115, %p116
    %p118 = scmp.ne.s32.totalorder %s104, %s105
    %p119 = scmp.eq.s32.totalorder %s15, 1
    %p120 = por %p118, %p119
    %p122 = scmp.ne.s32.totalorder %s105, %s121
    %p123 = scmp.eq.s32.totalorder %s15, 0
    %p124 = por %p122, %p123
    %p125 = scmp.le.s32.totalorder 1, %s9
    %p126 = scmp.lt.s32.totalorder %s9, 3
    %p127 = pnand %p125, %p126
    %p128 = pneg %p127
    // Predicated region
    $region9: #{_lambda_.53} parent=5 // pred_check
      _
    $region10: #{_lambda_.53} parent=5 // pred_check_branch
      %130 = sbr.rel (%p127) target = $region12
    $region11: #{_lambda_.53} parent=5 // pred_region
      %s131 = ssub.s32 %s9, 1
      // Predicated region
      $region13: #{_lambda_.53} parent=11 // pred_check
        %p132 = pneg %p68
      $region14: #{_lambda_.53} parent=11 // pred_check_branch
        %134 = sbr.rel (%p132) target = $region16
      $region15: #{_lambda_.53} parent=11 // pred_region
        _
      $region16: #{_lambda_.53} parent=11 // pred_fallthru
        _
      // Predicated region
      $region17: #{_lambda_.53} parent=11 // pred_check
        %p135 = pneg %p89
      $region18: #{_lambda_.53} parent=11 // pred_check_branch
        %137 = sbr.rel (%p135) target = $region20
      $region19: #{_lambda_.53} parent=11 // pred_region
        _
      $region20: #{_lambda_.53} parent=11 // pred_fallthru
        _
    $region12: #{_lambda_.53} parent=5 // pred_fallthru
      _
    %p138 = scmp.lt.s32.totalorder %s9, 2
    // Predicated region
    $region21: #{_lambda_.53} parent=5 // pred_check
      %p139 = pneg %p138
    $region22: #{_lambda_.53} parent=5 // pred_check_branch
      %141 = sbr.rel (%p139) target = $region24
    $region23: #{_lambda_.53} parent=5 // pred_region
      // Predicated region
      $region25: #{_lambda_.53} parent=23 // pred_check
        %p142 = pneg %p41
      $region26: #{_lambda_.53} parent=23 // pred_check_branch
        %144 = sbr.rel (%p142) target = $region28
      $region27: #{_lambda_.53} parent=23 // pred_region
        %p145 = scmp.lt.s32.totalorder %s16, 1
        %s146 = scalar_select %p145, %s16, 1
        %s147 = smul.addr %s146, 4
        %s148 = scalar_lea.vmem %s0, %s147
      $region28: #{_lambda_.53} parent=23 // pred_fallthru
        _
    $region24: #{_lambda_.53} parent=5 // pred_fallthru
      _
    %p149 = scmp.le.s32.totalorder 1, %s9
    %p150 = scmp.lt.s32.totalorder %s9, 3
    %p151 = pnand %p149, %p150
    %p152 = pneg %p151
    // Predicated region
    $region29: #{_lambda_.53} parent=5 // pred_check
      _
    $region30: #{_lambda_.53} parent=5 // pred_check_branch
      %154 = sbr.rel (%p151) target = $region32
    $region31: #{_lambda_.53} parent=5 // pred_region
      %s155 = ssub.s32 %s9, 1
      %p156 = scmp.lt.s32.totalorder %s18, 1
      %s157 = scalar_select %p156, %s18, 1
      %s158 = smul.addr %s157, 4
      %s159 = scalar_lea.vmem %s0, %s158
      %p160 = pneg %p47
      %p161 = pneg %p44
      %p162 = pneg %p68
      %p163 = pneg %p65
      %p164 = pneg %p89
      %p165 = pneg %p86
      %p166 = pneg %p117
      %p167 = pneg %p114
      %p168 = scmp.lt.s32.totalorder %s18, 1
      %s169 = scalar_select %p168, %s18, 1
      %p170 = scmp.lt.s32.totalorder %s19, 0
      %s171 = scalar_select %p170, %s19, 0
      %s172 = sadd.s32 %s171, %s169
      %s173 = smul.addr %s172, 4
      %s174 = scalar_lea.vmem %s3, %s173
      %p175 = scmp.lt.s32.totalorder %s18, 1
      %s176 = scalar_select %p175, %s18, 1
      %s177 = smul.addr %s176, 4
      %s178 = scalar_lea.vmem %s0, %s177
      %p179 = scmp.lt.s32.totalorder %s18, 1
      %s180 = scalar_select %p179, %s18, 1
      %p181 = scmp.lt.s32.totalorder %s19, 0
      %s182 = scalar_select %p181, %s19, 0
      %s183 = sadd.s32 %s182, %s180
      %s184 = smul.addr %s183, 4
      %s185 = scalar_lea.vmem %s3, %s184
      %v187 = vld [vmem:[%s178] sm:$0xf]
      %v189 = vunpack.c.l.b16 %v187
      %v190 = vpack.c.b16 %v189, %v189
      %191 = vrot.lane.b32.xlu0 %v190, 127
      %v192 = vpop.permute.xlu0 %191
      %193 = vrot.lane.b32.xlu0 %v190, 126
      %v194 = vpop.permute.xlu0 %193
      %195 = vrot.lane.b32.xlu0 %v190, 125
      %v196 = vpop.permute.xlu0 %195
      %197 = vrot.lane.b32.xlu0 %v190, 124
      %v198 = vpop.permute.xlu0 %197
      %vm199 = vcmask 1043456
      %v202 = vsel %vm199, %v187, %v192
      %v206 = vsel %vm199, %v194, %v196
      %v208 = vld [vmem:[%s1] sm:$0xf]
      %v209 = vld [vmem:[%s2] sm:$0xff]
      %211 = vset.pattern.permute.xlu0 0
      %212 = vperm.xlu0 %211, %v209
      %v213 = vpop.permute.xlu0 %212
      %vm215 = vcmask 326656
      %v217 = vsel %vm215, %v208, 0
      %v220 = vsel %vm199, %v198, 0
      %222 = vmatprep.subr.bf16.mxu0 0
      %223 = vmatpush1.bf16.msra.mxu0 %v202
      %224 = vmatprep.subr.bf16.mxu0 0
      %225 = vmatpush1.bf16.msra.mxu0 %v206
      %226 = vmatprep.subr.bf16.mxu0 0
      %227 = vmatpush1.bf16.msra.mxu0 %v220
      %228 = vmatprep.subr.bf16.mxu0 0
      %229 = vmatpush1.bf16.msra.mxu0 0
      %230 = vmatprep.subr.bf16.mxu0 0
      %231 = vmatpush1.bf16.msra.mxu0 0
      %232 = vmatprep.subr.bf16.mxu0 0
      %233 = vmatpush1.bf16.msra.mxu0 0
      %234 = vmatprep.subr.bf16.mxu0 0
      %235 = vmatpush1.bf16.msra.mxu0 0
      %236 = vmatprep.subr.bf16.mxu0 0
      %237 = vmatpush1.bf16.msra.mxu0 0
      %238 = vmatprep.subr.bf16.mxu0 0
      %239 = vmatpush1.bf16.msra.mxu0 0
      %240 = vmatprep.subr.bf16.mxu0 0
      %241 = vmatpush1.bf16.msra.mxu0 0
      %242 = vmatprep.subr.bf16.mxu0 0
      %243 = vmatpush1.bf16.msra.mxu0 0
      %244 = vmatprep.subr.bf16.mxu0 0
      %245 = vmatpush1.bf16.msra.mxu0 0
      %246 = vmatprep.subr.bf16.mxu0 0
      %247 = vmatpush1.bf16.msra.mxu0 0
      %248 = vmatprep.subr.bf16.mxu0 0
      %249 = vmatpush1.bf16.msra.mxu0 0
      %250 = vmatprep.subr.bf16.mxu0 0
      %251 = vmatpush1.bf16.msra.mxu0 0
      %252 = vmatprep.subr.bf16.mxu0 0
      %253 = vmatpush1.bf16.msra.mxu0 0
      %254 = vmatprep.mubr.bf16.mxu0 0
      %255 = vmatmul.mubr.bf16.gmra.mrb[0].mxu0 %v217
      %v256 = vpop.f32.mrb[0].mxu0
      %v257 = vadd.f32 %v213, %v256
      %v258 = vpop.f32.mrb[0].mxu0
      %v259 = vpop.f32.mrb[0].mxu0
      %v260 = vpop.f32.mrb[0].mxu0
      %261 = vdwg.mxu0
      %v262 = vmul.f32 %v257, 0.1
      %v263 = vmax.f32 %v257, %v262
      %v264 = vpack.c.bf16 %v263, %v263
      %vm265 = vcmask 35840
      %266 = vst.msk [vmem:[%s185] sm:$0xf] %vm265, %v264
      %p267 = scmp.lt.s32.totalorder %s18, 1
      %s268 = scalar_select %p267, %s18, 1
      %p269 = scmp.lt.s32.totalorder %s19, 0
      %s270 = scalar_select %p269, %s19, 0
      %s271 = sadd.s32 %s270, %s268
      %s272 = smul.addr %s271, 4
      %s273 = scalar_lea.vmem %s3, %s272
      // Predicated region
      $region33: #{_lambda_.53} parent=31 // pred_check
        %p274 = pneg %p114
      $region34: #{_lambda_.53} parent=31 // pred_check_branch
        %276 = sbr.rel (%p274) target = $region36
      $region35: #{_lambda_.53} parent=31 // pred_region
        _
      $region36: #{_lambda_.53} parent=31 // pred_fallthru
        _
    $region32: #{_lambda_.53} parent=5 // pred_fallthru
      _
    %p277 = scmp.le.s32.totalorder 2, %s9
    // Predicated region
    $region37: #{_lambda_.53} parent=5 // pred_check
      %p278 = pneg %p277
    $region38: #{_lambda_.53} parent=5 // pred_check_branch
      %280 = sbr.rel (%p278) target = $region40
    $region39: #{_lambda_.53} parent=5 // pred_region
      %s281 = ssub.s32 %s9, 2
      // Predicated region
      $region41: #{_lambda_.53} parent=39 // pred_check
        %p282 = pneg %p120
      $region42: #{_lambda_.53} parent=39 // pred_check_branch
        %284 = sbr.rel (%p282) target = $region44
      $region43: #{_lambda_.53} parent=39 // pred_region
        %p285 = scmp.lt.s32.totalorder %s20, 1
        %s286 = scalar_select %p285, %s20, 1
        %p287 = scmp.lt.s32.totalorder %s21, 0
        %s288 = scalar_select %p287, %s21, 0
        %s289 = sadd.s32 %s288, %s286
        %s290 = smul.addr %s289, 4
        %s291 = scalar_lea.vmem %s3, %s290
      $region44: #{_lambda_.53} parent=39 // pred_fallthru
        _
    $region40: #{_lambda_.53} parent=5 // pred_fallthru
      _
  $region6: #{_lambda_.53} parent=0 // loop_footer
    %s13 = sadd.s32 1, %s9
  $region7: #{_lambda_.53} parent=0 // loop_footer_branch
    %8 = sbr.rel target = $region3
  $region8: #{_lambda_.53} parent=0 // loop_exit
    _

// kernel: _lambda_.52
$region0: #{_lambda_.52}
  #allocation0 [shape = 'u32[]', space=smem, size = 0x4, offset = 0x4, fixed_abs, tag = 'smem constant byte address 0x4 - core index']
  #allocation1 [shape = 'u32[144,128]{1,0:T(1,128)}', space=vmem, size = 0x12000, scoped, tag = 'internal scratch']
  %s0 = inlined_call_operand.vmem [shape: bf16[2,1,23], index: 0, kind: input, shape index: {}]
  %s1 = inlined_call_operand.vmem [shape: bf16[4,15], index: 1, kind: input, shape index: {}]
  %s2 = inlined_call_operand.vmem [shape: f32[4,1], index: 2, kind: input, shape index: {}]
  %s3 = inlined_call_operand.vmem [shape: bf16[2,4,9], index: 3, kind: output, shape index: {}]
  %s4 = sld [smem:[#allocation0]]
  $region45: #{_lambda_.52} parent=0
    _
  %s6 = ssub.s32 1, %s4
  %s7 = scalar_select 0, %s6, %s4
  loop: start=0, step=1, limit=4
  $region2: #{_lambda_.52} parent=0 // loop_pre_header
    _
  $region3: #{_lambda_.52} parent=0 // loop_header
    %s9 = sphi 0, %s13
    %p10 = scmp.ge.s32.totalorder %s9, 4
    %s16 = sphi 0, %s28
    %s17 = sphi 0, %s24
    %s18 = sphi 0, %s16
    %s19 = sphi 0, %s17
    %s20 = sphi 0, %s18
    %s21 = sphi 0, %s19
    %s31 = sphi 0, %s33
    %s34 = sphi 0, %s31
    %s35 = sphi 0, %s34
    %s51 = sphi 0, %s35
    %s55 = sphi 0, %s55
    %s57 = sphi 0, %s55
    %s58 = sphi 0, %s57
    %s72 = sphi 0, %s58
    %s76 = sphi 0, %s76
    %s78 = sphi 0, %s76
    %s79 = sphi 0, %s78
    %s93 = sphi 0, %s79
    %s101 = sphi 0, %s103
    %s104 = sphi 0, %s101
    %s105 = sphi 0, %s104
    %s121 = sphi 0, %s105
  $region4: #{_lambda_.52} parent=0 // loop_header_branch
    %12 = sbr.rel (%p10) target = $region8
  $region5: #{_lambda_.52} parent=0 // loop_body
    %s14 = ssub.s32 %s9, 1
    %s15 = ssub.s32 %s9, 2
    %s22 = sadd.s32 1, %s17
    %p23 = scmp.ge.s32.totalorder %s22, 1
    %s24 = scalar_select %p23, 0, %s22
    %s25 = sadd.s32 1, %s16
    %s26 = scalar_select %p23, %s25, %s16
    %p27 = scmp.ge.s32.totalorder %s26, 2
    %s28 = scalar_select %p27, 0, %s26
    %s29 = ssub.s32 %s16, %s28
    %p30 = scmp.eq.s32.totalorder %s29, 0
    %s32 = sadd.s32 %s31, 1
    %s33 = scalar_select %p30, %s31, %s32
    %p36 = pneg %p30
    %p37 = scmp.eq.s32.totalorder %s9, 1
    %p38 = por %p36, %p37
    %p39 = scmp.ne.s32.totalorder %s31, %s34
    %p40 = scmp.eq.s32.totalorder %s9, 0
    %p41 = por %p39, %p40
    %p42 = scmp.ne.s32.totalorder %s31, %s34
    %p43 = scmp.eq.s32.totalorder %s14, 1
    %p44 = por %p42, %p43
    %p45 = scmp.ne.s32.totalorder %s34, %s35
    %p46 = scmp.eq.s32.totalorder %s14, 0
    %p47 = por %p45, %p46
    %p48 = scmp.ne.s32.totalorder %s34, %s35
    %p49 = scmp.eq.s32.totalorder %s15, 1
    %p50 = por %p48, %p49
    %p52 = scmp.ne.s32.totalorder %s35, %s51
    %p53 = scmp.eq.s32.totalorder %s15, 0
    %p54 = por %p52, %p53
    %s56 = sadd.s32 %s55, 1
    %p59 = scmp.eq.s32.totalorder %s9, 1
    %p60 = scmp.ne.s32.totalorder %s55, %s57
    %p61 = scmp.eq.s32.totalorder %s9, 0
    %p62 = por %p60, %p61
    %p63 = scmp.ne.s32.totalorder %s55, %s57
    %p64 = scmp.eq.s32.totalorder %s14, 1
    %p65 = por %p63, %p64
    %p66 = scmp.ne.s32.totalorder %s57, %s58
    %p67 = scmp.eq.s32.totalorder %s14, 0
    %p68 = por %p66, %p67
    %p69 = scmp.ne.s32.totalorder %s57, %s58
    %p70 = scmp.eq.s32.totalorder %s15, 1
    %p71 = por %p69, %p70
    %p73 = scmp.ne.s32.totalorder %s58, %s72
    %p74 = scmp.eq.s32.totalorder %s15, 0
    %p75 = por %p73, %p74
    %s77 = sadd.s32 %s76, 1
    %p80 = scmp.eq.s32.totalorder %s9, 1
    %p81 = scmp.ne.s32.totalorder %s76, %s78
    %p82 = scmp.eq.s32.totalorder %s9, 0
    %p83 = por %p81, %p82
    %p84 = scmp.ne.s32.totalorder %s76, %s78
    %p85 = scmp.eq.s32.totalorder %s14, 1
    %p86 = por %p84, %p85
    %p87 = scmp.ne.s32.totalorder %s78, %s79
    %p88 = scmp.eq.s32.totalorder %s14, 0
    %p89 = por %p87, %p88
    %p90 = scmp.ne.s32.totalorder %s78, %s79
    %p91 = scmp.eq.s32.totalorder %s15, 1
    %p92 = por %p90, %p91
    %p94 = scmp.ne.s32.totalorder %s79, %s93
    %p95 = scmp.eq.s32.totalorder %s15, 0
    %p96 = por %p94, %p95
    %s97 = ssub.s32 %s16, %s28
    %s98 = ssub.s32 %s17, %s24
    %s99 = sor.u32 %s97, %s98
    %p100 = scmp.eq.s32.totalorder %s99, 0
    %s102 = sadd.s32 %s101, 1
    %s103 = scalar_select %p100, %s101, %s102
    %p106 = pneg %p100
    %p107 = scmp.eq.s32.totalorder %s9, 1
    %p108 = por %p106, %p107
    %p109 = scmp.ne.s32.totalorder %s101, %s104
    %p110 = scmp.eq.s32.totalorder %s9, 0
    %p111 = por %p109, %p110
    %p112 = scmp.ne.s32.totalorder %s101, %s104
    %p113 = scmp.eq.s32.totalorder %s14, 1
    %p114 = por %p112, %p113
    %p115 = scmp.ne.s32.totalorder %s104, %s105
    %p116 = scmp.eq.s32.totalorder %s14, 0
    %p117 = por %p115, %p116
    %p118 = scmp.ne.s32.totalorder %s104, %s105
    %p119 = scmp.eq.s32.totalorder %s15, 1
    %p120 = por %p118, %p119
    %p122 = scmp.ne.s32.totalorder %s105, %s121
    %p123 = scmp.eq.s32.totalorder %s15, 0
    %p124 = por %p122, %p123
    %p125 = scmp.le.s32.totalorder 1, %s9
    %p126 = scmp.lt.s32.totalorder %s9, 3
    %p127 = pnand %p125, %p126
    %p128 = pneg %p127
    // Predicated region
    $region9: #{_lambda_.52} parent=5 // pred_check
      _
    $region10: #{_lambda_.52} parent=5 // pred_check_branch
      %130 = sbr.rel (%p127) target = $region12
    $region11: #{_lambda_.52} parent=5 // pred_region
      %s131 = ssub.s32 %s9, 1
      // Predicated region
      $region13: #{_lambda_.52} parent=11 // pred_check
        %p132 = pneg %p68
      $region14: #{_lambda_.52} parent=11 // pred_check_branch
        %134 = sbr.rel (%p132) target = $region16
      $region15: #{_lambda_.52} parent=11 // pred_region
        _
      $region16: #{_lambda_.52} parent=11 // pred_fallthru
        _
      // Predicated region
      $region17: #{_lambda_.52} parent=11 // pred_check
        %p135 = pneg %p89
      $region18: #{_lambda_.52} parent=11 // pred_check_branch
        %137 = sbr.rel (%p135) target = $region20
      $region19: #{_lambda_.52} parent=11 // pred_region
        _
      $region20: #{_lambda_.52} parent=11 // pred_fallthru
        _
    $region12: #{_lambda_.52} parent=5 // pred_fallthru
      _
    %p138 = scmp.lt.s32.totalorder %s9, 2
    // Predicated region
    $region21: #{_lambda_.52} parent=5 // pred_check
      %p139 = pneg %p138
    $region22: #{_lambda_.52} parent=5 // pred_check_branch
      %141 = sbr.rel (%p139) target = $region24
    $region23: #{_lambda_.52} parent=5 // pred_region
      // Predicated region
      $region25: #{_lambda_.52} parent=23 // pred_check
        %p142 = pneg %p41
      $region26: #{_lambda_.52} parent=23 // pred_check_branch
        %144 = sbr.rel (%p142) target = $region28
      $region27: #{_lambda_.52} parent=23 // pred_region
        %p145 = scmp.lt.s32.totalorder %s16, 1
        %s146 = scalar_select %p145, %s16, 1
        %s147 = scalar_lea.vmem %s0, %s146
      $region28: #{_lambda_.52} parent=23 // pred_fallthru
        _
    $region24: #{_lambda_.52} parent=5 // pred_fallthru
      _
    %p148 = scmp.le.s32.totalorder 1, %s9
    %p149 = scmp.lt.s32.totalorder %s9, 3
    %p150 = pnand %p148, %p149
    %p151 = pneg %p150
    // Predicated region
    $region29: #{_lambda_.52} parent=5 // pred_check
      _
    $region30: #{_lambda_.52} parent=5 // pred_check_branch
      %153 = sbr.rel (%p150) target = $region32
    $region31: #{_lambda_.52} parent=5 // pred_region
      %s154 = ssub.s32 %s9, 1
      %p155 = scmp.lt.s32.totalorder %s18, 1
      %s156 = scalar_select %p155, %s18, 1
      %s157 = scalar_lea.vmem %s0, %s156
      %p158 = pneg %p47
      %p159 = pneg %p44
      %p160 = pneg %p68
      %p161 = pneg %p65
      %p162 = pneg %p89
      %p163 = pneg %p86
      %p164 = pneg %p117
      %p165 = pneg %p114
      %p166 = scmp.lt.s32.totalorder %s18, 1
      %s167 = scalar_select %p166, %s18, 1
      %p168 = scmp.lt.s32.totalorder %s19, 0
      %s169 = scalar_select %p168, %s19, 0
      %s170 = sadd.s32 %s169, %s167
      %s171 = smul.addr %s170, 2
      %s172 = scalar_lea.vmem %s3, %s171
      %p173 = scmp.lt.s32.totalorder %s18, 1
      %s174 = scalar_select %p173, %s18, 1
      %s175 = scalar_lea.vmem %s0, %s174
      %p176 = scmp.lt.s32.totalorder %s18, 1
      %s177 = scalar_select %p176, %s18, 1
      %p178 = scmp.lt.s32.totalorder %s19, 0
      %s179 = scalar_select %p178, %s19, 0
      %s180 = sadd.s32 %s179, %s177
      %s181 = smul.addr %s180, 2
      %s182 = scalar_lea.vmem %s3, %s181
      %v184 = vld [vmem:[%s175] sm:$0x1]
      %v187 = vunpack.c.l.s4 1966171168
      %v188 = vunpack.c.0.s8 %v187
      %v189 = vlaneseq
      %v190 = vshrl.u32 %v189, 7
      %v191 = vsub.s32 %v188, %v190
      %v192 = vrot.slane %v184, %v191
      %v194 = vunpack.c.l.s4 1966171168
      %v195 = vunpack.c.0.s8 %v194
      %v196 = vlaneseq
      %v197 = vshrl.u32 %v196, 7
      %v198 = vsub.s32 %v195, %v197
      %v199 = vrot.slane %v192, %v198
      %v201 = vshll.u32 %v199, 16
      %203 = vrot.lane.b32.xlu0 %v201, 127
      %v204 = vpop.permute.xlu0 %203
      %v206 = vcombine.low %v184, %v184
      %v208 = vunpack.c.l.s4 1966171168
      %v209 = vunpack.c.0.s8 %v208
      %v210 = vlaneseq
      %v211 = vshrl.u32 %v210, 7
      %v212 = vsub.s32 %v209, %v211
      %v213 = vrot.slane %v206, %v212
      %v215 = vunpack.c.l.s4 1966171168
      %v216 = vunpack.c.0.s8 %v215
      %v217 = vlaneseq
      %v218 = vshrl.u32 %v217, 7
      %v219 = vsub.s32 %v216, %v218
      %v220 = vrot.slane %v213, %v219
      %221 = vrot.lane.b32.xlu0 %v220, 126
      %v222 = vpop.permute.xlu0 %221
      %v223 = vrot.slane %v201, 7
      %224 = vrot.lane.b32.xlu0 %v223, 125
      %v225 = vpop.permute.xlu0 %224
      %v227 = vcombine.low %v192, %v192
      %v229 = vunpack.c.l.s4 1966171168
      %v230 = vunpack.c.0.s8 %v229
      %v231 = vlaneseq
      %v232 = vshrl.u32 %v231, 7
      %v233 = vsub.s32 %v230, %v232
      %v234 = vrot.slane %v227, %v233
      %235 = vrot.lane.b32.xlu0 %v234, 124
      %v236 = vpop.permute.xlu0 %235
      %v237 = vrot.slane %v201, 6
      %238 = vrot.lane.b32.xlu0 %v237, 123
      %v239 = vpop.permute.xlu0 %238
      %v241 = vcombine.low %v213, %v213
      %v243 = vunpack.c.l.s4 1966171168
      %v244 = vunpack.c.0.s8 %v243
      %v245 = vlaneseq
      %v246 = vshrl.u32 %v245, 7
      %v247 = vsub.s32 %v244, %v246
      %v248 = vrot.slane %v241, %v247
      %249 = vrot.lane.b32.xlu0 %v248, 122
      %v250 = vpop.permute.xlu0 %249
      %v251 = vrot.slane %v201, 5
      %252 = vrot.lane.b32.xlu0 %v251, 121
      %v253 = vpop.permute.xlu0 %252
      %v255 = vcombine.low %v199, %v199
      %256 = vrot.lane.b32.xlu0 %v255, 120
      %v257 = vpop.permute.xlu0 %256
      %v258 = vrot.slane %v201, 4
      %259 = vrot.lane.b32.xlu0 %v258, 119
      %v260 = vpop.permute.xlu0 %259
      %v262 = vcombine.low %v220, %v220
      %263 = vrot.lane.b32.xlu0 %v262, 118
      %v264 = vpop.permute.xlu0 %263
      %v265 = vrot.slane %v201, 3
      %266 = vrot.lane.b32.xlu0 %v265, 117
      %v267 = vpop.permute.xlu0 %266
      %v269 = vcombine.low %v234, %v234
      %270 = vrot.lane.b32.xlu0 %v269, 116
      %v271 = vpop.permute.xlu0 %270
      %v272 = vrot.slane %v201, 2
      %273 = vrot.lane.b32.xlu0 %v272, 115
      %v274 = vpop.permute.xlu0 %273
      %v276 = vcombine.low %v248, %v248
      %277 = vrot.lane.b32.xlu0 %v276, 114
      %v278 = vpop.permute.xlu0 %277
      %vm279 = vcmask 1040384
      %vm280 = vsmask.f32 256
      %vm281 = vmand %vm279, %vm280
      %v282 = vsel %vm281, %v184, %v204
      %vm283 = vcmask 1040384
      %v286 = vsel %vm283, %v282, %v222
      %vm288 = vcmask 1041408
      %vm289 = vsmask.f32 1280
      %vm290 = vmand %vm288, %vm289
      %v291 = vsel %vm290, %v286, %v225
      %vm292 = vcmask 1041408
      %v295 = vsel %vm292, %v291, %v236
      %vm297 = vcmask 1042432
      %vm298 = vsmask.f32 2304
      %vm299 = vmand %vm297, %vm298
      %v300 = vsel %vm299, %v295, %v239
      %vm301 = vcmask 1042432
      %v304 = vsel %vm301, %v300, %v250
      %vm306 = vcmask 1043456
      %vm307 = vsmask.f32 3328
      %vm308 = vmand %vm306, %vm307
      %v309 = vsel %vm308, %v304, %v253
      %vm310 = vcmask 1043456
      %v313 = vsel %vm310, %v309, %v257
      %vm315 = vcmask 1044480
      %vm316 = vsmask.f32 4352
      %vm317 = vmand %vm315, %vm316
      %v318 = vsel %vm317, %v313, %v260
      %vm319 = vcmask 1044480
      %v322 = vsel %vm319, %v318, %v264
      %vm324 = vcmask 1045504
      %vm325 = vsmask.f32 5376
      %vm326 = vmand %vm324, %vm325
      %v327 = vsel %vm326, %v322, %v267
      %vm328 = vcmask 1045504
      %v331 = vsel %vm328, %v327, %v271
      %vm333 = vcmask 1046528
      %vm334 = vsmask.f32 6400
      %vm335 = vmand %vm333, %vm334
      %v336 = vsel %vm335, %v331, %v274
      %vm337 = vcmask 1046528
      %v340 = vsel %vm337, %v336, %v278
      %v341 = vld [vmem:[%s1] sm:$0x3]
      %v342 = vld [vmem:[%s2] sm:$0xf]
      %344 = vset.pattern.permute.xlu0 0
      %345 = vperm.xlu0 %344, %v342
      %v346 = vpop.permute.xlu0 %345
      %vm348 = vcmask 121856
      %v350 = vsel %vm348, %v341, 0
      %vm352 = vcmask 1047552
      %v353 = vsel %vm337, 4294967295, 65535
      %v354 = vsel %vm352, %v353, 0
      %v355 = vand.u32 %v340, %v354
      %357 = vmatprep.subr.bf16.mxu0 0
      %358 = vmatpush1.bf16.msra.mxu0 %v355
      %359 = vmatprep.subr.bf16.mxu0 0
      %360 = vmatpush1.bf16.msra.mxu0 0
      %361 = vmatprep.subr.bf16.mxu0 0
      %362 = vmatpush1.bf16.msra.mxu0 0
      %363 = vmatprep.subr.bf16.mxu0 0
      %364 = vmatpush1.bf16.msra.mxu0 0
      %365 = vmatprep.subr.bf16.mxu0 0
      %366 = vmatpush1.bf16.msra.mxu0 0
      %367 = vmatprep.subr.bf16.mxu0 0
      %368 = vmatpush1.bf16.msra.mxu0 0
      %369 = vmatprep.subr.bf16.mxu0 0
      %370 = vmatpush1.bf16.msra.mxu0 0
      %371 = vmatprep.subr.bf16.mxu0 0
      %372 = vmatpush1.bf16.msra.mxu0 0
      %373 = vmatprep.subr.bf16.mxu0 0
      %374 = vmatpush1.bf16.msra.mxu0 0
      %375 = vmatprep.subr.bf16.mxu0 0
      %376 = vmatpush1.bf16.msra.mxu0 0
      %377 = vmatprep.subr.bf16.mxu0 0
      %378 = vmatpush1.bf16.msra.mxu0 0
      %379 = vmatprep.subr.bf16.mxu0 0
      %380 = vmatpush1.bf16.msra.mxu0 0
      %381 = vmatprep.subr.bf16.mxu0 0
      %382 = vmatpush1.bf16.msra.mxu0 0
      %383 = vmatprep.subr.bf16.mxu0 0
      %384 = vmatpush1.bf16.msra.mxu0 0
      %385 = vmatprep.subr.bf16.mxu0 0
      %386 = vmatpush1.bf16.msra.mxu0 0
      %387 = vmatprep.subr.bf16.mxu0 0
      %388 = vmatpush1.bf16.msra.mxu0 0
      %389 = vmatprep.mubr.bf16.mxu0 0
      %390 = vmatmul.mubr.bf16.gmra.mrb[0].mxu0 %v350
      %v391 = vpop.f32.mrb[0].mxu0
      %v392 = vadd.f32 %v346, %v391
      %v393 = vpop.f32.mrb[0].mxu0
      %v394 = vpop.f32.mrb[0].mxu0
      %v395 = vpop.f32.mrb[0].mxu0
      %396 = vdwg.mxu0
      %v397 = vmul.f32 %v392, 0.1
      %v398 = vmax.f32 %v392, %v397
      %v399 = vpack.c.bf16 %v398, %v398
      %vm400 = vcmask 66560
      %401 = vst.msk [vmem:[%s182] sm:$0x3] %vm400, %v399
      %p402 = scmp.lt.s32.totalorder %s18, 1
      %s403 = scalar_select %p402, %s18, 1
      %p404 = scmp.lt.s32.totalorder %s19, 0
      %s405 = scalar_select %p404, %s19, 0
      %s406 = sadd.s32 %s405, %s403
      %s407 = smul.addr %s406, 2
      %s408 = scalar_lea.vmem %s3, %s407
      // Predicated region
      $region33: #{_lambda_.52} parent=31 // pred_check
        %p409 = pneg %p114
      $region34: #{_lambda_.52} parent=31 // pred_check_branch
        %411 = sbr.rel (%p409) target = $region36
      $region35: #{_lambda_.52} parent=31 // pred_region
        _
      $region36: #{_lambda_.52} parent=31 // pred_fallthru
        _
    $region32: #{_lambda_.52} parent=5 // pred_fallthru
      _
    %p412 = scmp.le.s32.totalorder 2, %s9
    // Predicated region
    $region37: #{_lambda_.52} parent=5 // pred_check
      %p413 = pneg %p412
    $region38: #{_lambda_.52} parent=5 // pred_check_branch
      %415 = sbr.rel (%p413) target = $region40
    $region39: #{_lambda_.52} parent=5 // pred_region
      %s416 = ssub.s32 %s9, 2
      // Predicated region
      $region41: #{_lambda_.52} parent=39 // pred_check
        %p417 = pneg %p120
      $region42: #{_lambda_.52} parent=39 // pred_check_branch
        %419 = sbr.rel (%p417) target = $region44
      $region43: #{_lambda_.52} parent=39 // pred_region
        %p420 = scmp.lt.s32.totalorder %s20, 1
        %s421 = scalar_select %p420, %s20, 1
        %p422 = scmp.lt.s32.totalorder %s21, 0
        %s423 = scalar_select %p422, %s21, 0
        %s424 = sadd.s32 %s423, %s421
        %s425 = smul.addr %s424, 2
        %s426 = scalar_lea.vmem %s3, %s425
      $region44: #{_lambda_.52} parent=39 // pred_fallthru
        _
    $region40: #{_lambda_.52} parent=5 // pred_fallthru
      _
  $region6: #{_lambda_.52} parent=0 // loop_footer
    %s13 = sadd.s32 1, %s9
  $region7: #{_lambda_.52} parent=0 // loop_footer_branch
    %8 = sbr.rel target = $region3
  $region8: #{_lambda_.52} parent=0 // loop_exit
    _

</llo_original>
